<compile_context>
chip_gen: v6e
topology: v6e:2x2x1
jax: 0.10.0
libtpu: 0.0.40
codegen_flags: <defaults>
</compile_context>

<pallas_src>
import functools

import numpy as np
import jax
import jax.numpy as jnp
from jax.experimental import pallas as pl
from jax.experimental.pallas import tpu as pltpu

_EPS = 1e-5


# ---------------------------------------------------------------------------
# In-kernel helpers (operate on traced values / refs)
# ---------------------------------------------------------------------------

def _conv_im2col(zp, w_ref, ks, wp, side):
    """'same' ks x ks conv of a padded, row-flattened image held as (Cin, wp*wp).

    Tap (kh, kw) of the conv is a constant lane offset kh*wp + kw of the
    flattened padded image, so the (ks*ks*Cin, next) im2col is built from 49
    static lane-slices + sublane concatenation, followed by ONE bf16 MXU matmul
    with f32 accumulation.  Output columns are indexed q = h*wp + w; columns
    with w >= side are don't-care garbage that the following 0/1 "compact"
    matmul drops.
    """
    next_len = (side - 1) * wp + side
    row_groups = []
    for kh in range(ks):
        base = kh * wp
        taps = [zp[:, base + kw: base + kw + next_len] for kw in range(ks)]
        row_groups.append(jnp.concatenate(taps, axis=0))
    im2col = jnp.concatenate(row_groups, axis=0).astype(jnp.bfloat16)
    return jnp.dot(w_ref[...], im2col, preferred_element_type=jnp.float32)


def _bn_lrelu(xs, g_ref, b_ref, count, slope=None, mask=None):
    """BatchNorm (batch statistics, biased variance, eps=1e-5) over a list of
    per-image (C, spatial) tiles, with optional fused LeakyReLU.

    `mask` marks structurally valid lanes for the first BN whose lane layout is
    channel-blocked (inputs are exactly zero outside the mask)."""
    inv_n = 1.0 / float(count)
    mu = sum(jnp.sum(x, axis=1, keepdims=True) for x in xs) * inv_n        # (C,1)
    if mask is None:
        cs = [x - mu for x in xs]
        var = sum(jnp.sum(c * c, axis=1, keepdims=True) for c in cs) * inv_n
    else:
        # inputs are zero outside `mask`, so plain sums give E[x] and E[x^2]
        ex2 = sum(jnp.sum(x * x, axis=1, keepdims=True) for x in xs) * inv_n
        var = ex2 - mu * mu
        cs = [x - mu for x in xs]
    scale = jax.lax.rsqrt(var + _EPS) * g_ref[...]                          # (C,1)
    ys = [c * scale + b_ref[...] for c in cs]
    if slope is not None:
        ys = [jnp.where(y >= 0.0, y, slope * y) for y in ys]
    if mask is not None:
        ys = [y * mask for y in ys]
    return ys


# ---------------------------------------------------------------------------
# The fused kernel
# ---------------------------------------------------------------------------

def _super_generator_kernel(
    z_ref, w1_ref, b1_ref, blk_ref,
    g1_ref, be1_ref, g2_ref, be2_ref, g3_ref, be3_ref,
    up1_ref, cmp1_ref, up2_ref, cmp2_ref, pad3_ref,
    wc1_ref, wc2_ref, wc3_ref,
    o_ref,
    *, ks, side0, side1, side2):
    B = z_ref.shape[0]
    wp1 = side1 + ks - 1
    wp2 = side2 + ks - 1

    # ---- Linear: (B, nz) @ (nz, C*s0*s0) + bias  (lane-dense output) ---------
    lin = jnp.dot(z_ref[...], w1_ref[...], preferred_element_type=jnp.float32)
    lin = lin + b1_ref[...]                                    # (B, C*s0*s0)

    # Spread each image row into channel-major form: row c of `blk` keeps only
    # the 16-column block of channel c (== PyTorch .view(B, C, s0, s0)).
    blk = blk_ref[...]                                         # (C, C*s0*s0)
    xs = [blk * lin[b:b + 1, :] for b in range(B)]             # B x (C, C*s0*s0)

    # ---- BN1 (stats over B*s0*s0 valid lanes per channel) --------------------
    y1 = _bn_lrelu(xs, g1_ref, be1_ref, B * side0 * side0, slope=None, mask=blk)

    # ---- Up2x+pad, conv1, compact, BN2 + LReLU(0.2) ---------------------------
    d1 = []
    for b in range(B):
        zp = jnp.dot(y1[b], up1_ref[...], preferred_element_type=jnp.float32)   # (C, wp1*wp1)
        o1 = _conv_im2col(zp, wc1_ref, ks, wp1, side1)                            # (C, next1)
        d1.append(jnp.dot(o1, cmp1_ref[...], preferred_element_type=jnp.float32))  # (C, side1^2)
    y2 = _bn_lrelu(d1, g2_ref, be2_ref, B * side1 * side1, slope=0.2)

    # ---- Up2x+pad, conv2, compact, BN3 + LReLU(0.2) ---------------------------
    d2 = []
    for b in range(B):
        zp = jnp.dot(y2[b], up2_ref[...], preferred_element_type=jnp.float32)   # (C, wp2*wp2)
        o2 = _conv_im2col(zp, wc2_ref, ks, wp2, side2)                            # (C, next2)
        d2.append(jnp.dot(o2, cmp2_ref[...], preferred_element_type=jnp.float32))  # (C, side2^2)
    y3 = _bn_lrelu(d2, g3_ref, be3_ref, B * side2 * side2, slope=0.2)

    # ---- pad, conv3 (-> nc channels), compact, sigmoid ------------------------
    for b in range(B):
        zp = jnp.dot(y3[b], pad3_ref[...], preferred_element_type=jnp.float32)  # (C, wp2*wp2)
        o3 = _conv_im2col(zp, wc3_ref, ks, wp2, side2)                            # (nc, next2)
        img = jnp.dot(o3, cmp2_ref[...], preferred_element_type=jnp.float32)      # (nc, side2^2)
        o_ref[b] = 1.0 / (1.0 + jnp.exp(-img))                                    # sigmoid


# ---------------------------------------------------------------------------
# Constant 0/1 structural matrices (built once at init, host side)
# ---------------------------------------------------------------------------

def _up_pad_matrix(side_in, ks):
    """Dense (side_in x side_in) row-major image -> 2x nearest-upsampled image
    embedded with a ks//2 zero halo into a row-flattened padded buffer."""
    pad = ks // 2
    wp = 2 * side_in + 2 * pad
    m = np.zeros((side_in * side_in, wp * wp), np.float32)
    for h in range(side_in):
        for w in range(side_in):
            for r in range(2):
                for t in range(2):
                    m[h * side_in + w, (2 * h + r + pad) * wp + (2 * w + t + pad)] = 1.0
    return m


def _pad_matrix(side_in, ks):
    """Dense (side_in x side_in) image -> zero-padded row-flattened buffer."""
    pad = ks // 2
    wp = side_in + 2 * pad
    m = np.zeros((side_in * side_in, wp * wp), np.float32)
    for h in range(side_in):
        for w in range(side_in):
            m[h * side_in + w, (h + pad) * wp + (w + pad)] = 1.0
    return m


def _compact_matrix(side, ks):
    """Drop the garbage lanes of a conv output indexed q = h*wp + w."""
    wp = side + ks - 1
    nxt = (side - 1) * wp + side
    m = np.zeros((nxt, side * side), np.float32)
    for h in range(side):
        for w in range(side):
            m[h * wp + w, h * side + w] = 1.0
    return m


def _block_spread_matrix(c, s):
    """(C, C*s) mask: row c selects columns [c*s, (c+1)*s)."""
    m = np.zeros((c, c * s), np.float32)
    for ci in range(c):
        m[ci, ci * s:(ci + 1) * s] = 1.0
    return m


# ---------------------------------------------------------------------------
# Parameter init (weights are ours; layout plumbing done once here)
# ---------------------------------------------------------------------------

def init_params(key, *, nz, ngf, img_size, nc, ks=7):
    init_size = img_size // 4
    s0 = init_size * init_size
    c = 2 * ngf
    side1, side2 = 2 * init_size, 4 * init_size

    keys = jax.random.split(key, 5)
    w1 = 0.05 * jax.random.normal(keys[0], (nz, c * s0), jnp.float32)
    b1 = 0.01 * jax.random.normal(keys[1], (c * s0,), jnp.float32)
    conv1 = 0.05 * jax.random.normal(keys[2], (ks, ks, c, c), jnp.float32)
    conv2 = 0.05 * jax.random.normal(keys[3], (ks, ks, c, c), jnp.float32)
    conv3 = 0.05 * jax.random.normal(keys[4], (ks, ks, c, nc), jnp.float32)

    def conv_mat(w):  # (KH,KW,Cin,Cout) -> (Cout, KH*KW*Cin), bf16 for the MXU
        kh, kw, ci, co = w.shape
        return jnp.transpose(w, (3, 0, 1, 2)).reshape(co, kh * kw * ci).astype(jnp.bfloat16)

    params = dict(
        w1=w1,
        b1=b1.reshape(1, c * s0),
        blk=jnp.asarray(_block_spread_matrix(c, s0)),
        g1=jnp.ones((c, 1), jnp.float32), be1=jnp.zeros((c, 1), jnp.float32),
        g2=jnp.ones((c, 1), jnp.float32), be2=jnp.zeros((c, 1), jnp.float32),
        g3=jnp.ones((c, 1), jnp.float32), be3=jnp.zeros((c, 1), jnp.float32),
        # upsample/pad/compact matrices; up1 is tiled per channel block because
        # the first activation still has channels flattened into lanes.
        up1=jnp.asarray(np.tile(_up_pad_matrix(init_size, ks), (c, 1))),
        cmp1=jnp.asarray(_compact_matrix(side1, ks)),
        up2=jnp.asarray(_up_pad_matrix(side1, ks)),
        cmp2=jnp.asarray(_compact_matrix(side2, ks)),
        pad3=jnp.asarray(_pad_matrix(side2, ks)),
        wc1=conv_mat(conv1), wc2=conv_mat(conv2), wc3=conv_mat(conv3),
    )
    meta = dict(ks=ks, side0=init_size, side1=side1, side2=side2, c=c, nc=nc)
    return params, meta


# ---------------------------------------------------------------------------
# Forward (single pallas_call, no grid: everything fits easily in VMEM)
# ---------------------------------------------------------------------------

def super_generator_forward(z, params, meta):
    B = z.shape[0]
    nc, side2 = meta["nc"], meta["side2"]
    kernel = functools.partial(
        _super_generator_kernel,
        ks=meta["ks"], side0=meta["side0"], side1=meta["side1"], side2=side2)
    out = pl.pallas_call(
        kernel,
        out_shape=jax.ShapeDtypeStruct((B, nc, side2 * side2), jnp.float32),
        compiler_params=pltpu.CompilerParams(vmem_limit_bytes=32 * 1024 * 1024),
    )(z, params["w1"], params["b1"], params["blk"],
      params["g1"], params["be1"], params["g2"], params["be2"],
      params["g3"], params["be3"],
      params["up1"], params["cmp1"], params["up2"], params["cmp2"], params["pad3"],
      params["wc1"], params["wc2"], params["wc3"])
    # Layout plumbing only: (B, nc, H*W) -> PyTorch's (B, nc, H, W).
    return out.reshape(B, nc, side2, side2)


# ---------------------------------------------------------------------------
# Main
# ---------------------------------------------------------------------------

if __name__ == "__main__":
    # Small, forward-consistent shapes: batch=2, nz=16, ngf=4 (C=8), img=16, nc=3
    B, NZ, NGF, IMG, NC = 2, 16, 4, 16, 3

    key = jax.random.PRNGKey(0)
    kz, kp = jax.random.split(key)
    z = jax.random.normal(kz, (B, NZ), jnp.float32)
    params, meta = init_params(kp, nz=NZ, ngf=NGF, img_size=IMG, nc=NC)

    img = super_generator_forward(z, params, meta)
    img = jax.block_until_ready(img)

    assert img.shape == (B, NC, IMG, IMG), img.shape
    assert bool(jnp.all(jnp.isfinite(img)))
    assert bool(jnp.all((img >= 0.0) & (img <= 1.0)))  # sigmoid output range
    print("KERNEL_OK")
</pallas_src>

<mosaic_0001>
module attributes {stable_mosaic.version = 11 : i64} {
  func.func @_super_generator_kernel(%arg0: memref<2x16xf32, #tpu.memory_space<vmem>>, %arg1: memref<16x128xf32, #tpu.memory_space<vmem>>, %arg2: memref<1x128xf32, #tpu.memory_space<vmem>>, %arg3: memref<8x128xf32, #tpu.memory_space<vmem>>, %arg4: memref<8x1xf32, #tpu.memory_space<vmem>>, %arg5: memref<8x1xf32, #tpu.memory_space<vmem>>, %arg6: memref<8x1xf32, #tpu.memory_space<vmem>>, %arg7: memref<8x1xf32, #tpu.memory_space<vmem>>, %arg8: memref<8x1xf32, #tpu.memory_space<vmem>>, %arg9: memref<8x1xf32, #tpu.memory_space<vmem>>, %arg10: memref<128x196xf32, #tpu.memory_space<vmem>>, %arg11: memref<106x64xf32, #tpu.memory_space<vmem>>, %arg12: memref<64x484xf32, #tpu.memory_space<vmem>>, %arg13: memref<346x256xf32, #tpu.memory_space<vmem>>, %arg14: memref<256x484xf32, #tpu.memory_space<vmem>>, %arg15: memref<8x392xbf16, #tpu.memory_space<vmem>>, %arg16: memref<8x392xbf16, #tpu.memory_space<vmem>>, %arg17: memref<3x392xbf16, #tpu.memory_space<vmem>>, %arg18: memref<2x3x256xf32, #tpu.memory_space<vmem>>) attributes {dimension_semantics = [], scalar_prefetch = 0 : i64, scratch_operands = 0 : i64, tpu.core_type = #tpu.core_type<tc>} {
    %c0 = arith.constant 0 : index
    %c0_0 = arith.constant 0 : index
    %0 = vector.load %arg0[%c0, %c0_0] : memref<2x16xf32, #tpu.memory_space<vmem>>, vector<2x16xf32>
    %c0_1 = arith.constant 0 : index
    %c0_2 = arith.constant 0 : index
    %1 = vector.load %arg1[%c0_1, %c0_2] : memref<16x128xf32, #tpu.memory_space<vmem>>, vector<16x128xf32>
    %cst = arith.constant dense<0.000000e+00> : vector<2x128xf32>
    %2 = tpu.matmul %0, %1, %cst {dimension_numbers = #tpu.dot_dimension_numbers<[1], [0], [0], [1], [0, 0, 1, 1], [], []>} : vector<2x16xf32>, vector<16x128xf32>, vector<2x128xf32> -> vector<2x128xf32>
    %c0_3 = arith.constant 0 : index
    %c0_4 = arith.constant 0 : index
    %3 = vector.load %arg2[%c0_3, %c0_4] : memref<1x128xf32, #tpu.memory_space<vmem>>, vector<1x128xf32>
    %4 = vector.broadcast %3 : vector<1x128xf32> to vector<2x128xf32>
    %5 = arith.addf %2, %4 : vector<2x128xf32>
    %c0_5 = arith.constant 0 : index
    %c0_6 = arith.constant 0 : index
    %6 = vector.load %arg3[%c0_5, %c0_6] : memref<8x128xf32, #tpu.memory_space<vmem>>, vector<8x128xf32>
    %7 = vector.extract_strided_slice %5 {offsets = [0, 0], sizes = [1, 128], strides = [1, 1]} : vector<2x128xf32> to vector<1x128xf32>
    %8 = vector.broadcast %7 : vector<1x128xf32> to vector<8x128xf32>
    %9 = arith.mulf %6, %8 : vector<8x128xf32>
    %10 = vector.extract_strided_slice %5 {offsets = [1, 0], sizes = [1, 128], strides = [1, 1]} : vector<2x128xf32> to vector<1x128xf32>
    %11 = vector.broadcast %10 : vector<1x128xf32> to vector<8x128xf32>
    %12 = arith.mulf %6, %11 : vector<8x128xf32>
    %cst_7 = arith.constant dense<0.000000e+00> : vector<8xf32>
    %13 = vector.multi_reduction <add>, %9, %cst_7 [1] : vector<8x128xf32> to vector<8xf32>
    %14 = vector.shape_cast %13 : vector<8xf32> to vector<8x1xf32>
    %cst_8 = arith.constant 0.000000e+00 : f32
    %15 = vector.broadcast %cst_8 : f32 to vector<8x1xf32>
    %16 = arith.addf %15, %14 : vector<8x1xf32>
    %cst_9 = arith.constant dense<0.000000e+00> : vector<8xf32>
    %17 = vector.multi_reduction <add>, %12, %cst_9 [1] : vector<8x128xf32> to vector<8xf32>
    %18 = vector.shape_cast %17 : vector<8xf32> to vector<8x1xf32>
    %19 = arith.addf %16, %18 : vector<8x1xf32>
    %cst_10 = arith.constant 3.125000e-02 : f32
    %20 = vector.broadcast %cst_10 : f32 to vector<8x1xf32>
    %21 = arith.mulf %19, %20 : vector<8x1xf32>
    %22 = arith.mulf %9, %9 : vector<8x128xf32>
    %cst_11 = arith.constant dense<0.000000e+00> : vector<8xf32>
    %23 = vector.multi_reduction <add>, %22, %cst_11 [1] : vector<8x128xf32> to vector<8xf32>
    %24 = vector.shape_cast %23 : vector<8xf32> to vector<8x1xf32>
    %cst_12 = arith.constant 0.000000e+00 : f32
    %25 = vector.broadcast %cst_12 : f32 to vector<8x1xf32>
    %26 = arith.addf %25, %24 : vector<8x1xf32>
    %27 = arith.mulf %12, %12 : vector<8x128xf32>
    %cst_13 = arith.constant dense<0.000000e+00> : vector<8xf32>
    %28 = vector.multi_reduction <add>, %27, %cst_13 [1] : vector<8x128xf32> to vector<8xf32>
    %29 = vector.shape_cast %28 : vector<8xf32> to vector<8x1xf32>
    %30 = arith.addf %26, %29 : vector<8x1xf32>
    %cst_14 = arith.constant 3.125000e-02 : f32
    %31 = vector.broadcast %cst_14 : f32 to vector<8x1xf32>
    %32 = arith.mulf %30, %31 : vector<8x1xf32>
    %33 = arith.mulf %21, %21 : vector<8x1xf32>
    %34 = arith.subf %32, %33 : vector<8x1xf32>
    %35 = vector.broadcast %21 : vector<8x1xf32> to vector<8x128xf32>
    %36 = arith.subf %9, %35 : vector<8x128xf32>
    %37 = vector.broadcast %21 : vector<8x1xf32> to vector<8x128xf32>
    %38 = arith.subf %12, %37 : vector<8x128xf32>
    %cst_15 = arith.constant 9.99999974E-6 : f32
    %39 = vector.broadcast %cst_15 : f32 to vector<8x1xf32>
    %40 = arith.addf %34, %39 : vector<8x1xf32>
    %41 = math.rsqrt %40 : vector<8x1xf32>
    %c0_16 = arith.constant 0 : index
    %c0_17 = arith.constant 0 : index
    %42 = vector.load %arg4[%c0_16, %c0_17] : memref<8x1xf32, #tpu.memory_space<vmem>>, vector<8x1xf32>
    %43 = arith.mulf %41, %42 : vector<8x1xf32>
    %44 = vector.broadcast %43 : vector<8x1xf32> to vector<8x128xf32>
    %45 = arith.mulf %36, %44 : vector<8x128xf32>
    %c0_18 = arith.constant 0 : index
    %c0_19 = arith.constant 0 : index
    %46 = vector.load %arg5[%c0_18, %c0_19] : memref<8x1xf32, #tpu.memory_space<vmem>>, vector<8x1xf32>
    %47 = vector.broadcast %46 : vector<8x1xf32> to vector<8x128xf32>
    %48 = arith.addf %45, %47 : vector<8x128xf32>
    %49 = vector.broadcast %43 : vector<8x1xf32> to vector<8x128xf32>
    %50 = arith.mulf %38, %49 : vector<8x128xf32>
    %c0_20 = arith.constant 0 : index
    %c0_21 = arith.constant 0 : index
    %51 = vector.load %arg5[%c0_20, %c0_21] : memref<8x1xf32, #tpu.memory_space<vmem>>, vector<8x1xf32>
    %52 = vector.broadcast %51 : vector<8x1xf32> to vector<8x128xf32>
    %53 = arith.addf %50, %52 : vector<8x128xf32>
    %54 = arith.mulf %48, %6 : vector<8x128xf32>
    %55 = arith.mulf %53, %6 : vector<8x128xf32>
    %c0_22 = arith.constant 0 : index
    %c0_23 = arith.constant 0 : index
    %56 = vector.load %arg10[%c0_22, %c0_23] : memref<128x196xf32, #tpu.memory_space<vmem>>, vector<128x196xf32>
    %cst_24 = arith.constant dense<0.000000e+00> : vector<8x196xf32>
    %57 = tpu.matmul %54, %56, %cst_24 {dimension_numbers = #tpu.dot_dimension_numbers<[1], [0], [0], [1], [0, 0, 1, 1], [], []>} : vector<8x128xf32>, vector<128x196xf32>, vector<8x196xf32> -> vector<8x196xf32>
    %58 = vector.extract_strided_slice %57 {offsets = [0, 0], sizes = [8, 106], strides = [1, 1]} : vector<8x196xf32> to vector<8x106xf32>
    %59 = vector.extract_strided_slice %57 {offsets = [0, 1], sizes = [8, 106], strides = [1, 1]} : vector<8x196xf32> to vector<8x106xf32>
    %60 = vector.extract_strided_slice %57 {offsets = [0, 2], sizes = [8, 106], strides = [1, 1]} : vector<8x196xf32> to vector<8x106xf32>
    %61 = vector.extract_strided_slice %57 {offsets = [0, 3], sizes = [8, 106], strides = [1, 1]} : vector<8x196xf32> to vector<8x106xf32>
    %62 = vector.extract_strided_slice %57 {offsets = [0, 4], sizes = [8, 106], strides = [1, 1]} : vector<8x196xf32> to vector<8x106xf32>
    %63 = vector.extract_strided_slice %57 {offsets = [0, 5], sizes = [8, 106], strides = [1, 1]} : vector<8x196xf32> to vector<8x106xf32>
    %64 = vector.extract_strided_slice %57 {offsets = [0, 6], sizes = [8, 106], strides = [1, 1]} : vector<8x196xf32> to vector<8x106xf32>
    %65 = tpu.concatenate %58, %59, %60, %61, %62, %63, %64 in 0 : vector<8x106xf32>, vector<8x106xf32>, vector<8x106xf32>, vector<8x106xf32>, vector<8x106xf32>, vector<8x106xf32>, vector<8x106xf32> -> vector<56x106xf32>
    %66 = vector.extract_strided_slice %57 {offsets = [0, 14], sizes = [8, 106], strides = [1, 1]} : vector<8x196xf32> to vector<8x106xf32>
    %67 = vector.extract_strided_slice %57 {offsets = [0, 15], sizes = [8, 106], strides = [1, 1]} : vector<8x196xf32> to vector<8x106xf32>
    %68 = vector.extract_strided_slice %57 {offsets = [0, 16], sizes = [8, 106], strides = [1, 1]} : vector<8x196xf32> to vector<8x106xf32>
    %69 = vector.extract_strided_slice %57 {offsets = [0, 17], sizes = [8, 106], strides = [1, 1]} : vector<8x196xf32> to vector<8x106xf32>
    %70 = vector.extract_strided_slice %57 {offsets = [0, 18], sizes = [8, 106], strides = [1, 1]} : vector<8x196xf32> to vector<8x106xf32>
    %71 = vector.extract_strided_slice %57 {offsets = [0, 19], sizes = [8, 106], strides = [1, 1]} : vector<8x196xf32> to vector<8x106xf32>
    %72 = vector.extract_strided_slice %57 {offsets = [0, 20], sizes = [8, 106], strides = [1, 1]} : vector<8x196xf32> to vector<8x106xf32>
    %73 = tpu.concatenate %66, %67, %68, %69, %70, %71, %72 in 0 : vector<8x106xf32>, vector<8x106xf32>, vector<8x106xf32>, vector<8x106xf32>, vector<8x106xf32>, vector<8x106xf32>, vector<8x106xf32> -> vector<56x106xf32>
    %74 = vector.extract_strided_slice %57 {offsets = [0, 28], sizes = [8, 106], strides = [1, 1]} : vector<8x196xf32> to vector<8x106xf32>
    %75 = vector.extract_strided_slice %57 {offsets = [0, 29], sizes = [8, 106], strides = [1, 1]} : vector<8x196xf32> to vector<8x106xf32>
    %76 = vector.extract_strided_slice %57 {offsets = [0, 30], sizes = [8, 106], strides = [1, 1]} : vector<8x196xf32> to vector<8x106xf32>
    %77 = vector.extract_strided_slice %57 {offsets = [0, 31], sizes = [8, 106], strides = [1, 1]} : vector<8x196xf32> to vector<8x106xf32>
    %78 = vector.extract_strided_slice %57 {offsets = [0, 32], sizes = [8, 106], strides = [1, 1]} : vector<8x196xf32> to vector<8x106xf32>
    %79 = vector.extract_strided_slice %57 {offsets = [0, 33], sizes = [8, 106], strides = [1, 1]} : vector<8x196xf32> to vector<8x106xf32>
    %80 = vector.extract_strided_slice %57 {offsets = [0, 34], sizes = [8, 106], strides = [1, 1]} : vector<8x196xf32> to vector<8x106xf32>
    %81 = tpu.concatenate %74, %75, %76, %77, %78, %79, %80 in 0 : vector<8x106xf32>, vector<8x106xf32>, vector<8x106xf32>, vector<8x106xf32>, vector<8x106xf32>, vector<8x106xf32>, vector<8x106xf32> -> vector<56x106xf32>
    %82 = vector.extract_strided_slice %57 {offsets = [0, 42], sizes = [8, 106], strides = [1, 1]} : vector<8x196xf32> to vector<8x106xf32>
    %83 = vector.extract_strided_slice %57 {offsets = [0, 43], sizes = [8, 106], strides = [1, 1]} : vector<8x196xf32> to vector<8x106xf32>
    %84 = vector.extract_strided_slice %57 {offsets = [0, 44], sizes = [8, 106], strides = [1, 1]} : vector<8x196xf32> to vector<8x106xf32>
    %85 = vector.extract_strided_slice %57 {offsets = [0, 45], sizes = [8, 106], strides = [1, 1]} : vector<8x196xf32> to vector<8x106xf32>
    %86 = vector.extract_strided_slice %57 {offsets = [0, 46], sizes = [8, 106], strides = [1, 1]} : vector<8x196xf32> to vector<8x106xf32>
    %87 = vector.extract_strided_slice %57 {offsets = [0, 47], sizes = [8, 106], strides = [1, 1]} : vector<8x196xf32> to vector<8x106xf32>
    %88 = vector.extract_strided_slice %57 {offsets = [0, 48], sizes = [8, 106], strides = [1, 1]} : vector<8x196xf32> to vector<8x106xf32>
    %89 = tpu.concatenate %82, %83, %84, %85, %86, %87, %88 in 0 : vector<8x106xf32>, vector<8x106xf32>, vector<8x106xf32>, vector<8x106xf32>, vector<8x106xf32>, vector<8x106xf32>, vector<8x106xf32> -> vector<56x106xf32>
    %90 = vector.extract_strided_slice %57 {offsets = [0, 56], sizes = [8, 106], strides = [1, 1]} : vector<8x196xf32> to vector<8x106xf32>
    %91 = vector.extract_strided_slice %57 {offsets = [0, 57], sizes = [8, 106], strides = [1, 1]} : vector<8x196xf32> to vector<8x106xf32>
    %92 = vector.extract_strided_slice %57 {offsets = [0, 58], sizes = [8, 106], strides = [1, 1]} : vector<8x196xf32> to vector<8x106xf32>
    %93 = vector.extract_strided_slice %57 {offsets = [0, 59], sizes = [8, 106], strides = [1, 1]} : vector<8x196xf32> to vector<8x106xf32>
    %94 = vector.extract_strided_slice %57 {offsets = [0, 60], sizes = [8, 106], strides = [1, 1]} : vector<8x196xf32> to vector<8x106xf32>
    %95 = vector.extract_strided_slice %57 {offsets = [0, 61], sizes = [8, 106], strides = [1, 1]} : vector<8x196xf32> to vector<8x106xf32>
    %96 = vector.extract_strided_slice %57 {offsets = [0, 62], sizes = [8, 106], strides = [1, 1]} : vector<8x196xf32> to vector<8x106xf32>
    %97 = tpu.concatenate %90, %91, %92, %93, %94, %95, %96 in 0 : vector<8x106xf32>, vector<8x106xf32>, vector<8x106xf32>, vector<8x106xf32>, vector<8x106xf32>, vector<8x106xf32>, vector<8x106xf32> -> vector<56x106xf32>
    %98 = vector.extract_strided_slice %57 {offsets = [0, 70], sizes = [8, 106], strides = [1, 1]} : vector<8x196xf32> to vector<8x106xf32>
    %99 = vector.extract_strided_slice %57 {offsets = [0, 71], sizes = [8, 106], strides = [1, 1]} : vector<8x196xf32> to vector<8x106xf32>
    %100 = vector.extract_strided_slice %57 {offsets = [0, 72], sizes = [8, 106], strides = [1, 1]} : vector<8x196xf32> to vector<8x106xf32>
    %101 = vector.extract_strided_slice %57 {offsets = [0, 73], sizes = [8, 106], strides = [1, 1]} : vector<8x196xf32> to vector<8x106xf32>
    %102 = vector.extract_strided_slice %57 {offsets = [0, 74], sizes = [8, 106], strides = [1, 1]} : vector<8x196xf32> to vector<8x106xf32>
    %103 = vector.extract_strided_slice %57 {offsets = [0, 75], sizes = [8, 106], strides = [1, 1]} : vector<8x196xf32> to vector<8x106xf32>
    %104 = vector.extract_strided_slice %57 {offsets = [0, 76], sizes = [8, 106], strides = [1, 1]} : vector<8x196xf32> to vector<8x106xf32>
    %105 = tpu.concatenate %98, %99, %100, %101, %102, %103, %104 in 0 : vector<8x106xf32>, vector<8x106xf32>, vector<8x106xf32>, vector<8x106xf32>, vector<8x106xf32>, vector<8x106xf32>, vector<8x106xf32> -> vector<56x106xf32>
    %106 = vector.extract_strided_slice %57 {offsets = [0, 84], sizes = [8, 106], strides = [1, 1]} : vector<8x196xf32> to vector<8x106xf32>
    %107 = vector.extract_strided_slice %57 {offsets = [0, 85], sizes = [8, 106], strides = [1, 1]} : vector<8x196xf32> to vector<8x106xf32>
    %108 = vector.extract_strided_slice %57 {offsets = [0, 86], sizes = [8, 106], strides = [1, 1]} : vector<8x196xf32> to vector<8x106xf32>
    %109 = vector.extract_strided_slice %57 {offsets = [0, 87], sizes = [8, 106], strides = [1, 1]} : vector<8x196xf32> to vector<8x106xf32>
    %110 = vector.extract_strided_slice %57 {offsets = [0, 88], sizes = [8, 106], strides = [1, 1]} : vector<8x196xf32> to vector<8x106xf32>
    %111 = vector.extract_strided_slice %57 {offsets = [0, 89], sizes = [8, 106], strides = [1, 1]} : vector<8x196xf32> to vector<8x106xf32>
    %112 = vector.extract_strided_slice %57 {offsets = [0, 90], sizes = [8, 106], strides = [1, 1]} : vector<8x196xf32> to vector<8x106xf32>
    %113 = tpu.concatenate %106, %107, %108, %109, %110, %111, %112 in 0 : vector<8x106xf32>, vector<8x106xf32>, vector<8x106xf32>, vector<8x106xf32>, vector<8x106xf32>, vector<8x106xf32>, vector<8x106xf32> -> vector<56x106xf32>
    %114 = tpu.concatenate %65, %73, %81, %89, %97, %105, %113 in 0 : vector<56x106xf32>, vector<56x106xf32>, vector<56x106xf32>, vector<56x106xf32>, vector<56x106xf32>, vector<56x106xf32>, vector<56x106xf32> -> vector<392x106xf32>
    %115 = arith.truncf %114 : vector<392x106xf32> to vector<392x106xbf16>
    %c0_25 = arith.constant 0 : index
    %c0_26 = arith.constant 0 : index
    %116 = vector.load %arg15[%c0_25, %c0_26] : memref<8x392xbf16, #tpu.memory_space<vmem>>, vector<8x392xbf16>
    %cst_27 = arith.constant dense<0.000000e+00> : vector<8x106xf32>
    %117 = tpu.matmul %116, %115, %cst_27 {dimension_numbers = #tpu.dot_dimension_numbers<[1], [0], [0], [1], [0, 0, 1, 1], [], []>} : vector<8x392xbf16>, vector<392x106xbf16>, vector<8x106xf32> -> vector<8x106xf32>
    %c0_28 = arith.constant 0 : index
    %c0_29 = arith.constant 0 : index
    %118 = vector.load %arg11[%c0_28, %c0_29] : memref<106x64xf32, #tpu.memory_space<vmem>>, vector<106x64xf32>
    %cst_30 = arith.constant dense<0.000000e+00> : vector<8x64xf32>
    %119 = tpu.matmul %117, %118, %cst_30 {dimension_numbers = #tpu.dot_dimension_numbers<[1], [0], [0], [1], [0, 0, 1, 1], [], []>} : vector<8x106xf32>, vector<106x64xf32>, vector<8x64xf32> -> vector<8x64xf32>
    %c0_31 = arith.constant 0 : index
    %c0_32 = arith.constant 0 : index
    %120 = vector.load %arg10[%c0_31, %c0_32] : memref<128x196xf32, #tpu.memory_space<vmem>>, vector<128x196xf32>
    %cst_33 = arith.constant dense<0.000000e+00> : vector<8x196xf32>
    %121 = tpu.matmul %55, %120, %cst_33 {dimension_numbers = #tpu.dot_dimension_numbers<[1], [0], [0], [1], [0, 0, 1, 1], [], []>} : vector<8x128xf32>, vector<128x196xf32>, vector<8x196xf32> -> vector<8x196xf32>
    %122 = vector.extract_strided_slice %121 {offsets = [0, 0], sizes = [8, 106], strides = [1, 1]} : vector<8x196xf32> to vector<8x106xf32>
    %123 = vector.extract_strided_slice %121 {offsets = [0, 1], sizes = [8, 106], strides = [1, 1]} : vector<8x196xf32> to vector<8x106xf32>
    %124 = vector.extract_strided_slice %121 {offsets = [0, 2], sizes = [8, 106], strides = [1, 1]} : vector<8x196xf32> to vector<8x106xf32>
    %125 = vector.extract_strided_slice %121 {offsets = [0, 3], sizes = [8, 106], strides = [1, 1]} : vector<8x196xf32> to vector<8x106xf32>
    %126 = vector.extract_strided_slice %121 {offsets = [0, 4], sizes = [8, 106], strides = [1, 1]} : vector<8x196xf32> to vector<8x106xf32>
    %127 = vector.extract_strided_slice %121 {offsets = [0, 5], sizes = [8, 106], strides = [1, 1]} : vector<8x196xf32> to vector<8x106xf32>
    %128 = vector.extract_strided_slice %121 {offsets = [0, 6], sizes = [8, 106], strides = [1, 1]} : vector<8x196xf32> to vector<8x106xf32>
    %129 = tpu.concatenate %122, %123, %124, %125, %126, %127, %128 in 0 : vector<8x106xf32>, vector<8x106xf32>, vector<8x106xf32>, vector<8x106xf32>, vector<8x106xf32>, vector<8x106xf32>, vector<8x106xf32> -> vector<56x106xf32>
    %130 = vector.extract_strided_slice %121 {offsets = [0, 14], sizes = [8, 106], strides = [1, 1]} : vector<8x196xf32> to vector<8x106xf32>
    %131 = vector.extract_strided_slice %121 {offsets = [0, 15], sizes = [8, 106], strides = [1, 1]} : vector<8x196xf32> to vector<8x106xf32>
    %132 = vector.extract_strided_slice %121 {offsets = [0, 16], sizes = [8, 106], strides = [1, 1]} : vector<8x196xf32> to vector<8x106xf32>
    %133 = vector.extract_strided_slice %121 {offsets = [0, 17], sizes = [8, 106], strides = [1, 1]} : vector<8x196xf32> to vector<8x106xf32>
    %134 = vector.extract_strided_slice %121 {offsets = [0, 18], sizes = [8, 106], strides = [1, 1]} : vector<8x196xf32> to vector<8x106xf32>
    %135 = vector.extract_strided_slice %121 {offsets = [0, 19], sizes = [8, 106], strides = [1, 1]} : vector<8x196xf32> to vector<8x106xf32>
    %136 = vector.extract_strided_slice %121 {offsets = [0, 20], sizes = [8, 106], strides = [1, 1]} : vector<8x196xf32> to vector<8x106xf32>
    %137 = tpu.concatenate %130, %131, %132, %133, %134, %135, %136 in 0 : vector<8x106xf32>, vector<8x106xf32>, vector<8x106xf32>, vector<8x106xf32>, vector<8x106xf32>, vector<8x106xf32>, vector<8x106xf32> -> vector<56x106xf32>
    %138 = vector.extract_strided_slice %121 {offsets = [0, 28], sizes = [8, 106], strides = [1, 1]} : vector<8x196xf32> to vector<8x106xf32>
    %139 = vector.extract_strided_slice %121 {offsets = [0, 29], sizes = [8, 106], strides = [1, 1]} : vector<8x196xf32> to vector<8x106xf32>
    %140 = vector.extract_strided_slice %121 {offsets = [0, 30], sizes = [8, 106], strides = [1, 1]} : vector<8x196xf32> to vector<8x106xf32>
    %141 = vector.extract_strided_slice %121 {offsets = [0, 31], sizes = [8, 106], strides = [1, 1]} : vector<8x196xf32> to vector<8x106xf32>
    %142 = vector.extract_strided_slice %121 {offsets = [0, 32], sizes = [8, 106], strides = [1, 1]} : vector<8x196xf32> to vector<8x106xf32>
    %143 = vector.extract_strided_slice %121 {offsets = [0, 33], sizes = [8, 106], strides = [1, 1]} : vector<8x196xf32> to vector<8x106xf32>
    %144 = vector.extract_strided_slice %121 {offsets = [0, 34], sizes = [8, 106], strides = [1, 1]} : vector<8x196xf32> to vector<8x106xf32>
    %145 = tpu.concatenate %138, %139, %140, %141, %142, %143, %144 in 0 : vector<8x106xf32>, vector<8x106xf32>, vector<8x106xf32>, vector<8x106xf32>, vector<8x106xf32>, vector<8x106xf32>, vector<8x106xf32> -> vector<56x106xf32>
    %146 = vector.extract_strided_slice %121 {offsets = [0, 42], sizes = [8, 106], strides = [1, 1]} : vector<8x196xf32> to vector<8x106xf32>
    %147 = vector.extract_strided_slice %121 {offsets = [0, 43], sizes = [8, 106], strides = [1, 1]} : vector<8x196xf32> to vector<8x106xf32>
    %148 = vector.extract_strided_slice %121 {offsets = [0, 44], sizes = [8, 106], strides = [1, 1]} : vector<8x196xf32> to vector<8x106xf32>
    %149 = vector.extract_strided_slice %121 {offsets = [0, 45], sizes = [8, 106], strides = [1, 1]} : vector<8x196xf32> to vector<8x106xf32>
    %150 = vector.extract_strided_slice %121 {offsets = [0, 46], sizes = [8, 106], strides = [1, 1]} : vector<8x196xf32> to vector<8x106xf32>
    %151 = vector.extract_strided_slice %121 {offsets = [0, 47], sizes = [8, 106], strides = [1, 1]} : vector<8x196xf32> to vector<8x106xf32>
    %152 = vector.extract_strided_slice %121 {offsets = [0, 48], sizes = [8, 106], strides = [1, 1]} : vector<8x196xf32> to vector<8x106xf32>
    %153 = tpu.concatenate %146, %147, %148, %149, %150, %151, %152 in 0 : vector<8x106xf32>, vector<8x106xf32>, vector<8x106xf32>, vector<8x106xf32>, vector<8x106xf32>, vector<8x106xf32>, vector<8x106xf32> -> vector<56x106xf32>
    %154 = vector.extract_strided_slice %121 {offsets = [0, 56], sizes = [8, 106], strides = [1, 1]} : vector<8x196xf32> to vector<8x106xf32>
    %155 = vector.extract_strided_slice %121 {offsets = [0, 57], sizes = [8, 106], strides = [1, 1]} : vector<8x196xf32> to vector<8x106xf32>
    %156 = vector.extract_strided_slice %121 {offsets = [0, 58], sizes = [8, 106], strides = [1, 1]} : vector<8x196xf32> to vector<8x106xf32>
    %157 = vector.extract_strided_slice %121 {offsets = [0, 59], sizes = [8, 106], strides = [1, 1]} : vector<8x196xf32> to vector<8x106xf32>
    %158 = vector.extract_strided_slice %121 {offsets = [0, 60], sizes = [8, 106], strides = [1, 1]} : vector<8x196xf32> to vector<8x106xf32>
    %159 = vector.extract_strided_slice %121 {offsets = [0, 61], sizes = [8, 106], strides = [1, 1]} : vector<8x196xf32> to vector<8x106xf32>
    %160 = vector.extract_strided_slice %121 {offsets = [0, 62], sizes = [8, 106], strides = [1, 1]} : vector<8x196xf32> to vector<8x106xf32>
    %161 = tpu.concatenate %154, %155, %156, %157, %158, %159, %160 in 0 : vector<8x106xf32>, vector<8x106xf32>, vector<8x106xf32>, vector<8x106xf32>, vector<8x106xf32>, vector<8x106xf32>, vector<8x106xf32> -> vector<56x106xf32>
    %162 = vector.extract_strided_slice %121 {offsets = [0, 70], sizes = [8, 106], strides = [1, 1]} : vector<8x196xf32> to vector<8x106xf32>
    %163 = vector.extract_strided_slice %121 {offsets = [0, 71], sizes = [8, 106], strides = [1, 1]} : vector<8x196xf32> to vector<8x106xf32>
    %164 = vector.extract_strided_slice %121 {offsets = [0, 72], sizes = [8, 106], strides = [1, 1]} : vector<8x196xf32> to vector<8x106xf32>
    %165 = vector.extract_strided_slice %121 {offsets = [0, 73], sizes = [8, 106], strides = [1, 1]} : vector<8x196xf32> to vector<8x106xf32>
    %166 = vector.extract_strided_slice %121 {offsets = [0, 74], sizes = [8, 106], strides = [1, 1]} : vector<8x196xf32> to vector<8x106xf32>
    %167 = vector.extract_strided_slice %121 {offsets = [0, 75], sizes = [8, 106], strides = [1, 1]} : vector<8x196xf32> to vector<8x106xf32>
    %168 = vector.extract_strided_slice %121 {offsets = [0, 76], sizes = [8, 106], strides = [1, 1]} : vector<8x196xf32> to vector<8x106xf32>
    %169 = tpu.concatenate %162, %163, %164, %165, %166, %167, %168 in 0 : vector<8x106xf32>, vector<8x106xf32>, vector<8x106xf32>, vector<8x106xf32>, vector<8x106xf32>, vector<8x106xf32>, vector<8x106xf32> -> vector<56x106xf32>
    %170 = vector.extract_strided_slice %121 {offsets = [0, 84], sizes = [8, 106], strides = [1, 1]} : vector<8x196xf32> to vector<8x106xf32>
    %171 = vector.extract_strided_slice %121 {offsets = [0, 85], sizes = [8, 106], strides = [1, 1]} : vector<8x196xf32> to vector<8x106xf32>
    %172 = vector.extract_strided_slice %121 {offsets = [0, 86], sizes = [8, 106], strides = [1, 1]} : vector<8x196xf32> to vector<8x106xf32>
    %173 = vector.extract_strided_slice %121 {offsets = [0, 87], sizes = [8, 106], strides = [1, 1]} : vector<8x196xf32> to vector<8x106xf32>
    %174 = vector.extract_strided_slice %121 {offsets = [0, 88], sizes = [8, 106], strides = [1, 1]} : vector<8x196xf32> to vector<8x106xf32>
    %175 = vector.extract_strided_slice %121 {offsets = [0, 89], sizes = [8, 106], strides = [1, 1]} : vector<8x196xf32> to vector<8x106xf32>
    %176 = vector.extract_strided_slice %121 {offsets = [0, 90], sizes = [8, 106], strides = [1, 1]} : vector<8x196xf32> to vector<8x106xf32>
    %177 = tpu.concatenate %170, %171, %172, %173, %174, %175, %176 in 0 : vector<8x106xf32>, vector<8x106xf32>, vector<8x106xf32>, vector<8x106xf32>, vector<8x106xf32>, vector<8x106xf32>, vector<8x106xf32> -> vector<56x106xf32>
    %178 = tpu.concatenate %129, %137, %145, %153, %161, %169, %177 in 0 : vector<56x106xf32>, vector<56x106xf32>, vector<56x106xf32>, vector<56x106xf32>, vector<56x106xf32>, vector<56x106xf32>, vector<56x106xf32> -> vector<392x106xf32>
    %179 = arith.truncf %178 : vector<392x106xf32> to vector<392x106xbf16>
    %c0_34 = arith.constant 0 : index
    %c0_35 = arith.constant 0 : index
    %180 = vector.load %arg15[%c0_34, %c0_35] : memref<8x392xbf16, #tpu.memory_space<vmem>>, vector<8x392xbf16>
    %cst_36 = arith.constant dense<0.000000e+00> : vector<8x106xf32>
    %181 = tpu.matmul %180, %179, %cst_36 {dimension_numbers = #tpu.dot_dimension_numbers<[1], [0], [0], [1], [0, 0, 1, 1], [], []>} : vector<8x392xbf16>, vector<392x106xbf16>, vector<8x106xf32> -> vector<8x106xf32>
    %c0_37 = arith.constant 0 : index
    %c0_38 = arith.constant 0 : index
    %182 = vector.load %arg11[%c0_37, %c0_38] : memref<106x64xf32, #tpu.memory_space<vmem>>, vector<106x64xf32>
    %cst_39 = arith.constant dense<0.000000e+00> : vector<8x64xf32>
    %183 = tpu.matmul %181, %182, %cst_39 {dimension_numbers = #tpu.dot_dimension_numbers<[1], [0], [0], [1], [0, 0, 1, 1], [], []>} : vector<8x106xf32>, vector<106x64xf32>, vector<8x64xf32> -> vector<8x64xf32>
    %cst_40 = arith.constant dense<0.000000e+00> : vector<8xf32>
    %184 = vector.multi_reduction <add>, %119, %cst_40 [1] : vector<8x64xf32> to vector<8xf32>
    %185 = vector.shape_cast %184 : vector<8xf32> to vector<8x1xf32>
    %cst_41 = arith.constant 0.000000e+00 : f32
    %186 = vector.broadcast %cst_41 : f32 to vector<8x1xf32>
    %187 = arith.addf %186, %185 : vector<8x1xf32>
    %cst_42 = arith.constant dense<0.000000e+00> : vector<8xf32>
    %188 = vector.multi_reduction <add>, %183, %cst_42 [1] : vector<8x64xf32> to vector<8xf32>
    %189 = vector.shape_cast %188 : vector<8xf32> to vector<8x1xf32>
    %190 = arith.addf %187, %189 : vector<8x1xf32>
    %cst_43 = arith.constant 7.812500e-03 : f32
    %191 = vector.broadcast %cst_43 : f32 to vector<8x1xf32>
    %192 = arith.mulf %190, %191 : vector<8x1xf32>
    %193 = vector.broadcast %192 : vector<8x1xf32> to vector<8x64xf32>
    %194 = arith.subf %119, %193 : vector<8x64xf32>
    %195 = vector.broadcast %192 : vector<8x1xf32> to vector<8x64xf32>
    %196 = arith.subf %183, %195 : vector<8x64xf32>
    %197 = arith.mulf %194, %194 : vector<8x64xf32>
    %cst_44 = arith.constant dense<0.000000e+00> : vector<8xf32>
    %198 = vector.multi_reduction <add>, %197, %cst_44 [1] : vector<8x64xf32> to vector<8xf32>
    %199 = vector.shape_cast %198 : vector<8xf32> to vector<8x1xf32>
    %cst_45 = arith.constant 0.000000e+00 : f32
    %200 = vector.broadcast %cst_45 : f32 to vector<8x1xf32>
    %201 = arith.addf %200, %199 : vector<8x1xf32>
    %202 = arith.mulf %196, %196 : vector<8x64xf32>
    %cst_46 = arith.constant dense<0.000000e+00> : vector<8xf32>
    %203 = vector.multi_reduction <add>, %202, %cst_46 [1] : vector<8x64xf32> to vector<8xf32>
    %204 = vector.shape_cast %203 : vector<8xf32> to vector<8x1xf32>
    %205 = arith.addf %201, %204 : vector<8x1xf32>
    %cst_47 = arith.constant 7.812500e-03 : f32
    %206 = vector.broadcast %cst_47 : f32 to vector<8x1xf32>
    %207 = arith.mulf %205, %206 : vector<8x1xf32>
    %cst_48 = arith.constant 9.99999974E-6 : f32
    %208 = vector.broadcast %cst_48 : f32 to vector<8x1xf32>
    %209 = arith.addf %207, %208 : vector<8x1xf32>
    %210 = math.rsqrt %209 : vector<8x1xf32>
    %c0_49 = arith.constant 0 : index
    %c0_50 = arith.constant 0 : index
    %211 = vector.load %arg6[%c0_49, %c0_50] : memref<8x1xf32, #tpu.memory_space<vmem>>, vector<8x1xf32>
    %212 = arith.mulf %210, %211 : vector<8x1xf32>
    %213 = vector.broadcast %212 : vector<8x1xf32> to vector<8x64xf32>
    %214 = arith.mulf %194, %213 : vector<8x64xf32>
    %c0_51 = arith.constant 0 : index
    %c0_52 = arith.constant 0 : index
    %215 = vector.load %arg7[%c0_51, %c0_52] : memref<8x1xf32, #tpu.memory_space<vmem>>, vector<8x1xf32>
    %216 = vector.broadcast %215 : vector<8x1xf32> to vector<8x64xf32>
    %217 = arith.addf %214, %216 : vector<8x64xf32>
    %218 = vector.broadcast %212 : vector<8x1xf32> to vector<8x64xf32>
    %219 = arith.mulf %196, %218 : vector<8x64xf32>
    %c0_53 = arith.constant 0 : index
    %c0_54 = arith.constant 0 : index
    %220 = vector.load %arg7[%c0_53, %c0_54] : memref<8x1xf32, #tpu.memory_space<vmem>>, vector<8x1xf32>
    %221 = vector.broadcast %220 : vector<8x1xf32> to vector<8x64xf32>
    %222 = arith.addf %219, %221 : vector<8x64xf32>
    %cst_55 = arith.constant 0.000000e+00 : f32
    %223 = vector.broadcast %cst_55 : f32 to vector<8x64xf32>
    %224 = arith.cmpf oge, %217, %223 : vector<8x64xf32>
    %cst_56 = arith.constant 2.000000e-01 : f32
    %225 = vector.broadcast %cst_56 : f32 to vector<8x64xf32>
    %226 = arith.mulf %225, %217 : vector<8x64xf32>
    %227 = arith.select %224, %217, %226 : vector<8x64xi1>, vector<8x64xf32>
    %cst_57 = arith.constant 0.000000e+00 : f32
    %228 = vector.broadcast %cst_57 : f32 to vector<8x64xf32>
    %229 = arith.cmpf oge, %222, %228 : vector<8x64xf32>
    %cst_58 = arith.constant 2.000000e-01 : f32
    %230 = vector.broadcast %cst_58 : f32 to vector<8x64xf32>
    %231 = arith.mulf %230, %222 : vector<8x64xf32>
    %232 = arith.select %229, %222, %231 : vector<8x64xi1>, vector<8x64xf32>
    %c0_59 = arith.constant 0 : index
    %c0_60 = arith.constant 0 : index
    %233 = vector.load %arg12[%c0_59, %c0_60] : memref<64x484xf32, #tpu.memory_space<vmem>>, vector<64x484xf32>
    %cst_61 = arith.constant dense<0.000000e+00> : vector<8x484xf32>
    %234 = tpu.matmul %227, %233, %cst_61 {dimension_numbers = #tpu.dot_dimension_numbers<[1], [0], [0], [1], [0, 0, 1, 1], [], []>} : vector<8x64xf32>, vector<64x484xf32>, vector<8x484xf32> -> vector<8x484xf32>
    %235 = vector.extract_strided_slice %234 {offsets = [0, 0], sizes = [8, 346], strides = [1, 1]} : vector<8x484xf32> to vector<8x346xf32>
    %236 = vector.extract_strided_slice %234 {offsets = [0, 1], sizes = [8, 346], strides = [1, 1]} : vector<8x484xf32> to vector<8x346xf32>
    %237 = vector.extract_strided_slice %234 {offsets = [0, 2], sizes = [8, 346], strides = [1, 1]} : vector<8x484xf32> to vector<8x346xf32>
    %238 = vector.extract_strided_slice %234 {offsets = [0, 3], sizes = [8, 346], strides = [1, 1]} : vector<8x484xf32> to vector<8x346xf32>
    %239 = vector.extract_strided_slice %234 {offsets = [0, 4], sizes = [8, 346], strides = [1, 1]} : vector<8x484xf32> to vector<8x346xf32>
    %240 = vector.extract_strided_slice %234 {offsets = [0, 5], sizes = [8, 346], strides = [1, 1]} : vector<8x484xf32> to vector<8x346xf32>
    %241 = vector.extract_strided_slice %234 {offsets = [0, 6], sizes = [8, 346], strides = [1, 1]} : vector<8x484xf32> to vector<8x346xf32>
    %242 = tpu.concatenate %235, %236, %237, %238, %239, %240, %241 in 0 : vector<8x346xf32>, vector<8x346xf32>, vector<8x346xf32>, vector<8x346xf32>, vector<8x346xf32>, vector<8x346xf32>, vector<8x346xf32> -> vector<56x346xf32>
    %243 = vector.extract_strided_slice %234 {offsets = [0, 22], sizes = [8, 346], strides = [1, 1]} : vector<8x484xf32> to vector<8x346xf32>
    %244 = vector.extract_strided_slice %234 {offsets = [0, 23], sizes = [8, 346], strides = [1, 1]} : vector<8x484xf32> to vector<8x346xf32>
    %245 = vector.extract_strided_slice %234 {offsets = [0, 24], sizes = [8, 346], strides = [1, 1]} : vector<8x484xf32> to vector<8x346xf32>
    %246 = vector.extract_strided_slice %234 {offsets = [0, 25], sizes = [8, 346], strides = [1, 1]} : vector<8x484xf32> to vector<8x346xf32>
    %247 = vector.extract_strided_slice %234 {offsets = [0, 26], sizes = [8, 346], strides = [1, 1]} : vector<8x484xf32> to vector<8x346xf32>
    %248 = vector.extract_strided_slice %234 {offsets = [0, 27], sizes = [8, 346], strides = [1, 1]} : vector<8x484xf32> to vector<8x346xf32>
    %249 = vector.extract_strided_slice %234 {offsets = [0, 28], sizes = [8, 346], strides = [1, 1]} : vector<8x484xf32> to vector<8x346xf32>
    %250 = tpu.concatenate %243, %244, %245, %246, %247, %248, %249 in 0 : vector<8x346xf32>, vector<8x346xf32>, vector<8x346xf32>, vector<8x346xf32>, vector<8x346xf32>, vector<8x346xf32>, vector<8x346xf32> -> vector<56x346xf32>
    %251 = vector.extract_strided_slice %234 {offsets = [0, 44], sizes = [8, 346], strides = [1, 1]} : vector<8x484xf32> to vector<8x346xf32>
    %252 = vector.extract_strided_slice %234 {offsets = [0, 45], sizes = [8, 346], strides = [1, 1]} : vector<8x484xf32> to vector<8x346xf32>
    %253 = vector.extract_strided_slice %234 {offsets = [0, 46], sizes = [8, 346], strides = [1, 1]} : vector<8x484xf32> to vector<8x346xf32>
    %254 = vector.extract_strided_slice %234 {offsets = [0, 47], sizes = [8, 346], strides = [1, 1]} : vector<8x484xf32> to vector<8x346xf32>
    %255 = vector.extract_strided_slice %234 {offsets = [0, 48], sizes = [8, 346], strides = [1, 1]} : vector<8x484xf32> to vector<8x346xf32>
    %256 = vector.extract_strided_slice %234 {offsets = [0, 49], sizes = [8, 346], strides = [1, 1]} : vector<8x484xf32> to vector<8x346xf32>
    %257 = vector.extract_strided_slice %234 {offsets = [0, 50], sizes = [8, 346], strides = [1, 1]} : vector<8x484xf32> to vector<8x346xf32>
    %258 = tpu.concatenate %251, %252, %253, %254, %255, %256, %257 in 0 : vector<8x346xf32>, vector<8x346xf32>, vector<8x346xf32>, vector<8x346xf32>, vector<8x346xf32>, vector<8x346xf32>, vector<8x346xf32> -> vector<56x346xf32>
    %259 = vector.extract_strided_slice %234 {offsets = [0, 66], sizes = [8, 346], strides = [1, 1]} : vector<8x484xf32> to vector<8x346xf32>
    %260 = vector.extract_strided_slice %234 {offsets = [0, 67], sizes = [8, 346], strides = [1, 1]} : vector<8x484xf32> to vector<8x346xf32>
    %261 = vector.extract_strided_slice %234 {offsets = [0, 68], sizes = [8, 346], strides = [1, 1]} : vector<8x484xf32> to vector<8x346xf32>
    %262 = vector.extract_strided_slice %234 {offsets = [0, 69], sizes = [8, 346], strides = [1, 1]} : vector<8x484xf32> to vector<8x346xf32>
    %263 = vector.extract_strided_slice %234 {offsets = [0, 70], sizes = [8, 346], strides = [1, 1]} : vector<8x484xf32> to vector<8x346xf32>
    %264 = vector.extract_strided_slice %234 {offsets = [0, 71], sizes = [8, 346], strides = [1, 1]} : vector<8x484xf32> to vector<8x346xf32>
    %265 = vector.extract_strided_slice %234 {offsets = [0, 72], sizes = [8, 346], strides = [1, 1]} : vector<8x484xf32> to vector<8x346xf32>
    %266 = tpu.concatenate %259, %260, %261, %262, %263, %264, %265 in 0 : vector<8x346xf32>, vector<8x346xf32>, vector<8x346xf32>, vector<8x346xf32>, vector<8x346xf32>, vector<8x346xf32>, vector<8x346xf32> -> vector<56x346xf32>
    %267 = vector.extract_strided_slice %234 {offsets = [0, 88], sizes = [8, 346], strides = [1, 1]} : vector<8x484xf32> to vector<8x346xf32>
    %268 = vector.extract_strided_slice %234 {offsets = [0, 89], sizes = [8, 346], strides = [1, 1]} : vector<8x484xf32> to vector<8x346xf32>
    %269 = vector.extract_strided_slice %234 {offsets = [0, 90], sizes = [8, 346], strides = [1, 1]} : vector<8x484xf32> to vector<8x346xf32>
    %270 = vector.extract_strided_slice %234 {offsets = [0, 91], sizes = [8, 346], strides = [1, 1]} : vector<8x484xf32> to vector<8x346xf32>
    %271 = vector.extract_strided_slice %234 {offsets = [0, 92], sizes = [8, 346], strides = [1, 1]} : vector<8x484xf32> to vector<8x346xf32>
    %272 = vector.extract_strided_slice %234 {offsets = [0, 93], sizes = [8, 346], strides = [1, 1]} : vector<8x484xf32> to vector<8x346xf32>
    %273 = vector.extract_strided_slice %234 {offsets = [0, 94], sizes = [8, 346], strides = [1, 1]} : vector<8x484xf32> to vector<8x346xf32>
    %274 = tpu.concatenate %267, %268, %269, %270, %271, %272, %273 in 0 : vector<8x346xf32>, vector<8x346xf32>, vector<8x346xf32>, vector<8x346xf32>, vector<8x346xf32>, vector<8x346xf32>, vector<8x346xf32> -> vector<56x346xf32>
    %275 = vector.extract_strided_slice %234 {offsets = [0, 110], sizes = [8, 346], strides = [1, 1]} : vector<8x484xf32> to vector<8x346xf32>
    %276 = vector.extract_strided_slice %234 {offsets = [0, 111], sizes = [8, 346], strides = [1, 1]} : vector<8x484xf32> to vector<8x346xf32>
    %277 = vector.extract_strided_slice %234 {offsets = [0, 112], sizes = [8, 346], strides = [1, 1]} : vector<8x484xf32> to vector<8x346xf32>
    %278 = vector.extract_strided_slice %234 {offsets = [0, 113], sizes = [8, 346], strides = [1, 1]} : vector<8x484xf32> to vector<8x346xf32>
    %279 = vector.extract_strided_slice %234 {offsets = [0, 114], sizes = [8, 346], strides = [1, 1]} : vector<8x484xf32> to vector<8x346xf32>
    %280 = vector.extract_strided_slice %234 {offsets = [0, 115], sizes = [8, 346], strides = [1, 1]} : vector<8x484xf32> to vector<8x346xf32>
    %281 = vector.extract_strided_slice %234 {offsets = [0, 116], sizes = [8, 346], strides = [1, 1]} : vector<8x484xf32> to vector<8x346xf32>
    %282 = tpu.concatenate %275, %276, %277, %278, %279, %280, %281 in 0 : vector<8x346xf32>, vector<8x346xf32>, vector<8x346xf32>, vector<8x346xf32>, vector<8x346xf32>, vector<8x346xf32>, vector<8x346xf32> -> vector<56x346xf32>
    %283 = vector.extract_strided_slice %234 {offsets = [0, 132], sizes = [8, 346], strides = [1, 1]} : vector<8x484xf32> to vector<8x346xf32>
    %284 = vector.extract_strided_slice %234 {offsets = [0, 133], sizes = [8, 346], strides = [1, 1]} : vector<8x484xf32> to vector<8x346xf32>
    %285 = vector.extract_strided_slice %234 {offsets = [0, 134], sizes = [8, 346], strides = [1, 1]} : vector<8x484xf32> to vector<8x346xf32>
    %286 = vector.extract_strided_slice %234 {offsets = [0, 135], sizes = [8, 346], strides = [1, 1]} : vector<8x484xf32> to vector<8x346xf32>
    %287 = vector.extract_strided_slice %234 {offsets = [0, 136], sizes = [8, 346], strides = [1, 1]} : vector<8x484xf32> to vector<8x346xf32>
    %288 = vector.extract_strided_slice %234 {offsets = [0, 137], sizes = [8, 346], strides = [1, 1]} : vector<8x484xf32> to vector<8x346xf32>
    %289 = vector.extract_strided_slice %234 {offsets = [0, 138], sizes = [8, 346], strides = [1, 1]} : vector<8x484xf32> to vector<8x346xf32>
    %290 = tpu.concatenate %283, %284, %285, %286, %287, %288, %289 in 0 : vector<8x346xf32>, vector<8x346xf32>, vector<8x346xf32>, vector<8x346xf32>, vector<8x346xf32>, vector<8x346xf32>, vector<8x346xf32> -> vector<56x346xf32>
    %291 = tpu.concatenate %242, %250, %258, %266, %274, %282, %290 in 0 : vector<56x346xf32>, vector<56x346xf32>, vector<56x346xf32>, vector<56x346xf32>, vector<56x346xf32>, vector<56x346xf32>, vector<56x346xf32> -> vector<392x346xf32>
    %292 = arith.truncf %291 : vector<392x346xf32> to vector<392x346xbf16>
    %c0_62 = arith.constant 0 : index
    %c0_63 = arith.constant 0 : index
    %293 = vector.load %arg16[%c0_62, %c0_63] : memref<8x392xbf16, #tpu.memory_space<vmem>>, vector<8x392xbf16>
    %cst_64 = arith.constant dense<0.000000e+00> : vector<8x346xf32>
    %294 = tpu.matmul %293, %292, %cst_64 {dimension_numbers = #tpu.dot_dimension_numbers<[1], [0], [0], [1], [0, 0, 1, 1], [], []>} : vector<8x392xbf16>, vector<392x346xbf16>, vector<8x346xf32> -> vector<8x346xf32>
    %c0_65 = arith.constant 0 : index
    %c0_66 = arith.constant 0 : index
    %295 = vector.load %arg13[%c0_65, %c0_66] : memref<346x256xf32, #tpu.memory_space<vmem>>, vector<346x256xf32>
    %cst_67 = arith.constant dense<0.000000e+00> : vector<8x256xf32>
    %296 = tpu.matmul %294, %295, %cst_67 {dimension_numbers = #tpu.dot_dimension_numbers<[1], [0], [0], [1], [0, 0, 1, 1], [], []>} : vector<8x346xf32>, vector<346x256xf32>, vector<8x256xf32> -> vector<8x256xf32>
    %c0_68 = arith.constant 0 : index
    %c0_69 = arith.constant 0 : index
    %297 = vector.load %arg12[%c0_68, %c0_69] : memref<64x484xf32, #tpu.memory_space<vmem>>, vector<64x484xf32>
    %cst_70 = arith.constant dense<0.000000e+00> : vector<8x484xf32>
    %298 = tpu.matmul %232, %297, %cst_70 {dimension_numbers = #tpu.dot_dimension_numbers<[1], [0], [0], [1], [0, 0, 1, 1], [], []>} : vector<8x64xf32>, vector<64x484xf32>, vector<8x484xf32> -> vector<8x484xf32>
    %299 = vector.extract_strided_slice %298 {offsets = [0, 0], sizes = [8, 346], strides = [1, 1]} : vector<8x484xf32> to vector<8x346xf32>
    %300 = vector.extract_strided_slice %298 {offsets = [0, 1], sizes = [8, 346], strides = [1, 1]} : vector<8x484xf32> to vector<8x346xf32>
    %301 = vector.extract_strided_slice %298 {offsets = [0, 2], sizes = [8, 346], strides = [1, 1]} : vector<8x484xf32> to vector<8x346xf32>
    %302 = vector.extract_strided_slice %298 {offsets = [0, 3], sizes = [8, 346], strides = [1, 1]} : vector<8x484xf32> to vector<8x346xf32>
    %303 = vector.extract_strided_slice %298 {offsets = [0, 4], sizes = [8, 346], strides = [1, 1]} : vector<8x484xf32> to vector<8x346xf32>
    %304 = vector.extract_strided_slice %298 {offsets = [0, 5], sizes = [8, 346], strides = [1, 1]} : vector<8x484xf32> to vector<8x346xf32>
    %305 = vector.extract_strided_slice %298 {offsets = [0, 6], sizes = [8, 346], strides = [1, 1]} : vector<8x484xf32> to vector<8x346xf32>
    %306 = tpu.concatenate %299, %300, %301, %302, %303, %304, %305 in 0 : vector<8x346xf32>, vector<8x346xf32>, vector<8x346xf32>, vector<8x346xf32>, vector<8x346xf32>, vector<8x346xf32>, vector<8x346xf32> -> vector<56x346xf32>
    %307 = vector.extract_strided_slice %298 {offsets = [0, 22], sizes = [8, 346], strides = [1, 1]} : vector<8x484xf32> to vector<8x346xf32>
    %308 = vector.extract_strided_slice %298 {offsets = [0, 23], sizes = [8, 346], strides = [1, 1]} : vector<8x484xf32> to vector<8x346xf32>
    %309 = vector.extract_strided_slice %298 {offsets = [0, 24], sizes = [8, 346], strides = [1, 1]} : vector<8x484xf32> to vector<8x346xf32>
    %310 = vector.extract_strided_slice %298 {offsets = [0, 25], sizes = [8, 346], strides = [1, 1]} : vector<8x484xf32> to vector<8x346xf32>
    %311 = vector.extract_strided_slice %298 {offsets = [0, 26], sizes = [8, 346], strides = [1, 1]} : vector<8x484xf32> to vector<8x346xf32>
    %312 = vector.extract_strided_slice %298 {offsets = [0, 27], sizes = [8, 346], strides = [1, 1]} : vector<8x484xf32> to vector<8x346xf32>
    %313 = vector.extract_strided_slice %298 {offsets = [0, 28], sizes = [8, 346], strides = [1, 1]} : vector<8x484xf32> to vector<8x346xf32>
    %314 = tpu.concatenate %307, %308, %309, %310, %311, %312, %313 in 0 : vector<8x346xf32>, vector<8x346xf32>, vector<8x346xf32>, vector<8x346xf32>, vector<8x346xf32>, vector<8x346xf32>, vector<8x346xf32> -> vector<56x346xf32>
    %315 = vector.extract_strided_slice %298 {offsets = [0, 44], sizes = [8, 346], strides = [1, 1]} : vector<8x484xf32> to vector<8x346xf32>
    %316 = vector.extract_strided_slice %298 {offsets = [0, 45], sizes = [8, 346], strides = [1, 1]} : vector<8x484xf32> to vector<8x346xf32>
    %317 = vector.extract_strided_slice %298 {offsets = [0, 46], sizes = [8, 346], strides = [1, 1]} : vector<8x484xf32> to vector<8x346xf32>
    %318 = vector.extract_strided_slice %298 {offsets = [0, 47], sizes = [8, 346], strides = [1, 1]} : vector<8x484xf32> to vector<8x346xf32>
    %319 = vector.extract_strided_slice %298 {offsets = [0, 48], sizes = [8, 346], strides = [1, 1]} : vector<8x484xf32> to vector<8x346xf32>
    %320 = vector.extract_strided_slice %298 {offsets = [0, 49], sizes = [8, 346], strides = [1, 1]} : vector<8x484xf32> to vector<8x346xf32>
    %321 = vector.extract_strided_slice %298 {offsets = [0, 50], sizes = [8, 346], strides = [1, 1]} : vector<8x484xf32> to vector<8x346xf32>
    %322 = tpu.concatenate %315, %316, %317, %318, %319, %320, %321 in 0 : vector<8x346xf32>, vector<8x346xf32>, vector<8x346xf32>, vector<8x346xf32>, vector<8x346xf32>, vector<8x346xf32>, vector<8x346xf32> -> vector<56x346xf32>
    %323 = vector.extract_strided_slice %298 {offsets = [0, 66], sizes = [8, 346], strides = [1, 1]} : vector<8x484xf32> to vector<8x346xf32>
    %324 = vector.extract_strided_slice %298 {offsets = [0, 67], sizes = [8, 346], strides = [1, 1]} : vector<8x484xf32> to vector<8x346xf32>
    %325 = vector.extract_strided_slice %298 {offsets = [0, 68], sizes = [8, 346], strides = [1, 1]} : vector<8x484xf32> to vector<8x346xf32>
    %326 = vector.extract_strided_slice %298 {offsets = [0, 69], sizes = [8, 346], strides = [1, 1]} : vector<8x484xf32> to vector<8x346xf32>
    %327 = vector.extract_strided_slice %298 {offsets = [0, 70], sizes = [8, 346], strides = [1, 1]} : vector<8x484xf32> to vector<8x346xf32>
    %328 = vector.extract_strided_slice %298 {offsets = [0, 71], sizes = [8, 346], strides = [1, 1]} : vector<8x484xf32> to vector<8x346xf32>
    %329 = vector.extract_strided_slice %298 {offsets = [0, 72], sizes = [8, 346], strides = [1, 1]} : vector<8x484xf32> to vector<8x346xf32>
    %330 = tpu.concatenate %323, %324, %325, %326, %327, %328, %329 in 0 : vector<8x346xf32>, vector<8x346xf32>, vector<8x346xf32>, vector<8x346xf32>, vector<8x346xf32>, vector<8x346xf32>, vector<8x346xf32> -> vector<56x346xf32>
    %331 = vector.extract_strided_slice %298 {offsets = [0, 88], sizes = [8, 346], strides = [1, 1]} : vector<8x484xf32> to vector<8x346xf32>
    %332 = vector.extract_strided_slice %298 {offsets = [0, 89], sizes = [8, 346], strides = [1, 1]} : vector<8x484xf32> to vector<8x346xf32>
    %333 = vector.extract_strided_slice %298 {offsets = [0, 90], sizes = [8, 346], strides = [1, 1]} : vector<8x484xf32> to vector<8x346xf32>
    %334 = vector.extract_strided_slice %298 {offsets = [0, 91], sizes = [8, 346], strides = [1, 1]} : vector<8x484xf32> to vector<8x346xf32>
    %335 = vector.extract_strided_slice %298 {offsets = [0, 92], sizes = [8, 346], strides = [1, 1]} : vector<8x484xf32> to vector<8x346xf32>
    %336 = vector.extract_strided_slice %298 {offsets = [0, 93], sizes = [8, 346], strides = [1, 1]} : vector<8x484xf32> to vector<8x346xf32>
    %337 = vector.extract_strided_slice %298 {offsets = [0, 94], sizes = [8, 346], strides = [1, 1]} : vector<8x484xf32> to vector<8x346xf32>
    %338 = tpu.concatenate %331, %332, %333, %334, %335, %336, %337 in 0 : vector<8x346xf32>, vector<8x346xf32>, vector<8x346xf32>, vector<8x346xf32>, vector<8x346xf32>, vector<8x346xf32>, vector<8x346xf32> -> vector<56x346xf32>
    %339 = vector.extract_strided_slice %298 {offsets = [0, 110], sizes = [8, 346], strides = [1, 1]} : vector<8x484xf32> to vector<8x346xf32>
    %340 = vector.extract_strided_slice %298 {offsets = [0, 111], sizes = [8, 346], strides = [1, 1]} : vector<8x484xf32> to vector<8x346xf32>
    %341 = vector.extract_strided_slice %298 {offsets = [0, 112], sizes = [8, 346], strides = [1, 1]} : vector<8x484xf32> to vector<8x346xf32>
    %342 = vector.extract_strided_slice %298 {offsets = [0, 113], sizes = [8, 346], strides = [1, 1]} : vector<8x484xf32> to vector<8x346xf32>
    %343 = vector.extract_strided_slice %298 {offsets = [0, 114], sizes = [8, 346], strides = [1, 1]} : vector<8x484xf32> to vector<8x346xf32>
    %344 = vector.extract_strided_slice %298 {offsets = [0, 115], sizes = [8, 346], strides = [1, 1]} : vector<8x484xf32> to vector<8x346xf32>
    %345 = vector.extract_strided_slice %298 {offsets = [0, 116], sizes = [8, 346], strides = [1, 1]} : vector<8x484xf32> to vector<8x346xf32>
    %346 = tpu.concatenate %339, %340, %341, %342, %343, %344, %345 in 0 : vector<8x346xf32>, vector<8x346xf32>, vector<8x346xf32>, vector<8x346xf32>, vector<8x346xf32>, vector<8x346xf32>, vector<8x346xf32> -> vector<56x346xf32>
    %347 = vector.extract_strided_slice %298 {offsets = [0, 132], sizes = [8, 346], strides = [1, 1]} : vector<8x484xf32> to vector<8x346xf32>
    %348 = vector.extract_strided_slice %298 {offsets = [0, 133], sizes = [8, 346], strides = [1, 1]} : vector<8x484xf32> to vector<8x346xf32>
    %349 = vector.extract_strided_slice %298 {offsets = [0, 134], sizes = [8, 346], strides = [1, 1]} : vector<8x484xf32> to vector<8x346xf32>
    %350 = vector.extract_strided_slice %298 {offsets = [0, 135], sizes = [8, 346], strides = [1, 1]} : vector<8x484xf32> to vector<8x346xf32>
    %351 = vector.extract_strided_slice %298 {offsets = [0, 136], sizes = [8, 346], strides = [1, 1]} : vector<8x484xf32> to vector<8x346xf32>
    %352 = vector.extract_strided_slice %298 {offsets = [0, 137], sizes = [8, 346], strides = [1, 1]} : vector<8x484xf32> to vector<8x346xf32>
    %353 = vector.extract_strided_slice %298 {offsets = [0, 138], sizes = [8, 346], strides = [1, 1]} : vector<8x484xf32> to vector<8x346xf32>
    %354 = tpu.concatenate %347, %348, %349, %350, %351, %352, %353 in 0 : vector<8x346xf32>, vector<8x346xf32>, vector<8x346xf32>, vector<8x346xf32>, vector<8x346xf32>, vector<8x346xf32>, vector<8x346xf32> -> vector<56x346xf32>
    %355 = tpu.concatenate %306, %314, %322, %330, %338, %346, %354 in 0 : vector<56x346xf32>, vector<56x346xf32>, vector<56x346xf32>, vector<56x346xf32>, vector<56x346xf32>, vector<56x346xf32>, vector<56x346xf32> -> vector<392x346xf32>
    %356 = arith.truncf %355 : vector<392x346xf32> to vector<392x346xbf16>
    %c0_71 = arith.constant 0 : index
    %c0_72 = arith.constant 0 : index
    %357 = vector.load %arg16[%c0_71, %c0_72] : memref<8x392xbf16, #tpu.memory_space<vmem>>, vector<8x392xbf16>
    %cst_73 = arith.constant dense<0.000000e+00> : vector<8x346xf32>
    %358 = tpu.matmul %357, %356, %cst_73 {dimension_numbers = #tpu.dot_dimension_numbers<[1], [0], [0], [1], [0, 0, 1, 1], [], []>} : vector<8x392xbf16>, vector<392x346xbf16>, vector<8x346xf32> -> vector<8x346xf32>
    %c0_74 = arith.constant 0 : index
    %c0_75 = arith.constant 0 : index
    %359 = vector.load %arg13[%c0_74, %c0_75] : memref<346x256xf32, #tpu.memory_space<vmem>>, vector<346x256xf32>
    %cst_76 = arith.constant dense<0.000000e+00> : vector<8x256xf32>
    %360 = tpu.matmul %358, %359, %cst_76 {dimension_numbers = #tpu.dot_dimension_numbers<[1], [0], [0], [1], [0, 0, 1, 1], [], []>} : vector<8x346xf32>, vector<346x256xf32>, vector<8x256xf32> -> vector<8x256xf32>
    %cst_77 = arith.constant dense<0.000000e+00> : vector<8xf32>
    %361 = vector.multi_reduction <add>, %296, %cst_77 [1] : vector<8x256xf32> to vector<8xf32>
    %362 = vector.shape_cast %361 : vector<8xf32> to vector<8x1xf32>
    %cst_78 = arith.constant 0.000000e+00 : f32
    %363 = vector.broadcast %cst_78 : f32 to vector<8x1xf32>
    %364 = arith.addf %363, %362 : vector<8x1xf32>
    %cst_79 = arith.constant dense<0.000000e+00> : vector<8xf32>
    %365 = vector.multi_reduction <add>, %360, %cst_79 [1] : vector<8x256xf32> to vector<8xf32>
    %366 = vector.shape_cast %365 : vector<8xf32> to vector<8x1xf32>
    %367 = arith.addf %364, %366 : vector<8x1xf32>
    %cst_80 = arith.constant 0.001953125 : f32
    %368 = vector.broadcast %cst_80 : f32 to vector<8x1xf32>
    %369 = arith.mulf %367, %368 : vector<8x1xf32>
    %370 = vector.broadcast %369 : vector<8x1xf32> to vector<8x256xf32>
    %371 = arith.subf %296, %370 : vector<8x256xf32>
    %372 = vector.broadcast %369 : vector<8x1xf32> to vector<8x256xf32>
    %373 = arith.subf %360, %372 : vector<8x256xf32>
    %374 = arith.mulf %371, %371 : vector<8x256xf32>
    %cst_81 = arith.constant dense<0.000000e+00> : vector<8xf32>
    %375 = vector.multi_reduction <add>, %374, %cst_81 [1] : vector<8x256xf32> to vector<8xf32>
    %376 = vector.shape_cast %375 : vector<8xf32> to vector<8x1xf32>
    %cst_82 = arith.constant 0.000000e+00 : f32
    %377 = vector.broadcast %cst_82 : f32 to vector<8x1xf32>
    %378 = arith.addf %377, %376 : vector<8x1xf32>
    %379 = arith.mulf %373, %373 : vector<8x256xf32>
    %cst_83 = arith.constant dense<0.000000e+00> : vector<8xf32>
    %380 = vector.multi_reduction <add>, %379, %cst_83 [1] : vector<8x256xf32> to vector<8xf32>
    %381 = vector.shape_cast %380 : vector<8xf32> to vector<8x1xf32>
    %382 = arith.addf %378, %381 : vector<8x1xf32>
    %cst_84 = arith.constant 0.001953125 : f32
    %383 = vector.broadcast %cst_84 : f32 to vector<8x1xf32>
    %384 = arith.mulf %382, %383 : vector<8x1xf32>
    %cst_85 = arith.constant 9.99999974E-6 : f32
    %385 = vector.broadcast %cst_85 : f32 to vector<8x1xf32>
    %386 = arith.addf %384, %385 : vector<8x1xf32>
    %387 = math.rsqrt %386 : vector<8x1xf32>
    %c0_86 = arith.constant 0 : index
    %c0_87 = arith.constant 0 : index
    %388 = vector.load %arg8[%c0_86, %c0_87] : memref<8x1xf32, #tpu.memory_space<vmem>>, vector<8x1xf32>
    %389 = arith.mulf %387, %388 : vector<8x1xf32>
    %390 = vector.broadcast %389 : vector<8x1xf32> to vector<8x256xf32>
    %391 = arith.mulf %371, %390 : vector<8x256xf32>
    %c0_88 = arith.constant 0 : index
    %c0_89 = arith.constant 0 : index
    %392 = vector.load %arg9[%c0_88, %c0_89] : memref<8x1xf32, #tpu.memory_space<vmem>>, vector<8x1xf32>
    %393 = vector.broadcast %392 : vector<8x1xf32> to vector<8x256xf32>
    %394 = arith.addf %391, %393 : vector<8x256xf32>
    %395 = vector.broadcast %389 : vector<8x1xf32> to vector<8x256xf32>
    %396 = arith.mulf %373, %395 : vector<8x256xf32>
    %c0_90 = arith.constant 0 : index
    %c0_91 = arith.constant 0 : index
    %397 = vector.load %arg9[%c0_90, %c0_91] : memref<8x1xf32, #tpu.memory_space<vmem>>, vector<8x1xf32>
    %398 = vector.broadcast %397 : vector<8x1xf32> to vector<8x256xf32>
    %399 = arith.addf %396, %398 : vector<8x256xf32>
    %cst_92 = arith.constant 0.000000e+00 : f32
    %400 = vector.broadcast %cst_92 : f32 to vector<8x256xf32>
    %401 = arith.cmpf oge, %394, %400 : vector<8x256xf32>
    %cst_93 = arith.constant 2.000000e-01 : f32
    %402 = vector.broadcast %cst_93 : f32 to vector<8x256xf32>
    %403 = arith.mulf %402, %394 : vector<8x256xf32>
    %404 = arith.select %401, %394, %403 : vector<8x256xi1>, vector<8x256xf32>
    %cst_94 = arith.constant 0.000000e+00 : f32
    %405 = vector.broadcast %cst_94 : f32 to vector<8x256xf32>
    %406 = arith.cmpf oge, %399, %405 : vector<8x256xf32>
    %cst_95 = arith.constant 2.000000e-01 : f32
    %407 = vector.broadcast %cst_95 : f32 to vector<8x256xf32>
    %408 = arith.mulf %407, %399 : vector<8x256xf32>
    %409 = arith.select %406, %399, %408 : vector<8x256xi1>, vector<8x256xf32>
    %c0_96 = arith.constant 0 : index
    %c0_97 = arith.constant 0 : index
    %410 = vector.load %arg14[%c0_96, %c0_97] : memref<256x484xf32, #tpu.memory_space<vmem>>, vector<256x484xf32>
    %cst_98 = arith.constant dense<0.000000e+00> : vector<8x484xf32>
    %411 = tpu.matmul %404, %410, %cst_98 {dimension_numbers = #tpu.dot_dimension_numbers<[1], [0], [0], [1], [0, 0, 1, 1], [], []>} : vector<8x256xf32>, vector<256x484xf32>, vector<8x484xf32> -> vector<8x484xf32>
    %412 = vector.extract_strided_slice %411 {offsets = [0, 0], sizes = [8, 346], strides = [1, 1]} : vector<8x484xf32> to vector<8x346xf32>
    %413 = vector.extract_strided_slice %411 {offsets = [0, 1], sizes = [8, 346], strides = [1, 1]} : vector<8x484xf32> to vector<8x346xf32>
    %414 = vector.extract_strided_slice %411 {offsets = [0, 2], sizes = [8, 346], strides = [1, 1]} : vector<8x484xf32> to vector<8x346xf32>
    %415 = vector.extract_strided_slice %411 {offsets = [0, 3], sizes = [8, 346], strides = [1, 1]} : vector<8x484xf32> to vector<8x346xf32>
    %416 = vector.extract_strided_slice %411 {offsets = [0, 4], sizes = [8, 346], strides = [1, 1]} : vector<8x484xf32> to vector<8x346xf32>
    %417 = vector.extract_strided_slice %411 {offsets = [0, 5], sizes = [8, 346], strides = [1, 1]} : vector<8x484xf32> to vector<8x346xf32>
    %418 = vector.extract_strided_slice %411 {offsets = [0, 6], sizes = [8, 346], strides = [1, 1]} : vector<8x484xf32> to vector<8x346xf32>
    %419 = tpu.concatenate %412, %413, %414, %415, %416, %417, %418 in 0 : vector<8x346xf32>, vector<8x346xf32>, vector<8x346xf32>, vector<8x346xf32>, vector<8x346xf32>, vector<8x346xf32>, vector<8x346xf32> -> vector<56x346xf32>
    %420 = vector.extract_strided_slice %411 {offsets = [0, 22], sizes = [8, 346], strides = [1, 1]} : vector<8x484xf32> to vector<8x346xf32>
    %421 = vector.extract_strided_slice %411 {offsets = [0, 23], sizes = [8, 346], strides = [1, 1]} : vector<8x484xf32> to vector<8x346xf32>
    %422 = vector.extract_strided_slice %411 {offsets = [0, 24], sizes = [8, 346], strides = [1, 1]} : vector<8x484xf32> to vector<8x346xf32>
    %423 = vector.extract_strided_slice %411 {offsets = [0, 25], sizes = [8, 346], strides = [1, 1]} : vector<8x484xf32> to vector<8x346xf32>
    %424 = vector.extract_strided_slice %411 {offsets = [0, 26], sizes = [8, 346], strides = [1, 1]} : vector<8x484xf32> to vector<8x346xf32>
    %425 = vector.extract_strided_slice %411 {offsets = [0, 27], sizes = [8, 346], strides = [1, 1]} : vector<8x484xf32> to vector<8x346xf32>
    %426 = vector.extract_strided_slice %411 {offsets = [0, 28], sizes = [8, 346], strides = [1, 1]} : vector<8x484xf32> to vector<8x346xf32>
    %427 = tpu.concatenate %420, %421, %422, %423, %424, %425, %426 in 0 : vector<8x346xf32>, vector<8x346xf32>, vector<8x346xf32>, vector<8x346xf32>, vector<8x346xf32>, vector<8x346xf32>, vector<8x346xf32> -> vector<56x346xf32>
    %428 = vector.extract_strided_slice %411 {offsets = [0, 44], sizes = [8, 346], strides = [1, 1]} : vector<8x484xf32> to vector<8x346xf32>
    %429 = vector.extract_strided_slice %411 {offsets = [0, 45], sizes = [8, 346], strides = [1, 1]} : vector<8x484xf32> to vector<8x346xf32>
    %430 = vector.extract_strided_slice %411 {offsets = [0, 46], sizes = [8, 346], strides = [1, 1]} : vector<8x484xf32> to vector<8x346xf32>
    %431 = vector.extract_strided_slice %411 {offsets = [0, 47], sizes = [8, 346], strides = [1, 1]} : vector<8x484xf32> to vector<8x346xf32>
    %432 = vector.extract_strided_slice %411 {offsets = [0, 48], sizes = [8, 346], strides = [1, 1]} : vector<8x484xf32> to vector<8x346xf32>
    %433 = vector.extract_strided_slice %411 {offsets = [0, 49], sizes = [8, 346], strides = [1, 1]} : vector<8x484xf32> to vector<8x346xf32>
    %434 = vector.extract_strided_slice %411 {offsets = [0, 50], sizes = [8, 346], strides = [1, 1]} : vector<8x484xf32> to vector<8x346xf32>
    %435 = tpu.concatenate %428, %429, %430, %431, %432, %433, %434 in 0 : vector<8x346xf32>, vector<8x346xf32>, vector<8x346xf32>, vector<8x346xf32>, vector<8x346xf32>, vector<8x346xf32>, vector<8x346xf32> -> vector<56x346xf32>
    %436 = vector.extract_strided_slice %411 {offsets = [0, 66], sizes = [8, 346], strides = [1, 1]} : vector<8x484xf32> to vector<8x346xf32>
    %437 = vector.extract_strided_slice %411 {offsets = [0, 67], sizes = [8, 346], strides = [1, 1]} : vector<8x484xf32> to vector<8x346xf32>
    %438 = vector.extract_strided_slice %411 {offsets = [0, 68], sizes = [8, 346], strides = [1, 1]} : vector<8x484xf32> to vector<8x346xf32>
    %439 = vector.extract_strided_slice %411 {offsets = [0, 69], sizes = [8, 346], strides = [1, 1]} : vector<8x484xf32> to vector<8x346xf32>
    %440 = vector.extract_strided_slice %411 {offsets = [0, 70], sizes = [8, 346], strides = [1, 1]} : vector<8x484xf32> to vector<8x346xf32>
    %441 = vector.extract_strided_slice %411 {offsets = [0, 71], sizes = [8, 346], strides = [1, 1]} : vector<8x484xf32> to vector<8x346xf32>
    %442 = vector.extract_strided_slice %411 {offsets = [0, 72], sizes = [8, 346], strides = [1, 1]} : vector<8x484xf32> to vector<8x346xf32>
    %443 = tpu.concatenate %436, %437, %438, %439, %440, %441, %442 in 0 : vector<8x346xf32>, vector<8x346xf32>, vector<8x346xf32>, vector<8x346xf32>, vector<8x346xf32>, vector<8x346xf32>, vector<8x346xf32> -> vector<56x346xf32>
    %444 = vector.extract_strided_slice %411 {offsets = [0, 88], sizes = [8, 346], strides = [1, 1]} : vector<8x484xf32> to vector<8x346xf32>
    %445 = vector.extract_strided_slice %411 {offsets = [0, 89], sizes = [8, 346], strides = [1, 1]} : vector<8x484xf32> to vector<8x346xf32>
    %446 = vector.extract_strided_slice %411 {offsets = [0, 90], sizes = [8, 346], strides = [1, 1]} : vector<8x484xf32> to vector<8x346xf32>
    %447 = vector.extract_strided_slice %411 {offsets = [0, 91], sizes = [8, 346], strides = [1, 1]} : vector<8x484xf32> to vector<8x346xf32>
    %448 = vector.extract_strided_slice %411 {offsets = [0, 92], sizes = [8, 346], strides = [1, 1]} : vector<8x484xf32> to vector<8x346xf32>
    %449 = vector.extract_strided_slice %411 {offsets = [0, 93], sizes = [8, 346], strides = [1, 1]} : vector<8x484xf32> to vector<8x346xf32>
    %450 = vector.extract_strided_slice %411 {offsets = [0, 94], sizes = [8, 346], strides = [1, 1]} : vector<8x484xf32> to vector<8x346xf32>
    %451 = tpu.concatenate %444, %445, %446, %447, %448, %449, %450 in 0 : vector<8x346xf32>, vector<8x346xf32>, vector<8x346xf32>, vector<8x346xf32>, vector<8x346xf32>, vector<8x346xf32>, vector<8x346xf32> -> vector<56x346xf32>
    %452 = vector.extract_strided_slice %411 {offsets = [0, 110], sizes = [8, 346], strides = [1, 1]} : vector<8x484xf32> to vector<8x346xf32>
    %453 = vector.extract_strided_slice %411 {offsets = [0, 111], sizes = [8, 346], strides = [1, 1]} : vector<8x484xf32> to vector<8x346xf32>
    %454 = vector.extract_strided_slice %411 {offsets = [0, 112], sizes = [8, 346], strides = [1, 1]} : vector<8x484xf32> to vector<8x346xf32>
    %455 = vector.extract_strided_slice %411 {offsets = [0, 113], sizes = [8, 346], strides = [1, 1]} : vector<8x484xf32> to vector<8x346xf32>
    %456 = vector.extract_strided_slice %411 {offsets = [0, 114], sizes = [8, 346], strides = [1, 1]} : vector<8x484xf32> to vector<8x346xf32>
    %457 = vector.extract_strided_slice %411 {offsets = [0, 115], sizes = [8, 346], strides = [1, 1]} : vector<8x484xf32> to vector<8x346xf32>
    %458 = vector.extract_strided_slice %411 {offsets = [0, 116], sizes = [8, 346], strides = [1, 1]} : vector<8x484xf32> to vector<8x346xf32>
    %459 = tpu.concatenate %452, %453, %454, %455, %456, %457, %458 in 0 : vector<8x346xf32>, vector<8x346xf32>, vector<8x346xf32>, vector<8x346xf32>, vector<8x346xf32>, vector<8x346xf32>, vector<8x346xf32> -> vector<56x346xf32>
    %460 = vector.extract_strided_slice %411 {offsets = [0, 132], sizes = [8, 346], strides = [1, 1]} : vector<8x484xf32> to vector<8x346xf32>
    %461 = vector.extract_strided_slice %411 {offsets = [0, 133], sizes = [8, 346], strides = [1, 1]} : vector<8x484xf32> to vector<8x346xf32>
    %462 = vector.extract_strided_slice %411 {offsets = [0, 134], sizes = [8, 346], strides = [1, 1]} : vector<8x484xf32> to vector<8x346xf32>
    %463 = vector.extract_strided_slice %411 {offsets = [0, 135], sizes = [8, 346], strides = [1, 1]} : vector<8x484xf32> to vector<8x346xf32>
    %464 = vector.extract_strided_slice %411 {offsets = [0, 136], sizes = [8, 346], strides = [1, 1]} : vector<8x484xf32> to vector<8x346xf32>
    %465 = vector.extract_strided_slice %411 {offsets = [0, 137], sizes = [8, 346], strides = [1, 1]} : vector<8x484xf32> to vector<8x346xf32>
    %466 = vector.extract_strided_slice %411 {offsets = [0, 138], sizes = [8, 346], strides = [1, 1]} : vector<8x484xf32> to vector<8x346xf32>
    %467 = tpu.concatenate %460, %461, %462, %463, %464, %465, %466 in 0 : vector<8x346xf32>, vector<8x346xf32>, vector<8x346xf32>, vector<8x346xf32>, vector<8x346xf32>, vector<8x346xf32>, vector<8x346xf32> -> vector<56x346xf32>
    %468 = tpu.concatenate %419, %427, %435, %443, %451, %459, %467 in 0 : vector<56x346xf32>, vector<56x346xf32>, vector<56x346xf32>, vector<56x346xf32>, vector<56x346xf32>, vector<56x346xf32>, vector<56x346xf32> -> vector<392x346xf32>
    %469 = arith.truncf %468 : vector<392x346xf32> to vector<392x346xbf16>
    %c0_99 = arith.constant 0 : index
    %c0_100 = arith.constant 0 : index
    %470 = vector.load %arg17[%c0_99, %c0_100] : memref<3x392xbf16, #tpu.memory_space<vmem>>, vector<3x392xbf16>
    %cst_101 = arith.constant dense<0.000000e+00> : vector<3x346xf32>
    %471 = tpu.matmul %470, %469, %cst_101 {dimension_numbers = #tpu.dot_dimension_numbers<[1], [0], [0], [1], [0, 0, 1, 1], [], []>} : vector<3x392xbf16>, vector<392x346xbf16>, vector<3x346xf32> -> vector<3x346xf32>
    %c0_102 = arith.constant 0 : index
    %c0_103 = arith.constant 0 : index
    %472 = vector.load %arg13[%c0_102, %c0_103] : memref<346x256xf32, #tpu.memory_space<vmem>>, vector<346x256xf32>
    %cst_104 = arith.constant dense<0.000000e+00> : vector<3x256xf32>
    %473 = tpu.matmul %471, %472, %cst_104 {dimension_numbers = #tpu.dot_dimension_numbers<[1], [0], [0], [1], [0, 0, 1, 1], [], []>} : vector<3x346xf32>, vector<346x256xf32>, vector<3x256xf32> -> vector<3x256xf32>
    %cst_105 = arith.constant 0.000000e+00 : f32
    %474 = vector.broadcast %cst_105 : f32 to vector<3x256xf32>
    %475 = arith.subf %474, %473 : vector<3x256xf32>
    %476 = math.exp %475 : vector<3x256xf32>
    %cst_106 = arith.constant 1.000000e+00 : f32
    %477 = vector.broadcast %cst_106 : f32 to vector<3x256xf32>
    %478 = arith.addf %477, %476 : vector<3x256xf32>
    %cst_107 = arith.constant 1.000000e+00 : f32
    %479 = vector.broadcast %cst_107 : f32 to vector<3x256xf32>
    %480 = arith.divf %479, %478 : vector<3x256xf32>
    %c0_108 = arith.constant 0 : index
    %c0_109 = arith.constant 0 : index
    %c0_110 = arith.constant 0 : index
    %481 = vector.load %arg18[%c0_108, %c0_109, %c0_110] : memref<2x3x256xf32, #tpu.memory_space<vmem>>, vector<1x3x256xf32>
    %482 = vector.shape_cast %481 : vector<1x3x256xf32> to vector<3x256xf32>
    %483 = vector.shape_cast %480 : vector<3x256xf32> to vector<1x3x256xf32>
    tpu.vector_store %arg18[%c0_108, %c0_109, %c0_110], %483 {strides = array<i32>} : memref<2x3x256xf32, #tpu.memory_space<vmem>>, vector<1x3x256xf32>,
    %c0_111 = arith.constant 0 : index
    %c0_112 = arith.constant 0 : index
    %484 = vector.load %arg14[%c0_111, %c0_112] : memref<256x484xf32, #tpu.memory_space<vmem>>, vector<256x484xf32>
    %cst_113 = arith.constant dense<0.000000e+00> : vector<8x484xf32>
    %485 = tpu.matmul %409, %484, %cst_113 {dimension_numbers = #tpu.dot_dimension_numbers<[1], [0], [0], [1], [0, 0, 1, 1], [], []>} : vector<8x256xf32>, vector<256x484xf32>, vector<8x484xf32> -> vector<8x484xf32>
    %486 = vector.extract_strided_slice %485 {offsets = [0, 0], sizes = [8, 346], strides = [1, 1]} : vector<8x484xf32> to vector<8x346xf32>
    %487 = vector.extract_strided_slice %485 {offsets = [0, 1], sizes = [8, 346], strides = [1, 1]} : vector<8x484xf32> to vector<8x346xf32>
    %488 = vector.extract_strided_slice %485 {offsets = [0, 2], sizes = [8, 346], strides = [1, 1]} : vector<8x484xf32> to vector<8x346xf32>
    %489 = vector.extract_strided_slice %485 {offsets = [0, 3], sizes = [8, 346], strides = [1, 1]} : vector<8x484xf32> to vector<8x346xf32>
    %490 = vector.extract_strided_slice %485 {offsets = [0, 4], sizes = [8, 346], strides = [1, 1]} : vector<8x484xf32> to vector<8x346xf32>
    %491 = vector.extract_strided_slice %485 {offsets = [0, 5], sizes = [8, 346], strides = [1, 1]} : vector<8x484xf32> to vector<8x346xf32>
    %492 = vector.extract_strided_slice %485 {offsets = [0, 6], sizes = [8, 346], strides = [1, 1]} : vector<8x484xf32> to vector<8x346xf32>
    %493 = tpu.concatenate %486, %487, %488, %489, %490, %491, %492 in 0 : vector<8x346xf32>, vector<8x346xf32>, vector<8x346xf32>, vector<8x346xf32>, vector<8x346xf32>, vector<8x346xf32>, vector<8x346xf32> -> vector<56x346xf32>
    %494 = vector.extract_strided_slice %485 {offsets = [0, 22], sizes = [8, 346], strides = [1, 1]} : vector<8x484xf32> to vector<8x346xf32>
    %495 = vector.extract_strided_slice %485 {offsets = [0, 23], sizes = [8, 346], strides = [1, 1]} : vector<8x484xf32> to vector<8x346xf32>
    %496 = vector.extract_strided_slice %485 {offsets = [0, 24], sizes = [8, 346], strides = [1, 1]} : vector<8x484xf32> to vector<8x346xf32>
    %497 = vector.extract_strided_slice %485 {offsets = [0, 25], sizes = [8, 346], strides = [1, 1]} : vector<8x484xf32> to vector<8x346xf32>
    %498 = vector.extract_strided_slice %485 {offsets = [0, 26], sizes = [8, 346], strides = [1, 1]} : vector<8x484xf32> to vector<8x346xf32>
    %499 = vector.extract_strided_slice %485 {offsets = [0, 27], sizes = [8, 346], strides = [1, 1]} : vector<8x484xf32> to vector<8x346xf32>
    %500 = vector.extract_strided_slice %485 {offsets = [0, 28], sizes = [8, 346], strides = [1, 1]} : vector<8x484xf32> to vector<8x346xf32>
    %501 = tpu.concatenate %494, %495, %496, %497, %498, %499, %500 in 0 : vector<8x346xf32>, vector<8x346xf32>, vector<8x346xf32>, vector<8x346xf32>, vector<8x346xf32>, vector<8x346xf32>, vector<8x346xf32> -> vector<56x346xf32>
    %502 = vector.extract_strided_slice %485 {offsets = [0, 44], sizes = [8, 346], strides = [1, 1]} : vector<8x484xf32> to vector<8x346xf32>
    %503 = vector.extract_strided_slice %485 {offsets = [0, 45], sizes = [8, 346], strides = [1, 1]} : vector<8x484xf32> to vector<8x346xf32>
    %504 = vector.extract_strided_slice %485 {offsets = [0, 46], sizes = [8, 346], strides = [1, 1]} : vector<8x484xf32> to vector<8x346xf32>
    %505 = vector.extract_strided_slice %485 {offsets = [0, 47], sizes = [8, 346], strides = [1, 1]} : vector<8x484xf32> to vector<8x346xf32>
    %506 = vector.extract_strided_slice %485 {offsets = [0, 48], sizes = [8, 346], strides = [1, 1]} : vector<8x484xf32> to vector<8x346xf32>
    %507 = vector.extract_strided_slice %485 {offsets = [0, 49], sizes = [8, 346], strides = [1, 1]} : vector<8x484xf32> to vector<8x346xf32>
    %508 = vector.extract_strided_slice %485 {offsets = [0, 50], sizes = [8, 346], strides = [1, 1]} : vector<8x484xf32> to vector<8x346xf32>
    %509 = tpu.concatenate %502, %503, %504, %505, %506, %507, %508 in 0 : vector<8x346xf32>, vector<8x346xf32>, vector<8x346xf32>, vector<8x346xf32>, vector<8x346xf32>, vector<8x346xf32>, vector<8x346xf32> -> vector<56x346xf32>
    %510 = vector.extract_strided_slice %485 {offsets = [0, 66], sizes = [8, 346], strides = [1, 1]} : vector<8x484xf32> to vector<8x346xf32>
    %511 = vector.extract_strided_slice %485 {offsets = [0, 67], sizes = [8, 346], strides = [1, 1]} : vector<8x484xf32> to vector<8x346xf32>
    %512 = vector.extract_strided_slice %485 {offsets = [0, 68], sizes = [8, 346], strides = [1, 1]} : vector<8x484xf32> to vector<8x346xf32>
    %513 = vector.extract_strided_slice %485 {offsets = [0, 69], sizes = [8, 346], strides = [1, 1]} : vector<8x484xf32> to vector<8x346xf32>
    %514 = vector.extract_strided_slice %485 {offsets = [0, 70], sizes = [8, 346], strides = [1, 1]} : vector<8x484xf32> to vector<8x346xf32>
    %515 = vector.extract_strided_slice %485 {offsets = [0, 71], sizes = [8, 346], strides = [1, 1]} : vector<8x484xf32> to vector<8x346xf32>
    %516 = vector.extract_strided_slice %485 {offsets = [0, 72], sizes = [8, 346], strides = [1, 1]} : vector<8x484xf32> to vector<8x346xf32>
    %517 = tpu.concatenate %510, %511, %512, %513, %514, %515, %516 in 0 : vector<8x346xf32>, vector<8x346xf32>, vector<8x346xf32>, vector<8x346xf32>, vector<8x346xf32>, vector<8x346xf32>, vector<8x346xf32> -> vector<56x346xf32>
    %518 = vector.extract_strided_slice %485 {offsets = [0, 88], sizes = [8, 346], strides = [1, 1]} : vector<8x484xf32> to vector<8x346xf32>
    %519 = vector.extract_strided_slice %485 {offsets = [0, 89], sizes = [8, 346], strides = [1, 1]} : vector<8x484xf32> to vector<8x346xf32>
    %520 = vector.extract_strided_slice %485 {offsets = [0, 90], sizes = [8, 346], strides = [1, 1]} : vector<8x484xf32> to vector<8x346xf32>
    %521 = vector.extract_strided_slice %485 {offsets = [0, 91], sizes = [8, 346], strides = [1, 1]} : vector<8x484xf32> to vector<8x346xf32>
    %522 = vector.extract_strided_slice %485 {offsets = [0, 92], sizes = [8, 346], strides = [1, 1]} : vector<8x484xf32> to vector<8x346xf32>
    %523 = vector.extract_strided_slice %485 {offsets = [0, 93], sizes = [8, 346], strides = [1, 1]} : vector<8x484xf32> to vector<8x346xf32>
    %524 = vector.extract_strided_slice %485 {offsets = [0, 94], sizes = [8, 346], strides = [1, 1]} : vector<8x484xf32> to vector<8x346xf32>
    %525 = tpu.concatenate %518, %519, %520, %521, %522, %523, %524 in 0 : vector<8x346xf32>, vector<8x346xf32>, vector<8x346xf32>, vector<8x346xf32>, vector<8x346xf32>, vector<8x346xf32>, vector<8x346xf32> -> vector<56x346xf32>
    %526 = vector.extract_strided_slice %485 {offsets = [0, 110], sizes = [8, 346], strides = [1, 1]} : vector<8x484xf32> to vector<8x346xf32>
    %527 = vector.extract_strided_slice %485 {offsets = [0, 111], sizes = [8, 346], strides = [1, 1]} : vector<8x484xf32> to vector<8x346xf32>
    %528 = vector.extract_strided_slice %485 {offsets = [0, 112], sizes = [8, 346], strides = [1, 1]} : vector<8x484xf32> to vector<8x346xf32>
    %529 = vector.extract_strided_slice %485 {offsets = [0, 113], sizes = [8, 346], strides = [1, 1]} : vector<8x484xf32> to vector<8x346xf32>
    %530 = vector.extract_strided_slice %485 {offsets = [0, 114], sizes = [8, 346], strides = [1, 1]} : vector<8x484xf32> to vector<8x346xf32>
    %531 = vector.extract_strided_slice %485 {offsets = [0, 115], sizes = [8, 346], strides = [1, 1]} : vector<8x484xf32> to vector<8x346xf32>
    %532 = vector.extract_strided_slice %485 {offsets = [0, 116], sizes = [8, 346], strides = [1, 1]} : vector<8x484xf32> to vector<8x346xf32>
    %533 = tpu.concatenate %526, %527, %528, %529, %530, %531, %532 in 0 : vector<8x346xf32>, vector<8x346xf32>, vector<8x346xf32>, vector<8x346xf32>, vector<8x346xf32>, vector<8x346xf32>, vector<8x346xf32> -> vector<56x346xf32>
    %534 = vector.extract_strided_slice %485 {offsets = [0, 132], sizes = [8, 346], strides = [1, 1]} : vector<8x484xf32> to vector<8x346xf32>
    %535 = vector.extract_strided_slice %485 {offsets = [0, 133], sizes = [8, 346], strides = [1, 1]} : vector<8x484xf32> to vector<8x346xf32>
    %536 = vector.extract_strided_slice %485 {offsets = [0, 134], sizes = [8, 346], strides = [1, 1]} : vector<8x484xf32> to vector<8x346xf32>
    %537 = vector.extract_strided_slice %485 {offsets = [0, 135], sizes = [8, 346], strides = [1, 1]} : vector<8x484xf32> to vector<8x346xf32>
    %538 = vector.extract_strided_slice %485 {offsets = [0, 136], sizes = [8, 346], strides = [1, 1]} : vector<8x484xf32> to vector<8x346xf32>
    %539 = vector.extract_strided_slice %485 {offsets = [0, 137], sizes = [8, 346], strides = [1, 1]} : vector<8x484xf32> to vector<8x346xf32>
    %540 = vector.extract_strided_slice %485 {offsets = [0, 138], sizes = [8, 346], strides = [1, 1]} : vector<8x484xf32> to vector<8x346xf32>
    %541 = tpu.concatenate %534, %535, %536, %537, %538, %539, %540 in 0 : vector<8x346xf32>, vector<8x346xf32>, vector<8x346xf32>, vector<8x346xf32>, vector<8x346xf32>, vector<8x346xf32>, vector<8x346xf32> -> vector<56x346xf32>
    %542 = tpu.concatenate %493, %501, %509, %517, %525, %533, %541 in 0 : vector<56x346xf32>, vector<56x346xf32>, vector<56x346xf32>, vector<56x346xf32>, vector<56x346xf32>, vector<56x346xf32>, vector<56x346xf32> -> vector<392x346xf32>
    %543 = arith.truncf %542 : vector<392x346xf32> to vector<392x346xbf16>
    %c0_114 = arith.constant 0 : index
    %c0_115 = arith.constant 0 : index
    %544 = vector.load %arg17[%c0_114, %c0_115] : memref<3x392xbf16, #tpu.memory_space<vmem>>, vector<3x392xbf16>
    %cst_116 = arith.constant dense<0.000000e+00> : vector<3x346xf32>
    %545 = tpu.matmul %544, %543, %cst_116 {dimension_numbers = #tpu.dot_dimension_numbers<[1], [0], [0], [1], [0, 0, 1, 1], [], []>} : vector<3x392xbf16>, vector<392x346xbf16>, vector<3x346xf32> -> vector<3x346xf32>
    %c0_117 = arith.constant 0 : index
    %c0_118 = arith.constant 0 : index
    %546 = vector.load %arg13[%c0_117, %c0_118] : memref<346x256xf32, #tpu.memory_space<vmem>>, vector<346x256xf32>
    %cst_119 = arith.constant dense<0.000000e+00> : vector<3x256xf32>
    %547 = tpu.matmul %545, %546, %cst_119 {dimension_numbers = #tpu.dot_dimension_numbers<[1], [0], [0], [1], [0, 0, 1, 1], [], []>} : vector<3x346xf32>, vector<346x256xf32>, vector<3x256xf32> -> vector<3x256xf32>
    %cst_120 = arith.constant 0.000000e+00 : f32
    %548 = vector.broadcast %cst_120 : f32 to vector<3x256xf32>
    %549 = arith.subf %548, %547 : vector<3x256xf32>
    %550 = math.exp %549 : vector<3x256xf32>
    %cst_121 = arith.constant 1.000000e+00 : f32
    %551 = vector.broadcast %cst_121 : f32 to vector<3x256xf32>
    %552 = arith.addf %551, %550 : vector<3x256xf32>
    %cst_122 = arith.constant 1.000000e+00 : f32
    %553 = vector.broadcast %cst_122 : f32 to vector<3x256xf32>
    %554 = arith.divf %553, %552 : vector<3x256xf32>
    %c1 = arith.constant 1 : index
    %c0_123 = arith.constant 0 : index
    %c0_124 = arith.constant 0 : index
    %555 = vector.load %arg18[%c1, %c0_123, %c0_124] : memref<2x3x256xf32, #tpu.memory_space<vmem>>, vector<1x3x256xf32>
    %556 = vector.shape_cast %555 : vector<1x3x256xf32> to vector<3x256xf32>
    %557 = vector.shape_cast %554 : vector<3x256xf32> to vector<1x3x256xf32>
    tpu.vector_store %arg18[%c1, %c0_123, %c0_124], %557 {strides = array<i32>} : memref<2x3x256xf32, #tpu.memory_space<vmem>>, vector<1x3x256xf32>,
    return
  }
}

</mosaic_0001>

<llo_original>
// kernel: tpu_custom_call.1
$region0: #{tpu_custom_call.1}
  #allocation0 [shape = 'u32[]', space=smem, size = 0x4, offset = 0x4, fixed_abs, tag = 'smem constant byte address 0x4 - core index']
  #allocation1 [shape = 'u32[144,128]{1,0:T(1,128)}', space=vmem, size = 0x12000, scoped, tag = 'internal scratch']
  %s0 = inlined_call_operand.vmem [shape: f32[2,16], index: 0, kind: input, shape index: {}]
  %s1 = inlined_call_operand.vmem [shape: f32[16,128], index: 1, kind: input, shape index: {}]
  %s2 = inlined_call_operand.vmem [shape: f32[1,128], index: 2, kind: input, shape index: {}]
  %s3 = inlined_call_operand.vmem [shape: f32[8,128], index: 3, kind: input, shape index: {}]
  %s4 = inlined_call_operand.vmem [shape: f32[8,1], index: 4, kind: input, shape index: {}]
  %s5 = inlined_call_operand.vmem [shape: f32[8,1], index: 5, kind: input, shape index: {}]
  %s6 = inlined_call_operand.vmem [shape: f32[8,1], index: 6, kind: input, shape index: {}]
  %s7 = inlined_call_operand.vmem [shape: f32[8,1], index: 7, kind: input, shape index: {}]
  %s8 = inlined_call_operand.vmem [shape: f32[8,1], index: 8, kind: input, shape index: {}]
  %s9 = inlined_call_operand.vmem [shape: f32[8,1], index: 9, kind: input, shape index: {}]
  %s10 = inlined_call_operand.vmem [shape: f32[128,196], index: 10, kind: input, shape index: {}]
  %s11 = inlined_call_operand.vmem [shape: f32[106,64], index: 11, kind: input, shape index: {}]
  %s12 = inlined_call_operand.vmem [shape: f32[64,484], index: 12, kind: input, shape index: {}]
  %s13 = inlined_call_operand.vmem [shape: f32[346,256], index: 13, kind: input, shape index: {}]
  %s14 = inlined_call_operand.vmem [shape: f32[256,484], index: 14, kind: input, shape index: {}]
  %s15 = inlined_call_operand.vmem [shape: bf16[8,392], index: 15, kind: input, shape index: {}]
  %s16 = inlined_call_operand.vmem [shape: bf16[8,392], index: 16, kind: input, shape index: {}]
  %s17 = inlined_call_operand.vmem [shape: bf16[3,392], index: 17, kind: input, shape index: {}]
  %s18 = inlined_call_operand.vmem [shape: f32[2,3,256], index: 18, kind: output, shape index: {}]
  %s19 = sld [smem:[#allocation0]]
  $region82: #{tpu_custom_call.1} parent=0
    _
  %s21 = ssub.s32 1, %s19
  %s22 = scalar_select 0, %s21, %s19
  // Predicated region
  $region2: #{tpu_custom_call.1} parent=0 // pred_check
    _
  $region3: #{tpu_custom_call.1} parent=0 // pred_check_branch
    %24 = sbr.rel (0) target = $region5
  $region4: #{tpu_custom_call.1} parent=0 // pred_region
    _
  $region5: #{tpu_custom_call.1} parent=0 // pred_fallthru
    _
  // Predicated region
  $region6: #{tpu_custom_call.1} parent=0 // pred_check
    _
  $region7: #{tpu_custom_call.1} parent=0 // pred_check_branch
    %26 = sbr.rel (0) target = $region9
  $region8: #{tpu_custom_call.1} parent=0 // pred_region
    _
  $region9: #{tpu_custom_call.1} parent=0 // pred_fallthru
    _
  // Predicated region
  $region10: #{tpu_custom_call.1} parent=0 // pred_check
    _
  $region11: #{tpu_custom_call.1} parent=0 // pred_check_branch
    %28 = sbr.rel (0) target = $region13
  $region12: #{tpu_custom_call.1} parent=0 // pred_region
    _
  $region13: #{tpu_custom_call.1} parent=0 // pred_fallthru
    _
  // Predicated region
  $region14: #{tpu_custom_call.1} parent=0 // pred_check
    _
  $region15: #{tpu_custom_call.1} parent=0 // pred_check_branch
    %30 = sbr.rel (0) target = $region17
  $region16: #{tpu_custom_call.1} parent=0 // pred_region
    _
  $region17: #{tpu_custom_call.1} parent=0 // pred_fallthru
    _
  // Predicated region
  $region18: #{tpu_custom_call.1} parent=0 // pred_check
    _
  $region19: #{tpu_custom_call.1} parent=0 // pred_check_branch
    %32 = sbr.rel (0) target = $region21
  $region20: #{tpu_custom_call.1} parent=0 // pred_region
    _
  $region21: #{tpu_custom_call.1} parent=0 // pred_fallthru
    _
  // Predicated region
  $region22: #{tpu_custom_call.1} parent=0 // pred_check
    _
  $region23: #{tpu_custom_call.1} parent=0 // pred_check_branch
    %34 = sbr.rel (0) target = $region25
  $region24: #{tpu_custom_call.1} parent=0 // pred_region
    _
  $region25: #{tpu_custom_call.1} parent=0 // pred_fallthru
    _
  // Predicated region
  $region26: #{tpu_custom_call.1} parent=0 // pred_check
    _
  $region27: #{tpu_custom_call.1} parent=0 // pred_check_branch
    %36 = sbr.rel (0) target = $region29
  $region28: #{tpu_custom_call.1} parent=0 // pred_region
    _
  $region29: #{tpu_custom_call.1} parent=0 // pred_fallthru
    _
  // Predicated region
  $region30: #{tpu_custom_call.1} parent=0 // pred_check
    _
  $region31: #{tpu_custom_call.1} parent=0 // pred_check_branch
    %38 = sbr.rel (0) target = $region33
  $region32: #{tpu_custom_call.1} parent=0 // pred_region
    _
  $region33: #{tpu_custom_call.1} parent=0 // pred_fallthru
    _
  // Predicated region
  $region34: #{tpu_custom_call.1} parent=0 // pred_check
    _
  $region35: #{tpu_custom_call.1} parent=0 // pred_check_branch
    %40 = sbr.rel (0) target = $region37
  $region36: #{tpu_custom_call.1} parent=0 // pred_region
    _
  $region37: #{tpu_custom_call.1} parent=0 // pred_fallthru
    _
  // Predicated region
  $region38: #{tpu_custom_call.1} parent=0 // pred_check
    _
  $region39: #{tpu_custom_call.1} parent=0 // pred_check_branch
    %42 = sbr.rel (0) target = $region41
  $region40: #{tpu_custom_call.1} parent=0 // pred_region
    _
  $region41: #{tpu_custom_call.1} parent=0 // pred_fallthru
    _
  // Predicated region
  $region42: #{tpu_custom_call.1} parent=0 // pred_check
    _
  $region43: #{tpu_custom_call.1} parent=0 // pred_check_branch
    %44 = sbr.rel (0) target = $region45
  $region44: #{tpu_custom_call.1} parent=0 // pred_region
    _
  $region45: #{tpu_custom_call.1} parent=0 // pred_fallthru
    _
  // Predicated region
  $region46: #{tpu_custom_call.1} parent=0 // pred_check
    _
  $region47: #{tpu_custom_call.1} parent=0 // pred_check_branch
    %46 = sbr.rel (0) target = $region49
  $region48: #{tpu_custom_call.1} parent=0 // pred_region
    _
  $region49: #{tpu_custom_call.1} parent=0 // pred_fallthru
    _
  // Predicated region
  $region50: #{tpu_custom_call.1} parent=0 // pred_check
    _
  $region51: #{tpu_custom_call.1} parent=0 // pred_check_branch
    %48 = sbr.rel (0) target = $region53
  $region52: #{tpu_custom_call.1} parent=0 // pred_region
    _
  $region53: #{tpu_custom_call.1} parent=0 // pred_fallthru
    _
  // Predicated region
  $region54: #{tpu_custom_call.1} parent=0 // pred_check
    _
  $region55: #{tpu_custom_call.1} parent=0 // pred_check_branch
    %50 = sbr.rel (0) target = $region57
  $region56: #{tpu_custom_call.1} parent=0 // pred_region
    _
  $region57: #{tpu_custom_call.1} parent=0 // pred_fallthru
    _
  // Predicated region
  $region58: #{tpu_custom_call.1} parent=0 // pred_check
    _
  $region59: #{tpu_custom_call.1} parent=0 // pred_check_branch
    %52 = sbr.rel (0) target = $region61
  $region60: #{tpu_custom_call.1} parent=0 // pred_region
    _
  $region61: #{tpu_custom_call.1} parent=0 // pred_fallthru
    _
  // Predicated region
  $region62: #{tpu_custom_call.1} parent=0 // pred_check
    _
  $region63: #{tpu_custom_call.1} parent=0 // pred_check_branch
    %54 = sbr.rel (0) target = $region65
  $region64: #{tpu_custom_call.1} parent=0 // pred_region
    _
  $region65: #{tpu_custom_call.1} parent=0 // pred_fallthru
    _
  // Predicated region
  $region66: #{tpu_custom_call.1} parent=0 // pred_check
    _
  $region67: #{tpu_custom_call.1} parent=0 // pred_check_branch
    %56 = sbr.rel (0) target = $region69
  $region68: #{tpu_custom_call.1} parent=0 // pred_region
    _
  $region69: #{tpu_custom_call.1} parent=0 // pred_fallthru
    _
  // Predicated region
  $region70: #{tpu_custom_call.1} parent=0 // pred_check
    _
  $region71: #{tpu_custom_call.1} parent=0 // pred_check_branch
    %58 = sbr.rel (0) target = $region73
  $region72: #{tpu_custom_call.1} parent=0 // pred_region
    _
  $region73: #{tpu_custom_call.1} parent=0 // pred_fallthru
    _
  %v60 = vld [vmem:[%s0] sm:$0x3]
  %v61 = vld [vmem:[%s1] sm:$0xff]
  %v62 = vld [vmem:[%s1 + $0x8] sm:$0xff]
  %v63 = vld [vmem:[%s2] sm:$0x1]
  %v65 = vlaneseq
  %v66 = vshrl.u32 %v65, 7
  %v67 = vsub.s32 0, %v66
  %v68 = vrot.slane %v63, %v67
  %vm70 = vcmask 130048
  %v72 = vsel %vm70, %v60, 0
  %74 = vmatprep.subr.mxu0 0.0
  %75 = vmatpush1.msra.mxu0 0.0
  %76 = vmatprep.subr.mxu0 0.0
  %77 = vmatpush1.msra.mxu0 0.0
  %78 = vmatprep.subr.mxu0 0.0
  %79 = vmatpush1.msra.mxu0 0.0
  %80 = vmatprep.subr.mxu0 0.0
  %81 = vmatpush1.msra.mxu0 0.0
  %82 = vmatprep.subr.mxu0 0.0
  %83 = vmatpush1.msra.mxu0 0.0
  %84 = vmatprep.subr.mxu0 0.0
  %85 = vmatpush1.msra.mxu0 0.0
  %86 = vmatprep.subr.mxu0 0.0
  %87 = vmatpush1.msra.mxu0 0.0
  %88 = vmatprep.subr.mxu0 0.0
  %89 = vmatpush1.msra.mxu0 0.0
  %90 = vmatprep.subr.mxu0 0.0
  %91 = vmatpush1.msra.mxu0 0.0
  %92 = vmatprep.subr.mxu0 0.0
  %93 = vmatpush1.msra.mxu0 0.0
  %94 = vmatprep.subr.mxu0 0.0
  %95 = vmatpush1.msra.mxu0 0.0
  %96 = vmatprep.subr.mxu0 0.0
  %97 = vmatpush1.msra.mxu0 0.0
  %98 = vmatprep.subr.mxu0 0.0
  %99 = vmatpush1.msra.mxu0 0.0
  %100 = vmatprep.subr.mxu0 0.0
  %101 = vmatpush1.msra.mxu0 0.0
  %102 = vmatprep.subr.mxu0 0.0
  %103 = vmatpush1.msra.mxu0 %v62
  %104 = vmatprep.subr.mxu0 0.0
  %105 = vmatpush1.msra.mxu0 %v61
  %106 = vmatprep.subr.mxu0 0.0
  %107 = vmatpush2.msra.mxu0 0.0
  %108 = vmatprep.subr.mxu0 0.0
  %109 = vmatpush2.msra.mxu0 0.0
  %110 = vmatprep.subr.mxu0 0.0
  %111 = vmatpush2.msra.mxu0 0.0
  %112 = vmatprep.subr.mxu0 0.0
  %113 = vmatpush2.msra.mxu0 0.0
  %114 = vmatprep.subr.mxu0 0.0
  %115 = vmatpush2.msra.mxu0 0.0
  %116 = vmatprep.subr.mxu0 0.0
  %117 = vmatpush2.msra.mxu0 0.0
  %118 = vmatprep.subr.mxu0 0.0
  %119 = vmatpush2.msra.mxu0 0.0
  %120 = vmatprep.subr.mxu0 0.0
  %121 = vmatpush2.msra.mxu0 0.0
  %122 = vmatprep.subr.mxu0 0.0
  %123 = vmatpush2.msra.mxu0 0.0
  %124 = vmatprep.subr.mxu0 0.0
  %125 = vmatpush2.msra.mxu0 0.0
  %126 = vmatprep.subr.mxu0 0.0
  %127 = vmatpush2.msra.mxu0 0.0
  %128 = vmatprep.subr.mxu0 0.0
  %129 = vmatpush2.msra.mxu0 0.0
  %130 = vmatprep.subr.mxu0 0.0
  %131 = vmatpush2.msra.mxu0 0.0
  %132 = vmatprep.subr.mxu0 0.0
  %133 = vmatpush2.msra.mxu0 0.0
  %134 = vmatprep.subr.mxu0 0.0
  %135 = vmatpush2.msra.mxu0 0.0
  %136 = vmatprep.subr.mxu0 0.0
  %137 = vmatpush2.msra.mxu0 0.0
  %138 = vmatprep.mubr.f32.mxu0 0.0
  %139 = vmatmul.mubr.f32.gmra.mxu0 %v72
  %v140 = vpop.f32.mrf.mxu0
  %v141 = vadd.f32 %v68, %v140
  %v142 = vpop.f32.mrf.mxu0
  %143 = vdwg.mxu0
  %v144 = vld [vmem:[%s3] sm:$0xff]
  %v145 = vlaneseq
  %v146 = vshrl.u32 %v145, 7
  %v147 = vsub.s32 0, %v146
  %v148 = vrot.slane %v141, %v147
  %v149 = vmul.f32 %v144, %v148
  %v150 = vlaneseq
  %v151 = vshrl.u32 %v150, 7
  %v152 = vsub.s32 1, %v151
  %v153 = vrot.slane %v141, %v152
  %v154 = vmul.f32 %v144, %v153
  %155 = vadd.xlane.f32.xlu0 %v149
  %v156 = vpop.xlane.xlu0 %155
  %v157 = vadd.f32 %v156, 0.0
  %158 = vadd.xlane.f32.xlu0 %v154
  %v159 = vpop.xlane.xlu0 %158
  %v160 = vadd.f32 %v157, %v159
  %v161 = vmul.f32 %v160, 0.03125
  %v162 = vmul.f32 %v149, %v149
  %163 = vadd.xlane.f32.xlu0 %v162
  %v164 = vpop.xlane.xlu0 %163
  %v165 = vadd.f32 %v164, 0.0
  %v166 = vmul.f32 %v154, %v154
  %167 = vadd.xlane.f32.xlu0 %v166
  %v168 = vpop.xlane.xlu0 %167
  %v169 = vadd.f32 %v165, %v168
  %v170 = vmul.f32 %v169, 0.03125
  %v171 = vmul.f32 %v161, %v161
  %v172 = vsub.f32 %v170, %v171
  %v173 = vsub.f32 %v149, %v161
  %v174 = vsub.f32 %v154, %v161
  %v175 = vadd.f32 %v172, 1e-05
  %v176 = vrsqrt.pop %v175
  %v177 = vld [vmem:[%s4] sm:$0xff]
  %v178 = vmul.f32 %v176, %v177
  %180 = vset.pattern.permute.xlu0 0
  %181 = vperm.xlu0 %180, %v178
  %v182 = vpop.permute.xlu0 %181
  %v184 = vmul.f32 %v173, %v182
  %v185 = vld [vmem:[%s5] sm:$0xff]
  %187 = vset.pattern.permute.xlu0 0
  %188 = vperm.xlu0 %187, %v185
  %v189 = vpop.permute.xlu0 %188
  %v191 = vadd.f32 %v184, %v189
  %v192 = vmul.f32 %v174, %v182
  %v193 = vadd.f32 %v192, %v189
  %v194 = vmul.f32 %v191, %v144
  %v195 = vmul.f32 %v193, %v144
  %v196 = vld [vmem:[%s10] sm:$0xff]
  %v197 = vld [vmem:[%s10 + $0x8] sm:$0xff]
  %v198 = vld [vmem:[%s10 + $0x10] sm:$0xff]
  %v199 = vld [vmem:[%s10 + $0x18] sm:$0xff]
  %v200 = vld [vmem:[%s10 + $0x20] sm:$0xff]
  %v201 = vld [vmem:[%s10 + $0x28] sm:$0xff]
  %v202 = vld [vmem:[%s10 + $0x30] sm:$0xff]
  %v203 = vld [vmem:[%s10 + $0x38] sm:$0xff]
  %v204 = vld [vmem:[%s10 + $0x40] sm:$0xff]
  %v205 = vld [vmem:[%s10 + $0x48] sm:$0xff]
  %v206 = vld [vmem:[%s10 + $0x50] sm:$0xff]
  %v207 = vld [vmem:[%s10 + $0x58] sm:$0xff]
  %v208 = vld [vmem:[%s10 + $0x60] sm:$0xff]
  %v209 = vld [vmem:[%s10 + $0x68] sm:$0xff]
  %v210 = vld [vmem:[%s10 + $0x70] sm:$0xff]
  %v211 = vld [vmem:[%s10 + $0x78] sm:$0xff]
  %v212 = vld [vmem:[%s10 + $0x80] sm:$0xff]
  %v213 = vld [vmem:[%s10 + $0x88] sm:$0xff]
  %v214 = vld [vmem:[%s10 + $0x90] sm:$0xff]
  %v215 = vld [vmem:[%s10 + $0x98] sm:$0xff]
  %v216 = vld [vmem:[%s10 + $0xa0] sm:$0xff]
  %v217 = vld [vmem:[%s10 + $0xa8] sm:$0xff]
  %v218 = vld [vmem:[%s10 + $0xb0] sm:$0xff]
  %v219 = vld [vmem:[%s10 + $0xb8] sm:$0xff]
  %v220 = vld [vmem:[%s10 + $0xc0] sm:$0xff]
  %v221 = vld [vmem:[%s10 + $0xc8] sm:$0xff]
  %v222 = vld [vmem:[%s10 + $0xd0] sm:$0xff]
  %v223 = vld [vmem:[%s10 + $0xd8] sm:$0xff]
  %v224 = vld [vmem:[%s10 + $0xe0] sm:$0xff]
  %v225 = vld [vmem:[%s10 + $0xe8] sm:$0xff]
  %v226 = vld [vmem:[%s10 + $0xf0] sm:$0xff]
  %v227 = vld [vmem:[%s10 + $0xf8] sm:$0xff]
  %228 = vmatprep.subr.mxu0 %v227
  %229 = vmatpush1.msra.mxu0 %v226
  %230 = vmatprep.subr.mxu0 %v225
  %231 = vmatpush1.msra.mxu0 %v224
  %232 = vmatprep.subr.mxu0 %v223
  %233 = vmatpush1.msra.mxu0 %v222
  %234 = vmatprep.subr.mxu0 %v221
  %235 = vmatpush1.msra.mxu0 %v220
  %236 = vmatprep.subr.mxu0 %v219
  %237 = vmatpush1.msra.mxu0 %v218
  %238 = vmatprep.subr.mxu0 %v217
  %239 = vmatpush1.msra.mxu0 %v216
  %240 = vmatprep.subr.mxu0 %v215
  %241 = vmatpush1.msra.mxu0 %v214
  %242 = vmatprep.subr.mxu0 %v213
  %243 = vmatpush1.msra.mxu0 %v212
  %244 = vmatprep.subr.mxu0 %v211
  %245 = vmatpush1.msra.mxu0 %v210
  %246 = vmatprep.subr.mxu0 %v209
  %247 = vmatpush1.msra.mxu0 %v208
  %248 = vmatprep.subr.mxu0 %v207
  %249 = vmatpush1.msra.mxu0 %v206
  %250 = vmatprep.subr.mxu0 %v205
  %251 = vmatpush1.msra.mxu0 %v204
  %252 = vmatprep.subr.mxu0 %v203
  %253 = vmatpush1.msra.mxu0 %v202
  %254 = vmatprep.subr.mxu0 %v201
  %255 = vmatpush1.msra.mxu0 %v200
  %256 = vmatprep.subr.mxu0 %v199
  %257 = vmatpush1.msra.mxu0 %v198
  %258 = vmatprep.subr.mxu0 %v197
  %259 = vmatpush1.msra.mxu0 %v196
  %260 = vmatprep.subr.mxu0 0.0
  %261 = vmatpush2.msra.mxu0 0.0
  %262 = vmatprep.subr.mxu0 0.0
  %263 = vmatpush2.msra.mxu0 0.0
  %264 = vmatprep.subr.mxu0 0.0
  %265 = vmatpush2.msra.mxu0 0.0
  %266 = vmatprep.subr.mxu0 0.0
  %267 = vmatpush2.msra.mxu0 0.0
  %268 = vmatprep.subr.mxu0 0.0
  %269 = vmatpush2.msra.mxu0 0.0
  %270 = vmatprep.subr.mxu0 0.0
  %271 = vmatpush2.msra.mxu0 0.0
  %272 = vmatprep.subr.mxu0 0.0
  %273 = vmatpush2.msra.mxu0 0.0
  %274 = vmatprep.subr.mxu0 0.0
  %275 = vmatpush2.msra.mxu0 0.0
  %276 = vmatprep.subr.mxu0 0.0
  %277 = vmatpush2.msra.mxu0 0.0
  %278 = vmatprep.subr.mxu0 0.0
  %279 = vmatpush2.msra.mxu0 0.0
  %280 = vmatprep.subr.mxu0 0.0
  %281 = vmatpush2.msra.mxu0 0.0
  %282 = vmatprep.subr.mxu0 0.0
  %283 = vmatpush2.msra.mxu0 0.0
  %284 = vmatprep.subr.mxu0 0.0
  %285 = vmatpush2.msra.mxu0 0.0
  %286 = vmatprep.subr.mxu0 0.0
  %287 = vmatpush2.msra.mxu0 0.0
  %288 = vmatprep.subr.mxu0 0.0
  %289 = vmatpush2.msra.mxu0 0.0
  %290 = vmatprep.subr.mxu0 0.0
  %291 = vmatpush2.msra.mxu0 0.0
  %292 = vmatprep.mubr.f32.mxu0 0.0
  %293 = vmatmul.mubr.f32.gmra.mxu0 %v194
  %v294 = vpop.f32.mrf.mxu0
  %v295 = vadd.f32 0.0, %v294
  %v296 = vpop.f32.mrf.mxu0
  %v297 = vadd.f32 0.0, %v296
  %298 = vdwg.mxu0
  %300 = vrot.lane.b32.xlu0 %v295, 127
  %v301 = vpop.permute.xlu0 %300
  %303 = vrot.lane.b32.xlu0 %v295, 126
  %v304 = vpop.permute.xlu0 %303
  %306 = vrot.lane.b32.xlu0 %v295, 125
  %v307 = vpop.permute.xlu0 %306
  %309 = vrot.lane.b32.xlu0 %v295, 124
  %v310 = vpop.permute.xlu0 %309
  %312 = vrot.lane.b32.xlu0 %v295, 123
  %v313 = vpop.permute.xlu0 %312
  %315 = vrot.lane.b32.xlu0 %v295, 122
  %v316 = vpop.permute.xlu0 %315
  %319 = vrot.lane.b32.xlu0 %v297, 127
  %v320 = vpop.permute.xlu0 %319
  %vm321 = vcmask 1039360
  %v322 = vsel %vm321, %v301, %v320
  %323 = vrot.lane.b32.xlu0 %v297, 126
  %v324 = vpop.permute.xlu0 %323
  %vm325 = vcmask 1031168
  %v326 = vsel %vm325, %v304, %v324
  %327 = vrot.lane.b32.xlu0 %v297, 125
  %v328 = vpop.permute.xlu0 %327
  %vm329 = vcmask 1022976
  %v330 = vsel %vm329, %v307, %v328
  %331 = vrot.lane.b32.xlu0 %v297, 124
  %v332 = vpop.permute.xlu0 %331
  %vm333 = vcmask 1014784
  %v334 = vsel %vm333, %v310, %v332
  %335 = vrot.lane.b32.xlu0 %v297, 123
  %v336 = vpop.permute.xlu0 %335
  %vm337 = vcmask 1006592
  %v338 = vsel %vm337, %v313, %v336
  %339 = vrot.lane.b32.xlu0 %v297, 122
  %v340 = vpop.permute.xlu0 %339
  %vm341 = vcmask 998400
  %v342 = vsel %vm341, %v316, %v340
  %343 = vrot.lane.b32.xlu0 %v295, 114
  %v344 = vpop.permute.xlu0 %343
  %345 = vrot.lane.b32.xlu0 %v301, 114
  %v346 = vpop.permute.xlu0 %345
  %347 = vrot.lane.b32.xlu0 %v304, 114
  %v348 = vpop.permute.xlu0 %347
  %349 = vrot.lane.b32.xlu0 %v307, 114
  %v350 = vpop.permute.xlu0 %349
  %351 = vrot.lane.b32.xlu0 %v310, 114
  %v352 = vpop.permute.xlu0 %351
  %353 = vrot.lane.b32.xlu0 %v313, 114
  %v354 = vpop.permute.xlu0 %353
  %355 = vrot.lane.b32.xlu0 %v316, 114
  %v356 = vpop.permute.xlu0 %355
  %364 = vrot.lane.b32.xlu0 %v295, 100
  %v365 = vpop.permute.xlu0 %364
  %366 = vrot.lane.b32.xlu0 %v297, 100
  %v367 = vpop.permute.xlu0 %366
  %368 = vrot.lane.b32.xlu0 %v322, 100
  %v369 = vpop.permute.xlu0 %368
  %370 = vrot.lane.b32.xlu0 %v320, 100
  %v371 = vpop.permute.xlu0 %370
  %372 = vrot.lane.b32.xlu0 %v326, 100
  %v373 = vpop.permute.xlu0 %372
  %374 = vrot.lane.b32.xlu0 %v324, 100
  %v375 = vpop.permute.xlu0 %374
  %376 = vrot.lane.b32.xlu0 %v330, 100
  %v377 = vpop.permute.xlu0 %376
  %378 = vrot.lane.b32.xlu0 %v328, 100
  %v379 = vpop.permute.xlu0 %378
  %380 = vrot.lane.b32.xlu0 %v334, 100
  %v381 = vpop.permute.xlu0 %380
  %382 = vrot.lane.b32.xlu0 %v332, 100
  %v383 = vpop.permute.xlu0 %382
  %384 = vrot.lane.b32.xlu0 %v338, 100
  %v385 = vpop.permute.xlu0 %384
  %386 = vrot.lane.b32.xlu0 %v336, 100
  %v387 = vpop.permute.xlu0 %386
  %388 = vrot.lane.b32.xlu0 %v342, 100
  %v389 = vpop.permute.xlu0 %388
  %390 = vrot.lane.b32.xlu0 %v340, 100
  %v391 = vpop.permute.xlu0 %390
  %vm392 = vcmask 818176
  %v393 = vsel %vm392, %v365, %v367
  %v394 = vsel %vm392, %v369, %v371
  %v395 = vsel %vm392, %v373, %v375
  %v396 = vsel %vm392, %v377, %v379
  %v397 = vsel %vm392, %v381, %v383
  %v398 = vsel %vm392, %v385, %v387
  %v399 = vsel %vm392, %v389, %v391
  %407 = vrot.lane.b32.xlu0 %v295, 86
  %v408 = vpop.permute.xlu0 %407
  %409 = vrot.lane.b32.xlu0 %v297, 86
  %v410 = vpop.permute.xlu0 %409
  %411 = vrot.lane.b32.xlu0 %v322, 86
  %v412 = vpop.permute.xlu0 %411
  %413 = vrot.lane.b32.xlu0 %v320, 86
  %v414 = vpop.permute.xlu0 %413
  %415 = vrot.lane.b32.xlu0 %v326, 86
  %v416 = vpop.permute.xlu0 %415
  %417 = vrot.lane.b32.xlu0 %v324, 86
  %v418 = vpop.permute.xlu0 %417
  %419 = vrot.lane.b32.xlu0 %v330, 86
  %v420 = vpop.permute.xlu0 %419
  %421 = vrot.lane.b32.xlu0 %v328, 86
  %v422 = vpop.permute.xlu0 %421
  %423 = vrot.lane.b32.xlu0 %v334, 86
  %v424 = vpop.permute.xlu0 %423
  %425 = vrot.lane.b32.xlu0 %v332, 86
  %v426 = vpop.permute.xlu0 %425
  %427 = vrot.lane.b32.xlu0 %v338, 86
  %v428 = vpop.permute.xlu0 %427
  %429 = vrot.lane.b32.xlu0 %v336, 86
  %v430 = vpop.permute.xlu0 %429
  %431 = vrot.lane.b32.xlu0 %v342, 86
  %v432 = vpop.permute.xlu0 %431
  %433 = vrot.lane.b32.xlu0 %v340, 86
  %v434 = vpop.permute.xlu0 %433
  %vm435 = vcmask 703488
  %v436 = vsel %vm435, %v408, %v410
  %v437 = vsel %vm435, %v412, %v414
  %v438 = vsel %vm435, %v416, %v418
  %v439 = vsel %vm435, %v420, %v422
  %v440 = vsel %vm435, %v424, %v426
  %v441 = vsel %vm435, %v428, %v430
  %v442 = vsel %vm435, %v432, %v434
  %450 = vrot.lane.b32.xlu0 %v295, 72
  %v451 = vpop.permute.xlu0 %450
  %452 = vrot.lane.b32.xlu0 %v297, 72
  %v453 = vpop.permute.xlu0 %452
  %454 = vrot.lane.b32.xlu0 %v322, 72
  %v455 = vpop.permute.xlu0 %454
  %456 = vrot.lane.b32.xlu0 %v320, 72
  %v457 = vpop.permute.xlu0 %456
  %458 = vrot.lane.b32.xlu0 %v326, 72
  %v459 = vpop.permute.xlu0 %458
  %460 = vrot.lane.b32.xlu0 %v324, 72
  %v461 = vpop.permute.xlu0 %460
  %462 = vrot.lane.b32.xlu0 %v330, 72
  %v463 = vpop.permute.xlu0 %462
  %464 = vrot.lane.b32.xlu0 %v328, 72
  %v465 = vpop.permute.xlu0 %464
  %466 = vrot.lane.b32.xlu0 %v334, 72
  %v467 = vpop.permute.xlu0 %466
  %468 = vrot.lane.b32.xlu0 %v332, 72
  %v469 = vpop.permute.xlu0 %468
  %470 = vrot.lane.b32.xlu0 %v338, 72
  %v471 = vpop.permute.xlu0 %470
  %472 = vrot.lane.b32.xlu0 %v336, 72
  %v473 = vpop.permute.xlu0 %472
  %474 = vrot.lane.b32.xlu0 %v342, 72
  %v475 = vpop.permute.xlu0 %474
  %476 = vrot.lane.b32.xlu0 %v340, 72
  %v477 = vpop.permute.xlu0 %476
  %vm478 = vcmask 588800
  %v479 = vsel %vm478, %v451, %v453
  %v480 = vsel %vm478, %v455, %v457
  %v481 = vsel %vm478, %v459, %v461
  %v482 = vsel %vm478, %v463, %v465
  %v483 = vsel %vm478, %v467, %v469
  %v484 = vsel %vm478, %v471, %v473
  %v485 = vsel %vm478, %v475, %v477
  %493 = vrot.lane.b32.xlu0 %v295, 58
  %v494 = vpop.permute.xlu0 %493
  %495 = vrot.lane.b32.xlu0 %v297, 58
  %v496 = vpop.permute.xlu0 %495
  %497 = vrot.lane.b32.xlu0 %v322, 58
  %v498 = vpop.permute.xlu0 %497
  %499 = vrot.lane.b32.xlu0 %v320, 58
  %v500 = vpop.permute.xlu0 %499
  %501 = vrot.lane.b32.xlu0 %v326, 58
  %v502 = vpop.permute.xlu0 %501
  %503 = vrot.lane.b32.xlu0 %v324, 58
  %v504 = vpop.permute.xlu0 %503
  %505 = vrot.lane.b32.xlu0 %v330, 58
  %v506 = vpop.permute.xlu0 %505
  %507 = vrot.lane.b32.xlu0 %v328, 58
  %v508 = vpop.permute.xlu0 %507
  %509 = vrot.lane.b32.xlu0 %v334, 58
  %v510 = vpop.permute.xlu0 %509
  %511 = vrot.lane.b32.xlu0 %v332, 58
  %v512 = vpop.permute.xlu0 %511
  %513 = vrot.lane.b32.xlu0 %v338, 58
  %v514 = vpop.permute.xlu0 %513
  %515 = vrot.lane.b32.xlu0 %v336, 58
  %v516 = vpop.permute.xlu0 %515
  %517 = vrot.lane.b32.xlu0 %v342, 58
  %v518 = vpop.permute.xlu0 %517
  %519 = vrot.lane.b32.xlu0 %v340, 58
  %v520 = vpop.permute.xlu0 %519
  %vm521 = vcmask 474112
  %v522 = vsel %vm521, %v494, %v496
  %v523 = vsel %vm521, %v498, %v500
  %v524 = vsel %vm521, %v502, %v504
  %v525 = vsel %vm521, %v506, %v508
  %v526 = vsel %vm521, %v510, %v512
  %v527 = vsel %vm521, %v514, %v516
  %v528 = vsel %vm521, %v518, %v520
  %536 = vrot.lane.b32.xlu0 %v295, 44
  %v537 = vpop.permute.xlu0 %536
  %538 = vrot.lane.b32.xlu0 %v297, 44
  %v539 = vpop.permute.xlu0 %538
  %540 = vrot.lane.b32.xlu0 %v322, 44
  %v541 = vpop.permute.xlu0 %540
  %542 = vrot.lane.b32.xlu0 %v320, 44
  %v543 = vpop.permute.xlu0 %542
  %544 = vrot.lane.b32.xlu0 %v326, 44
  %v545 = vpop.permute.xlu0 %544
  %546 = vrot.lane.b32.xlu0 %v324, 44
  %v547 = vpop.permute.xlu0 %546
  %548 = vrot.lane.b32.xlu0 %v330, 44
  %v549 = vpop.permute.xlu0 %548
  %550 = vrot.lane.b32.xlu0 %v328, 44
  %v551 = vpop.permute.xlu0 %550
  %552 = vrot.lane.b32.xlu0 %v334, 44
  %v553 = vpop.permute.xlu0 %552
  %554 = vrot.lane.b32.xlu0 %v332, 44
  %v555 = vpop.permute.xlu0 %554
  %556 = vrot.lane.b32.xlu0 %v338, 44
  %v557 = vpop.permute.xlu0 %556
  %558 = vrot.lane.b32.xlu0 %v336, 44
  %v559 = vpop.permute.xlu0 %558
  %560 = vrot.lane.b32.xlu0 %v342, 44
  %v561 = vpop.permute.xlu0 %560
  %562 = vrot.lane.b32.xlu0 %v340, 44
  %v563 = vpop.permute.xlu0 %562
  %vm564 = vcmask 359424
  %v565 = vsel %vm564, %v537, %v539
  %v566 = vsel %vm564, %v541, %v543
  %v567 = vsel %vm564, %v545, %v547
  %v568 = vsel %vm564, %v549, %v551
  %v569 = vsel %vm564, %v553, %v555
  %v570 = vsel %vm564, %v557, %v559
  %v571 = vsel %vm564, %v561, %v563
  %v579 = vpack.c.bf16 %v301, %v295
  %v580 = vpack.c.bf16 %v307, %v304
  %v581 = vpack.c.bf16 %v313, %v310
  %v582 = vpack.c.bf16 %v344, %v316
  %v583 = vpack.c.bf16 %v348, %v346
  %v584 = vpack.c.bf16 %v352, %v350
  %v585 = vpack.c.bf16 %v356, %v354
  %v586 = vpack.c.bf16 %v394, %v393
  %v587 = vpack.c.bf16 %v396, %v395
  %v588 = vpack.c.bf16 %v398, %v397
  %v589 = vpack.c.bf16 %v436, %v399
  %v590 = vpack.c.bf16 %v438, %v437
  %v591 = vpack.c.bf16 %v440, %v439
  %v592 = vpack.c.bf16 %v442, %v441
  %v593 = vpack.c.bf16 %v480, %v479
  %v594 = vpack.c.bf16 %v482, %v481
  %v595 = vpack.c.bf16 %v484, %v483
  %v596 = vpack.c.bf16 %v522, %v485
  %v597 = vpack.c.bf16 %v524, %v523
  %v598 = vpack.c.bf16 %v526, %v525
  %v599 = vpack.c.bf16 %v528, %v527
  %v600 = vpack.c.bf16 %v566, %v565
  %v601 = vpack.c.bf16 %v568, %v567
  %v602 = vpack.c.bf16 %v570, %v569
  %v603 = vpack.c.bf16 %v571, %v571
  %v604 = vld [vmem:[%s15] sm:$0xff]
  %v605 = vld [vmem:[%s15 + $0x8] sm:$0xff]
  %v608 = vunpack.c.l.b16 %v604
  %v609 = vunpack.c.h.b16 %v604
  %v610 = vunpack.c.l.b16 %v605
  %v611 = vunpack.c.h.b16 %v605
  %v612 = vpack.c.b16 %v608, %v608
  %v613 = vpack.c.b16 %v609, %v609
  %v614 = vpack.c.b16 %v610, %v610
  %v615 = vpack.c.b16 %v611, %v611
  %vm619 = vcmask 64512
  %v621 = vsel %vm619, %v615, 0
  %vm623 = vcmask 1043456
  %v625 = vsel %vm623, %v603, 0
  %627 = vmatprep.subr.bf16.mxu0 0
  %628 = vmatpush1.bf16.msra.mxu0 %v586
  %629 = vmatprep.subr.bf16.mxu0 0
  %630 = vmatpush1.bf16.msra.mxu0 %v585
  %631 = vmatprep.subr.bf16.mxu0 0
  %632 = vmatpush1.bf16.msra.mxu0 %v584
  %633 = vmatprep.subr.bf16.mxu0 0
  %634 = vmatpush1.bf16.msra.mxu0 %v583
  %635 = vmatprep.subr.bf16.mxu0 0
  %636 = vmatpush1.bf16.msra.mxu0 %v582
  %637 = vmatprep.subr.bf16.mxu0 0
  %638 = vmatpush1.bf16.msra.mxu0 %v581
  %639 = vmatprep.subr.bf16.mxu0 0
  %640 = vmatpush1.bf16.msra.mxu0 %v580
  %641 = vmatprep.subr.bf16.mxu0 0
  %642 = vmatpush1.bf16.msra.mxu0 %v579
  %643 = vmatprep.subr.bf16.mxu0 0
  %644 = vmatpush2.bf16.msra.mxu0 %v594
  %645 = vmatprep.subr.bf16.mxu0 0
  %646 = vmatpush2.bf16.msra.mxu0 %v593
  %647 = vmatprep.subr.bf16.mxu0 0
  %648 = vmatpush2.bf16.msra.mxu0 %v592
  %649 = vmatprep.subr.bf16.mxu0 0
  %650 = vmatpush2.bf16.msra.mxu0 %v591
  %651 = vmatprep.subr.bf16.mxu0 0
  %652 = vmatpush2.bf16.msra.mxu0 %v590
  %653 = vmatprep.subr.bf16.mxu0 0
  %654 = vmatpush2.bf16.msra.mxu0 %v589
  %655 = vmatprep.subr.bf16.mxu0 0
  %656 = vmatpush2.bf16.msra.mxu0 %v588
  %657 = vmatprep.subr.bf16.mxu0 0
  %658 = vmatpush2.bf16.msra.mxu0 %v587
  %659 = vmatprep.mubr.bf16.mxu0 %v613
  %660 = vmatmul.mubr.bf16.gmra.mxu0 %v612
  %v661 = vpop.f32.mrf.mxu0
  %v662 = vadd.f32 0.0, %v661
  %v663 = vpop.f32.mrf.mxu0
  %v664 = vpop.f32.mrf.mxu0
  %v665 = vpop.f32.mrf.mxu0
  %666 = vdwg.mxu0
  %667 = vmatprep.subr.bf16.mxu0 0
  %668 = vmatpush1.bf16.msra.mxu0 %v602
  %669 = vmatprep.subr.bf16.mxu0 0
  %670 = vmatpush1.bf16.msra.mxu0 %v601
  %671 = vmatprep.subr.bf16.mxu0 0
  %672 = vmatpush1.bf16.msra.mxu0 %v600
  %673 = vmatprep.subr.bf16.mxu0 0
  %674 = vmatpush1.bf16.msra.mxu0 %v599
  %675 = vmatprep.subr.bf16.mxu0 0
  %676 = vmatpush1.bf16.msra.mxu0 %v598
  %677 = vmatprep.subr.bf16.mxu0 0
  %678 = vmatpush1.bf16.msra.mxu0 %v597
  %679 = vmatprep.subr.bf16.mxu0 0
  %680 = vmatpush1.bf16.msra.mxu0 %v596
  %681 = vmatprep.subr.bf16.mxu0 0
  %682 = vmatpush1.bf16.msra.mxu0 %v595
  %683 = vmatprep.subr.bf16.mxu0 0
  %684 = vmatpush2.bf16.msra.mxu0 0
  %685 = vmatprep.subr.bf16.mxu0 0
  %686 = vmatpush2.bf16.msra.mxu0 0
  %687 = vmatprep.subr.bf16.mxu0 0
  %688 = vmatpush2.bf16.msra.mxu0 0
  %689 = vmatprep.subr.bf16.mxu0 0
  %690 = vmatpush2.bf16.msra.mxu0 0
  %691 = vmatprep.subr.bf16.mxu0 0
  %692 = vmatpush2.bf16.msra.mxu0 0
  %693 = vmatprep.subr.bf16.mxu0 0
  %694 = vmatpush2.bf16.msra.mxu0 0
  %695 = vmatprep.subr.bf16.mxu0 0
  %696 = vmatpush2.bf16.msra.mxu0 0
  %697 = vmatprep.subr.bf16.mxu0 0
  %698 = vmatpush2.bf16.msra.mxu0 %v625
  %699 = vmatprep.mubr.bf16.mxu0 %v621
  %700 = vmatmul.mubr.bf16.gmra.mxu0 %v614
  %v701 = vpop.f32.mrf.mxu0
  %v702 = vadd.f32 %v662, %v701
  %v703 = vpop.f32.mrf.mxu0
  %v704 = vpop.f32.mrf.mxu0
  %v705 = vpop.f32.mrf.mxu0
  %706 = vdwg.mxu0
  %v707 = vld [vmem:[%s11] sm:$0xff]
  %v708 = vld [vmem:[%s11 + $0x8] sm:$0xff]
  %v709 = vld [vmem:[%s11 + $0x10] sm:$0xff]
  %v710 = vld [vmem:[%s11 + $0x18] sm:$0xff]
  %v711 = vld [vmem:[%s11 + $0x20] sm:$0xff]
  %v712 = vld [vmem:[%s11 + $0x28] sm:$0xff]
  %v713 = vld [vmem:[%s11 + $0x30] sm:$0xff]
  %v714 = vld [vmem:[%s11 + $0x38] sm:$0xff]
  %v715 = vld [vmem:[%s11 + $0x40] sm:$0xff]
  %v716 = vld [vmem:[%s11 + $0x48] sm:$0xff]
  %v717 = vld [vmem:[%s11 + $0x50] sm:$0xff]
  %v718 = vld [vmem:[%s11 + $0x58] sm:$0xff]
  %v719 = vld [vmem:[%s11 + $0x60] sm:$0xff]
  %v720 = vld [vmem:[%s11 + $0x68] sm:$0x3]
  %vm721 = vcmask 867328
  %v723 = vsel %vm721, %v702, 0
  %vm725 = vcmask 1041408
  %v727 = vsel %vm725, %v720, 0
  %729 = vmatprep.subr.mxu0 0.0
  %730 = vmatpush1.msra.mxu0 0.0
  %731 = vmatprep.subr.mxu0 0.0
  %732 = vmatpush1.msra.mxu0 0.0
  %733 = vmatprep.subr.mxu0 0.0
  %734 = vmatpush1.msra.mxu0 %v727
  %735 = vmatprep.subr.mxu0 0.0
  %736 = vmatpush1.msra.mxu0 %v719
  %737 = vmatprep.subr.mxu0 0.0
  %738 = vmatpush1.msra.mxu0 %v718
  %739 = vmatprep.subr.mxu0 0.0
  %740 = vmatpush1.msra.mxu0 %v717
  %741 = vmatprep.subr.mxu0 0.0
  %742 = vmatpush1.msra.mxu0 %v716
  %743 = vmatprep.subr.mxu0 0.0
  %744 = vmatpush1.msra.mxu0 %v715
  %745 = vmatprep.subr.mxu0 0.0
  %746 = vmatpush1.msra.mxu0 %v714
  %747 = vmatprep.subr.mxu0 0.0
  %748 = vmatpush1.msra.mxu0 %v713
  %749 = vmatprep.subr.mxu0 0.0
  %750 = vmatpush1.msra.mxu0 %v712
  %751 = vmatprep.subr.mxu0 0.0
  %752 = vmatpush1.msra.mxu0 %v711
  %753 = vmatprep.subr.mxu0 0.0
  %754 = vmatpush1.msra.mxu0 %v710
  %755 = vmatprep.subr.mxu0 0.0
  %756 = vmatpush1.msra.mxu0 %v709
  %757 = vmatprep.subr.mxu0 0.0
  %758 = vmatpush1.msra.mxu0 %v708
  %759 = vmatprep.subr.mxu0 0.0
  %760 = vmatpush1.msra.mxu0 %v707
  %761 = vmatprep.subr.mxu0 0.0
  %762 = vmatpush2.msra.mxu0 0.0
  %763 = vmatprep.subr.mxu0 0.0
  %764 = vmatpush2.msra.mxu0 0.0
  %765 = vmatprep.subr.mxu0 0.0
  %766 = vmatpush2.msra.mxu0 0.0
  %767 = vmatprep.subr.mxu0 0.0
  %768 = vmatpush2.msra.mxu0 0.0
  %769 = vmatprep.subr.mxu0 0.0
  %770 = vmatpush2.msra.mxu0 0.0
  %771 = vmatprep.subr.mxu0 0.0
  %772 = vmatpush2.msra.mxu0 0.0
  %773 = vmatprep.subr.mxu0 0.0
  %774 = vmatpush2.msra.mxu0 0.0
  %775 = vmatprep.subr.mxu0 0.0
  %776 = vmatpush2.msra.mxu0 0.0
  %777 = vmatprep.subr.mxu0 0.0
  %778 = vmatpush2.msra.mxu0 0.0
  %779 = vmatprep.subr.mxu0 0.0
  %780 = vmatpush2.msra.mxu0 0.0
  %781 = vmatprep.subr.mxu0 0.0
  %782 = vmatpush2.msra.mxu0 0.0
  %783 = vmatprep.subr.mxu0 0.0
  %784 = vmatpush2.msra.mxu0 0.0
  %785 = vmatprep.subr.mxu0 0.0
  %786 = vmatpush2.msra.mxu0 0.0
  %787 = vmatprep.subr.mxu0 0.0
  %788 = vmatpush2.msra.mxu0 0.0
  %789 = vmatprep.subr.mxu0 0.0
  %790 = vmatpush2.msra.mxu0 0.0
  %791 = vmatprep.subr.mxu0 0.0
  %792 = vmatpush2.msra.mxu0 0.0
  %793 = vmatprep.mubr.f32.mxu0 0.0
  %794 = vmatmul.mubr.f32.gmra.mxu0 %v723
  %v795 = vpop.f32.mrf.mxu0
  %v796 = vadd.f32 0.0, %v795
  %v797 = vpop.f32.mrf.mxu0
  %798 = vdwg.mxu0
  %799 = vmatprep.subr.mxu0 %v227
  %800 = vmatpush1.msra.mxu0 %v226
  %801 = vmatprep.subr.mxu0 %v225
  %802 = vmatpush1.msra.mxu0 %v224
  %803 = vmatprep.subr.mxu0 %v223
  %804 = vmatpush1.msra.mxu0 %v222
  %805 = vmatprep.subr.mxu0 %v221
  %806 = vmatpush1.msra.mxu0 %v220
  %807 = vmatprep.subr.mxu0 %v219
  %808 = vmatpush1.msra.mxu0 %v218
  %809 = vmatprep.subr.mxu0 %v217
  %810 = vmatpush1.msra.mxu0 %v216
  %811 = vmatprep.subr.mxu0 %v215
  %812 = vmatpush1.msra.mxu0 %v214
  %813 = vmatprep.subr.mxu0 %v213
  %814 = vmatpush1.msra.mxu0 %v212
  %815 = vmatprep.subr.mxu0 %v211
  %816 = vmatpush1.msra.mxu0 %v210
  %817 = vmatprep.subr.mxu0 %v209
  %818 = vmatpush1.msra.mxu0 %v208
  %819 = vmatprep.subr.mxu0 %v207
  %820 = vmatpush1.msra.mxu0 %v206
  %821 = vmatprep.subr.mxu0 %v205
  %822 = vmatpush1.msra.mxu0 %v204
  %823 = vmatprep.subr.mxu0 %v203
  %824 = vmatpush1.msra.mxu0 %v202
  %825 = vmatprep.subr.mxu0 %v201
  %826 = vmatpush1.msra.mxu0 %v200
  %827 = vmatprep.subr.mxu0 %v199
  %828 = vmatpush1.msra.mxu0 %v198
  %829 = vmatprep.subr.mxu0 %v197
  %830 = vmatpush1.msra.mxu0 %v196
  %831 = vmatprep.subr.mxu0 0.0
  %832 = vmatpush2.msra.mxu0 0.0
  %833 = vmatprep.subr.mxu0 0.0
  %834 = vmatpush2.msra.mxu0 0.0
  %835 = vmatprep.subr.mxu0 0.0
  %836 = vmatpush2.msra.mxu0 0.0
  %837 = vmatprep.subr.mxu0 0.0
  %838 = vmatpush2.msra.mxu0 0.0
  %839 = vmatprep.subr.mxu0 0.0
  %840 = vmatpush2.msra.mxu0 0.0
  %841 = vmatprep.subr.mxu0 0.0
  %842 = vmatpush2.msra.mxu0 0.0
  %843 = vmatprep.subr.mxu0 0.0
  %844 = vmatpush2.msra.mxu0 0.0
  %845 = vmatprep.subr.mxu0 0.0
  %846 = vmatpush2.msra.mxu0 0.0
  %847 = vmatprep.subr.mxu0 0.0
  %848 = vmatpush2.msra.mxu0 0.0
  %849 = vmatprep.subr.mxu0 0.0
  %850 = vmatpush2.msra.mxu0 0.0
  %851 = vmatprep.subr.mxu0 0.0
  %852 = vmatpush2.msra.mxu0 0.0
  %853 = vmatprep.subr.mxu0 0.0
  %854 = vmatpush2.msra.mxu0 0.0
  %855 = vmatprep.subr.mxu0 0.0
  %856 = vmatpush2.msra.mxu0 0.0
  %857 = vmatprep.subr.mxu0 0.0
  %858 = vmatpush2.msra.mxu0 0.0
  %859 = vmatprep.subr.mxu0 0.0
  %860 = vmatpush2.msra.mxu0 0.0
  %861 = vmatprep.subr.mxu0 0.0
  %862 = vmatpush2.msra.mxu0 0.0
  %863 = vmatprep.mubr.f32.mxu0 0.0
  %864 = vmatmul.mubr.f32.gmra.mxu0 %v195
  %v865 = vpop.f32.mrf.mxu0
  %v866 = vadd.f32 0.0, %v865
  %v867 = vpop.f32.mrf.mxu0
  %v868 = vadd.f32 0.0, %v867
  %869 = vdwg.mxu0
  %871 = vrot.lane.b32.xlu0 %v866, 127
  %v872 = vpop.permute.xlu0 %871
  %874 = vrot.lane.b32.xlu0 %v866, 126
  %v875 = vpop.permute.xlu0 %874
  %877 = vrot.lane.b32.xlu0 %v866, 125
  %v878 = vpop.permute.xlu0 %877
  %880 = vrot.lane.b32.xlu0 %v866, 124
  %v881 = vpop.permute.xlu0 %880
  %883 = vrot.lane.b32.xlu0 %v866, 123
  %v884 = vpop.permute.xlu0 %883
  %886 = vrot.lane.b32.xlu0 %v866, 122
  %v887 = vpop.permute.xlu0 %886
  %890 = vrot.lane.b32.xlu0 %v868, 127
  %v891 = vpop.permute.xlu0 %890
  %v892 = vsel %vm321, %v872, %v891
  %893 = vrot.lane.b32.xlu0 %v868, 126
  %v894 = vpop.permute.xlu0 %893
  %v895 = vsel %vm325, %v875, %v894
  %896 = vrot.lane.b32.xlu0 %v868, 125
  %v897 = vpop.permute.xlu0 %896
  %v898 = vsel %vm329, %v878, %v897
  %899 = vrot.lane.b32.xlu0 %v868, 124
  %v900 = vpop.permute.xlu0 %899
  %v901 = vsel %vm333, %v881, %v900
  %902 = vrot.lane.b32.xlu0 %v868, 123
  %v903 = vpop.permute.xlu0 %902
  %v904 = vsel %vm337, %v884, %v903
  %905 = vrot.lane.b32.xlu0 %v868, 122
  %v906 = vpop.permute.xlu0 %905
  %v907 = vsel %vm341, %v887, %v906
  %908 = vrot.lane.b32.xlu0 %v866, 114
  %v909 = vpop.permute.xlu0 %908
  %910 = vrot.lane.b32.xlu0 %v872, 114
  %v911 = vpop.permute.xlu0 %910
  %912 = vrot.lane.b32.xlu0 %v875, 114
  %v913 = vpop.permute.xlu0 %912
  %914 = vrot.lane.b32.xlu0 %v878, 114
  %v915 = vpop.permute.xlu0 %914
  %916 = vrot.lane.b32.xlu0 %v881, 114
  %v917 = vpop.permute.xlu0 %916
  %918 = vrot.lane.b32.xlu0 %v884, 114
  %v919 = vpop.permute.xlu0 %918
  %920 = vrot.lane.b32.xlu0 %v887, 114
  %v921 = vpop.permute.xlu0 %920
  %929 = vrot.lane.b32.xlu0 %v866, 100
  %v930 = vpop.permute.xlu0 %929
  %931 = vrot.lane.b32.xlu0 %v868, 100
  %v932 = vpop.permute.xlu0 %931
  %933 = vrot.lane.b32.xlu0 %v892, 100
  %v934 = vpop.permute.xlu0 %933
  %935 = vrot.lane.b32.xlu0 %v891, 100
  %v936 = vpop.permute.xlu0 %935
  %937 = vrot.lane.b32.xlu0 %v895, 100
  %v938 = vpop.permute.xlu0 %937
  %939 = vrot.lane.b32.xlu0 %v894, 100
  %v940 = vpop.permute.xlu0 %939
  %941 = vrot.lane.b32.xlu0 %v898, 100
  %v942 = vpop.permute.xlu0 %941
  %943 = vrot.lane.b32.xlu0 %v897, 100
  %v944 = vpop.permute.xlu0 %943
  %945 = vrot.lane.b32.xlu0 %v901, 100
  %v946 = vpop.permute.xlu0 %945
  %947 = vrot.lane.b32.xlu0 %v900, 100
  %v948 = vpop.permute.xlu0 %947
  %949 = vrot.lane.b32.xlu0 %v904, 100
  %v950 = vpop.permute.xlu0 %949
  %951 = vrot.lane.b32.xlu0 %v903, 100
  %v952 = vpop.permute.xlu0 %951
  %953 = vrot.lane.b32.xlu0 %v907, 100
  %v954 = vpop.permute.xlu0 %953
  %955 = vrot.lane.b32.xlu0 %v906, 100
  %v956 = vpop.permute.xlu0 %955
  %v957 = vsel %vm392, %v930, %v932
  %v958 = vsel %vm392, %v934, %v936
  %v959 = vsel %vm392, %v938, %v940
  %v960 = vsel %vm392, %v942, %v944
  %v961 = vsel %vm392, %v946, %v948
  %v962 = vsel %vm392, %v950, %v952
  %v963 = vsel %vm392, %v954, %v956
  %971 = vrot.lane.b32.xlu0 %v866, 86
  %v972 = vpop.permute.xlu0 %971
  %973 = vrot.lane.b32.xlu0 %v868, 86
  %v974 = vpop.permute.xlu0 %973
  %975 = vrot.lane.b32.xlu0 %v892, 86
  %v976 = vpop.permute.xlu0 %975
  %977 = vrot.lane.b32.xlu0 %v891, 86
  %v978 = vpop.permute.xlu0 %977
  %979 = vrot.lane.b32.xlu0 %v895, 86
  %v980 = vpop.permute.xlu0 %979
  %981 = vrot.lane.b32.xlu0 %v894, 86
  %v982 = vpop.permute.xlu0 %981
  %983 = vrot.lane.b32.xlu0 %v898, 86
  %v984 = vpop.permute.xlu0 %983
  %985 = vrot.lane.b32.xlu0 %v897, 86
  %v986 = vpop.permute.xlu0 %985
  %987 = vrot.lane.b32.xlu0 %v901, 86
  %v988 = vpop.permute.xlu0 %987
  %989 = vrot.lane.b32.xlu0 %v900, 86
  %v990 = vpop.permute.xlu0 %989
  %991 = vrot.lane.b32.xlu0 %v904, 86
  %v992 = vpop.permute.xlu0 %991
  %993 = vrot.lane.b32.xlu0 %v903, 86
  %v994 = vpop.permute.xlu0 %993
  %995 = vrot.lane.b32.xlu0 %v907, 86
  %v996 = vpop.permute.xlu0 %995
  %997 = vrot.lane.b32.xlu0 %v906, 86
  %v998 = vpop.permute.xlu0 %997
  %v999 = vsel %vm435, %v972, %v974
  %v1000 = vsel %vm435, %v976, %v978
  %v1001 = vsel %vm435, %v980, %v982
  %v1002 = vsel %vm435, %v984, %v986
  %v1003 = vsel %vm435, %v988, %v990
  %v1004 = vsel %vm435, %v992, %v994
  %v1005 = vsel %vm435, %v996, %v998
  %1013 = vrot.lane.b32.xlu0 %v866, 72
  %v1014 = vpop.permute.xlu0 %1013
  %1015 = vrot.lane.b32.xlu0 %v868, 72
  %v1016 = vpop.permute.xlu0 %1015
  %1017 = vrot.lane.b32.xlu0 %v892, 72
  %v1018 = vpop.permute.xlu0 %1017
  %1019 = vrot.lane.b32.xlu0 %v891, 72
  %v1020 = vpop.permute.xlu0 %1019
  %1021 = vrot.lane.b32.xlu0 %v895, 72
  %v1022 = vpop.permute.xlu0 %1021
  %1023 = vrot.lane.b32.xlu0 %v894, 72
  %v1024 = vpop.permute.xlu0 %1023
  %1025 = vrot.lane.b32.xlu0 %v898, 72
  %v1026 = vpop.permute.xlu0 %1025
  %1027 = vrot.lane.b32.xlu0 %v897, 72
  %v1028 = vpop.permute.xlu0 %1027
  %1029 = vrot.lane.b32.xlu0 %v901, 72
  %v1030 = vpop.permute.xlu0 %1029
  %1031 = vrot.lane.b32.xlu0 %v900, 72
  %v1032 = vpop.permute.xlu0 %1031
  %1033 = vrot.lane.b32.xlu0 %v904, 72
  %v1034 = vpop.permute.xlu0 %1033
  %1035 = vrot.lane.b32.xlu0 %v903, 72
  %v1036 = vpop.permute.xlu0 %1035
  %1037 = vrot.lane.b32.xlu0 %v907, 72
  %v1038 = vpop.permute.xlu0 %1037
  %1039 = vrot.lane.b32.xlu0 %v906, 72
  %v1040 = vpop.permute.xlu0 %1039
  %v1041 = vsel %vm478, %v1014, %v1016
  %v1042 = vsel %vm478, %v1018, %v1020
  %v1043 = vsel %vm478, %v1022, %v1024
  %v1044 = vsel %vm478, %v1026, %v1028
  %v1045 = vsel %vm478, %v1030, %v1032
  %v1046 = vsel %vm478, %v1034, %v1036
  %v1047 = vsel %vm478, %v1038, %v1040
  %1055 = vrot.lane.b32.xlu0 %v866, 58
  %v1056 = vpop.permute.xlu0 %1055
  %1057 = vrot.lane.b32.xlu0 %v868, 58
  %v1058 = vpop.permute.xlu0 %1057
  %1059 = vrot.lane.b32.xlu0 %v892, 58
  %v1060 = vpop.permute.xlu0 %1059
  %1061 = vrot.lane.b32.xlu0 %v891, 58
  %v1062 = vpop.permute.xlu0 %1061
  %1063 = vrot.lane.b32.xlu0 %v895, 58
  %v1064 = vpop.permute.xlu0 %1063
  %1065 = vrot.lane.b32.xlu0 %v894, 58
  %v1066 = vpop.permute.xlu0 %1065
  %1067 = vrot.lane.b32.xlu0 %v898, 58
  %v1068 = vpop.permute.xlu0 %1067
  %1069 = vrot.lane.b32.xlu0 %v897, 58
  %v1070 = vpop.permute.xlu0 %1069
  %1071 = vrot.lane.b32.xlu0 %v901, 58
  %v1072 = vpop.permute.xlu0 %1071
  %1073 = vrot.lane.b32.xlu0 %v900, 58
  %v1074 = vpop.permute.xlu0 %1073
  %1075 = vrot.lane.b32.xlu0 %v904, 58
  %v1076 = vpop.permute.xlu0 %1075
  %1077 = vrot.lane.b32.xlu0 %v903, 58
  %v1078 = vpop.permute.xlu0 %1077
  %1079 = vrot.lane.b32.xlu0 %v907, 58
  %v1080 = vpop.permute.xlu0 %1079
  %1081 = vrot.lane.b32.xlu0 %v906, 58
  %v1082 = vpop.permute.xlu0 %1081
  %v1083 = vsel %vm521, %v1056, %v1058
  %v1084 = vsel %vm521, %v1060, %v1062
  %v1085 = vsel %vm521, %v1064, %v1066
  %v1086 = vsel %vm521, %v1068, %v1070
  %v1087 = vsel %vm521, %v1072, %v1074
  %v1088 = vsel %vm521, %v1076, %v1078
  %v1089 = vsel %vm521, %v1080, %v1082
  %1097 = vrot.lane.b32.xlu0 %v866, 44
  %v1098 = vpop.permute.xlu0 %1097
  %1099 = vrot.lane.b32.xlu0 %v868, 44
  %v1100 = vpop.permute.xlu0 %1099
  %1101 = vrot.lane.b32.xlu0 %v892, 44
  %v1102 = vpop.permute.xlu0 %1101
  %1103 = vrot.lane.b32.xlu0 %v891, 44
  %v1104 = vpop.permute.xlu0 %1103
  %1105 = vrot.lane.b32.xlu0 %v895, 44
  %v1106 = vpop.permute.xlu0 %1105
  %1107 = vrot.lane.b32.xlu0 %v894, 44
  %v1108 = vpop.permute.xlu0 %1107
  %1109 = vrot.lane.b32.xlu0 %v898, 44
  %v1110 = vpop.permute.xlu0 %1109
  %1111 = vrot.lane.b32.xlu0 %v897, 44
  %v1112 = vpop.permute.xlu0 %1111
  %1113 = vrot.lane.b32.xlu0 %v901, 44
  %v1114 = vpop.permute.xlu0 %1113
  %1115 = vrot.lane.b32.xlu0 %v900, 44
  %v1116 = vpop.permute.xlu0 %1115
  %1117 = vrot.lane.b32.xlu0 %v904, 44
  %v1118 = vpop.permute.xlu0 %1117
  %1119 = vrot.lane.b32.xlu0 %v903, 44
  %v1120 = vpop.permute.xlu0 %1119
  %1121 = vrot.lane.b32.xlu0 %v907, 44
  %v1122 = vpop.permute.xlu0 %1121
  %1123 = vrot.lane.b32.xlu0 %v906, 44
  %v1124 = vpop.permute.xlu0 %1123
  %v1125 = vsel %vm564, %v1098, %v1100
  %v1126 = vsel %vm564, %v1102, %v1104
  %v1127 = vsel %vm564, %v1106, %v1108
  %v1128 = vsel %vm564, %v1110, %v1112
  %v1129 = vsel %vm564, %v1114, %v1116
  %v1130 = vsel %vm564, %v1118, %v1120
  %v1131 = vsel %vm564, %v1122, %v1124
  %v1139 = vpack.c.bf16 %v872, %v866
  %v1140 = vpack.c.bf16 %v878, %v875
  %v1141 = vpack.c.bf16 %v884, %v881
  %v1142 = vpack.c.bf16 %v909, %v887
  %v1143 = vpack.c.bf16 %v913, %v911
  %v1144 = vpack.c.bf16 %v917, %v915
  %v1145 = vpack.c.bf16 %v921, %v919
  %v1146 = vpack.c.bf16 %v958, %v957
  %v1147 = vpack.c.bf16 %v960, %v959
  %v1148 = vpack.c.bf16 %v962, %v961
  %v1149 = vpack.c.bf16 %v999, %v963
  %v1150 = vpack.c.bf16 %v1001, %v1000
  %v1151 = vpack.c.bf16 %v1003, %v1002
  %v1152 = vpack.c.bf16 %v1005, %v1004
  %v1153 = vpack.c.bf16 %v1042, %v1041
  %v1154 = vpack.c.bf16 %v1044, %v1043
  %v1155 = vpack.c.bf16 %v1046, %v1045
  %v1156 = vpack.c.bf16 %v1083, %v1047
  %v1157 = vpack.c.bf16 %v1085, %v1084
  %v1158 = vpack.c.bf16 %v1087, %v1086
  %v1159 = vpack.c.bf16 %v1089, %v1088
  %v1160 = vpack.c.bf16 %v1126, %v1125
  %v1161 = vpack.c.bf16 %v1128, %v1127
  %v1162 = vpack.c.bf16 %v1130, %v1129
  %v1163 = vpack.c.bf16 %v1131, %v1131
  %v1165 = vsel %vm623, %v1163, 0
  %1167 = vmatprep.subr.bf16.mxu0 0
  %1168 = vmatpush1.bf16.msra.mxu0 %v1146
  %1169 = vmatprep.subr.bf16.mxu0 0
  %1170 = vmatpush1.bf16.msra.mxu0 %v1145
  %1171 = vmatprep.subr.bf16.mxu0 0
  %1172 = vmatpush1.bf16.msra.mxu0 %v1144
  %1173 = vmatprep.subr.bf16.mxu0 0
  %1174 = vmatpush1.bf16.msra.mxu0 %v1143
  %1175 = vmatprep.subr.bf16.mxu0 0
  %1176 = vmatpush1.bf16.msra.mxu0 %v1142
  %1177 = vmatprep.subr.bf16.mxu0 0
  %1178 = vmatpush1.bf16.msra.mxu0 %v1141
  %1179 = vmatprep.subr.bf16.mxu0 0
  %1180 = vmatpush1.bf16.msra.mxu0 %v1140
  %1181 = vmatprep.subr.bf16.mxu0 0
  %1182 = vmatpush1.bf16.msra.mxu0 %v1139
  %1183 = vmatprep.subr.bf16.mxu0 0
  %1184 = vmatpush2.bf16.msra.mxu0 %v1154
  %1185 = vmatprep.subr.bf16.mxu0 0
  %1186 = vmatpush2.bf16.msra.mxu0 %v1153
  %1187 = vmatprep.subr.bf16.mxu0 0
  %1188 = vmatpush2.bf16.msra.mxu0 %v1152
  %1189 = vmatprep.subr.bf16.mxu0 0
  %1190 = vmatpush2.bf16.msra.mxu0 %v1151
  %1191 = vmatprep.subr.bf16.mxu0 0
  %1192 = vmatpush2.bf16.msra.mxu0 %v1150
  %1193 = vmatprep.subr.bf16.mxu0 0
  %1194 = vmatpush2.bf16.msra.mxu0 %v1149
  %1195 = vmatprep.subr.bf16.mxu0 0
  %1196 = vmatpush2.bf16.msra.mxu0 %v1148
  %1197 = vmatprep.subr.bf16.mxu0 0
  %1198 = vmatpush2.bf16.msra.mxu0 %v1147
  %1199 = vmatprep.mubr.bf16.mxu0 %v613
  %1200 = vmatmul.mubr.bf16.gmra.mxu0 %v612
  %v1201 = vpop.f32.mrf.mxu0
  %v1202 = vadd.f32 0.0, %v1201
  %v1203 = vpop.f32.mrf.mxu0
  %v1204 = vpop.f32.mrf.mxu0
  %v1205 = vpop.f32.mrf.mxu0
  %1206 = vdwg.mxu0
  %1207 = vmatprep.subr.bf16.mxu0 0
  %1208 = vmatpush1.bf16.msra.mxu0 %v1162
  %1209 = vmatprep.subr.bf16.mxu0 0
  %1210 = vmatpush1.bf16.msra.mxu0 %v1161
  %1211 = vmatprep.subr.bf16.mxu0 0
  %1212 = vmatpush1.bf16.msra.mxu0 %v1160
  %1213 = vmatprep.subr.bf16.mxu0 0
  %1214 = vmatpush1.bf16.msra.mxu0 %v1159
  %1215 = vmatprep.subr.bf16.mxu0 0
  %1216 = vmatpush1.bf16.msra.mxu0 %v1158
  %1217 = vmatprep.subr.bf16.mxu0 0
  %1218 = vmatpush1.bf16.msra.mxu0 %v1157
  %1219 = vmatprep.subr.bf16.mxu0 0
  %1220 = vmatpush1.bf16.msra.mxu0 %v1156
  %1221 = vmatprep.subr.bf16.mxu0 0
  %1222 = vmatpush1.bf16.msra.mxu0 %v1155
  %1223 = vmatprep.subr.bf16.mxu0 0
  %1224 = vmatpush2.bf16.msra.mxu0 0
  %1225 = vmatprep.subr.bf16.mxu0 0
  %1226 = vmatpush2.bf16.msra.mxu0 0
  %1227 = vmatprep.subr.bf16.mxu0 0
  %1228 = vmatpush2.bf16.msra.mxu0 0
  %1229 = vmatprep.subr.bf16.mxu0 0
  %1230 = vmatpush2.bf16.msra.mxu0 0
  %1231 = vmatprep.subr.bf16.mxu0 0
  %1232 = vmatpush2.bf16.msra.mxu0 0
  %1233 = vmatprep.subr.bf16.mxu0 0
  %1234 = vmatpush2.bf16.msra.mxu0 0
  %1235 = vmatprep.subr.bf16.mxu0 0
  %1236 = vmatpush2.bf16.msra.mxu0 0
  %1237 = vmatprep.subr.bf16.mxu0 0
  %1238 = vmatpush2.bf16.msra.mxu0 %v1165
  %1239 = vmatprep.mubr.bf16.mxu0 %v621
  %1240 = vmatmul.mubr.bf16.gmra.mxu0 %v614
  %v1241 = vpop.f32.mrf.mxu0
  %v1242 = vadd.f32 %v1202, %v1241
  %v1243 = vpop.f32.mrf.mxu0
  %v1244 = vpop.f32.mrf.mxu0
  %v1245 = vpop.f32.mrf.mxu0
  %1246 = vdwg.mxu0
  %v1248 = vsel %vm721, %v1242, 0
  %1250 = vmatprep.subr.mxu0 0.0
  %1251 = vmatpush1.msra.mxu0 0.0
  %1252 = vmatprep.subr.mxu0 0.0
  %1253 = vmatpush1.msra.mxu0 0.0
  %1254 = vmatprep.subr.mxu0 0.0
  %1255 = vmatpush1.msra.mxu0 %v727
  %1256 = vmatprep.subr.mxu0 0.0
  %1257 = vmatpush1.msra.mxu0 %v719
  %1258 = vmatprep.subr.mxu0 0.0
  %1259 = vmatpush1.msra.mxu0 %v718
  %1260 = vmatprep.subr.mxu0 0.0
  %1261 = vmatpush1.msra.mxu0 %v717
  %1262 = vmatprep.subr.mxu0 0.0
  %1263 = vmatpush1.msra.mxu0 %v716
  %1264 = vmatprep.subr.mxu0 0.0
  %1265 = vmatpush1.msra.mxu0 %v715
  %1266 = vmatprep.subr.mxu0 0.0
  %1267 = vmatpush1.msra.mxu0 %v714
  %1268 = vmatprep.subr.mxu0 0.0
  %1269 = vmatpush1.msra.mxu0 %v713
  %1270 = vmatprep.subr.mxu0 0.0
  %1271 = vmatpush1.msra.mxu0 %v712
  %1272 = vmatprep.subr.mxu0 0.0
  %1273 = vmatpush1.msra.mxu0 %v711
  %1274 = vmatprep.subr.mxu0 0.0
  %1275 = vmatpush1.msra.mxu0 %v710
  %1276 = vmatprep.subr.mxu0 0.0
  %1277 = vmatpush1.msra.mxu0 %v709
  %1278 = vmatprep.subr.mxu0 0.0
  %1279 = vmatpush1.msra.mxu0 %v708
  %1280 = vmatprep.subr.mxu0 0.0
  %1281 = vmatpush1.msra.mxu0 %v707
  %1282 = vmatprep.subr.mxu0 0.0
  %1283 = vmatpush2.msra.mxu0 0.0
  %1284 = vmatprep.subr.mxu0 0.0
  %1285 = vmatpush2.msra.mxu0 0.0
  %1286 = vmatprep.subr.mxu0 0.0
  %1287 = vmatpush2.msra.mxu0 0.0
  %1288 = vmatprep.subr.mxu0 0.0
  %1289 = vmatpush2.msra.mxu0 0.0
  %1290 = vmatprep.subr.mxu0 0.0
  %1291 = vmatpush2.msra.mxu0 0.0
  %1292 = vmatprep.subr.mxu0 0.0
  %1293 = vmatpush2.msra.mxu0 0.0
  %1294 = vmatprep.subr.mxu0 0.0
  %1295 = vmatpush2.msra.mxu0 0.0
  %1296 = vmatprep.subr.mxu0 0.0
  %1297 = vmatpush2.msra.mxu0 0.0
  %1298 = vmatprep.subr.mxu0 0.0
  %1299 = vmatpush2.msra.mxu0 0.0
  %1300 = vmatprep.subr.mxu0 0.0
  %1301 = vmatpush2.msra.mxu0 0.0
  %1302 = vmatprep.subr.mxu0 0.0
  %1303 = vmatpush2.msra.mxu0 0.0
  %1304 = vmatprep.subr.mxu0 0.0
  %1305 = vmatpush2.msra.mxu0 0.0
  %1306 = vmatprep.subr.mxu0 0.0
  %1307 = vmatpush2.msra.mxu0 0.0
  %1308 = vmatprep.subr.mxu0 0.0
  %1309 = vmatpush2.msra.mxu0 0.0
  %1310 = vmatprep.subr.mxu0 0.0
  %1311 = vmatpush2.msra.mxu0 0.0
  %1312 = vmatprep.subr.mxu0 0.0
  %1313 = vmatpush2.msra.mxu0 0.0
  %1314 = vmatprep.mubr.f32.mxu0 0.0
  %1315 = vmatmul.mubr.f32.gmra.mxu0 %v1248
  %v1316 = vpop.f32.mrf.mxu0
  %v1317 = vadd.f32 0.0, %v1316
  %v1318 = vpop.f32.mrf.mxu0
  %1319 = vdwg.mxu0
  %vm1320 = vcmask 523264
  %v1321 = vsel %vm1320, %v796, 0.0
  %1322 = vadd.xlane.f32.xlu0 %v1321
  %v1323 = vpop.xlane.xlu0 %1322
  %v1324 = vadd.f32 %v1323, 0.0
  %v1325 = vsel %vm1320, %v1317, 0.0
  %1326 = vadd.xlane.f32.xlu0 %v1325
  %v1327 = vpop.xlane.xlu0 %1326
  %v1328 = vadd.f32 %v1324, %v1327
  %v1329 = vmul.f32 %v1328, 0.0078125
  %v1330 = vsub.f32 %v796, %v1329
  %v1331 = vsub.f32 %v1317, %v1329
  %v1332 = vmul.f32 %v1330, %v1330
  %v1333 = vsel %vm1320, %v1332, 0.0
  %1334 = vadd.xlane.f32.xlu0 %v1333
  %v1335 = vpop.xlane.xlu0 %1334
  %v1336 = vadd.f32 %v1335, 0.0
  %v1337 = vmul.f32 %v1331, %v1331
  %v1338 = vsel %vm1320, %v1337, 0.0
  %1339 = vadd.xlane.f32.xlu0 %v1338
  %v1340 = vpop.xlane.xlu0 %1339
  %v1341 = vadd.f32 %v1336, %v1340
  %v1342 = vmul.f32 %v1341, 0.0078125
  %v1343 = vadd.f32 %v1342, 1e-05
  %v1344 = vrsqrt.pop %v1343
  %v1345 = vld [vmem:[%s6] sm:$0xff]
  %v1346 = vmul.f32 %v1344, %v1345
  %1348 = vset.pattern.permute.xlu0 0
  %1349 = vperm.xlu0 %1348, %v1346
  %v1350 = vpop.permute.xlu0 %1349
  %v1352 = vmul.f32 %v1330, %v1350
  %v1353 = vld [vmem:[%s7] sm:$0xff]
  %1355 = vset.pattern.permute.xlu0 0
  %1356 = vperm.xlu0 %1355, %v1353
  %v1357 = vpop.permute.xlu0 %1356
  %v1359 = vadd.f32 %v1352, %v1357
  %v1360 = vmul.f32 %v1331, %v1350
  %v1361 = vadd.f32 %v1360, %v1357
  %vm1362 = vcmp.ge.f32.partialorder %v1359, 0.0
  %v1363 = vmul.f32 %v1359, 0.2
  %v1364 = vsel %vm1362, %v1359, %v1363
  %vm1365 = vcmp.ge.f32.partialorder %v1361, 0.0
  %v1366 = vmul.f32 %v1361, 0.2
  %v1367 = vsel %vm1365, %v1361, %v1366
  %v1368 = vld [vmem:[%s12] sm:$0xff]
  %v1369 = vld [vmem:[%s12 + $0x8] sm:$0xff]
  %v1370 = vld [vmem:[%s12 + $0x10] sm:$0xff]
  %v1371 = vld [vmem:[%s12 + $0x18] sm:$0xff]
  %v1372 = vld [vmem:[%s12 + $0x20] sm:$0xff]
  %v1373 = vld [vmem:[%s12 + $0x28] sm:$0xff]
  %v1374 = vld [vmem:[%s12 + $0x30] sm:$0xff]
  %v1375 = vld [vmem:[%s12 + $0x38] sm:$0xff]
  %v1376 = vld [vmem:[%s12 + $0x40] sm:$0xff]
  %v1377 = vld [vmem:[%s12 + $0x48] sm:$0xff]
  %v1378 = vld [vmem:[%s12 + $0x50] sm:$0xff]
  %v1379 = vld [vmem:[%s12 + $0x58] sm:$0xff]
  %v1380 = vld [vmem:[%s12 + $0x60] sm:$0xff]
  %v1381 = vld [vmem:[%s12 + $0x68] sm:$0xff]
  %v1382 = vld [vmem:[%s12 + $0x70] sm:$0xff]
  %v1383 = vld [vmem:[%s12 + $0x78] sm:$0xff]
  %v1384 = vld [vmem:[%s12 + $0x80] sm:$0xff]
  %v1385 = vld [vmem:[%s12 + $0x88] sm:$0xff]
  %v1386 = vld [vmem:[%s12 + $0x90] sm:$0xff]
  %v1387 = vld [vmem:[%s12 + $0x98] sm:$0xff]
  %v1388 = vld [vmem:[%s12 + $0xa0] sm:$0xff]
  %v1389 = vld [vmem:[%s12 + $0xa8] sm:$0xff]
  %v1390 = vld [vmem:[%s12 + $0xb0] sm:$0xff]
  %v1391 = vld [vmem:[%s12 + $0xb8] sm:$0xff]
  %v1392 = vld [vmem:[%s12 + $0xc0] sm:$0xff]
  %v1393 = vld [vmem:[%s12 + $0xc8] sm:$0xff]
  %v1394 = vld [vmem:[%s12 + $0xd0] sm:$0xff]
  %v1395 = vld [vmem:[%s12 + $0xd8] sm:$0xff]
  %v1396 = vld [vmem:[%s12 + $0xe0] sm:$0xff]
  %v1397 = vld [vmem:[%s12 + $0xe8] sm:$0xff]
  %v1398 = vld [vmem:[%s12 + $0xf0] sm:$0xff]
  %v1399 = vld [vmem:[%s12 + $0xf8] sm:$0xff]
  %v1401 = vsel %vm1320, %v1364, 0
  %1403 = vmatprep.subr.mxu0 0.0
  %1404 = vmatpush1.msra.mxu0 0.0
  %1405 = vmatprep.subr.mxu0 0.0
  %1406 = vmatpush1.msra.mxu0 0.0
  %1407 = vmatprep.subr.mxu0 0.0
  %1408 = vmatpush1.msra.mxu0 0.0
  %1409 = vmatprep.subr.mxu0 0.0
  %1410 = vmatpush1.msra.mxu0 0.0
  %1411 = vmatprep.subr.mxu0 0.0
  %1412 = vmatpush1.msra.mxu0 0.0
  %1413 = vmatprep.subr.mxu0 0.0
  %1414 = vmatpush1.msra.mxu0 0.0
  %1415 = vmatprep.subr.mxu0 0.0
  %1416 = vmatpush1.msra.mxu0 0.0
  %1417 = vmatprep.subr.mxu0 0.0
  %1418 = vmatpush1.msra.mxu0 0.0
  %1419 = vmatprep.subr.mxu0 %v1397
  %1420 = vmatpush1.msra.mxu0 %v1396
  %1421 = vmatprep.subr.mxu0 %v1393
  %1422 = vmatpush1.msra.mxu0 %v1392
  %1423 = vmatprep.subr.mxu0 %v1389
  %1424 = vmatpush1.msra.mxu0 %v1388
  %1425 = vmatprep.subr.mxu0 %v1385
  %1426 = vmatpush1.msra.mxu0 %v1384
  %1427 = vmatprep.subr.mxu0 %v1381
  %1428 = vmatpush1.msra.mxu0 %v1380
  %1429 = vmatprep.subr.mxu0 %v1377
  %1430 = vmatpush1.msra.mxu0 %v1376
  %1431 = vmatprep.subr.mxu0 %v1373
  %1432 = vmatpush1.msra.mxu0 %v1372
  %1433 = vmatprep.subr.mxu0 %v1369
  %1434 = vmatpush1.msra.mxu0 %v1368
  %1435 = vmatprep.subr.mxu0 0.0
  %1436 = vmatpush2.msra.mxu0 0.0
  %1437 = vmatprep.subr.mxu0 0.0
  %1438 = vmatpush2.msra.mxu0 0.0
  %1439 = vmatprep.subr.mxu0 0.0
  %1440 = vmatpush2.msra.mxu0 0.0
  %1441 = vmatprep.subr.mxu0 0.0
  %1442 = vmatpush2.msra.mxu0 0.0
  %1443 = vmatprep.subr.mxu0 0.0
  %1444 = vmatpush2.msra.mxu0 0.0
  %1445 = vmatprep.subr.mxu0 0.0
  %1446 = vmatpush2.msra.mxu0 0.0
  %1447 = vmatprep.subr.mxu0 0.0
  %1448 = vmatpush2.msra.mxu0 0.0
  %1449 = vmatprep.subr.mxu0 0.0
  %1450 = vmatpush2.msra.mxu0 0.0
  %1451 = vmatprep.subr.mxu0 0.0
  %1452 = vmatpush2.msra.mxu0 0.0
  %1453 = vmatprep.subr.mxu0 0.0
  %1454 = vmatpush2.msra.mxu0 0.0
  %1455 = vmatprep.subr.mxu0 0.0
  %1456 = vmatpush2.msra.mxu0 0.0
  %1457 = vmatprep.subr.mxu0 0.0
  %1458 = vmatpush2.msra.mxu0 0.0
  %1459 = vmatprep.subr.mxu0 0.0
  %1460 = vmatpush2.msra.mxu0 0.0
  %1461 = vmatprep.subr.mxu0 0.0
  %1462 = vmatpush2.msra.mxu0 0.0
  %1463 = vmatprep.subr.mxu0 0.0
  %1464 = vmatpush2.msra.mxu0 0.0
  %1465 = vmatprep.subr.mxu0 0.0
  %1466 = vmatpush2.msra.mxu0 0.0
  %1467 = vmatprep.mubr.f32.mxu0 0.0
  %1468 = vmatmul.mubr.f32.gmra.mxu0 %v1401
  %v1469 = vpop.f32.mrf.mxu0
  %v1470 = vadd.f32 0.0, %v1469
  %v1471 = vpop.f32.mrf.mxu0
  %v1472 = vadd.f32 0.0, %v1471
  %1473 = vdwg.mxu0
  %1474 = vmatprep.subr.mxu0 0.0
  %1475 = vmatpush1.msra.mxu0 0.0
  %1476 = vmatprep.subr.mxu0 0.0
  %1477 = vmatpush1.msra.mxu0 0.0
  %1478 = vmatprep.subr.mxu0 0.0
  %1479 = vmatpush1.msra.mxu0 0.0
  %1480 = vmatprep.subr.mxu0 0.0
  %1481 = vmatpush1.msra.mxu0 0.0
  %1482 = vmatprep.subr.mxu0 0.0
  %1483 = vmatpush1.msra.mxu0 0.0
  %1484 = vmatprep.subr.mxu0 0.0
  %1485 = vmatpush1.msra.mxu0 0.0
  %1486 = vmatprep.subr.mxu0 0.0
  %1487 = vmatpush1.msra.mxu0 0.0
  %1488 = vmatprep.subr.mxu0 0.0
  %1489 = vmatpush1.msra.mxu0 0.0
  %1490 = vmatprep.subr.mxu0 %v1399
  %1491 = vmatpush1.msra.mxu0 %v1398
  %1492 = vmatprep.subr.mxu0 %v1395
  %1493 = vmatpush1.msra.mxu0 %v1394
  %1494 = vmatprep.subr.mxu0 %v1391
  %1495 = vmatpush1.msra.mxu0 %v1390
  %1496 = vmatprep.subr.mxu0 %v1387
  %1497 = vmatpush1.msra.mxu0 %v1386
  %1498 = vmatprep.subr.mxu0 %v1383
  %1499 = vmatpush1.msra.mxu0 %v1382
  %1500 = vmatprep.subr.mxu0 %v1379
  %1501 = vmatpush1.msra.mxu0 %v1378
  %1502 = vmatprep.subr.mxu0 %v1375
  %1503 = vmatpush1.msra.mxu0 %v1374
  %1504 = vmatprep.subr.mxu0 %v1371
  %1505 = vmatpush1.msra.mxu0 %v1370
  %1506 = vmatprep.subr.mxu0 0.0
  %1507 = vmatpush2.msra.mxu0 0.0
  %1508 = vmatprep.subr.mxu0 0.0
  %1509 = vmatpush2.msra.mxu0 0.0
  %1510 = vmatprep.subr.mxu0 0.0
  %1511 = vmatpush2.msra.mxu0 0.0
  %1512 = vmatprep.subr.mxu0 0.0
  %1513 = vmatpush2.msra.mxu0 0.0
  %1514 = vmatprep.subr.mxu0 0.0
  %1515 = vmatpush2.msra.mxu0 0.0
  %1516 = vmatprep.subr.mxu0 0.0
  %1517 = vmatpush2.msra.mxu0 0.0
  %1518 = vmatprep.subr.mxu0 0.0
  %1519 = vmatpush2.msra.mxu0 0.0
  %1520 = vmatprep.subr.mxu0 0.0
  %1521 = vmatpush2.msra.mxu0 0.0
  %1522 = vmatprep.subr.mxu0 0.0
  %1523 = vmatpush2.msra.mxu0 0.0
  %1524 = vmatprep.subr.mxu0 0.0
  %1525 = vmatpush2.msra.mxu0 0.0
  %1526 = vmatprep.subr.mxu0 0.0
  %1527 = vmatpush2.msra.mxu0 0.0
  %1528 = vmatprep.subr.mxu0 0.0
  %1529 = vmatpush2.msra.mxu0 0.0
  %1530 = vmatprep.subr.mxu0 0.0
  %1531 = vmatpush2.msra.mxu0 0.0
  %1532 = vmatprep.subr.mxu0 0.0
  %1533 = vmatpush2.msra.mxu0 0.0
  %1534 = vmatprep.subr.mxu0 0.0
  %1535 = vmatpush2.msra.mxu0 0.0
  %1536 = vmatprep.subr.mxu0 0.0
  %1537 = vmatpush2.msra.mxu0 0.0
  %1538 = vmatprep.mubr.f32.mxu0 0.0
  %1539 = vmatmul.mubr.f32.gmra.mxu0 %v1401
  %v1540 = vpop.f32.mrf.mxu0
  %v1541 = vadd.f32 0.0, %v1540
  %v1542 = vpop.f32.mrf.mxu0
  %v1543 = vadd.f32 0.0, %v1542
  %1544 = vdwg.mxu0
  %1548 = vrot.lane.b32.xlu0 %v1470, 127
  %v1549 = vpop.permute.xlu0 %1548
  %1550 = vrot.lane.b32.xlu0 %v1472, 127
  %v1551 = vpop.permute.xlu0 %1550
  %1552 = vrot.lane.b32.xlu0 %v1541, 127
  %v1553 = vpop.permute.xlu0 %1552
  %v1554 = vsel %vm321, %v1549, %v1551
  %v1555 = vsel %vm321, %v1551, %v1553
  %1559 = vrot.lane.b32.xlu0 %v1470, 126
  %v1560 = vpop.permute.xlu0 %1559
  %1561 = vrot.lane.b32.xlu0 %v1472, 126
  %v1562 = vpop.permute.xlu0 %1561
  %1563 = vrot.lane.b32.xlu0 %v1541, 126
  %v1564 = vpop.permute.xlu0 %1563
  %v1565 = vsel %vm325, %v1560, %v1562
  %v1566 = vsel %vm325, %v1562, %v1564
  %1570 = vrot.lane.b32.xlu0 %v1470, 125
  %v1571 = vpop.permute.xlu0 %1570
  %1572 = vrot.lane.b32.xlu0 %v1472, 125
  %v1573 = vpop.permute.xlu0 %1572
  %1574 = vrot.lane.b32.xlu0 %v1541, 125
  %v1575 = vpop.permute.xlu0 %1574
  %v1576 = vsel %vm329, %v1571, %v1573
  %v1577 = vsel %vm329, %v1573, %v1575
  %1581 = vrot.lane.b32.xlu0 %v1470, 124
  %v1582 = vpop.permute.xlu0 %1581
  %1583 = vrot.lane.b32.xlu0 %v1472, 124
  %v1584 = vpop.permute.xlu0 %1583
  %1585 = vrot.lane.b32.xlu0 %v1541, 124
  %v1586 = vpop.permute.xlu0 %1585
  %v1587 = vsel %vm333, %v1582, %v1584
  %v1588 = vsel %vm333, %v1584, %v1586
  %1592 = vrot.lane.b32.xlu0 %v1470, 123
  %v1593 = vpop.permute.xlu0 %1592
  %1594 = vrot.lane.b32.xlu0 %v1472, 123
  %v1595 = vpop.permute.xlu0 %1594
  %1596 = vrot.lane.b32.xlu0 %v1541, 123
  %v1597 = vpop.permute.xlu0 %1596
  %v1598 = vsel %vm337, %v1593, %v1595
  %v1599 = vsel %vm337, %v1595, %v1597
  %1603 = vrot.lane.b32.xlu0 %v1470, 122
  %v1604 = vpop.permute.xlu0 %1603
  %1605 = vrot.lane.b32.xlu0 %v1472, 122
  %v1606 = vpop.permute.xlu0 %1605
  %1607 = vrot.lane.b32.xlu0 %v1541, 122
  %v1608 = vpop.permute.xlu0 %1607
  %v1609 = vsel %vm341, %v1604, %v1606
  %v1610 = vsel %vm341, %v1606, %v1608
  %1615 = vrot.lane.b32.xlu0 %v1543, 127
  %v1616 = vpop.permute.xlu0 %1615
  %v1617 = vsel %vm321, %v1553, %v1616
  %1618 = vrot.lane.b32.xlu0 %v1543, 126
  %v1619 = vpop.permute.xlu0 %1618
  %v1620 = vsel %vm325, %v1564, %v1619
  %1621 = vrot.lane.b32.xlu0 %v1543, 125
  %v1622 = vpop.permute.xlu0 %1621
  %v1623 = vsel %vm329, %v1575, %v1622
  %1624 = vrot.lane.b32.xlu0 %v1543, 124
  %v1625 = vpop.permute.xlu0 %1624
  %v1626 = vsel %vm333, %v1586, %v1625
  %1627 = vrot.lane.b32.xlu0 %v1543, 123
  %v1628 = vpop.permute.xlu0 %1627
  %v1629 = vsel %vm337, %v1597, %v1628
  %1630 = vrot.lane.b32.xlu0 %v1543, 122
  %v1631 = vpop.permute.xlu0 %1630
  %v1632 = vsel %vm341, %v1608, %v1631
  %1633 = vrot.lane.b32.xlu0 %v1470, 106
  %v1634 = vpop.permute.xlu0 %1633
  %1635 = vrot.lane.b32.xlu0 %v1472, 106
  %v1636 = vpop.permute.xlu0 %1635
  %1637 = vrot.lane.b32.xlu0 %v1541, 106
  %v1638 = vpop.permute.xlu0 %1637
  %1639 = vrot.lane.b32.xlu0 %v1554, 106
  %v1640 = vpop.permute.xlu0 %1639
  %1641 = vrot.lane.b32.xlu0 %v1555, 106
  %v1642 = vpop.permute.xlu0 %1641
  %1643 = vrot.lane.b32.xlu0 %v1553, 106
  %v1644 = vpop.permute.xlu0 %1643
  %1645 = vrot.lane.b32.xlu0 %v1565, 106
  %v1646 = vpop.permute.xlu0 %1645
  %1647 = vrot.lane.b32.xlu0 %v1566, 106
  %v1648 = vpop.permute.xlu0 %1647
  %1649 = vrot.lane.b32.xlu0 %v1564, 106
  %v1650 = vpop.permute.xlu0 %1649
  %1651 = vrot.lane.b32.xlu0 %v1576, 106
  %v1652 = vpop.permute.xlu0 %1651
  %1653 = vrot.lane.b32.xlu0 %v1577, 106
  %v1654 = vpop.permute.xlu0 %1653
  %1655 = vrot.lane.b32.xlu0 %v1575, 106
  %v1656 = vpop.permute.xlu0 %1655
  %1657 = vrot.lane.b32.xlu0 %v1587, 106
  %v1658 = vpop.permute.xlu0 %1657
  %1659 = vrot.lane.b32.xlu0 %v1588, 106
  %v1660 = vpop.permute.xlu0 %1659
  %1661 = vrot.lane.b32.xlu0 %v1586, 106
  %v1662 = vpop.permute.xlu0 %1661
  %1663 = vrot.lane.b32.xlu0 %v1598, 106
  %v1664 = vpop.permute.xlu0 %1663
  %1665 = vrot.lane.b32.xlu0 %v1599, 106
  %v1666 = vpop.permute.xlu0 %1665
  %1667 = vrot.lane.b32.xlu0 %v1597, 106
  %v1668 = vpop.permute.xlu0 %1667
  %1669 = vrot.lane.b32.xlu0 %v1609, 106
  %v1670 = vpop.permute.xlu0 %1669
  %1671 = vrot.lane.b32.xlu0 %v1610, 106
  %v1672 = vpop.permute.xlu0 %1671
  %1673 = vrot.lane.b32.xlu0 %v1608, 106
  %v1674 = vpop.permute.xlu0 %1673
  %v1675 = vsel %vm721, %v1634, %v1636
  %v1676 = vsel %vm721, %v1636, %v1638
  %v1677 = vsel %vm721, %v1640, %v1642
  %v1678 = vsel %vm721, %v1642, %v1644
  %v1679 = vsel %vm721, %v1646, %v1648
  %v1680 = vsel %vm721, %v1648, %v1650
  %v1681 = vsel %vm721, %v1652, %v1654
  %v1682 = vsel %vm721, %v1654, %v1656
  %v1683 = vsel %vm721, %v1658, %v1660
  %v1684 = vsel %vm721, %v1660, %v1662
  %v1685 = vsel %vm721, %v1664, %v1666
  %v1686 = vsel %vm721, %v1666, %v1668
  %v1687 = vsel %vm721, %v1670, %v1672
  %v1688 = vsel %vm721, %v1672, %v1674
  %1710 = vrot.lane.b32.xlu0 %v1470, 84
  %v1711 = vpop.permute.xlu0 %1710
  %1712 = vrot.lane.b32.xlu0 %v1472, 84
  %v1713 = vpop.permute.xlu0 %1712
  %1714 = vrot.lane.b32.xlu0 %v1541, 84
  %v1715 = vpop.permute.xlu0 %1714
  %1716 = vrot.lane.b32.xlu0 %v1543, 84
  %v1717 = vpop.permute.xlu0 %1716
  %1718 = vrot.lane.b32.xlu0 %v1554, 84
  %v1719 = vpop.permute.xlu0 %1718
  %1720 = vrot.lane.b32.xlu0 %v1555, 84
  %v1721 = vpop.permute.xlu0 %1720
  %1722 = vrot.lane.b32.xlu0 %v1617, 84
  %v1723 = vpop.permute.xlu0 %1722
  %1724 = vrot.lane.b32.xlu0 %v1616, 84
  %v1725 = vpop.permute.xlu0 %1724
  %1726 = vrot.lane.b32.xlu0 %v1565, 84
  %v1727 = vpop.permute.xlu0 %1726
  %1728 = vrot.lane.b32.xlu0 %v1566, 84
  %v1729 = vpop.permute.xlu0 %1728
  %1730 = vrot.lane.b32.xlu0 %v1620, 84
  %v1731 = vpop.permute.xlu0 %1730
  %1732 = vrot.lane.b32.xlu0 %v1619, 84
  %v1733 = vpop.permute.xlu0 %1732
  %1734 = vrot.lane.b32.xlu0 %v1576, 84
  %v1735 = vpop.permute.xlu0 %1734
  %1736 = vrot.lane.b32.xlu0 %v1577, 84
  %v1737 = vpop.permute.xlu0 %1736
  %1738 = vrot.lane.b32.xlu0 %v1623, 84
  %v1739 = vpop.permute.xlu0 %1738
  %1740 = vrot.lane.b32.xlu0 %v1622, 84
  %v1741 = vpop.permute.xlu0 %1740
  %1742 = vrot.lane.b32.xlu0 %v1587, 84
  %v1743 = vpop.permute.xlu0 %1742
  %1744 = vrot.lane.b32.xlu0 %v1588, 84
  %v1745 = vpop.permute.xlu0 %1744
  %1746 = vrot.lane.b32.xlu0 %v1626, 84
  %v1747 = vpop.permute.xlu0 %1746
  %1748 = vrot.lane.b32.xlu0 %v1625, 84
  %v1749 = vpop.permute.xlu0 %1748
  %1750 = vrot.lane.b32.xlu0 %v1598, 84
  %v1751 = vpop.permute.xlu0 %1750
  %1752 = vrot.lane.b32.xlu0 %v1599, 84
  %v1753 = vpop.permute.xlu0 %1752
  %1754 = vrot.lane.b32.xlu0 %v1629, 84
  %v1755 = vpop.permute.xlu0 %1754
  %1756 = vrot.lane.b32.xlu0 %v1628, 84
  %v1757 = vpop.permute.xlu0 %1756
  %1758 = vrot.lane.b32.xlu0 %v1609, 84
  %v1759 = vpop.permute.xlu0 %1758
  %1760 = vrot.lane.b32.xlu0 %v1610, 84
  %v1761 = vpop.permute.xlu0 %1760
  %1762 = vrot.lane.b32.xlu0 %v1632, 84
  %v1763 = vpop.permute.xlu0 %1762
  %1764 = vrot.lane.b32.xlu0 %v1631, 84
  %v1765 = vpop.permute.xlu0 %1764
  %vm1766 = vcmask 687104
  %v1767 = vsel %vm1766, %v1711, %v1713
  %v1768 = vsel %vm1766, %v1713, %v1715
  %v1769 = vsel %vm1766, %v1715, %v1717
  %v1770 = vsel %vm1766, %v1719, %v1721
  %v1771 = vsel %vm1766, %v1721, %v1723
  %v1772 = vsel %vm1766, %v1723, %v1725
  %v1773 = vsel %vm1766, %v1727, %v1729
  %v1774 = vsel %vm1766, %v1729, %v1731
  %v1775 = vsel %vm1766, %v1731, %v1733
  %v1776 = vsel %vm1766, %v1735, %v1737
  %v1777 = vsel %vm1766, %v1737, %v1739
  %v1778 = vsel %vm1766, %v1739, %v1741
  %v1779 = vsel %vm1766, %v1743, %v1745
  %v1780 = vsel %vm1766, %v1745, %v1747
  %v1781 = vsel %vm1766, %v1747, %v1749
  %v1782 = vsel %vm1766, %v1751, %v1753
  %v1783 = vsel %vm1766, %v1753, %v1755
  %v1784 = vsel %vm1766, %v1755, %v1757
  %v1785 = vsel %vm1766, %v1759, %v1761
  %v1786 = vsel %vm1766, %v1761, %v1763
  %v1787 = vsel %vm1766, %v1763, %v1765
  %1809 = vrot.lane.b32.xlu0 %v1470, 62
  %v1810 = vpop.permute.xlu0 %1809
  %1811 = vrot.lane.b32.xlu0 %v1472, 62
  %v1812 = vpop.permute.xlu0 %1811
  %1813 = vrot.lane.b32.xlu0 %v1541, 62
  %v1814 = vpop.permute.xlu0 %1813
  %1815 = vrot.lane.b32.xlu0 %v1543, 62
  %v1816 = vpop.permute.xlu0 %1815
  %1817 = vrot.lane.b32.xlu0 %v1554, 62
  %v1818 = vpop.permute.xlu0 %1817
  %1819 = vrot.lane.b32.xlu0 %v1555, 62
  %v1820 = vpop.permute.xlu0 %1819
  %1821 = vrot.lane.b32.xlu0 %v1617, 62
  %v1822 = vpop.permute.xlu0 %1821
  %1823 = vrot.lane.b32.xlu0 %v1616, 62
  %v1824 = vpop.permute.xlu0 %1823
  %1825 = vrot.lane.b32.xlu0 %v1565, 62
  %v1826 = vpop.permute.xlu0 %1825
  %1827 = vrot.lane.b32.xlu0 %v1566, 62
  %v1828 = vpop.permute.xlu0 %1827
  %1829 = vrot.lane.b32.xlu0 %v1620, 62
  %v1830 = vpop.permute.xlu0 %1829
  %1831 = vrot.lane.b32.xlu0 %v1619, 62
  %v1832 = vpop.permute.xlu0 %1831
  %1833 = vrot.lane.b32.xlu0 %v1576, 62
  %v1834 = vpop.permute.xlu0 %1833
  %1835 = vrot.lane.b32.xlu0 %v1577, 62
  %v1836 = vpop.permute.xlu0 %1835
  %1837 = vrot.lane.b32.xlu0 %v1623, 62
  %v1838 = vpop.permute.xlu0 %1837
  %1839 = vrot.lane.b32.xlu0 %v1622, 62
  %v1840 = vpop.permute.xlu0 %1839
  %1841 = vrot.lane.b32.xlu0 %v1587, 62
  %v1842 = vpop.permute.xlu0 %1841
  %1843 = vrot.lane.b32.xlu0 %v1588, 62
  %v1844 = vpop.permute.xlu0 %1843
  %1845 = vrot.lane.b32.xlu0 %v1626, 62
  %v1846 = vpop.permute.xlu0 %1845
  %1847 = vrot.lane.b32.xlu0 %v1625, 62
  %v1848 = vpop.permute.xlu0 %1847
  %1849 = vrot.lane.b32.xlu0 %v1598, 62
  %v1850 = vpop.permute.xlu0 %1849
  %1851 = vrot.lane.b32.xlu0 %v1599, 62
  %v1852 = vpop.permute.xlu0 %1851
  %1853 = vrot.lane.b32.xlu0 %v1629, 62
  %v1854 = vpop.permute.xlu0 %1853
  %1855 = vrot.lane.b32.xlu0 %v1628, 62
  %v1856 = vpop.permute.xlu0 %1855
  %1857 = vrot.lane.b32.xlu0 %v1609, 62
  %v1858 = vpop.permute.xlu0 %1857
  %1859 = vrot.lane.b32.xlu0 %v1610, 62
  %v1860 = vpop.permute.xlu0 %1859
  %1861 = vrot.lane.b32.xlu0 %v1632, 62
  %v1862 = vpop.permute.xlu0 %1861
  %1863 = vrot.lane.b32.xlu0 %v1631, 62
  %v1864 = vpop.permute.xlu0 %1863
  %vm1865 = vcmask 506880
  %v1866 = vsel %vm1865, %v1810, %v1812
  %v1867 = vsel %vm1865, %v1812, %v1814
  %v1868 = vsel %vm1865, %v1814, %v1816
  %v1869 = vsel %vm1865, %v1818, %v1820
  %v1870 = vsel %vm1865, %v1820, %v1822
  %v1871 = vsel %vm1865, %v1822, %v1824
  %v1872 = vsel %vm1865, %v1826, %v1828
  %v1873 = vsel %vm1865, %v1828, %v1830
  %v1874 = vsel %vm1865, %v1830, %v1832
  %v1875 = vsel %vm1865, %v1834, %v1836
  %v1876 = vsel %vm1865, %v1836, %v1838
  %v1877 = vsel %vm1865, %v1838, %v1840
  %v1878 = vsel %vm1865, %v1842, %v1844
  %v1879 = vsel %vm1865, %v1844, %v1846
  %v1880 = vsel %vm1865, %v1846, %v1848
  %v1881 = vsel %vm1865, %v1850, %v1852
  %v1882 = vsel %vm1865, %v1852, %v1854
  %v1883 = vsel %vm1865, %v1854, %v1856
  %v1884 = vsel %vm1865, %v1858, %v1860
  %v1885 = vsel %vm1865, %v1860, %v1862
  %v1886 = vsel %vm1865, %v1862, %v1864
  %1908 = vrot.lane.b32.xlu0 %v1470, 40
  %v1909 = vpop.permute.xlu0 %1908
  %1910 = vrot.lane.b32.xlu0 %v1472, 40
  %v1911 = vpop.permute.xlu0 %1910
  %1912 = vrot.lane.b32.xlu0 %v1541, 40
  %v1913 = vpop.permute.xlu0 %1912
  %1914 = vrot.lane.b32.xlu0 %v1543, 40
  %v1915 = vpop.permute.xlu0 %1914
  %1916 = vrot.lane.b32.xlu0 %v1554, 40
  %v1917 = vpop.permute.xlu0 %1916
  %1918 = vrot.lane.b32.xlu0 %v1555, 40
  %v1919 = vpop.permute.xlu0 %1918
  %1920 = vrot.lane.b32.xlu0 %v1617, 40
  %v1921 = vpop.permute.xlu0 %1920
  %1922 = vrot.lane.b32.xlu0 %v1616, 40
  %v1923 = vpop.permute.xlu0 %1922
  %1924 = vrot.lane.b32.xlu0 %v1565, 40
  %v1925 = vpop.permute.xlu0 %1924
  %1926 = vrot.lane.b32.xlu0 %v1566, 40
  %v1927 = vpop.permute.xlu0 %1926
  %1928 = vrot.lane.b32.xlu0 %v1620, 40
  %v1929 = vpop.permute.xlu0 %1928
  %1930 = vrot.lane.b32.xlu0 %v1619, 40
  %v1931 = vpop.permute.xlu0 %1930
  %1932 = vrot.lane.b32.xlu0 %v1576, 40
  %v1933 = vpop.permute.xlu0 %1932
  %1934 = vrot.lane.b32.xlu0 %v1577, 40
  %v1935 = vpop.permute.xlu0 %1934
  %1936 = vrot.lane.b32.xlu0 %v1623, 40
  %v1937 = vpop.permute.xlu0 %1936
  %1938 = vrot.lane.b32.xlu0 %v1622, 40
  %v1939 = vpop.permute.xlu0 %1938
  %1940 = vrot.lane.b32.xlu0 %v1587, 40
  %v1941 = vpop.permute.xlu0 %1940
  %1942 = vrot.lane.b32.xlu0 %v1588, 40
  %v1943 = vpop.permute.xlu0 %1942
  %1944 = vrot.lane.b32.xlu0 %v1626, 40
  %v1945 = vpop.permute.xlu0 %1944
  %1946 = vrot.lane.b32.xlu0 %v1625, 40
  %v1947 = vpop.permute.xlu0 %1946
  %1948 = vrot.lane.b32.xlu0 %v1598, 40
  %v1949 = vpop.permute.xlu0 %1948
  %1950 = vrot.lane.b32.xlu0 %v1599, 40
  %v1951 = vpop.permute.xlu0 %1950
  %1952 = vrot.lane.b32.xlu0 %v1629, 40
  %v1953 = vpop.permute.xlu0 %1952
  %1954 = vrot.lane.b32.xlu0 %v1628, 40
  %v1955 = vpop.permute.xlu0 %1954
  %1956 = vrot.lane.b32.xlu0 %v1609, 40
  %v1957 = vpop.permute.xlu0 %1956
  %1958 = vrot.lane.b32.xlu0 %v1610, 40
  %v1959 = vpop.permute.xlu0 %1958
  %1960 = vrot.lane.b32.xlu0 %v1632, 40
  %v1961 = vpop.permute.xlu0 %1960
  %1962 = vrot.lane.b32.xlu0 %v1631, 40
  %v1963 = vpop.permute.xlu0 %1962
  %vm1964 = vcmask 326656
  %v1965 = vsel %vm1964, %v1909, %v1911
  %v1966 = vsel %vm1964, %v1911, %v1913
  %v1967 = vsel %vm1964, %v1913, %v1915
  %v1968 = vsel %vm1964, %v1917, %v1919
  %v1969 = vsel %vm1964, %v1919, %v1921
  %v1970 = vsel %vm1964, %v1921, %v1923
  %v1971 = vsel %vm1964, %v1925, %v1927
  %v1972 = vsel %vm1964, %v1927, %v1929
  %v1973 = vsel %vm1964, %v1929, %v1931
  %v1974 = vsel %vm1964, %v1933, %v1935
  %v1975 = vsel %vm1964, %v1935, %v1937
  %v1976 = vsel %vm1964, %v1937, %v1939
  %v1977 = vsel %vm1964, %v1941, %v1943
  %v1978 = vsel %vm1964, %v1943, %v1945
  %v1979 = vsel %vm1964, %v1945, %v1947
  %v1980 = vsel %vm1964, %v1949, %v1951
  %v1981 = vsel %vm1964, %v1951, %v1953
  %v1982 = vsel %vm1964, %v1953, %v1955
  %v1983 = vsel %vm1964, %v1957, %v1959
  %v1984 = vsel %vm1964, %v1959, %v1961
  %v1985 = vsel %vm1964, %v1961, %v1963
  %2007 = vrot.lane.b32.xlu0 %v1470, 18
  %v2008 = vpop.permute.xlu0 %2007
  %2009 = vrot.lane.b32.xlu0 %v1472, 18
  %v2010 = vpop.permute.xlu0 %2009
  %2011 = vrot.lane.b32.xlu0 %v1541, 18
  %v2012 = vpop.permute.xlu0 %2011
  %2013 = vrot.lane.b32.xlu0 %v1543, 18
  %v2014 = vpop.permute.xlu0 %2013
  %2015 = vrot.lane.b32.xlu0 %v1554, 18
  %v2016 = vpop.permute.xlu0 %2015
  %2017 = vrot.lane.b32.xlu0 %v1555, 18
  %v2018 = vpop.permute.xlu0 %2017
  %2019 = vrot.lane.b32.xlu0 %v1617, 18
  %v2020 = vpop.permute.xlu0 %2019
  %2021 = vrot.lane.b32.xlu0 %v1616, 18
  %v2022 = vpop.permute.xlu0 %2021
  %2023 = vrot.lane.b32.xlu0 %v1565, 18
  %v2024 = vpop.permute.xlu0 %2023
  %2025 = vrot.lane.b32.xlu0 %v1566, 18
  %v2026 = vpop.permute.xlu0 %2025
  %2027 = vrot.lane.b32.xlu0 %v1620, 18
  %v2028 = vpop.permute.xlu0 %2027
  %2029 = vrot.lane.b32.xlu0 %v1619, 18
  %v2030 = vpop.permute.xlu0 %2029
  %2031 = vrot.lane.b32.xlu0 %v1576, 18
  %v2032 = vpop.permute.xlu0 %2031
  %2033 = vrot.lane.b32.xlu0 %v1577, 18
  %v2034 = vpop.permute.xlu0 %2033
  %2035 = vrot.lane.b32.xlu0 %v1623, 18
  %v2036 = vpop.permute.xlu0 %2035
  %2037 = vrot.lane.b32.xlu0 %v1622, 18
  %v2038 = vpop.permute.xlu0 %2037
  %2039 = vrot.lane.b32.xlu0 %v1587, 18
  %v2040 = vpop.permute.xlu0 %2039
  %2041 = vrot.lane.b32.xlu0 %v1588, 18
  %v2042 = vpop.permute.xlu0 %2041
  %2043 = vrot.lane.b32.xlu0 %v1626, 18
  %v2044 = vpop.permute.xlu0 %2043
  %2045 = vrot.lane.b32.xlu0 %v1625, 18
  %v2046 = vpop.permute.xlu0 %2045
  %2047 = vrot.lane.b32.xlu0 %v1598, 18
  %v2048 = vpop.permute.xlu0 %2047
  %2049 = vrot.lane.b32.xlu0 %v1599, 18
  %v2050 = vpop.permute.xlu0 %2049
  %2051 = vrot.lane.b32.xlu0 %v1629, 18
  %v2052 = vpop.permute.xlu0 %2051
  %2053 = vrot.lane.b32.xlu0 %v1628, 18
  %v2054 = vpop.permute.xlu0 %2053
  %2055 = vrot.lane.b32.xlu0 %v1609, 18
  %v2056 = vpop.permute.xlu0 %2055
  %2057 = vrot.lane.b32.xlu0 %v1610, 18
  %v2058 = vpop.permute.xlu0 %2057
  %2059 = vrot.lane.b32.xlu0 %v1632, 18
  %v2060 = vpop.permute.xlu0 %2059
  %2061 = vrot.lane.b32.xlu0 %v1631, 18
  %v2062 = vpop.permute.xlu0 %2061
  %vm2063 = vcmask 146432
  %v2064 = vsel %vm2063, %v2008, %v2010
  %v2065 = vsel %vm2063, %v2010, %v2012
  %v2066 = vsel %vm2063, %v2012, %v2014
  %v2067 = vsel %vm2063, %v2016, %v2018
  %v2068 = vsel %vm2063, %v2018, %v2020
  %v2069 = vsel %vm2063, %v2020, %v2022
  %v2070 = vsel %vm2063, %v2024, %v2026
  %v2071 = vsel %vm2063, %v2026, %v2028
  %v2072 = vsel %vm2063, %v2028, %v2030
  %v2073 = vsel %vm2063, %v2032, %v2034
  %v2074 = vsel %vm2063, %v2034, %v2036
  %v2075 = vsel %vm2063, %v2036, %v2038
  %v2076 = vsel %vm2063, %v2040, %v2042
  %v2077 = vsel %vm2063, %v2042, %v2044
  %v2078 = vsel %vm2063, %v2044, %v2046
  %v2079 = vsel %vm2063, %v2048, %v2050
  %v2080 = vsel %vm2063, %v2050, %v2052
  %v2081 = vsel %vm2063, %v2052, %v2054
  %v2082 = vsel %vm2063, %v2056, %v2058
  %v2083 = vsel %vm2063, %v2058, %v2060
  %v2084 = vsel %vm2063, %v2060, %v2062
  %2106 = vrot.lane.b32.xlu0 %v1555, 124
  %v2107 = vpop.permute.xlu0 %2106
  %2108 = vrot.lane.b32.xlu0 %v1617, 124
  %v2109 = vpop.permute.xlu0 %2108
  %2110 = vrot.lane.b32.xlu0 %v1616, 124
  %v2111 = vpop.permute.xlu0 %2110
  %2112 = vrot.lane.b32.xlu0 %v1566, 124
  %v2113 = vpop.permute.xlu0 %2112
  %2114 = vrot.lane.b32.xlu0 %v1620, 124
  %v2115 = vpop.permute.xlu0 %2114
  %2116 = vrot.lane.b32.xlu0 %v1619, 124
  %v2117 = vpop.permute.xlu0 %2116
  %2118 = vrot.lane.b32.xlu0 %v1577, 124
  %v2119 = vpop.permute.xlu0 %2118
  %2120 = vrot.lane.b32.xlu0 %v1623, 124
  %v2121 = vpop.permute.xlu0 %2120
  %2122 = vrot.lane.b32.xlu0 %v1622, 124
  %v2123 = vpop.permute.xlu0 %2122
  %2124 = vrot.lane.b32.xlu0 %v1588, 124
  %v2125 = vpop.permute.xlu0 %2124
  %2126 = vrot.lane.b32.xlu0 %v1626, 124
  %v2127 = vpop.permute.xlu0 %2126
  %2128 = vrot.lane.b32.xlu0 %v1625, 124
  %v2129 = vpop.permute.xlu0 %2128
  %2130 = vrot.lane.b32.xlu0 %v1599, 124
  %v2131 = vpop.permute.xlu0 %2130
  %2132 = vrot.lane.b32.xlu0 %v1629, 124
  %v2133 = vpop.permute.xlu0 %2132
  %2134 = vrot.lane.b32.xlu0 %v1628, 124
  %v2135 = vpop.permute.xlu0 %2134
  %2136 = vrot.lane.b32.xlu0 %v1610, 124
  %v2137 = vpop.permute.xlu0 %2136
  %2138 = vrot.lane.b32.xlu0 %v1632, 124
  %v2139 = vpop.permute.xlu0 %2138
  %2140 = vrot.lane.b32.xlu0 %v1631, 124
  %v2141 = vpop.permute.xlu0 %2140
  %v2142 = vsel %vm333, %v2107, %v2109
  %v2143 = vsel %vm333, %v2109, %v2111
  %v2144 = vsel %vm333, %v2113, %v2115
  %v2145 = vsel %vm333, %v2115, %v2117
  %v2146 = vsel %vm333, %v2119, %v2121
  %v2147 = vsel %vm333, %v2121, %v2123
  %v2148 = vsel %vm333, %v2125, %v2127
  %v2149 = vsel %vm333, %v2127, %v2129
  %v2150 = vsel %vm333, %v2131, %v2133
  %v2151 = vsel %vm333, %v2133, %v2135
  %v2152 = vsel %vm333, %v2137, %v2139
  %v2153 = vsel %vm333, %v2139, %v2141
  %v2174 = vpack.c.bf16 %v1554, %v1470
  %v2175 = vpack.c.bf16 %v1555, %v1472
  %v2176 = vpack.c.bf16 %v1553, %v1541
  %v2177 = vpack.c.bf16 %v1576, %v1565
  %v2178 = vpack.c.bf16 %v1577, %v1566
  %v2179 = vpack.c.bf16 %v1575, %v1564
  %v2180 = vpack.c.bf16 %v1598, %v1587
  %v2181 = vpack.c.bf16 %v1599, %v1588
  %v2182 = vpack.c.bf16 %v1597, %v1586
  %v2183 = vpack.c.bf16 %v1675, %v1609
  %v2184 = vpack.c.bf16 %v1676, %v1610
  %v2185 = vpack.c.bf16 %v1638, %v1608
  %v2186 = vpack.c.bf16 %v1679, %v1677
  %v2187 = vpack.c.bf16 %v1680, %v1678
  %v2188 = vpack.c.bf16 %v1650, %v1644
  %v2189 = vpack.c.bf16 %v1683, %v1681
  %v2190 = vpack.c.bf16 %v1684, %v1682
  %v2191 = vpack.c.bf16 %v1662, %v1656
  %v2192 = vpack.c.bf16 %v1687, %v1685
  %v2193 = vpack.c.bf16 %v1688, %v1686
  %v2194 = vpack.c.bf16 %v1674, %v1668
  %v2195 = vpack.c.bf16 %v1770, %v1767
  %v2196 = vpack.c.bf16 %v1771, %v1768
  %v2197 = vpack.c.bf16 %v1772, %v1769
  %v2198 = vpack.c.bf16 %v1776, %v1773
  %v2199 = vpack.c.bf16 %v1777, %v1774
  %v2200 = vpack.c.bf16 %v1778, %v1775
  %v2201 = vpack.c.bf16 %v1782, %v1779
  %v2202 = vpack.c.bf16 %v1783, %v1780
  %v2203 = vpack.c.bf16 %v1784, %v1781
  %v2204 = vpack.c.bf16 %v1866, %v1785
  %v2205 = vpack.c.bf16 %v1867, %v1786
  %v2206 = vpack.c.bf16 %v1868, %v1787
  %v2207 = vpack.c.bf16 %v1872, %v1869
  %v2208 = vpack.c.bf16 %v1873, %v1870
  %v2209 = vpack.c.bf16 %v1874, %v1871
  %v2210 = vpack.c.bf16 %v1878, %v1875
  %v2211 = vpack.c.bf16 %v1879, %v1876
  %v2212 = vpack.c.bf16 %v1880, %v1877
  %v2213 = vpack.c.bf16 %v1884, %v1881
  %v2214 = vpack.c.bf16 %v1885, %v1882
  %v2215 = vpack.c.bf16 %v1886, %v1883
  %v2216 = vpack.c.bf16 %v1968, %v1965
  %v2217 = vpack.c.bf16 %v1969, %v1966
  %v2218 = vpack.c.bf16 %v1970, %v1967
  %v2219 = vpack.c.bf16 %v1974, %v1971
  %v2220 = vpack.c.bf16 %v1975, %v1972
  %v2221 = vpack.c.bf16 %v1976, %v1973
  %v2222 = vpack.c.bf16 %v1980, %v1977
  %v2223 = vpack.c.bf16 %v1981, %v1978
  %v2224 = vpack.c.bf16 %v1982, %v1979
  %v2225 = vpack.c.bf16 %v2064, %v1983
  %v2226 = vpack.c.bf16 %v2065, %v1984
  %v2227 = vpack.c.bf16 %v2066, %v1985
  %v2228 = vpack.c.bf16 %v2070, %v2067
  %v2229 = vpack.c.bf16 %v2071, %v2068
  %v2230 = vpack.c.bf16 %v2072, %v2069
  %v2231 = vpack.c.bf16 %v2076, %v2073
  %v2232 = vpack.c.bf16 %v2077, %v2074
  %v2233 = vpack.c.bf16 %v2078, %v2075
  %v2234 = vpack.c.bf16 %v2082, %v2079
  %v2235 = vpack.c.bf16 %v2083, %v2080
  %v2236 = vpack.c.bf16 %v2084, %v2081
  %v2237 = vpack.c.bf16 %v2142, %v1588
  %v2238 = vpack.c.bf16 %v2143, %v1626
  %v2239 = vpack.c.bf16 %v2111, %v1625
  %v2240 = vpack.c.bf16 %v2146, %v2144
  %v2241 = vpack.c.bf16 %v2147, %v2145
  %v2242 = vpack.c.bf16 %v2123, %v2117
  %v2243 = vpack.c.bf16 %v2150, %v2148
  %v2244 = vpack.c.bf16 %v2151, %v2149
  %v2245 = vpack.c.bf16 %v2135, %v2129
  %v2246 = vpack.c.bf16 %v2152, %v2152
  %v2247 = vpack.c.bf16 %v2153, %v2153
  %v2248 = vpack.c.bf16 %v2141, %v2141
  %v2249 = vld [vmem:[%s16] sm:$0xff]
  %v2250 = vld [vmem:[%s16 + $0x8] sm:$0xff]
  %v2253 = vunpack.c.l.b16 %v2249
  %v2254 = vunpack.c.h.b16 %v2249
  %v2255 = vunpack.c.l.b16 %v2250
  %v2256 = vunpack.c.h.b16 %v2250
  %v2257 = vpack.c.b16 %v2253, %v2253
  %v2258 = vpack.c.b16 %v2254, %v2254
  %v2259 = vpack.c.b16 %v2255, %v2255
  %v2260 = vpack.c.b16 %v2256, %v2256
  %v2265 = vsel %vm619, %v2260, 0
  %v2268 = vsel %vm623, %v2246, 0
  %v2271 = vsel %vm623, %v2247, 0
  %v2274 = vsel %vm623, %v2248, 0
  %2276 = vmatprep.subr.bf16.mxu0 %v2196
  %2277 = vmatpush1.bf16.msra.mxu0 %v2195
  %2278 = vmatprep.subr.bf16.mxu0 %v2193
  %2279 = vmatpush1.bf16.msra.mxu0 %v2192
  %2280 = vmatprep.subr.bf16.mxu0 %v2190
  %2281 = vmatpush1.bf16.msra.mxu0 %v2189
  %2282 = vmatprep.subr.bf16.mxu0 %v2187
  %2283 = vmatpush1.bf16.msra.mxu0 %v2186
  %2284 = vmatprep.subr.bf16.mxu0 %v2184
  %2285 = vmatpush1.bf16.msra.mxu0 %v2183
  %2286 = vmatprep.subr.bf16.mxu0 %v2181
  %2287 = vmatpush1.bf16.msra.mxu0 %v2180
  %2288 = vmatprep.subr.bf16.mxu0 %v2178
  %2289 = vmatpush1.bf16.msra.mxu0 %v2177
  %2290 = vmatprep.subr.bf16.mxu0 %v2175
  %2291 = vmatpush1.bf16.msra.mxu0 %v2174
  %2292 = vmatprep.subr.bf16.mxu0 %v2220
  %2293 = vmatpush2.bf16.msra.mxu0 %v2219
  %2294 = vmatprep.subr.bf16.mxu0 %v2217
  %2295 = vmatpush2.bf16.msra.mxu0 %v2216
  %2296 = vmatprep.subr.bf16.mxu0 %v2214
  %2297 = vmatpush2.bf16.msra.mxu0 %v2213
  %2298 = vmatprep.subr.bf16.mxu0 %v2211
  %2299 = vmatpush2.bf16.msra.mxu0 %v2210
  %2300 = vmatprep.subr.bf16.mxu0 %v2208
  %2301 = vmatpush2.bf16.msra.mxu0 %v2207
  %2302 = vmatprep.subr.bf16.mxu0 %v2205
  %2303 = vmatpush2.bf16.msra.mxu0 %v2204
  %2304 = vmatprep.subr.bf16.mxu0 %v2202
  %2305 = vmatpush2.bf16.msra.mxu0 %v2201
  %2306 = vmatprep.subr.bf16.mxu0 %v2199
  %2307 = vmatpush2.bf16.msra.mxu0 %v2198
  %2308 = vmatprep.mubr.bf16.mxu0 %v2258
  %2309 = vmatmul.mubr.bf16.gmra.mxu0 %v2257
  %v2310 = vpop.f32.mrf.mxu0
  %v2311 = vadd.f32 0.0, %v2310
  %v2312 = vpop.f32.mrf.mxu0
  %v2313 = vadd.f32 0.0, %v2312
  %v2314 = vpop.f32.mrf.mxu0
  %v2315 = vpop.f32.mrf.mxu0
  %2316 = vdwg.mxu0
  %2317 = vmatprep.subr.bf16.mxu0 %v2244
  %2318 = vmatpush1.bf16.msra.mxu0 %v2243
  %2319 = vmatprep.subr.bf16.mxu0 %v2241
  %2320 = vmatpush1.bf16.msra.mxu0 %v2240
  %2321 = vmatprep.subr.bf16.mxu0 %v2238
  %2322 = vmatpush1.bf16.msra.mxu0 %v2237
  %2323 = vmatprep.subr.bf16.mxu0 %v2235
  %2324 = vmatpush1.bf16.msra.mxu0 %v2234
  %2325 = vmatprep.subr.bf16.mxu0 %v2232
  %2326 = vmatpush1.bf16.msra.mxu0 %v2231
  %2327 = vmatprep.subr.bf16.mxu0 %v2229
  %2328 = vmatpush1.bf16.msra.mxu0 %v2228
  %2329 = vmatprep.subr.bf16.mxu0 %v2226
  %2330 = vmatpush1.bf16.msra.mxu0 %v2225
  %2331 = vmatprep.subr.bf16.mxu0 %v2223
  %2332 = vmatpush1.bf16.msra.mxu0 %v2222
  %2333 = vmatprep.subr.bf16.mxu0 0
  %2334 = vmatpush2.bf16.msra.mxu0 0
  %2335 = vmatprep.subr.bf16.mxu0 0
  %2336 = vmatpush2.bf16.msra.mxu0 0
  %2337 = vmatprep.subr.bf16.mxu0 0
  %2338 = vmatpush2.bf16.msra.mxu0 0
  %2339 = vmatprep.subr.bf16.mxu0 0
  %2340 = vmatpush2.bf16.msra.mxu0 0
  %2341 = vmatprep.subr.bf16.mxu0 0
  %2342 = vmatpush2.bf16.msra.mxu0 0
  %2343 = vmatprep.subr.bf16.mxu0 0
  %2344 = vmatpush2.bf16.msra.mxu0 0
  %2345 = vmatprep.subr.bf16.mxu0 0
  %2346 = vmatpush2.bf16.msra.mxu0 0
  %2347 = vmatprep.subr.bf16.mxu0 %v2271
  %2348 = vmatpush2.bf16.msra.mxu0 %v2268
  %2349 = vmatprep.mubr.bf16.mxu0 %v2265
  %2350 = vmatmul.mubr.bf16.gmra.mxu0 %v2259
  %v2351 = vpop.f32.mrf.mxu0
  %v2352 = vadd.f32 %v2311, %v2351
  %v2353 = vpop.f32.mrf.mxu0
  %v2354 = vadd.f32 %v2313, %v2353
  %v2355 = vpop.f32.mrf.mxu0
  %v2356 = vpop.f32.mrf.mxu0
  %2357 = vdwg.mxu0
  %2358 = vmatprep.subr.bf16.mxu0 0
  %2359 = vmatpush1.bf16.msra.mxu0 %v2197
  %2360 = vmatprep.subr.bf16.mxu0 0
  %2361 = vmatpush1.bf16.msra.mxu0 %v2194
  %2362 = vmatprep.subr.bf16.mxu0 0
  %2363 = vmatpush1.bf16.msra.mxu0 %v2191
  %2364 = vmatprep.subr.bf16.mxu0 0
  %2365 = vmatpush1.bf16.msra.mxu0 %v2188
  %2366 = vmatprep.subr.bf16.mxu0 0
  %2367 = vmatpush1.bf16.msra.mxu0 %v2185
  %2368 = vmatprep.subr.bf16.mxu0 0
  %2369 = vmatpush1.bf16.msra.mxu0 %v2182
  %2370 = vmatprep.subr.bf16.mxu0 0
  %2371 = vmatpush1.bf16.msra.mxu0 %v2179
  %2372 = vmatprep.subr.bf16.mxu0 0
  %2373 = vmatpush1.bf16.msra.mxu0 %v2176
  %2374 = vmatprep.subr.bf16.mxu0 0
  %2375 = vmatpush2.bf16.msra.mxu0 %v2221
  %2376 = vmatprep.subr.bf16.mxu0 0
  %2377 = vmatpush2.bf16.msra.mxu0 %v2218
  %2378 = vmatprep.subr.bf16.mxu0 0
  %2379 = vmatpush2.bf16.msra.mxu0 %v2215
  %2380 = vmatprep.subr.bf16.mxu0 0
  %2381 = vmatpush2.bf16.msra.mxu0 %v2212
  %2382 = vmatprep.subr.bf16.mxu0 0
  %2383 = vmatpush2.bf16.msra.mxu0 %v2209
  %2384 = vmatprep.subr.bf16.mxu0 0
  %2385 = vmatpush2.bf16.msra.mxu0 %v2206
  %2386 = vmatprep.subr.bf16.mxu0 0
  %2387 = vmatpush2.bf16.msra.mxu0 %v2203
  %2388 = vmatprep.subr.bf16.mxu0 0
  %2389 = vmatpush2.bf16.msra.mxu0 %v2200
  %2390 = vmatprep.mubr.bf16.mxu0 %v2258
  %2391 = vmatmul.mubr.bf16.gmra.mxu0 %v2257
  %v2392 = vpop.f32.mrf.mxu0
  %v2393 = vadd.f32 0.0, %v2392
  %v2394 = vpop.f32.mrf.mxu0
  %v2395 = vpop.f32.mrf.mxu0
  %v2396 = vpop.f32.mrf.mxu0
  %2397 = vdwg.mxu0
  %2398 = vmatprep.subr.bf16.mxu0 0
  %2399 = vmatpush1.bf16.msra.mxu0 %v2245
  %2400 = vmatprep.subr.bf16.mxu0 0
  %2401 = vmatpush1.bf16.msra.mxu0 %v2242
  %2402 = vmatprep.subr.bf16.mxu0 0
  %2403 = vmatpush1.bf16.msra.mxu0 %v2239
  %2404 = vmatprep.subr.bf16.mxu0 0
  %2405 = vmatpush1.bf16.msra.mxu0 %v2236
  %2406 = vmatprep.subr.bf16.mxu0 0
  %2407 = vmatpush1.bf16.msra.mxu0 %v2233
  %2408 = vmatprep.subr.bf16.mxu0 0
  %2409 = vmatpush1.bf16.msra.mxu0 %v2230
  %2410 = vmatprep.subr.bf16.mxu0 0
  %2411 = vmatpush1.bf16.msra.mxu0 %v2227
  %2412 = vmatprep.subr.bf16.mxu0 0
  %2413 = vmatpush1.bf16.msra.mxu0 %v2224
  %2414 = vmatprep.subr.bf16.mxu0 0
  %2415 = vmatpush2.bf16.msra.mxu0 0
  %2416 = vmatprep.subr.bf16.mxu0 0
  %2417 = vmatpush2.bf16.msra.mxu0 0
  %2418 = vmatprep.subr.bf16.mxu0 0
  %2419 = vmatpush2.bf16.msra.mxu0 0
  %2420 = vmatprep.subr.bf16.mxu0 0
  %2421 = vmatpush2.bf16.msra.mxu0 0
  %2422 = vmatprep.subr.bf16.mxu0 0
  %2423 = vmatpush2.bf16.msra.mxu0 0
  %2424 = vmatprep.subr.bf16.mxu0 0
  %2425 = vmatpush2.bf16.msra.mxu0 0
  %2426 = vmatprep.subr.bf16.mxu0 0
  %2427 = vmatpush2.bf16.msra.mxu0 0
  %2428 = vmatprep.subr.bf16.mxu0 0
  %2429 = vmatpush2.bf16.msra.mxu0 %v2274
  %2430 = vmatprep.mubr.bf16.mxu0 %v2265
  %2431 = vmatmul.mubr.bf16.gmra.mxu0 %v2259
  %v2432 = vpop.f32.mrf.mxu0
  %v2433 = vadd.f32 %v2393, %v2432
  %v2434 = vpop.f32.mrf.mxu0
  %v2435 = vpop.f32.mrf.mxu0
  %v2436 = vpop.f32.mrf.mxu0
  %2437 = vdwg.mxu0
  %v2438 = vld [vmem:[%s13] sm:$0xff]
  %v2439 = vld [vmem:[%s13 + $0x8] sm:$0xff]
  %v2440 = vld [vmem:[%s13 + $0x10] sm:$0xff]
  %v2441 = vld [vmem:[%s13 + $0x18] sm:$0xff]
  %v2442 = vld [vmem:[%s13 + $0x20] sm:$0xff]
  %v2443 = vld [vmem:[%s13 + $0x28] sm:$0xff]
  %v2444 = vld [vmem:[%s13 + $0x30] sm:$0xff]
  %v2445 = vld [vmem:[%s13 + $0x38] sm:$0xff]
  %v2446 = vld [vmem:[%s13 + $0x40] sm:$0xff]
  %v2447 = vld [vmem:[%s13 + $0x48] sm:$0xff]
  %v2448 = vld [vmem:[%s13 + $0x50] sm:$0xff]
  %v2449 = vld [vmem:[%s13 + $0x58] sm:$0xff]
  %v2450 = vld [vmem:[%s13 + $0x60] sm:$0xff]
  %v2451 = vld [vmem:[%s13 + $0x68] sm:$0xff]
  %v2452 = vld [vmem:[%s13 + $0x70] sm:$0xff]
  %v2453 = vld [vmem:[%s13 + $0x78] sm:$0xff]
  %v2454 = vld [vmem:[%s13 + $0x80] sm:$0xff]
  %v2455 = vld [vmem:[%s13 + $0x88] sm:$0xff]
  %v2456 = vld [vmem:[%s13 + $0x90] sm:$0xff]
  %v2457 = vld [vmem:[%s13 + $0x98] sm:$0xff]
  %v2458 = vld [vmem:[%s13 + $0xa0] sm:$0xff]
  %v2459 = vld [vmem:[%s13 + $0xa8] sm:$0xff]
  %v2460 = vld [vmem:[%s13 + $0xb0] sm:$0xff]
  %v2461 = vld [vmem:[%s13 + $0xb8] sm:$0xff]
  %v2462 = vld [vmem:[%s13 + $0xc0] sm:$0xff]
  %v2463 = vld [vmem:[%s13 + $0xc8] sm:$0xff]
  %v2464 = vld [vmem:[%s13 + $0xd0] sm:$0xff]
  %v2465 = vld [vmem:[%s13 + $0xd8] sm:$0xff]
  %v2466 = vld [vmem:[%s13 + $0xe0] sm:$0xff]
  %v2467 = vld [vmem:[%s13 + $0xe8] sm:$0xff]
  %v2468 = vld [vmem:[%s13 + $0xf0] sm:$0xff]
  %v2469 = vld [vmem:[%s13 + $0xf8] sm:$0xff]
  %v2470 = vld [vmem:[%s13 + $0x100] sm:$0xff]
  %v2471 = vld [vmem:[%s13 + $0x108] sm:$0xff]
  %v2472 = vld [vmem:[%s13 + $0x110] sm:$0xff]
  %v2473 = vld [vmem:[%s13 + $0x118] sm:$0xff]
  %v2474 = vld [vmem:[%s13 + $0x120] sm:$0xff]
  %v2475 = vld [vmem:[%s13 + $0x128] sm:$0xff]
  %v2476 = vld [vmem:[%s13 + $0x130] sm:$0xff]
  %v2477 = vld [vmem:[%s13 + $0x138] sm:$0xff]
  %v2478 = vld [vmem:[%s13 + $0x140] sm:$0xff]
  %v2479 = vld [vmem:[%s13 + $0x148] sm:$0xff]
  %v2480 = vld [vmem:[%s13 + $0x150] sm:$0xff]
  %v2481 = vld [vmem:[%s13 + $0x158] sm:$0xff]
  %v2482 = vld [vmem:[%s13 + $0x160] sm:$0xff]
  %v2483 = vld [vmem:[%s13 + $0x168] sm:$0xff]
  %v2484 = vld [vmem:[%s13 + $0x170] sm:$0xff]
  %v2485 = vld [vmem:[%s13 + $0x178] sm:$0xff]
  %v2486 = vld [vmem:[%s13 + $0x180] sm:$0xff]
  %v2487 = vld [vmem:[%s13 + $0x188] sm:$0xff]
  %v2488 = vld [vmem:[%s13 + $0x190] sm:$0xff]
  %v2489 = vld [vmem:[%s13 + $0x198] sm:$0xff]
  %v2490 = vld [vmem:[%s13 + $0x1a0] sm:$0xff]
  %v2491 = vld [vmem:[%s13 + $0x1a8] sm:$0xff]
  %v2492 = vld [vmem:[%s13 + $0x1b0] sm:$0xff]
  %v2493 = vld [vmem:[%s13 + $0x1b8] sm:$0xff]
  %v2494 = vld [vmem:[%s13 + $0x1c0] sm:$0xff]
  %v2495 = vld [vmem:[%s13 + $0x1c8] sm:$0xff]
  %v2496 = vld [vmem:[%s13 + $0x1d0] sm:$0xff]
  %v2497 = vld [vmem:[%s13 + $0x1d8] sm:$0xff]
  %v2498 = vld [vmem:[%s13 + $0x1e0] sm:$0xff]
  %v2499 = vld [vmem:[%s13 + $0x1e8] sm:$0xff]
  %v2500 = vld [vmem:[%s13 + $0x1f0] sm:$0xff]
  %v2501 = vld [vmem:[%s13 + $0x1f8] sm:$0xff]
  %v2502 = vld [vmem:[%s13 + $0x200] sm:$0xff]
  %v2503 = vld [vmem:[%s13 + $0x208] sm:$0xff]
  %v2504 = vld [vmem:[%s13 + $0x210] sm:$0xff]
  %v2505 = vld [vmem:[%s13 + $0x218] sm:$0xff]
  %v2506 = vld [vmem:[%s13 + $0x220] sm:$0xff]
  %v2507 = vld [vmem:[%s13 + $0x228] sm:$0xff]
  %v2508 = vld [vmem:[%s13 + $0x230] sm:$0xff]
  %v2509 = vld [vmem:[%s13 + $0x238] sm:$0xff]
  %v2510 = vld [vmem:[%s13 + $0x240] sm:$0xff]
  %v2511 = vld [vmem:[%s13 + $0x248] sm:$0xff]
  %v2512 = vld [vmem:[%s13 + $0x250] sm:$0xff]
  %v2513 = vld [vmem:[%s13 + $0x258] sm:$0xff]
  %v2514 = vld [vmem:[%s13 + $0x260] sm:$0xff]
  %v2515 = vld [vmem:[%s13 + $0x268] sm:$0xff]
  %v2516 = vld [vmem:[%s13 + $0x270] sm:$0xff]
  %v2517 = vld [vmem:[%s13 + $0x278] sm:$0xff]
  %v2518 = vld [vmem:[%s13 + $0x280] sm:$0xff]
  %v2519 = vld [vmem:[%s13 + $0x288] sm:$0xff]
  %v2520 = vld [vmem:[%s13 + $0x290] sm:$0xff]
  %v2521 = vld [vmem:[%s13 + $0x298] sm:$0xff]
  %v2522 = vld [vmem:[%s13 + $0x2a0] sm:$0xff]
  %v2523 = vld [vmem:[%s13 + $0x2a8] sm:$0xff]
  %v2524 = vld [vmem:[%s13 + $0x2b0] sm:$0x3]
  %v2525 = vld [vmem:[%s13 + $0x2b8] sm:$0x3]
  %vm2526 = vcmask 736256
  %v2528 = vsel %vm2526, %v2433, 0
  %v2531 = vsel %vm725, %v2524, 0
  %v2534 = vsel %vm725, %v2525, 0
  %2536 = vmatprep.subr.mxu0 %v2469
  %2537 = vmatpush1.msra.mxu0 %v2468
  %2538 = vmatprep.subr.mxu0 %v2467
  %2539 = vmatpush1.msra.mxu0 %v2466
  %2540 = vmatprep.subr.mxu0 %v2465
  %2541 = vmatpush1.msra.mxu0 %v2464
  %2542 = vmatprep.subr.mxu0 %v2463
  %2543 = vmatpush1.msra.mxu0 %v2462
  %2544 = vmatprep.subr.mxu0 %v2461
  %2545 = vmatpush1.msra.mxu0 %v2460
  %2546 = vmatprep.subr.mxu0 %v2459
  %2547 = vmatpush1.msra.mxu0 %v2458
  %2548 = vmatprep.subr.mxu0 %v2457
  %2549 = vmatpush1.msra.mxu0 %v2456
  %2550 = vmatprep.subr.mxu0 %v2455
  %2551 = vmatpush1.msra.mxu0 %v2454
  %2552 = vmatprep.subr.mxu0 %v2453
  %2553 = vmatpush1.msra.mxu0 %v2452
  %2554 = vmatprep.subr.mxu0 %v2451
  %2555 = vmatpush1.msra.mxu0 %v2450
  %2556 = vmatprep.subr.mxu0 %v2449
  %2557 = vmatpush1.msra.mxu0 %v2448
  %2558 = vmatprep.subr.mxu0 %v2447
  %2559 = vmatpush1.msra.mxu0 %v2446
  %2560 = vmatprep.subr.mxu0 %v2445
  %2561 = vmatpush1.msra.mxu0 %v2444
  %2562 = vmatprep.subr.mxu0 %v2443
  %2563 = vmatpush1.msra.mxu0 %v2442
  %2564 = vmatprep.subr.mxu0 %v2441
  %2565 = vmatpush1.msra.mxu0 %v2440
  %2566 = vmatprep.subr.mxu0 %v2439
  %2567 = vmatpush1.msra.mxu0 %v2438
  %2568 = vmatprep.subr.mxu0 %v2501
  %2569 = vmatpush2.msra.mxu0 %v2500
  %2570 = vmatprep.subr.mxu0 %v2499
  %2571 = vmatpush2.msra.mxu0 %v2498
  %2572 = vmatprep.subr.mxu0 %v2497
  %2573 = vmatpush2.msra.mxu0 %v2496
  %2574 = vmatprep.subr.mxu0 %v2495
  %2575 = vmatpush2.msra.mxu0 %v2494
  %2576 = vmatprep.subr.mxu0 %v2493
  %2577 = vmatpush2.msra.mxu0 %v2492
  %2578 = vmatprep.subr.mxu0 %v2491
  %2579 = vmatpush2.msra.mxu0 %v2490
  %2580 = vmatprep.subr.mxu0 %v2489
  %2581 = vmatpush2.msra.mxu0 %v2488
  %2582 = vmatprep.subr.mxu0 %v2487
  %2583 = vmatpush2.msra.mxu0 %v2486
  %2584 = vmatprep.subr.mxu0 %v2485
  %2585 = vmatpush2.msra.mxu0 %v2484
  %2586 = vmatprep.subr.mxu0 %v2483
  %2587 = vmatpush2.msra.mxu0 %v2482
  %2588 = vmatprep.subr.mxu0 %v2481
  %2589 = vmatpush2.msra.mxu0 %v2480
  %2590 = vmatprep.subr.mxu0 %v2479
  %2591 = vmatpush2.msra.mxu0 %v2478
  %2592 = vmatprep.subr.mxu0 %v2477
  %2593 = vmatpush2.msra.mxu0 %v2476
  %2594 = vmatprep.subr.mxu0 %v2475
  %2595 = vmatpush2.msra.mxu0 %v2474
  %2596 = vmatprep.subr.mxu0 %v2473
  %2597 = vmatpush2.msra.mxu0 %v2472
  %2598 = vmatprep.subr.mxu0 %v2471
  %2599 = vmatpush2.msra.mxu0 %v2470
  %2600 = vmatprep.mubr.f32.mxu0 %v2354
  %2601 = vmatmul.mubr.f32.gmra.mxu0 %v2352
  %v2602 = vpop.f32.mrf.mxu0
  %v2603 = vadd.f32 0.0, %v2602
  %v2604 = vpop.f32.mrf.mxu0
  %v2605 = vadd.f32 0.0, %v2604
  %2606 = vdwg.mxu0
  %2607 = vmatprep.subr.mxu0 0.0
  %2608 = vmatpush1.msra.mxu0 0.0
  %2609 = vmatprep.subr.mxu0 0.0
  %2610 = vmatpush1.msra.mxu0 0.0
  %2611 = vmatprep.subr.mxu0 0.0
  %2612 = vmatpush1.msra.mxu0 0.0
  %2613 = vmatprep.subr.mxu0 0.0
  %2614 = vmatpush1.msra.mxu0 0.0
  %2615 = vmatprep.subr.mxu0 %v2534
  %2616 = vmatpush1.msra.mxu0 %v2531
  %2617 = vmatprep.subr.mxu0 %v2523
  %2618 = vmatpush1.msra.mxu0 %v2522
  %2619 = vmatprep.subr.mxu0 %v2521
  %2620 = vmatpush1.msra.mxu0 %v2520
  %2621 = vmatprep.subr.mxu0 %v2519
  %2622 = vmatpush1.msra.mxu0 %v2518
  %2623 = vmatprep.subr.mxu0 %v2517
  %2624 = vmatpush1.msra.mxu0 %v2516
  %2625 = vmatprep.subr.mxu0 %v2515
  %2626 = vmatpush1.msra.mxu0 %v2514
  %2627 = vmatprep.subr.mxu0 %v2513
  %2628 = vmatpush1.msra.mxu0 %v2512
  %2629 = vmatprep.subr.mxu0 %v2511
  %2630 = vmatpush1.msra.mxu0 %v2510
  %2631 = vmatprep.subr.mxu0 %v2509
  %2632 = vmatpush1.msra.mxu0 %v2508
  %2633 = vmatprep.subr.mxu0 %v2507
  %2634 = vmatpush1.msra.mxu0 %v2506
  %2635 = vmatprep.subr.mxu0 %v2505
  %2636 = vmatpush1.msra.mxu0 %v2504
  %2637 = vmatprep.subr.mxu0 %v2503
  %2638 = vmatpush1.msra.mxu0 %v2502
  %2639 = vmatprep.subr.mxu0 0.0
  %2640 = vmatpush2.msra.mxu0 0.0
  %2641 = vmatprep.subr.mxu0 0.0
  %2642 = vmatpush2.msra.mxu0 0.0
  %2643 = vmatprep.subr.mxu0 0.0
  %2644 = vmatpush2.msra.mxu0 0.0
  %2645 = vmatprep.subr.mxu0 0.0
  %2646 = vmatpush2.msra.mxu0 0.0
  %2647 = vmatprep.subr.mxu0 0.0
  %2648 = vmatpush2.msra.mxu0 0.0
  %2649 = vmatprep.subr.mxu0 0.0
  %2650 = vmatpush2.msra.mxu0 0.0
  %2651 = vmatprep.subr.mxu0 0.0
  %2652 = vmatpush2.msra.mxu0 0.0
  %2653 = vmatprep.subr.mxu0 0.0
  %2654 = vmatpush2.msra.mxu0 0.0
  %2655 = vmatprep.subr.mxu0 0.0
  %2656 = vmatpush2.msra.mxu0 0.0
  %2657 = vmatprep.subr.mxu0 0.0
  %2658 = vmatpush2.msra.mxu0 0.0
  %2659 = vmatprep.subr.mxu0 0.0
  %2660 = vmatpush2.msra.mxu0 0.0
  %2661 = vmatprep.subr.mxu0 0.0
  %2662 = vmatpush2.msra.mxu0 0.0
  %2663 = vmatprep.subr.mxu0 0.0
  %2664 = vmatpush2.msra.mxu0 0.0
  %2665 = vmatprep.subr.mxu0 0.0
  %2666 = vmatpush2.msra.mxu0 0.0
  %2667 = vmatprep.subr.mxu0 0.0
  %2668 = vmatpush2.msra.mxu0 0.0
  %2669 = vmatprep.subr.mxu0 0.0
  %2670 = vmatpush2.msra.mxu0 0.0
  %2671 = vmatprep.mubr.f32.mxu0 0.0
  %2672 = vmatmul.mubr.f32.gmra.mxu0 %v2528
  %v2673 = vpop.f32.mrf.mxu0
  %v2674 = vadd.f32 %v2603, %v2673
  %v2675 = vpop.f32.mrf.mxu0
  %v2676 = vadd.f32 %v2605, %v2675
  %2677 = vdwg.mxu0
  %v2679 = vsel %vm1320, %v1367, 0
  %2681 = vmatprep.subr.mxu0 0.0
  %2682 = vmatpush1.msra.mxu0 0.0
  %2683 = vmatprep.subr.mxu0 0.0
  %2684 = vmatpush1.msra.mxu0 0.0
  %2685 = vmatprep.subr.mxu0 0.0
  %2686 = vmatpush1.msra.mxu0 0.0
  %2687 = vmatprep.subr.mxu0 0.0
  %2688 = vmatpush1.msra.mxu0 0.0
  %2689 = vmatprep.subr.mxu0 0.0
  %2690 = vmatpush1.msra.mxu0 0.0
  %2691 = vmatprep.subr.mxu0 0.0
  %2692 = vmatpush1.msra.mxu0 0.0
  %2693 = vmatprep.subr.mxu0 0.0
  %2694 = vmatpush1.msra.mxu0 0.0
  %2695 = vmatprep.subr.mxu0 0.0
  %2696 = vmatpush1.msra.mxu0 0.0
  %2697 = vmatprep.subr.mxu0 %v1397
  %2698 = vmatpush1.msra.mxu0 %v1396
  %2699 = vmatprep.subr.mxu0 %v1393
  %2700 = vmatpush1.msra.mxu0 %v1392
  %2701 = vmatprep.subr.mxu0 %v1389
  %2702 = vmatpush1.msra.mxu0 %v1388
  %2703 = vmatprep.subr.mxu0 %v1385
  %2704 = vmatpush1.msra.mxu0 %v1384
  %2705 = vmatprep.subr.mxu0 %v1381
  %2706 = vmatpush1.msra.mxu0 %v1380
  %2707 = vmatprep.subr.mxu0 %v1377
  %2708 = vmatpush1.msra.mxu0 %v1376
  %2709 = vmatprep.subr.mxu0 %v1373
  %2710 = vmatpush1.msra.mxu0 %v1372
  %2711 = vmatprep.subr.mxu0 %v1369
  %2712 = vmatpush1.msra.mxu0 %v1368
  %2713 = vmatprep.subr.mxu0 0.0
  %2714 = vmatpush2.msra.mxu0 0.0
  %2715 = vmatprep.subr.mxu0 0.0
  %2716 = vmatpush2.msra.mxu0 0.0
  %2717 = vmatprep.subr.mxu0 0.0
  %2718 = vmatpush2.msra.mxu0 0.0
  %2719 = vmatprep.subr.mxu0 0.0
  %2720 = vmatpush2.msra.mxu0 0.0
  %2721 = vmatprep.subr.mxu0 0.0
  %2722 = vmatpush2.msra.mxu0 0.0
  %2723 = vmatprep.subr.mxu0 0.0
  %2724 = vmatpush2.msra.mxu0 0.0
  %2725 = vmatprep.subr.mxu0 0.0
  %2726 = vmatpush2.msra.mxu0 0.0
  %2727 = vmatprep.subr.mxu0 0.0
  %2728 = vmatpush2.msra.mxu0 0.0
  %2729 = vmatprep.subr.mxu0 0.0
  %2730 = vmatpush2.msra.mxu0 0.0
  %2731 = vmatprep.subr.mxu0 0.0
  %2732 = vmatpush2.msra.mxu0 0.0
  %2733 = vmatprep.subr.mxu0 0.0
  %2734 = vmatpush2.msra.mxu0 0.0
  %2735 = vmatprep.subr.mxu0 0.0
  %2736 = vmatpush2.msra.mxu0 0.0
  %2737 = vmatprep.subr.mxu0 0.0
  %2738 = vmatpush2.msra.mxu0 0.0
  %2739 = vmatprep.subr.mxu0 0.0
  %2740 = vmatpush2.msra.mxu0 0.0
  %2741 = vmatprep.subr.mxu0 0.0
  %2742 = vmatpush2.msra.mxu0 0.0
  %2743 = vmatprep.subr.mxu0 0.0
  %2744 = vmatpush2.msra.mxu0 0.0
  %2745 = vmatprep.mubr.f32.mxu0 0.0
  %2746 = vmatmul.mubr.f32.gmra.mxu0 %v2679
  %v2747 = vpop.f32.mrf.mxu0
  %v2748 = vadd.f32 0.0, %v2747
  %v2749 = vpop.f32.mrf.mxu0
  %v2750 = vadd.f32 0.0, %v2749
  %2751 = vdwg.mxu0
  %2752 = vmatprep.subr.mxu0 0.0
  %2753 = vmatpush1.msra.mxu0 0.0
  %2754 = vmatprep.subr.mxu0 0.0
  %2755 = vmatpush1.msra.mxu0 0.0
  %2756 = vmatprep.subr.mxu0 0.0
  %2757 = vmatpush1.msra.mxu0 0.0
  %2758 = vmatprep.subr.mxu0 0.0
  %2759 = vmatpush1.msra.mxu0 0.0
  %2760 = vmatprep.subr.mxu0 0.0
  %2761 = vmatpush1.msra.mxu0 0.0
  %2762 = vmatprep.subr.mxu0 0.0
  %2763 = vmatpush1.msra.mxu0 0.0
  %2764 = vmatprep.subr.mxu0 0.0
  %2765 = vmatpush1.msra.mxu0 0.0
  %2766 = vmatprep.subr.mxu0 0.0
  %2767 = vmatpush1.msra.mxu0 0.0
  %2768 = vmatprep.subr.mxu0 %v1399
  %2769 = vmatpush1.msra.mxu0 %v1398
  %2770 = vmatprep.subr.mxu0 %v1395
  %2771 = vmatpush1.msra.mxu0 %v1394
  %2772 = vmatprep.subr.mxu0 %v1391
  %2773 = vmatpush1.msra.mxu0 %v1390
  %2774 = vmatprep.subr.mxu0 %v1387
  %2775 = vmatpush1.msra.mxu0 %v1386
  %2776 = vmatprep.subr.mxu0 %v1383
  %2777 = vmatpush1.msra.mxu0 %v1382
  %2778 = vmatprep.subr.mxu0 %v1379
  %2779 = vmatpush1.msra.mxu0 %v1378
  %2780 = vmatprep.subr.mxu0 %v1375
  %2781 = vmatpush1.msra.mxu0 %v1374
  %2782 = vmatprep.subr.mxu0 %v1371
  %2783 = vmatpush1.msra.mxu0 %v1370
  %2784 = vmatprep.subr.mxu0 0.0
  %2785 = vmatpush2.msra.mxu0 0.0
  %2786 = vmatprep.subr.mxu0 0.0
  %2787 = vmatpush2.msra.mxu0 0.0
  %2788 = vmatprep.subr.mxu0 0.0
  %2789 = vmatpush2.msra.mxu0 0.0
  %2790 = vmatprep.subr.mxu0 0.0
  %2791 = vmatpush2.msra.mxu0 0.0
  %2792 = vmatprep.subr.mxu0 0.0
  %2793 = vmatpush2.msra.mxu0 0.0
  %2794 = vmatprep.subr.mxu0 0.0
  %2795 = vmatpush2.msra.mxu0 0.0
  %2796 = vmatprep.subr.mxu0 0.0
  %2797 = vmatpush2.msra.mxu0 0.0
  %2798 = vmatprep.subr.mxu0 0.0
  %2799 = vmatpush2.msra.mxu0 0.0
  %2800 = vmatprep.subr.mxu0 0.0
  %2801 = vmatpush2.msra.mxu0 0.0
  %2802 = vmatprep.subr.mxu0 0.0
  %2803 = vmatpush2.msra.mxu0 0.0
  %2804 = vmatprep.subr.mxu0 0.0
  %2805 = vmatpush2.msra.mxu0 0.0
  %2806 = vmatprep.subr.mxu0 0.0
  %2807 = vmatpush2.msra.mxu0 0.0
  %2808 = vmatprep.subr.mxu0 0.0
  %2809 = vmatpush2.msra.mxu0 0.0
  %2810 = vmatprep.subr.mxu0 0.0
  %2811 = vmatpush2.msra.mxu0 0.0
  %2812 = vmatprep.subr.mxu0 0.0
  %2813 = vmatpush2.msra.mxu0 0.0
  %2814 = vmatprep.subr.mxu0 0.0
  %2815 = vmatpush2.msra.mxu0 0.0
  %2816 = vmatprep.mubr.f32.mxu0 0.0
  %2817 = vmatmul.mubr.f32.gmra.mxu0 %v2679
  %v2818 = vpop.f32.mrf.mxu0
  %v2819 = vadd.f32 0.0, %v2818
  %v2820 = vpop.f32.mrf.mxu0
  %v2821 = vadd.f32 0.0, %v2820
  %2822 = vdwg.mxu0
  %2826 = vrot.lane.b32.xlu0 %v2748, 127
  %v2827 = vpop.permute.xlu0 %2826
  %2828 = vrot.lane.b32.xlu0 %v2750, 127
  %v2829 = vpop.permute.xlu0 %2828
  %2830 = vrot.lane.b32.xlu0 %v2819, 127
  %v2831 = vpop.permute.xlu0 %2830
  %v2832 = vsel %vm321, %v2827, %v2829
  %v2833 = vsel %vm321, %v2829, %v2831
  %2837 = vrot.lane.b32.xlu0 %v2748, 126
  %v2838 = vpop.permute.xlu0 %2837
  %2839 = vrot.lane.b32.xlu0 %v2750, 126
  %v2840 = vpop.permute.xlu0 %2839
  %2841 = vrot.lane.b32.xlu0 %v2819, 126
  %v2842 = vpop.permute.xlu0 %2841
  %v2843 = vsel %vm325, %v2838, %v2840
  %v2844 = vsel %vm325, %v2840, %v2842
  %2848 = vrot.lane.b32.xlu0 %v2748, 125
  %v2849 = vpop.permute.xlu0 %2848
  %2850 = vrot.lane.b32.xlu0 %v2750, 125
  %v2851 = vpop.permute.xlu0 %2850
  %2852 = vrot.lane.b32.xlu0 %v2819, 125
  %v2853 = vpop.permute.xlu0 %2852
  %v2854 = vsel %vm329, %v2849, %v2851
  %v2855 = vsel %vm329, %v2851, %v2853
  %2859 = vrot.lane.b32.xlu0 %v2748, 124
  %v2860 = vpop.permute.xlu0 %2859
  %2861 = vrot.lane.b32.xlu0 %v2750, 124
  %v2862 = vpop.permute.xlu0 %2861
  %2863 = vrot.lane.b32.xlu0 %v2819, 124
  %v2864 = vpop.permute.xlu0 %2863
  %v2865 = vsel %vm333, %v2860, %v2862
  %v2866 = vsel %vm333, %v2862, %v2864
  %2870 = vrot.lane.b32.xlu0 %v2748, 123
  %v2871 = vpop.permute.xlu0 %2870
  %2872 = vrot.lane.b32.xlu0 %v2750, 123
  %v2873 = vpop.permute.xlu0 %2872
  %2874 = vrot.lane.b32.xlu0 %v2819, 123
  %v2875 = vpop.permute.xlu0 %2874
  %v2876 = vsel %vm337, %v2871, %v2873
  %v2877 = vsel %vm337, %v2873, %v2875
  %2881 = vrot.lane.b32.xlu0 %v2748, 122
  %v2882 = vpop.permute.xlu0 %2881
  %2883 = vrot.lane.b32.xlu0 %v2750, 122
  %v2884 = vpop.permute.xlu0 %2883
  %2885 = vrot.lane.b32.xlu0 %v2819, 122
  %v2886 = vpop.permute.xlu0 %2885
  %v2887 = vsel %vm341, %v2882, %v2884
  %v2888 = vsel %vm341, %v2884, %v2886
  %2893 = vrot.lane.b32.xlu0 %v2821, 127
  %v2894 = vpop.permute.xlu0 %2893
  %v2895 = vsel %vm321, %v2831, %v2894
  %2896 = vrot.lane.b32.xlu0 %v2821, 126
  %v2897 = vpop.permute.xlu0 %2896
  %v2898 = vsel %vm325, %v2842, %v2897
  %2899 = vrot.lane.b32.xlu0 %v2821, 125
  %v2900 = vpop.permute.xlu0 %2899
  %v2901 = vsel %vm329, %v2853, %v2900
  %2902 = vrot.lane.b32.xlu0 %v2821, 124
  %v2903 = vpop.permute.xlu0 %2902
  %v2904 = vsel %vm333, %v2864, %v2903
  %2905 = vrot.lane.b32.xlu0 %v2821, 123
  %v2906 = vpop.permute.xlu0 %2905
  %v2907 = vsel %vm337, %v2875, %v2906
  %2908 = vrot.lane.b32.xlu0 %v2821, 122
  %v2909 = vpop.permute.xlu0 %2908
  %v2910 = vsel %vm341, %v2886, %v2909
  %2911 = vrot.lane.b32.xlu0 %v2748, 106
  %v2912 = vpop.permute.xlu0 %2911
  %2913 = vrot.lane.b32.xlu0 %v2750, 106
  %v2914 = vpop.permute.xlu0 %2913
  %2915 = vrot.lane.b32.xlu0 %v2819, 106
  %v2916 = vpop.permute.xlu0 %2915
  %2917 = vrot.lane.b32.xlu0 %v2832, 106
  %v2918 = vpop.permute.xlu0 %2917
  %2919 = vrot.lane.b32.xlu0 %v2833, 106
  %v2920 = vpop.permute.xlu0 %2919
  %2921 = vrot.lane.b32.xlu0 %v2831, 106
  %v2922 = vpop.permute.xlu0 %2921
  %2923 = vrot.lane.b32.xlu0 %v2843, 106
  %v2924 = vpop.permute.xlu0 %2923
  %2925 = vrot.lane.b32.xlu0 %v2844, 106
  %v2926 = vpop.permute.xlu0 %2925
  %2927 = vrot.lane.b32.xlu0 %v2842, 106
  %v2928 = vpop.permute.xlu0 %2927
  %2929 = vrot.lane.b32.xlu0 %v2854, 106
  %v2930 = vpop.permute.xlu0 %2929
  %2931 = vrot.lane.b32.xlu0 %v2855, 106
  %v2932 = vpop.permute.xlu0 %2931
  %2933 = vrot.lane.b32.xlu0 %v2853, 106
  %v2934 = vpop.permute.xlu0 %2933
  %2935 = vrot.lane.b32.xlu0 %v2865, 106
  %v2936 = vpop.permute.xlu0 %2935
  %2937 = vrot.lane.b32.xlu0 %v2866, 106
  %v2938 = vpop.permute.xlu0 %2937
  %2939 = vrot.lane.b32.xlu0 %v2864, 106
  %v2940 = vpop.permute.xlu0 %2939
  %2941 = vrot.lane.b32.xlu0 %v2876, 106
  %v2942 = vpop.permute.xlu0 %2941
  %2943 = vrot.lane.b32.xlu0 %v2877, 106
  %v2944 = vpop.permute.xlu0 %2943
  %2945 = vrot.lane.b32.xlu0 %v2875, 106
  %v2946 = vpop.permute.xlu0 %2945
  %2947 = vrot.lane.b32.xlu0 %v2887, 106
  %v2948 = vpop.permute.xlu0 %2947
  %2949 = vrot.lane.b32.xlu0 %v2888, 106
  %v2950 = vpop.permute.xlu0 %2949
  %2951 = vrot.lane.b32.xlu0 %v2886, 106
  %v2952 = vpop.permute.xlu0 %2951
  %v2953 = vsel %vm721, %v2912, %v2914
  %v2954 = vsel %vm721, %v2914, %v2916
  %v2955 = vsel %vm721, %v2918, %v2920
  %v2956 = vsel %vm721, %v2920, %v2922
  %v2957 = vsel %vm721, %v2924, %v2926
  %v2958 = vsel %vm721, %v2926, %v2928
  %v2959 = vsel %vm721, %v2930, %v2932
  %v2960 = vsel %vm721, %v2932, %v2934
  %v2961 = vsel %vm721, %v2936, %v2938
  %v2962 = vsel %vm721, %v2938, %v2940
  %v2963 = vsel %vm721, %v2942, %v2944
  %v2964 = vsel %vm721, %v2944, %v2946
  %v2965 = vsel %vm721, %v2948, %v2950
  %v2966 = vsel %vm721, %v2950, %v2952
  %2988 = vrot.lane.b32.xlu0 %v2748, 84
  %v2989 = vpop.permute.xlu0 %2988
  %2990 = vrot.lane.b32.xlu0 %v2750, 84
  %v2991 = vpop.permute.xlu0 %2990
  %2992 = vrot.lane.b32.xlu0 %v2819, 84
  %v2993 = vpop.permute.xlu0 %2992
  %2994 = vrot.lane.b32.xlu0 %v2821, 84
  %v2995 = vpop.permute.xlu0 %2994
  %2996 = vrot.lane.b32.xlu0 %v2832, 84
  %v2997 = vpop.permute.xlu0 %2996
  %2998 = vrot.lane.b32.xlu0 %v2833, 84
  %v2999 = vpop.permute.xlu0 %2998
  %3000 = vrot.lane.b32.xlu0 %v2895, 84
  %v3001 = vpop.permute.xlu0 %3000
  %3002 = vrot.lane.b32.xlu0 %v2894, 84
  %v3003 = vpop.permute.xlu0 %3002
  %3004 = vrot.lane.b32.xlu0 %v2843, 84
  %v3005 = vpop.permute.xlu0 %3004
  %3006 = vrot.lane.b32.xlu0 %v2844, 84
  %v3007 = vpop.permute.xlu0 %3006
  %3008 = vrot.lane.b32.xlu0 %v2898, 84
  %v3009 = vpop.permute.xlu0 %3008
  %3010 = vrot.lane.b32.xlu0 %v2897, 84
  %v3011 = vpop.permute.xlu0 %3010
  %3012 = vrot.lane.b32.xlu0 %v2854, 84
  %v3013 = vpop.permute.xlu0 %3012
  %3014 = vrot.lane.b32.xlu0 %v2855, 84
  %v3015 = vpop.permute.xlu0 %3014
  %3016 = vrot.lane.b32.xlu0 %v2901, 84
  %v3017 = vpop.permute.xlu0 %3016
  %3018 = vrot.lane.b32.xlu0 %v2900, 84
  %v3019 = vpop.permute.xlu0 %3018
  %3020 = vrot.lane.b32.xlu0 %v2865, 84
  %v3021 = vpop.permute.xlu0 %3020
  %3022 = vrot.lane.b32.xlu0 %v2866, 84
  %v3023 = vpop.permute.xlu0 %3022
  %3024 = vrot.lane.b32.xlu0 %v2904, 84
  %v3025 = vpop.permute.xlu0 %3024
  %3026 = vrot.lane.b32.xlu0 %v2903, 84
  %v3027 = vpop.permute.xlu0 %3026
  %3028 = vrot.lane.b32.xlu0 %v2876, 84
  %v3029 = vpop.permute.xlu0 %3028
  %3030 = vrot.lane.b32.xlu0 %v2877, 84
  %v3031 = vpop.permute.xlu0 %3030
  %3032 = vrot.lane.b32.xlu0 %v2907, 84
  %v3033 = vpop.permute.xlu0 %3032
  %3034 = vrot.lane.b32.xlu0 %v2906, 84
  %v3035 = vpop.permute.xlu0 %3034
  %3036 = vrot.lane.b32.xlu0 %v2887, 84
  %v3037 = vpop.permute.xlu0 %3036
  %3038 = vrot.lane.b32.xlu0 %v2888, 84
  %v3039 = vpop.permute.xlu0 %3038
  %3040 = vrot.lane.b32.xlu0 %v2910, 84
  %v3041 = vpop.permute.xlu0 %3040
  %3042 = vrot.lane.b32.xlu0 %v2909, 84
  %v3043 = vpop.permute.xlu0 %3042
  %v3044 = vsel %vm1766, %v2989, %v2991
  %v3045 = vsel %vm1766, %v2991, %v2993
  %v3046 = vsel %vm1766, %v2993, %v2995
  %v3047 = vsel %vm1766, %v2997, %v2999
  %v3048 = vsel %vm1766, %v2999, %v3001
  %v3049 = vsel %vm1766, %v3001, %v3003
  %v3050 = vsel %vm1766, %v3005, %v3007
  %v3051 = vsel %vm1766, %v3007, %v3009
  %v3052 = vsel %vm1766, %v3009, %v3011
  %v3053 = vsel %vm1766, %v3013, %v3015
  %v3054 = vsel %vm1766, %v3015, %v3017
  %v3055 = vsel %vm1766, %v3017, %v3019
  %v3056 = vsel %vm1766, %v3021, %v3023
  %v3057 = vsel %vm1766, %v3023, %v3025
  %v3058 = vsel %vm1766, %v3025, %v3027
  %v3059 = vsel %vm1766, %v3029, %v3031
  %v3060 = vsel %vm1766, %v3031, %v3033
  %v3061 = vsel %vm1766, %v3033, %v3035
  %v3062 = vsel %vm1766, %v3037, %v3039
  %v3063 = vsel %vm1766, %v3039, %v3041
  %v3064 = vsel %vm1766, %v3041, %v3043
  %3086 = vrot.lane.b32.xlu0 %v2748, 62
  %v3087 = vpop.permute.xlu0 %3086
  %3088 = vrot.lane.b32.xlu0 %v2750, 62
  %v3089 = vpop.permute.xlu0 %3088
  %3090 = vrot.lane.b32.xlu0 %v2819, 62
  %v3091 = vpop.permute.xlu0 %3090
  %3092 = vrot.lane.b32.xlu0 %v2821, 62
  %v3093 = vpop.permute.xlu0 %3092
  %3094 = vrot.lane.b32.xlu0 %v2832, 62
  %v3095 = vpop.permute.xlu0 %3094
  %3096 = vrot.lane.b32.xlu0 %v2833, 62
  %v3097 = vpop.permute.xlu0 %3096
  %3098 = vrot.lane.b32.xlu0 %v2895, 62
  %v3099 = vpop.permute.xlu0 %3098
  %3100 = vrot.lane.b32.xlu0 %v2894, 62
  %v3101 = vpop.permute.xlu0 %3100
  %3102 = vrot.lane.b32.xlu0 %v2843, 62
  %v3103 = vpop.permute.xlu0 %3102
  %3104 = vrot.lane.b32.xlu0 %v2844, 62
  %v3105 = vpop.permute.xlu0 %3104
  %3106 = vrot.lane.b32.xlu0 %v2898, 62
  %v3107 = vpop.permute.xlu0 %3106
  %3108 = vrot.lane.b32.xlu0 %v2897, 62
  %v3109 = vpop.permute.xlu0 %3108
  %3110 = vrot.lane.b32.xlu0 %v2854, 62
  %v3111 = vpop.permute.xlu0 %3110
  %3112 = vrot.lane.b32.xlu0 %v2855, 62
  %v3113 = vpop.permute.xlu0 %3112
  %3114 = vrot.lane.b32.xlu0 %v2901, 62
  %v3115 = vpop.permute.xlu0 %3114
  %3116 = vrot.lane.b32.xlu0 %v2900, 62
  %v3117 = vpop.permute.xlu0 %3116
  %3118 = vrot.lane.b32.xlu0 %v2865, 62
  %v3119 = vpop.permute.xlu0 %3118
  %3120 = vrot.lane.b32.xlu0 %v2866, 62
  %v3121 = vpop.permute.xlu0 %3120
  %3122 = vrot.lane.b32.xlu0 %v2904, 62
  %v3123 = vpop.permute.xlu0 %3122
  %3124 = vrot.lane.b32.xlu0 %v2903, 62
  %v3125 = vpop.permute.xlu0 %3124
  %3126 = vrot.lane.b32.xlu0 %v2876, 62
  %v3127 = vpop.permute.xlu0 %3126
  %3128 = vrot.lane.b32.xlu0 %v2877, 62
  %v3129 = vpop.permute.xlu0 %3128
  %3130 = vrot.lane.b32.xlu0 %v2907, 62
  %v3131 = vpop.permute.xlu0 %3130
  %3132 = vrot.lane.b32.xlu0 %v2906, 62
  %v3133 = vpop.permute.xlu0 %3132
  %3134 = vrot.lane.b32.xlu0 %v2887, 62
  %v3135 = vpop.permute.xlu0 %3134
  %3136 = vrot.lane.b32.xlu0 %v2888, 62
  %v3137 = vpop.permute.xlu0 %3136
  %3138 = vrot.lane.b32.xlu0 %v2910, 62
  %v3139 = vpop.permute.xlu0 %3138
  %3140 = vrot.lane.b32.xlu0 %v2909, 62
  %v3141 = vpop.permute.xlu0 %3140
  %v3142 = vsel %vm1865, %v3087, %v3089
  %v3143 = vsel %vm1865, %v3089, %v3091
  %v3144 = vsel %vm1865, %v3091, %v3093
  %v3145 = vsel %vm1865, %v3095, %v3097
  %v3146 = vsel %vm1865, %v3097, %v3099
  %v3147 = vsel %vm1865, %v3099, %v3101
  %v3148 = vsel %vm1865, %v3103, %v3105
  %v3149 = vsel %vm1865, %v3105, %v3107
  %v3150 = vsel %vm1865, %v3107, %v3109
  %v3151 = vsel %vm1865, %v3111, %v3113
  %v3152 = vsel %vm1865, %v3113, %v3115
  %v3153 = vsel %vm1865, %v3115, %v3117
  %v3154 = vsel %vm1865, %v3119, %v3121
  %v3155 = vsel %vm1865, %v3121, %v3123
  %v3156 = vsel %vm1865, %v3123, %v3125
  %v3157 = vsel %vm1865, %v3127, %v3129
  %v3158 = vsel %vm1865, %v3129, %v3131
  %v3159 = vsel %vm1865, %v3131, %v3133
  %v3160 = vsel %vm1865, %v3135, %v3137
  %v3161 = vsel %vm1865, %v3137, %v3139
  %v3162 = vsel %vm1865, %v3139, %v3141
  %3184 = vrot.lane.b32.xlu0 %v2748, 40
  %v3185 = vpop.permute.xlu0 %3184
  %3186 = vrot.lane.b32.xlu0 %v2750, 40
  %v3187 = vpop.permute.xlu0 %3186
  %3188 = vrot.lane.b32.xlu0 %v2819, 40
  %v3189 = vpop.permute.xlu0 %3188
  %3190 = vrot.lane.b32.xlu0 %v2821, 40
  %v3191 = vpop.permute.xlu0 %3190
  %3192 = vrot.lane.b32.xlu0 %v2832, 40
  %v3193 = vpop.permute.xlu0 %3192
  %3194 = vrot.lane.b32.xlu0 %v2833, 40
  %v3195 = vpop.permute.xlu0 %3194
  %3196 = vrot.lane.b32.xlu0 %v2895, 40
  %v3197 = vpop.permute.xlu0 %3196
  %3198 = vrot.lane.b32.xlu0 %v2894, 40
  %v3199 = vpop.permute.xlu0 %3198
  %3200 = vrot.lane.b32.xlu0 %v2843, 40
  %v3201 = vpop.permute.xlu0 %3200
  %3202 = vrot.lane.b32.xlu0 %v2844, 40
  %v3203 = vpop.permute.xlu0 %3202
  %3204 = vrot.lane.b32.xlu0 %v2898, 40
  %v3205 = vpop.permute.xlu0 %3204
  %3206 = vrot.lane.b32.xlu0 %v2897, 40
  %v3207 = vpop.permute.xlu0 %3206
  %3208 = vrot.lane.b32.xlu0 %v2854, 40
  %v3209 = vpop.permute.xlu0 %3208
  %3210 = vrot.lane.b32.xlu0 %v2855, 40
  %v3211 = vpop.permute.xlu0 %3210
  %3212 = vrot.lane.b32.xlu0 %v2901, 40
  %v3213 = vpop.permute.xlu0 %3212
  %3214 = vrot.lane.b32.xlu0 %v2900, 40
  %v3215 = vpop.permute.xlu0 %3214
  %3216 = vrot.lane.b32.xlu0 %v2865, 40
  %v3217 = vpop.permute.xlu0 %3216
  %3218 = vrot.lane.b32.xlu0 %v2866, 40
  %v3219 = vpop.permute.xlu0 %3218
  %3220 = vrot.lane.b32.xlu0 %v2904, 40
  %v3221 = vpop.permute.xlu0 %3220
  %3222 = vrot.lane.b32.xlu0 %v2903, 40
  %v3223 = vpop.permute.xlu0 %3222
  %3224 = vrot.lane.b32.xlu0 %v2876, 40
  %v3225 = vpop.permute.xlu0 %3224
  %3226 = vrot.lane.b32.xlu0 %v2877, 40
  %v3227 = vpop.permute.xlu0 %3226
  %3228 = vrot.lane.b32.xlu0 %v2907, 40
  %v3229 = vpop.permute.xlu0 %3228
  %3230 = vrot.lane.b32.xlu0 %v2906, 40
  %v3231 = vpop.permute.xlu0 %3230
  %3232 = vrot.lane.b32.xlu0 %v2887, 40
  %v3233 = vpop.permute.xlu0 %3232
  %3234 = vrot.lane.b32.xlu0 %v2888, 40
  %v3235 = vpop.permute.xlu0 %3234
  %3236 = vrot.lane.b32.xlu0 %v2910, 40
  %v3237 = vpop.permute.xlu0 %3236
  %3238 = vrot.lane.b32.xlu0 %v2909, 40
  %v3239 = vpop.permute.xlu0 %3238
  %v3240 = vsel %vm1964, %v3185, %v3187
  %v3241 = vsel %vm1964, %v3187, %v3189
  %v3242 = vsel %vm1964, %v3189, %v3191
  %v3243 = vsel %vm1964, %v3193, %v3195
  %v3244 = vsel %vm1964, %v3195, %v3197
  %v3245 = vsel %vm1964, %v3197, %v3199
  %v3246 = vsel %vm1964, %v3201, %v3203
  %v3247 = vsel %vm1964, %v3203, %v3205
  %v3248 = vsel %vm1964, %v3205, %v3207
  %v3249 = vsel %vm1964, %v3209, %v3211
  %v3250 = vsel %vm1964, %v3211, %v3213
  %v3251 = vsel %vm1964, %v3213, %v3215
  %v3252 = vsel %vm1964, %v3217, %v3219
  %v3253 = vsel %vm1964, %v3219, %v3221
  %v3254 = vsel %vm1964, %v3221, %v3223
  %v3255 = vsel %vm1964, %v3225, %v3227
  %v3256 = vsel %vm1964, %v3227, %v3229
  %v3257 = vsel %vm1964, %v3229, %v3231
  %v3258 = vsel %vm1964, %v3233, %v3235
  %v3259 = vsel %vm1964, %v3235, %v3237
  %v3260 = vsel %vm1964, %v3237, %v3239
  %3282 = vrot.lane.b32.xlu0 %v2748, 18
  %v3283 = vpop.permute.xlu0 %3282
  %3284 = vrot.lane.b32.xlu0 %v2750, 18
  %v3285 = vpop.permute.xlu0 %3284
  %3286 = vrot.lane.b32.xlu0 %v2819, 18
  %v3287 = vpop.permute.xlu0 %3286
  %3288 = vrot.lane.b32.xlu0 %v2821, 18
  %v3289 = vpop.permute.xlu0 %3288
  %3290 = vrot.lane.b32.xlu0 %v2832, 18
  %v3291 = vpop.permute.xlu0 %3290
  %3292 = vrot.lane.b32.xlu0 %v2833, 18
  %v3293 = vpop.permute.xlu0 %3292
  %3294 = vrot.lane.b32.xlu0 %v2895, 18
  %v3295 = vpop.permute.xlu0 %3294
  %3296 = vrot.lane.b32.xlu0 %v2894, 18
  %v3297 = vpop.permute.xlu0 %3296
  %3298 = vrot.lane.b32.xlu0 %v2843, 18
  %v3299 = vpop.permute.xlu0 %3298
  %3300 = vrot.lane.b32.xlu0 %v2844, 18
  %v3301 = vpop.permute.xlu0 %3300
  %3302 = vrot.lane.b32.xlu0 %v2898, 18
  %v3303 = vpop.permute.xlu0 %3302
  %3304 = vrot.lane.b32.xlu0 %v2897, 18
  %v3305 = vpop.permute.xlu0 %3304
  %3306 = vrot.lane.b32.xlu0 %v2854, 18
  %v3307 = vpop.permute.xlu0 %3306
  %3308 = vrot.lane.b32.xlu0 %v2855, 18
  %v3309 = vpop.permute.xlu0 %3308
  %3310 = vrot.lane.b32.xlu0 %v2901, 18
  %v3311 = vpop.permute.xlu0 %3310
  %3312 = vrot.lane.b32.xlu0 %v2900, 18
  %v3313 = vpop.permute.xlu0 %3312
  %3314 = vrot.lane.b32.xlu0 %v2865, 18
  %v3315 = vpop.permute.xlu0 %3314
  %3316 = vrot.lane.b32.xlu0 %v2866, 18
  %v3317 = vpop.permute.xlu0 %3316
  %3318 = vrot.lane.b32.xlu0 %v2904, 18
  %v3319 = vpop.permute.xlu0 %3318
  %3320 = vrot.lane.b32.xlu0 %v2903, 18
  %v3321 = vpop.permute.xlu0 %3320
  %3322 = vrot.lane.b32.xlu0 %v2876, 18
  %v3323 = vpop.permute.xlu0 %3322
  %3324 = vrot.lane.b32.xlu0 %v2877, 18
  %v3325 = vpop.permute.xlu0 %3324
  %3326 = vrot.lane.b32.xlu0 %v2907, 18
  %v3327 = vpop.permute.xlu0 %3326
  %3328 = vrot.lane.b32.xlu0 %v2906, 18
  %v3329 = vpop.permute.xlu0 %3328
  %3330 = vrot.lane.b32.xlu0 %v2887, 18
  %v3331 = vpop.permute.xlu0 %3330
  %3332 = vrot.lane.b32.xlu0 %v2888, 18
  %v3333 = vpop.permute.xlu0 %3332
  %3334 = vrot.lane.b32.xlu0 %v2910, 18
  %v3335 = vpop.permute.xlu0 %3334
  %3336 = vrot.lane.b32.xlu0 %v2909, 18
  %v3337 = vpop.permute.xlu0 %3336
  %v3338 = vsel %vm2063, %v3283, %v3285
  %v3339 = vsel %vm2063, %v3285, %v3287
  %v3340 = vsel %vm2063, %v3287, %v3289
  %v3341 = vsel %vm2063, %v3291, %v3293
  %v3342 = vsel %vm2063, %v3293, %v3295
  %v3343 = vsel %vm2063, %v3295, %v3297
  %v3344 = vsel %vm2063, %v3299, %v3301
  %v3345 = vsel %vm2063, %v3301, %v3303
  %v3346 = vsel %vm2063, %v3303, %v3305
  %v3347 = vsel %vm2063, %v3307, %v3309
  %v3348 = vsel %vm2063, %v3309, %v3311
  %v3349 = vsel %vm2063, %v3311, %v3313
  %v3350 = vsel %vm2063, %v3315, %v3317
  %v3351 = vsel %vm2063, %v3317, %v3319
  %v3352 = vsel %vm2063, %v3319, %v3321
  %v3353 = vsel %vm2063, %v3323, %v3325
  %v3354 = vsel %vm2063, %v3325, %v3327
  %v3355 = vsel %vm2063, %v3327, %v3329
  %v3356 = vsel %vm2063, %v3331, %v3333
  %v3357 = vsel %vm2063, %v3333, %v3335
  %v3358 = vsel %vm2063, %v3335, %v3337
  %3380 = vrot.lane.b32.xlu0 %v2833, 124
  %v3381 = vpop.permute.xlu0 %3380
  %3382 = vrot.lane.b32.xlu0 %v2895, 124
  %v3383 = vpop.permute.xlu0 %3382
  %3384 = vrot.lane.b32.xlu0 %v2894, 124
  %v3385 = vpop.permute.xlu0 %3384
  %3386 = vrot.lane.b32.xlu0 %v2844, 124
  %v3387 = vpop.permute.xlu0 %3386
  %3388 = vrot.lane.b32.xlu0 %v2898, 124
  %v3389 = vpop.permute.xlu0 %3388
  %3390 = vrot.lane.b32.xlu0 %v2897, 124
  %v3391 = vpop.permute.xlu0 %3390
  %3392 = vrot.lane.b32.xlu0 %v2855, 124
  %v3393 = vpop.permute.xlu0 %3392
  %3394 = vrot.lane.b32.xlu0 %v2901, 124
  %v3395 = vpop.permute.xlu0 %3394
  %3396 = vrot.lane.b32.xlu0 %v2900, 124
  %v3397 = vpop.permute.xlu0 %3396
  %3398 = vrot.lane.b32.xlu0 %v2866, 124
  %v3399 = vpop.permute.xlu0 %3398
  %3400 = vrot.lane.b32.xlu0 %v2904, 124
  %v3401 = vpop.permute.xlu0 %3400
  %3402 = vrot.lane.b32.xlu0 %v2903, 124
  %v3403 = vpop.permute.xlu0 %3402
  %3404 = vrot.lane.b32.xlu0 %v2877, 124
  %v3405 = vpop.permute.xlu0 %3404
  %3406 = vrot.lane.b32.xlu0 %v2907, 124
  %v3407 = vpop.permute.xlu0 %3406
  %3408 = vrot.lane.b32.xlu0 %v2906, 124
  %v3409 = vpop.permute.xlu0 %3408
  %3410 = vrot.lane.b32.xlu0 %v2888, 124
  %v3411 = vpop.permute.xlu0 %3410
  %3412 = vrot.lane.b32.xlu0 %v2910, 124
  %v3413 = vpop.permute.xlu0 %3412
  %3414 = vrot.lane.b32.xlu0 %v2909, 124
  %v3415 = vpop.permute.xlu0 %3414
  %v3416 = vsel %vm333, %v3381, %v3383
  %v3417 = vsel %vm333, %v3383, %v3385
  %v3418 = vsel %vm333, %v3387, %v3389
  %v3419 = vsel %vm333, %v3389, %v3391
  %v3420 = vsel %vm333, %v3393, %v3395
  %v3421 = vsel %vm333, %v3395, %v3397
  %v3422 = vsel %vm333, %v3399, %v3401
  %v3423 = vsel %vm333, %v3401, %v3403
  %v3424 = vsel %vm333, %v3405, %v3407
  %v3425 = vsel %vm333, %v3407, %v3409
  %v3426 = vsel %vm333, %v3411, %v3413
  %v3427 = vsel %vm333, %v3413, %v3415
  %v3448 = vpack.c.bf16 %v2832, %v2748
  %v3449 = vpack.c.bf16 %v2833, %v2750
  %v3450 = vpack.c.bf16 %v2831, %v2819
  %v3451 = vpack.c.bf16 %v2854, %v2843
  %v3452 = vpack.c.bf16 %v2855, %v2844
  %v3453 = vpack.c.bf16 %v2853, %v2842
  %v3454 = vpack.c.bf16 %v2876, %v2865
  %v3455 = vpack.c.bf16 %v2877, %v2866
  %v3456 = vpack.c.bf16 %v2875, %v2864
  %v3457 = vpack.c.bf16 %v2953, %v2887
  %v3458 = vpack.c.bf16 %v2954, %v2888
  %v3459 = vpack.c.bf16 %v2916, %v2886
  %v3460 = vpack.c.bf16 %v2957, %v2955
  %v3461 = vpack.c.bf16 %v2958, %v2956
  %v3462 = vpack.c.bf16 %v2928, %v2922
  %v3463 = vpack.c.bf16 %v2961, %v2959
  %v3464 = vpack.c.bf16 %v2962, %v2960
  %v3465 = vpack.c.bf16 %v2940, %v2934
  %v3466 = vpack.c.bf16 %v2965, %v2963
  %v3467 = vpack.c.bf16 %v2966, %v2964
  %v3468 = vpack.c.bf16 %v2952, %v2946
  %v3469 = vpack.c.bf16 %v3047, %v3044
  %v3470 = vpack.c.bf16 %v3048, %v3045
  %v3471 = vpack.c.bf16 %v3049, %v3046
  %v3472 = vpack.c.bf16 %v3053, %v3050
  %v3473 = vpack.c.bf16 %v3054, %v3051
  %v3474 = vpack.c.bf16 %v3055, %v3052
  %v3475 = vpack.c.bf16 %v3059, %v3056
  %v3476 = vpack.c.bf16 %v3060, %v3057
  %v3477 = vpack.c.bf16 %v3061, %v3058
  %v3478 = vpack.c.bf16 %v3142, %v3062
  %v3479 = vpack.c.bf16 %v3143, %v3063
  %v3480 = vpack.c.bf16 %v3144, %v3064
  %v3481 = vpack.c.bf16 %v3148, %v3145
  %v3482 = vpack.c.bf16 %v3149, %v3146
  %v3483 = vpack.c.bf16 %v3150, %v3147
  %v3484 = vpack.c.bf16 %v3154, %v3151
  %v3485 = vpack.c.bf16 %v3155, %v3152
  %v3486 = vpack.c.bf16 %v3156, %v3153
  %v3487 = vpack.c.bf16 %v3160, %v3157
  %v3488 = vpack.c.bf16 %v3161, %v3158
  %v3489 = vpack.c.bf16 %v3162, %v3159
  %v3490 = vpack.c.bf16 %v3243, %v3240
  %v3491 = vpack.c.bf16 %v3244, %v3241
  %v3492 = vpack.c.bf16 %v3245, %v3242
  %v3493 = vpack.c.bf16 %v3249, %v3246
  %v3494 = vpack.c.bf16 %v3250, %v3247
  %v3495 = vpack.c.bf16 %v3251, %v3248
  %v3496 = vpack.c.bf16 %v3255, %v3252
  %v3497 = vpack.c.bf16 %v3256, %v3253
  %v3498 = vpack.c.bf16 %v3257, %v3254
  %v3499 = vpack.c.bf16 %v3338, %v3258
  %v3500 = vpack.c.bf16 %v3339, %v3259
  %v3501 = vpack.c.bf16 %v3340, %v3260
  %v3502 = vpack.c.bf16 %v3344, %v3341
  %v3503 = vpack.c.bf16 %v3345, %v3342
  %v3504 = vpack.c.bf16 %v3346, %v3343
  %v3505 = vpack.c.bf16 %v3350, %v3347
  %v3506 = vpack.c.bf16 %v3351, %v3348
  %v3507 = vpack.c.bf16 %v3352, %v3349
  %v3508 = vpack.c.bf16 %v3356, %v3353
  %v3509 = vpack.c.bf16 %v3357, %v3354
  %v3510 = vpack.c.bf16 %v3358, %v3355
  %v3511 = vpack.c.bf16 %v3416, %v2866
  %v3512 = vpack.c.bf16 %v3417, %v2904
  %v3513 = vpack.c.bf16 %v3385, %v2903
  %v3514 = vpack.c.bf16 %v3420, %v3418
  %v3515 = vpack.c.bf16 %v3421, %v3419
  %v3516 = vpack.c.bf16 %v3397, %v3391
  %v3517 = vpack.c.bf16 %v3424, %v3422
  %v3518 = vpack.c.bf16 %v3425, %v3423
  %v3519 = vpack.c.bf16 %v3409, %v3403
  %v3520 = vpack.c.bf16 %v3426, %v3426
  %v3521 = vpack.c.bf16 %v3427, %v3427
  %v3522 = vpack.c.bf16 %v3415, %v3415
  %v3524 = vsel %vm623, %v3520, 0
  %v3527 = vsel %vm623, %v3521, 0
  %v3530 = vsel %vm623, %v3522, 0
  %3532 = vmatprep.subr.bf16.mxu0 %v3470
  %3533 = vmatpush1.bf16.msra.mxu0 %v3469
  %3534 = vmatprep.subr.bf16.mxu0 %v3467
  %3535 = vmatpush1.bf16.msra.mxu0 %v3466
  %3536 = vmatprep.subr.bf16.mxu0 %v3464
  %3537 = vmatpush1.bf16.msra.mxu0 %v3463
  %3538 = vmatprep.subr.bf16.mxu0 %v3461
  %3539 = vmatpush1.bf16.msra.mxu0 %v3460
  %3540 = vmatprep.subr.bf16.mxu0 %v3458
  %3541 = vmatpush1.bf16.msra.mxu0 %v3457
  %3542 = vmatprep.subr.bf16.mxu0 %v3455
  %3543 = vmatpush1.bf16.msra.mxu0 %v3454
  %3544 = vmatprep.subr.bf16.mxu0 %v3452
  %3545 = vmatpush1.bf16.msra.mxu0 %v3451
  %3546 = vmatprep.subr.bf16.mxu0 %v3449
  %3547 = vmatpush1.bf16.msra.mxu0 %v3448
  %3548 = vmatprep.subr.bf16.mxu0 %v3494
  %3549 = vmatpush2.bf16.msra.mxu0 %v3493
  %3550 = vmatprep.subr.bf16.mxu0 %v3491
  %3551 = vmatpush2.bf16.msra.mxu0 %v3490
  %3552 = vmatprep.subr.bf16.mxu0 %v3488
  %3553 = vmatpush2.bf16.msra.mxu0 %v3487
  %3554 = vmatprep.subr.bf16.mxu0 %v3485
  %3555 = vmatpush2.bf16.msra.mxu0 %v3484
  %3556 = vmatprep.subr.bf16.mxu0 %v3482
  %3557 = vmatpush2.bf16.msra.mxu0 %v3481
  %3558 = vmatprep.subr.bf16.mxu0 %v3479
  %3559 = vmatpush2.bf16.msra.mxu0 %v3478
  %3560 = vmatprep.subr.bf16.mxu0 %v3476
  %3561 = vmatpush2.bf16.msra.mxu0 %v3475
  %3562 = vmatprep.subr.bf16.mxu0 %v3473
  %3563 = vmatpush2.bf16.msra.mxu0 %v3472
  %3564 = vmatprep.mubr.bf16.mxu0 %v2258
  %3565 = vmatmul.mubr.bf16.gmra.mxu0 %v2257
  %v3566 = vpop.f32.mrf.mxu0
  %v3567 = vadd.f32 0.0, %v3566
  %v3568 = vpop.f32.mrf.mxu0
  %v3569 = vadd.f32 0.0, %v3568
  %v3570 = vpop.f32.mrf.mxu0
  %v3571 = vpop.f32.mrf.mxu0
  %3572 = vdwg.mxu0
  %3573 = vmatprep.subr.bf16.mxu0 %v3518
  %3574 = vmatpush1.bf16.msra.mxu0 %v3517
  %3575 = vmatprep.subr.bf16.mxu0 %v3515
  %3576 = vmatpush1.bf16.msra.mxu0 %v3514
  %3577 = vmatprep.subr.bf16.mxu0 %v3512
  %3578 = vmatpush1.bf16.msra.mxu0 %v3511
  %3579 = vmatprep.subr.bf16.mxu0 %v3509
  %3580 = vmatpush1.bf16.msra.mxu0 %v3508
  %3581 = vmatprep.subr.bf16.mxu0 %v3506
  %3582 = vmatpush1.bf16.msra.mxu0 %v3505
  %3583 = vmatprep.subr.bf16.mxu0 %v3503
  %3584 = vmatpush1.bf16.msra.mxu0 %v3502
  %3585 = vmatprep.subr.bf16.mxu0 %v3500
  %3586 = vmatpush1.bf16.msra.mxu0 %v3499
  %3587 = vmatprep.subr.bf16.mxu0 %v3497
  %3588 = vmatpush1.bf16.msra.mxu0 %v3496
  %3589 = vmatprep.subr.bf16.mxu0 0
  %3590 = vmatpush2.bf16.msra.mxu0 0
  %3591 = vmatprep.subr.bf16.mxu0 0
  %3592 = vmatpush2.bf16.msra.mxu0 0
  %3593 = vmatprep.subr.bf16.mxu0 0
  %3594 = vmatpush2.bf16.msra.mxu0 0
  %3595 = vmatprep.subr.bf16.mxu0 0
  %3596 = vmatpush2.bf16.msra.mxu0 0
  %3597 = vmatprep.subr.bf16.mxu0 0
  %3598 = vmatpush2.bf16.msra.mxu0 0
  %3599 = vmatprep.subr.bf16.mxu0 0
  %3600 = vmatpush2.bf16.msra.mxu0 0
  %3601 = vmatprep.subr.bf16.mxu0 0
  %3602 = vmatpush2.bf16.msra.mxu0 0
  %3603 = vmatprep.subr.bf16.mxu0 %v3527
  %3604 = vmatpush2.bf16.msra.mxu0 %v3524
  %3605 = vmatprep.mubr.bf16.mxu0 %v2265
  %3606 = vmatmul.mubr.bf16.gmra.mxu0 %v2259
  %v3607 = vpop.f32.mrf.mxu0
  %v3608 = vadd.f32 %v3567, %v3607
  %v3609 = vpop.f32.mrf.mxu0
  %v3610 = vadd.f32 %v3569, %v3609
  %v3611 = vpop.f32.mrf.mxu0
  %v3612 = vpop.f32.mrf.mxu0
  %3613 = vdwg.mxu0
  %3614 = vmatprep.subr.bf16.mxu0 0
  %3615 = vmatpush1.bf16.msra.mxu0 %v3471
  %3616 = vmatprep.subr.bf16.mxu0 0
  %3617 = vmatpush1.bf16.msra.mxu0 %v3468
  %3618 = vmatprep.subr.bf16.mxu0 0
  %3619 = vmatpush1.bf16.msra.mxu0 %v3465
  %3620 = vmatprep.subr.bf16.mxu0 0
  %3621 = vmatpush1.bf16.msra.mxu0 %v3462
  %3622 = vmatprep.subr.bf16.mxu0 0
  %3623 = vmatpush1.bf16.msra.mxu0 %v3459
  %3624 = vmatprep.subr.bf16.mxu0 0
  %3625 = vmatpush1.bf16.msra.mxu0 %v3456
  %3626 = vmatprep.subr.bf16.mxu0 0
  %3627 = vmatpush1.bf16.msra.mxu0 %v3453
  %3628 = vmatprep.subr.bf16.mxu0 0
  %3629 = vmatpush1.bf16.msra.mxu0 %v3450
  %3630 = vmatprep.subr.bf16.mxu0 0
  %3631 = vmatpush2.bf16.msra.mxu0 %v3495
  %3632 = vmatprep.subr.bf16.mxu0 0
  %3633 = vmatpush2.bf16.msra.mxu0 %v3492
  %3634 = vmatprep.subr.bf16.mxu0 0
  %3635 = vmatpush2.bf16.msra.mxu0 %v3489
  %3636 = vmatprep.subr.bf16.mxu0 0
  %3637 = vmatpush2.bf16.msra.mxu0 %v3486
  %3638 = vmatprep.subr.bf16.mxu0 0
  %3639 = vmatpush2.bf16.msra.mxu0 %v3483
  %3640 = vmatprep.subr.bf16.mxu0 0
  %3641 = vmatpush2.bf16.msra.mxu0 %v3480
  %3642 = vmatprep.subr.bf16.mxu0 0
  %3643 = vmatpush2.bf16.msra.mxu0 %v3477
  %3644 = vmatprep.subr.bf16.mxu0 0
  %3645 = vmatpush2.bf16.msra.mxu0 %v3474
  %3646 = vmatprep.mubr.bf16.mxu0 %v2258
  %3647 = vmatmul.mubr.bf16.gmra.mxu0 %v2257
  %v3648 = vpop.f32.mrf.mxu0
  %v3649 = vadd.f32 0.0, %v3648
  %v3650 = vpop.f32.mrf.mxu0
  %v3651 = vpop.f32.mrf.mxu0
  %v3652 = vpop.f32.mrf.mxu0
  %3653 = vdwg.mxu0
  %3654 = vmatprep.subr.bf16.mxu0 0
  %3655 = vmatpush1.bf16.msra.mxu0 %v3519
  %3656 = vmatprep.subr.bf16.mxu0 0
  %3657 = vmatpush1.bf16.msra.mxu0 %v3516
  %3658 = vmatprep.subr.bf16.mxu0 0
  %3659 = vmatpush1.bf16.msra.mxu0 %v3513
  %3660 = vmatprep.subr.bf16.mxu0 0
  %3661 = vmatpush1.bf16.msra.mxu0 %v3510
  %3662 = vmatprep.subr.bf16.mxu0 0
  %3663 = vmatpush1.bf16.msra.mxu0 %v3507
  %3664 = vmatprep.subr.bf16.mxu0 0
  %3665 = vmatpush1.bf16.msra.mxu0 %v3504
  %3666 = vmatprep.subr.bf16.mxu0 0
  %3667 = vmatpush1.bf16.msra.mxu0 %v3501
  %3668 = vmatprep.subr.bf16.mxu0 0
  %3669 = vmatpush1.bf16.msra.mxu0 %v3498
  %3670 = vmatprep.subr.bf16.mxu0 0
  %3671 = vmatpush2.bf16.msra.mxu0 0
  %3672 = vmatprep.subr.bf16.mxu0 0
  %3673 = vmatpush2.bf16.msra.mxu0 0
  %3674 = vmatprep.subr.bf16.mxu0 0
  %3675 = vmatpush2.bf16.msra.mxu0 0
  %3676 = vmatprep.subr.bf16.mxu0 0
  %3677 = vmatpush2.bf16.msra.mxu0 0
  %3678 = vmatprep.subr.bf16.mxu0 0
  %3679 = vmatpush2.bf16.msra.mxu0 0
  %3680 = vmatprep.subr.bf16.mxu0 0
  %3681 = vmatpush2.bf16.msra.mxu0 0
  %3682 = vmatprep.subr.bf16.mxu0 0
  %3683 = vmatpush2.bf16.msra.mxu0 0
  %3684 = vmatprep.subr.bf16.mxu0 0
  %3685 = vmatpush2.bf16.msra.mxu0 %v3530
  %3686 = vmatprep.mubr.bf16.mxu0 %v2265
  %3687 = vmatmul.mubr.bf16.gmra.mxu0 %v2259
  %v3688 = vpop.f32.mrf.mxu0
  %v3689 = vadd.f32 %v3649, %v3688
  %v3690 = vpop.f32.mrf.mxu0
  %v3691 = vpop.f32.mrf.mxu0
  %v3692 = vpop.f32.mrf.mxu0
  %3693 = vdwg.mxu0
  %v3695 = vsel %vm2526, %v3689, 0
  %3697 = vmatprep.subr.mxu0 %v2469
  %3698 = vmatpush1.msra.mxu0 %v2468
  %3699 = vmatprep.subr.mxu0 %v2467
  %3700 = vmatpush1.msra.mxu0 %v2466
  %3701 = vmatprep.subr.mxu0 %v2465
  %3702 = vmatpush1.msra.mxu0 %v2464
  %3703 = vmatprep.subr.mxu0 %v2463
  %3704 = vmatpush1.msra.mxu0 %v2462
  %3705 = vmatprep.subr.mxu0 %v2461
  %3706 = vmatpush1.msra.mxu0 %v2460
  %3707 = vmatprep.subr.mxu0 %v2459
  %3708 = vmatpush1.msra.mxu0 %v2458
  %3709 = vmatprep.subr.mxu0 %v2457
  %3710 = vmatpush1.msra.mxu0 %v2456
  %3711 = vmatprep.subr.mxu0 %v2455
  %3712 = vmatpush1.msra.mxu0 %v2454
  %3713 = vmatprep.subr.mxu0 %v2453
  %3714 = vmatpush1.msra.mxu0 %v2452
  %3715 = vmatprep.subr.mxu0 %v2451
  %3716 = vmatpush1.msra.mxu0 %v2450
  %3717 = vmatprep.subr.mxu0 %v2449
  %3718 = vmatpush1.msra.mxu0 %v2448
  %3719 = vmatprep.subr.mxu0 %v2447
  %3720 = vmatpush1.msra.mxu0 %v2446
  %3721 = vmatprep.subr.mxu0 %v2445
  %3722 = vmatpush1.msra.mxu0 %v2444
  %3723 = vmatprep.subr.mxu0 %v2443
  %3724 = vmatpush1.msra.mxu0 %v2442
  %3725 = vmatprep.subr.mxu0 %v2441
  %3726 = vmatpush1.msra.mxu0 %v2440
  %3727 = vmatprep.subr.mxu0 %v2439
  %3728 = vmatpush1.msra.mxu0 %v2438
  %3729 = vmatprep.subr.mxu0 %v2501
  %3730 = vmatpush2.msra.mxu0 %v2500
  %3731 = vmatprep.subr.mxu0 %v2499
  %3732 = vmatpush2.msra.mxu0 %v2498
  %3733 = vmatprep.subr.mxu0 %v2497
  %3734 = vmatpush2.msra.mxu0 %v2496
  %3735 = vmatprep.subr.mxu0 %v2495
  %3736 = vmatpush2.msra.mxu0 %v2494
  %3737 = vmatprep.subr.mxu0 %v2493
  %3738 = vmatpush2.msra.mxu0 %v2492
  %3739 = vmatprep.subr.mxu0 %v2491
  %3740 = vmatpush2.msra.mxu0 %v2490
  %3741 = vmatprep.subr.mxu0 %v2489
  %3742 = vmatpush2.msra.mxu0 %v2488
  %3743 = vmatprep.subr.mxu0 %v2487
  %3744 = vmatpush2.msra.mxu0 %v2486
  %3745 = vmatprep.subr.mxu0 %v2485
  %3746 = vmatpush2.msra.mxu0 %v2484
  %3747 = vmatprep.subr.mxu0 %v2483
  %3748 = vmatpush2.msra.mxu0 %v2482
  %3749 = vmatprep.subr.mxu0 %v2481
  %3750 = vmatpush2.msra.mxu0 %v2480
  %3751 = vmatprep.subr.mxu0 %v2479
  %3752 = vmatpush2.msra.mxu0 %v2478
  %3753 = vmatprep.subr.mxu0 %v2477
  %3754 = vmatpush2.msra.mxu0 %v2476
  %3755 = vmatprep.subr.mxu0 %v2475
  %3756 = vmatpush2.msra.mxu0 %v2474
  %3757 = vmatprep.subr.mxu0 %v2473
  %3758 = vmatpush2.msra.mxu0 %v2472
  %3759 = vmatprep.subr.mxu0 %v2471
  %3760 = vmatpush2.msra.mxu0 %v2470
  %3761 = vmatprep.mubr.f32.mxu0 %v3610
  %3762 = vmatmul.mubr.f32.gmra.mxu0 %v3608
  %v3763 = vpop.f32.mrf.mxu0
  %v3764 = vadd.f32 0.0, %v3763
  %v3765 = vpop.f32.mrf.mxu0
  %v3766 = vadd.f32 0.0, %v3765
  %3767 = vdwg.mxu0
  %3768 = vmatprep.subr.mxu0 0.0
  %3769 = vmatpush1.msra.mxu0 0.0
  %3770 = vmatprep.subr.mxu0 0.0
  %3771 = vmatpush1.msra.mxu0 0.0
  %3772 = vmatprep.subr.mxu0 0.0
  %3773 = vmatpush1.msra.mxu0 0.0
  %3774 = vmatprep.subr.mxu0 0.0
  %3775 = vmatpush1.msra.mxu0 0.0
  %3776 = vmatprep.subr.mxu0 %v2534
  %3777 = vmatpush1.msra.mxu0 %v2531
  %3778 = vmatprep.subr.mxu0 %v2523
  %3779 = vmatpush1.msra.mxu0 %v2522
  %3780 = vmatprep.subr.mxu0 %v2521
  %3781 = vmatpush1.msra.mxu0 %v2520
  %3782 = vmatprep.subr.mxu0 %v2519
  %3783 = vmatpush1.msra.mxu0 %v2518
  %3784 = vmatprep.subr.mxu0 %v2517
  %3785 = vmatpush1.msra.mxu0 %v2516
  %3786 = vmatprep.subr.mxu0 %v2515
  %3787 = vmatpush1.msra.mxu0 %v2514
  %3788 = vmatprep.subr.mxu0 %v2513
  %3789 = vmatpush1.msra.mxu0 %v2512
  %3790 = vmatprep.subr.mxu0 %v2511
  %3791 = vmatpush1.msra.mxu0 %v2510
  %3792 = vmatprep.subr.mxu0 %v2509
  %3793 = vmatpush1.msra.mxu0 %v2508
  %3794 = vmatprep.subr.mxu0 %v2507
  %3795 = vmatpush1.msra.mxu0 %v2506
  %3796 = vmatprep.subr.mxu0 %v2505
  %3797 = vmatpush1.msra.mxu0 %v2504
  %3798 = vmatprep.subr.mxu0 %v2503
  %3799 = vmatpush1.msra.mxu0 %v2502
  %3800 = vmatprep.subr.mxu0 0.0
  %3801 = vmatpush2.msra.mxu0 0.0
  %3802 = vmatprep.subr.mxu0 0.0
  %3803 = vmatpush2.msra.mxu0 0.0
  %3804 = vmatprep.subr.mxu0 0.0
  %3805 = vmatpush2.msra.mxu0 0.0
  %3806 = vmatprep.subr.mxu0 0.0
  %3807 = vmatpush2.msra.mxu0 0.0
  %3808 = vmatprep.subr.mxu0 0.0
  %3809 = vmatpush2.msra.mxu0 0.0
  %3810 = vmatprep.subr.mxu0 0.0
  %3811 = vmatpush2.msra.mxu0 0.0
  %3812 = vmatprep.subr.mxu0 0.0
  %3813 = vmatpush2.msra.mxu0 0.0
  %3814 = vmatprep.subr.mxu0 0.0
  %3815 = vmatpush2.msra.mxu0 0.0
  %3816 = vmatprep.subr.mxu0 0.0
  %3817 = vmatpush2.msra.mxu0 0.0
  %3818 = vmatprep.subr.mxu0 0.0
  %3819 = vmatpush2.msra.mxu0 0.0
  %3820 = vmatprep.subr.mxu0 0.0
  %3821 = vmatpush2.msra.mxu0 0.0
  %3822 = vmatprep.subr.mxu0 0.0
  %3823 = vmatpush2.msra.mxu0 0.0
  %3824 = vmatprep.subr.mxu0 0.0
  %3825 = vmatpush2.msra.mxu0 0.0
  %3826 = vmatprep.subr.mxu0 0.0
  %3827 = vmatpush2.msra.mxu0 0.0
  %3828 = vmatprep.subr.mxu0 0.0
  %3829 = vmatpush2.msra.mxu0 0.0
  %3830 = vmatprep.subr.mxu0 0.0
  %3831 = vmatpush2.msra.mxu0 0.0
  %3832 = vmatprep.mubr.f32.mxu0 0.0
  %3833 = vmatmul.mubr.f32.gmra.mxu0 %v3695
  %v3834 = vpop.f32.mrf.mxu0
  %v3835 = vadd.f32 %v3764, %v3834
  %v3836 = vpop.f32.mrf.mxu0
  %v3837 = vadd.f32 %v3766, %v3836
  %3838 = vdwg.mxu0
  %v3839 = vadd.f32 %v2674, %v2676
  %3840 = vadd.xlane.f32.xlu0 %v3839
  %v3841 = vpop.xlane.xlu0 %3840
  %v3842 = vadd.f32 %v3841, 0.0
  %v3843 = vadd.f32 %v3835, %v3837
  %3844 = vadd.xlane.f32.xlu0 %v3843
  %v3845 = vpop.xlane.xlu0 %3844
  %v3846 = vadd.f32 %v3842, %v3845
  %v3847 = vmul.f32 %v3846, 0.001953125
  %v3848 = vsub.f32 %v2674, %v3847
  %v3849 = vsub.f32 %v2676, %v3847
  %v3850 = vsub.f32 %v3835, %v3847
  %v3851 = vsub.f32 %v3837, %v3847
  %v3852 = vmul.f32 %v3848, %v3848
  %v3853 = vmul.f32 %v3849, %v3849
  %v3854 = vadd.f32 %v3852, %v3853
  %3855 = vadd.xlane.f32.xlu0 %v3854
  %v3856 = vpop.xlane.xlu0 %3855
  %v3857 = vadd.f32 %v3856, 0.0
  %v3858 = vmul.f32 %v3850, %v3850
  %v3859 = vmul.f32 %v3851, %v3851
  %v3860 = vadd.f32 %v3858, %v3859
  %3861 = vadd.xlane.f32.xlu0 %v3860
  %v3862 = vpop.xlane.xlu0 %3861
  %v3863 = vadd.f32 %v3857, %v3862
  %v3864 = vmul.f32 %v3863, 0.001953125
  %v3865 = vadd.f32 %v3864, 1e-05
  %v3866 = vrsqrt.pop %v3865
  %v3867 = vld [vmem:[%s8] sm:$0xff]
  %v3868 = vmul.f32 %v3866, %v3867
  %3870 = vset.pattern.permute.xlu0 0
  %3871 = vperm.xlu0 %3870, %v3868
  %v3872 = vpop.permute.xlu0 %3871
  %v3874 = vmul.f32 %v3848, %v3872
  %v3875 = vmul.f32 %v3849, %v3872
  %v3876 = vld [vmem:[%s9] sm:$0xff]
  %3878 = vset.pattern.permute.xlu0 0
  %3879 = vperm.xlu0 %3878, %v3876
  %v3880 = vpop.permute.xlu0 %3879
  %v3882 = vadd.f32 %v3874, %v3880
  %v3883 = vadd.f32 %v3875, %v3880
  %v3884 = vmul.f32 %v3850, %v3872
  %v3885 = vmul.f32 %v3851, %v3872
  %v3886 = vadd.f32 %v3884, %v3880
  %v3887 = vadd.f32 %v3885, %v3880
  %vm3888 = vcmp.ge.f32.partialorder %v3882, 0.0
  %vm3889 = vcmp.ge.f32.partialorder %v3883, 0.0
  %v3890 = vmul.f32 %v3882, 0.2
  %v3891 = vmul.f32 %v3883, 0.2
  %v3892 = vsel %vm3888, %v3882, %v3890
  %v3893 = vsel %vm3889, %v3883, %v3891
  %vm3894 = vcmp.ge.f32.partialorder %v3886, 0.0
  %vm3895 = vcmp.ge.f32.partialorder %v3887, 0.0
  %v3896 = vmul.f32 %v3886, 0.2
  %v3897 = vmul.f32 %v3887, 0.2
  %v3898 = vsel %vm3894, %v3886, %v3896
  %v3899 = vsel %vm3895, %v3887, %v3897
  %v3900 = vld [vmem:[%s14] sm:$0xff]
  %v3901 = vld [vmem:[%s14 + $0x8] sm:$0xff]
  %v3902 = vld [vmem:[%s14 + $0x10] sm:$0xff]
  %v3903 = vld [vmem:[%s14 + $0x18] sm:$0xff]
  %v3904 = vld [vmem:[%s14 + $0x20] sm:$0xff]
  %v3905 = vld [vmem:[%s14 + $0x28] sm:$0xff]
  %v3906 = vld [vmem:[%s14 + $0x30] sm:$0xff]
  %v3907 = vld [vmem:[%s14 + $0x38] sm:$0xff]
  %v3908 = vld [vmem:[%s14 + $0x40] sm:$0xff]
  %v3909 = vld [vmem:[%s14 + $0x48] sm:$0xff]
  %v3910 = vld [vmem:[%s14 + $0x50] sm:$0xff]
  %v3911 = vld [vmem:[%s14 + $0x58] sm:$0xff]
  %v3912 = vld [vmem:[%s14 + $0x60] sm:$0xff]
  %v3913 = vld [vmem:[%s14 + $0x68] sm:$0xff]
  %v3914 = vld [vmem:[%s14 + $0x70] sm:$0xff]
  %v3915 = vld [vmem:[%s14 + $0x78] sm:$0xff]
  %v3916 = vld [vmem:[%s14 + $0x80] sm:$0xff]
  %v3917 = vld [vmem:[%s14 + $0x88] sm:$0xff]
  %v3918 = vld [vmem:[%s14 + $0x90] sm:$0xff]
  %v3919 = vld [vmem:[%s14 + $0x98] sm:$0xff]
  %v3920 = vld [vmem:[%s14 + $0xa0] sm:$0xff]
  %v3921 = vld [vmem:[%s14 + $0xa8] sm:$0xff]
  %v3922 = vld [vmem:[%s14 + $0xb0] sm:$0xff]
  %v3923 = vld [vmem:[%s14 + $0xb8] sm:$0xff]
  %v3924 = vld [vmem:[%s14 + $0xc0] sm:$0xff]
  %v3925 = vld [vmem:[%s14 + $0xc8] sm:$0xff]
  %v3926 = vld [vmem:[%s14 + $0xd0] sm:$0xff]
  %v3927 = vld [vmem:[%s14 + $0xd8] sm:$0xff]
  %v3928 = vld [vmem:[%s14 + $0xe0] sm:$0xff]
  %v3929 = vld [vmem:[%s14 + $0xe8] sm:$0xff]
  %v3930 = vld [vmem:[%s14 + $0xf0] sm:$0xff]
  %v3931 = vld [vmem:[%s14 + $0xf8] sm:$0xff]
  %v3932 = vld [vmem:[%s14 + $0x100] sm:$0xff]
  %v3933 = vld [vmem:[%s14 + $0x108] sm:$0xff]
  %v3934 = vld [vmem:[%s14 + $0x110] sm:$0xff]
  %v3935 = vld [vmem:[%s14 + $0x118] sm:$0xff]
  %v3936 = vld [vmem:[%s14 + $0x120] sm:$0xff]
  %v3937 = vld [vmem:[%s14 + $0x128] sm:$0xff]
  %v3938 = vld [vmem:[%s14 + $0x130] sm:$0xff]
  %v3939 = vld [vmem:[%s14 + $0x138] sm:$0xff]
  %v3940 = vld [vmem:[%s14 + $0x140] sm:$0xff]
  %v3941 = vld [vmem:[%s14 + $0x148] sm:$0xff]
  %v3942 = vld [vmem:[%s14 + $0x150] sm:$0xff]
  %v3943 = vld [vmem:[%s14 + $0x158] sm:$0xff]
  %v3944 = vld [vmem:[%s14 + $0x160] sm:$0xff]
  %v3945 = vld [vmem:[%s14 + $0x168] sm:$0xff]
  %v3946 = vld [vmem:[%s14 + $0x170] sm:$0xff]
  %v3947 = vld [vmem:[%s14 + $0x178] sm:$0xff]
  %v3948 = vld [vmem:[%s14 + $0x180] sm:$0xff]
  %v3949 = vld [vmem:[%s14 + $0x188] sm:$0xff]
  %v3950 = vld [vmem:[%s14 + $0x190] sm:$0xff]
  %v3951 = vld [vmem:[%s14 + $0x198] sm:$0xff]
  %v3952 = vld [vmem:[%s14 + $0x1a0] sm:$0xff]
  %v3953 = vld [vmem:[%s14 + $0x1a8] sm:$0xff]
  %v3954 = vld [vmem:[%s14 + $0x1b0] sm:$0xff]
  %v3955 = vld [vmem:[%s14 + $0x1b8] sm:$0xff]
  %v3956 = vld [vmem:[%s14 + $0x1c0] sm:$0xff]
  %v3957 = vld [vmem:[%s14 + $0x1c8] sm:$0xff]
  %v3958 = vld [vmem:[%s14 + $0x1d0] sm:$0xff]
  %v3959 = vld [vmem:[%s14 + $0x1d8] sm:$0xff]
  %v3960 = vld [vmem:[%s14 + $0x1e0] sm:$0xff]
  %v3961 = vld [vmem:[%s14 + $0x1e8] sm:$0xff]
  %v3962 = vld [vmem:[%s14 + $0x1f0] sm:$0xff]
  %v3963 = vld [vmem:[%s14 + $0x1f8] sm:$0xff]
  %v3964 = vld [vmem:[%s14 + $0x200] sm:$0xff]
  %v3965 = vld [vmem:[%s14 + $0x208] sm:$0xff]
  %v3966 = vld [vmem:[%s14 + $0x210] sm:$0xff]
  %v3967 = vld [vmem:[%s14 + $0x218] sm:$0xff]
  %v3968 = vld [vmem:[%s14 + $0x220] sm:$0xff]
  %v3969 = vld [vmem:[%s14 + $0x228] sm:$0xff]
  %v3970 = vld [vmem:[%s14 + $0x230] sm:$0xff]
  %v3971 = vld [vmem:[%s14 + $0x238] sm:$0xff]
  %v3972 = vld [vmem:[%s14 + $0x240] sm:$0xff]
  %v3973 = vld [vmem:[%s14 + $0x248] sm:$0xff]
  %v3974 = vld [vmem:[%s14 + $0x250] sm:$0xff]
  %v3975 = vld [vmem:[%s14 + $0x258] sm:$0xff]
  %v3976 = vld [vmem:[%s14 + $0x260] sm:$0xff]
  %v3977 = vld [vmem:[%s14 + $0x268] sm:$0xff]
  %v3978 = vld [vmem:[%s14 + $0x270] sm:$0xff]
  %v3979 = vld [vmem:[%s14 + $0x278] sm:$0xff]
  %v3980 = vld [vmem:[%s14 + $0x280] sm:$0xff]
  %v3981 = vld [vmem:[%s14 + $0x288] sm:$0xff]
  %v3982 = vld [vmem:[%s14 + $0x290] sm:$0xff]
  %v3983 = vld [vmem:[%s14 + $0x298] sm:$0xff]
  %v3984 = vld [vmem:[%s14 + $0x2a0] sm:$0xff]
  %v3985 = vld [vmem:[%s14 + $0x2a8] sm:$0xff]
  %v3986 = vld [vmem:[%s14 + $0x2b0] sm:$0xff]
  %v3987 = vld [vmem:[%s14 + $0x2b8] sm:$0xff]
  %v3988 = vld [vmem:[%s14 + $0x2c0] sm:$0xff]
  %v3989 = vld [vmem:[%s14 + $0x2c8] sm:$0xff]
  %v3990 = vld [vmem:[%s14 + $0x2d0] sm:$0xff]
  %v3991 = vld [vmem:[%s14 + $0x2d8] sm:$0xff]
  %v3992 = vld [vmem:[%s14 + $0x2e0] sm:$0xff]
  %v3993 = vld [vmem:[%s14 + $0x2e8] sm:$0xff]
  %v3994 = vld [vmem:[%s14 + $0x2f0] sm:$0xff]
  %v3995 = vld [vmem:[%s14 + $0x2f8] sm:$0xff]
  %v3996 = vld [vmem:[%s14 + $0x300] sm:$0xff]
  %v3997 = vld [vmem:[%s14 + $0x308] sm:$0xff]
  %v3998 = vld [vmem:[%s14 + $0x310] sm:$0xff]
  %v3999 = vld [vmem:[%s14 + $0x318] sm:$0xff]
  %v4000 = vld [vmem:[%s14 + $0x320] sm:$0xff]
  %v4001 = vld [vmem:[%s14 + $0x328] sm:$0xff]
  %v4002 = vld [vmem:[%s14 + $0x330] sm:$0xff]
  %v4003 = vld [vmem:[%s14 + $0x338] sm:$0xff]
  %v4004 = vld [vmem:[%s14 + $0x340] sm:$0xff]
  %v4005 = vld [vmem:[%s14 + $0x348] sm:$0xff]
  %v4006 = vld [vmem:[%s14 + $0x350] sm:$0xff]
  %v4007 = vld [vmem:[%s14 + $0x358] sm:$0xff]
  %v4008 = vld [vmem:[%s14 + $0x360] sm:$0xff]
  %v4009 = vld [vmem:[%s14 + $0x368] sm:$0xff]
  %v4010 = vld [vmem:[%s14 + $0x370] sm:$0xff]
  %v4011 = vld [vmem:[%s14 + $0x378] sm:$0xff]
  %v4012 = vld [vmem:[%s14 + $0x380] sm:$0xff]
  %v4013 = vld [vmem:[%s14 + $0x388] sm:$0xff]
  %v4014 = vld [vmem:[%s14 + $0x390] sm:$0xff]
  %v4015 = vld [vmem:[%s14 + $0x398] sm:$0xff]
  %v4016 = vld [vmem:[%s14 + $0x3a0] sm:$0xff]
  %v4017 = vld [vmem:[%s14 + $0x3a8] sm:$0xff]
  %v4018 = vld [vmem:[%s14 + $0x3b0] sm:$0xff]
  %v4019 = vld [vmem:[%s14 + $0x3b8] sm:$0xff]
  %v4020 = vld [vmem:[%s14 + $0x3c0] sm:$0xff]
  %v4021 = vld [vmem:[%s14 + $0x3c8] sm:$0xff]
  %v4022 = vld [vmem:[%s14 + $0x3d0] sm:$0xff]
  %v4023 = vld [vmem:[%s14 + $0x3d8] sm:$0xff]
  %v4024 = vld [vmem:[%s14 + $0x3e0] sm:$0xff]
  %v4025 = vld [vmem:[%s14 + $0x3e8] sm:$0xff]
  %v4026 = vld [vmem:[%s14 + $0x3f0] sm:$0xff]
  %v4027 = vld [vmem:[%s14 + $0x3f8] sm:$0xff]
  %4028 = vmatprep.subr.mxu0 %v3961
  %4029 = vmatpush1.msra.mxu0 %v3960
  %4030 = vmatprep.subr.mxu0 %v3957
  %4031 = vmatpush1.msra.mxu0 %v3956
  %4032 = vmatprep.subr.mxu0 %v3953
  %4033 = vmatpush1.msra.mxu0 %v3952
  %4034 = vmatprep.subr.mxu0 %v3949
  %4035 = vmatpush1.msra.mxu0 %v3948
  %4036 = vmatprep.subr.mxu0 %v3945
  %4037 = vmatpush1.msra.mxu0 %v3944
  %4038 = vmatprep.subr.mxu0 %v3941
  %4039 = vmatpush1.msra.mxu0 %v3940
  %4040 = vmatprep.subr.mxu0 %v3937
  %4041 = vmatpush1.msra.mxu0 %v3936
  %4042 = vmatprep.subr.mxu0 %v3933
  %4043 = vmatpush1.msra.mxu0 %v3932
  %4044 = vmatprep.subr.mxu0 %v3929
  %4045 = vmatpush1.msra.mxu0 %v3928
  %4046 = vmatprep.subr.mxu0 %v3925
  %4047 = vmatpush1.msra.mxu0 %v3924
  %4048 = vmatprep.subr.mxu0 %v3921
  %4049 = vmatpush1.msra.mxu0 %v3920
  %4050 = vmatprep.subr.mxu0 %v3917
  %4051 = vmatpush1.msra.mxu0 %v3916
  %4052 = vmatprep.subr.mxu0 %v3913
  %4053 = vmatpush1.msra.mxu0 %v3912
  %4054 = vmatprep.subr.mxu0 %v3909
  %4055 = vmatpush1.msra.mxu0 %v3908
  %4056 = vmatprep.subr.mxu0 %v3905
  %4057 = vmatpush1.msra.mxu0 %v3904
  %4058 = vmatprep.subr.mxu0 %v3901
  %4059 = vmatpush1.msra.mxu0 %v3900
  %4060 = vmatprep.subr.mxu0 %v4025
  %4061 = vmatpush2.msra.mxu0 %v4024
  %4062 = vmatprep.subr.mxu0 %v4021
  %4063 = vmatpush2.msra.mxu0 %v4020
  %4064 = vmatprep.subr.mxu0 %v4017
  %4065 = vmatpush2.msra.mxu0 %v4016
  %4066 = vmatprep.subr.mxu0 %v4013
  %4067 = vmatpush2.msra.mxu0 %v4012
  %4068 = vmatprep.subr.mxu0 %v4009
  %4069 = vmatpush2.msra.mxu0 %v4008
  %4070 = vmatprep.subr.mxu0 %v4005
  %4071 = vmatpush2.msra.mxu0 %v4004
  %4072 = vmatprep.subr.mxu0 %v4001
  %4073 = vmatpush2.msra.mxu0 %v4000
  %4074 = vmatprep.subr.mxu0 %v3997
  %4075 = vmatpush2.msra.mxu0 %v3996
  %4076 = vmatprep.subr.mxu0 %v3993
  %4077 = vmatpush2.msra.mxu0 %v3992
  %4078 = vmatprep.subr.mxu0 %v3989
  %4079 = vmatpush2.msra.mxu0 %v3988
  %4080 = vmatprep.subr.mxu0 %v3985
  %4081 = vmatpush2.msra.mxu0 %v3984
  %4082 = vmatprep.subr.mxu0 %v3981
  %4083 = vmatpush2.msra.mxu0 %v3980
  %4084 = vmatprep.subr.mxu0 %v3977
  %4085 = vmatpush2.msra.mxu0 %v3976
  %4086 = vmatprep.subr.mxu0 %v3973
  %4087 = vmatpush2.msra.mxu0 %v3972
  %4088 = vmatprep.subr.mxu0 %v3969
  %4089 = vmatpush2.msra.mxu0 %v3968
  %4090 = vmatprep.subr.mxu0 %v3965
  %4091 = vmatpush2.msra.mxu0 %v3964
  %4092 = vmatprep.mubr.f32.mxu0 %v3893
  %4093 = vmatmul.mubr.f32.gmra.mxu0 %v3892
  %v4094 = vpop.f32.mrf.mxu0
  %v4095 = vadd.f32 0.0, %v4094
  %v4096 = vpop.f32.mrf.mxu0
  %v4097 = vadd.f32 0.0, %v4096
  %4098 = vdwg.mxu0
  %4099 = vmatprep.subr.mxu0 %v3963
  %4100 = vmatpush1.msra.mxu0 %v3962
  %4101 = vmatprep.subr.mxu0 %v3959
  %4102 = vmatpush1.msra.mxu0 %v3958
  %4103 = vmatprep.subr.mxu0 %v3955
  %4104 = vmatpush1.msra.mxu0 %v3954
  %4105 = vmatprep.subr.mxu0 %v3951
  %4106 = vmatpush1.msra.mxu0 %v3950
  %4107 = vmatprep.subr.mxu0 %v3947
  %4108 = vmatpush1.msra.mxu0 %v3946
  %4109 = vmatprep.subr.mxu0 %v3943
  %4110 = vmatpush1.msra.mxu0 %v3942
  %4111 = vmatprep.subr.mxu0 %v3939
  %4112 = vmatpush1.msra.mxu0 %v3938
  %4113 = vmatprep.subr.mxu0 %v3935
  %4114 = vmatpush1.msra.mxu0 %v3934
  %4115 = vmatprep.subr.mxu0 %v3931
  %4116 = vmatpush1.msra.mxu0 %v3930
  %4117 = vmatprep.subr.mxu0 %v3927
  %4118 = vmatpush1.msra.mxu0 %v3926
  %4119 = vmatprep.subr.mxu0 %v3923
  %4120 = vmatpush1.msra.mxu0 %v3922
  %4121 = vmatprep.subr.mxu0 %v3919
  %4122 = vmatpush1.msra.mxu0 %v3918
  %4123 = vmatprep.subr.mxu0 %v3915
  %4124 = vmatpush1.msra.mxu0 %v3914
  %4125 = vmatprep.subr.mxu0 %v3911
  %4126 = vmatpush1.msra.mxu0 %v3910
  %4127 = vmatprep.subr.mxu0 %v3907
  %4128 = vmatpush1.msra.mxu0 %v3906
  %4129 = vmatprep.subr.mxu0 %v3903
  %4130 = vmatpush1.msra.mxu0 %v3902
  %4131 = vmatprep.subr.mxu0 %v4027
  %4132 = vmatpush2.msra.mxu0 %v4026
  %4133 = vmatprep.subr.mxu0 %v4023
  %4134 = vmatpush2.msra.mxu0 %v4022
  %4135 = vmatprep.subr.mxu0 %v4019
  %4136 = vmatpush2.msra.mxu0 %v4018
  %4137 = vmatprep.subr.mxu0 %v4015
  %4138 = vmatpush2.msra.mxu0 %v4014
  %4139 = vmatprep.subr.mxu0 %v4011
  %4140 = vmatpush2.msra.mxu0 %v4010
  %4141 = vmatprep.subr.mxu0 %v4007
  %4142 = vmatpush2.msra.mxu0 %v4006
  %4143 = vmatprep.subr.mxu0 %v4003
  %4144 = vmatpush2.msra.mxu0 %v4002
  %4145 = vmatprep.subr.mxu0 %v3999
  %4146 = vmatpush2.msra.mxu0 %v3998
  %4147 = vmatprep.subr.mxu0 %v3995
  %4148 = vmatpush2.msra.mxu0 %v3994
  %4149 = vmatprep.subr.mxu0 %v3991
  %4150 = vmatpush2.msra.mxu0 %v3990
  %4151 = vmatprep.subr.mxu0 %v3987
  %4152 = vmatpush2.msra.mxu0 %v3986
  %4153 = vmatprep.subr.mxu0 %v3983
  %4154 = vmatpush2.msra.mxu0 %v3982
  %4155 = vmatprep.subr.mxu0 %v3979
  %4156 = vmatpush2.msra.mxu0 %v3978
  %4157 = vmatprep.subr.mxu0 %v3975
  %4158 = vmatpush2.msra.mxu0 %v3974
  %4159 = vmatprep.subr.mxu0 %v3971
  %4160 = vmatpush2.msra.mxu0 %v3970
  %4161 = vmatprep.subr.mxu0 %v3967
  %4162 = vmatpush2.msra.mxu0 %v3966
  %4163 = vmatprep.mubr.f32.mxu0 %v3893
  %4164 = vmatmul.mubr.f32.gmra.mxu0 %v3892
  %v4165 = vpop.f32.mrf.mxu0
  %v4166 = vadd.f32 0.0, %v4165
  %v4167 = vpop.f32.mrf.mxu0
  %v4168 = vadd.f32 0.0, %v4167
  %4169 = vdwg.mxu0
  %4173 = vrot.lane.b32.xlu0 %v4095, 127
  %v4174 = vpop.permute.xlu0 %4173
  %4175 = vrot.lane.b32.xlu0 %v4097, 127
  %v4176 = vpop.permute.xlu0 %4175
  %4177 = vrot.lane.b32.xlu0 %v4166, 127
  %v4178 = vpop.permute.xlu0 %4177
  %v4179 = vsel %vm321, %v4174, %v4176
  %v4180 = vsel %vm321, %v4176, %v4178
  %4184 = vrot.lane.b32.xlu0 %v4095, 126
  %v4185 = vpop.permute.xlu0 %4184
  %4186 = vrot.lane.b32.xlu0 %v4097, 126
  %v4187 = vpop.permute.xlu0 %4186
  %4188 = vrot.lane.b32.xlu0 %v4166, 126
  %v4189 = vpop.permute.xlu0 %4188
  %v4190 = vsel %vm325, %v4185, %v4187
  %v4191 = vsel %vm325, %v4187, %v4189
  %4195 = vrot.lane.b32.xlu0 %v4095, 125
  %v4196 = vpop.permute.xlu0 %4195
  %4197 = vrot.lane.b32.xlu0 %v4097, 125
  %v4198 = vpop.permute.xlu0 %4197
  %4199 = vrot.lane.b32.xlu0 %v4166, 125
  %v4200 = vpop.permute.xlu0 %4199
  %v4201 = vsel %vm329, %v4196, %v4198
  %v4202 = vsel %vm329, %v4198, %v4200
  %4206 = vrot.lane.b32.xlu0 %v4095, 124
  %v4207 = vpop.permute.xlu0 %4206
  %4208 = vrot.lane.b32.xlu0 %v4097, 124
  %v4209 = vpop.permute.xlu0 %4208
  %4210 = vrot.lane.b32.xlu0 %v4166, 124
  %v4211 = vpop.permute.xlu0 %4210
  %v4212 = vsel %vm333, %v4207, %v4209
  %v4213 = vsel %vm333, %v4209, %v4211
  %4217 = vrot.lane.b32.xlu0 %v4095, 123
  %v4218 = vpop.permute.xlu0 %4217
  %4219 = vrot.lane.b32.xlu0 %v4097, 123
  %v4220 = vpop.permute.xlu0 %4219
  %4221 = vrot.lane.b32.xlu0 %v4166, 123
  %v4222 = vpop.permute.xlu0 %4221
  %v4223 = vsel %vm337, %v4218, %v4220
  %v4224 = vsel %vm337, %v4220, %v4222
  %4228 = vrot.lane.b32.xlu0 %v4095, 122
  %v4229 = vpop.permute.xlu0 %4228
  %4230 = vrot.lane.b32.xlu0 %v4097, 122
  %v4231 = vpop.permute.xlu0 %4230
  %4232 = vrot.lane.b32.xlu0 %v4166, 122
  %v4233 = vpop.permute.xlu0 %4232
  %v4234 = vsel %vm341, %v4229, %v4231
  %v4235 = vsel %vm341, %v4231, %v4233
  %4240 = vrot.lane.b32.xlu0 %v4168, 127
  %v4241 = vpop.permute.xlu0 %4240
  %v4242 = vsel %vm321, %v4178, %v4241
  %4243 = vrot.lane.b32.xlu0 %v4168, 126
  %v4244 = vpop.permute.xlu0 %4243
  %v4245 = vsel %vm325, %v4189, %v4244
  %4246 = vrot.lane.b32.xlu0 %v4168, 125
  %v4247 = vpop.permute.xlu0 %4246
  %v4248 = vsel %vm329, %v4200, %v4247
  %4249 = vrot.lane.b32.xlu0 %v4168, 124
  %v4250 = vpop.permute.xlu0 %4249
  %v4251 = vsel %vm333, %v4211, %v4250
  %4252 = vrot.lane.b32.xlu0 %v4168, 123
  %v4253 = vpop.permute.xlu0 %4252
  %v4254 = vsel %vm337, %v4222, %v4253
  %4255 = vrot.lane.b32.xlu0 %v4168, 122
  %v4256 = vpop.permute.xlu0 %4255
  %v4257 = vsel %vm341, %v4233, %v4256
  %4258 = vrot.lane.b32.xlu0 %v4095, 106
  %v4259 = vpop.permute.xlu0 %4258
  %4260 = vrot.lane.b32.xlu0 %v4097, 106
  %v4261 = vpop.permute.xlu0 %4260
  %4262 = vrot.lane.b32.xlu0 %v4166, 106
  %v4263 = vpop.permute.xlu0 %4262
  %4264 = vrot.lane.b32.xlu0 %v4179, 106
  %v4265 = vpop.permute.xlu0 %4264
  %4266 = vrot.lane.b32.xlu0 %v4180, 106
  %v4267 = vpop.permute.xlu0 %4266
  %4268 = vrot.lane.b32.xlu0 %v4178, 106
  %v4269 = vpop.permute.xlu0 %4268
  %4270 = vrot.lane.b32.xlu0 %v4190, 106
  %v4271 = vpop.permute.xlu0 %4270
  %4272 = vrot.lane.b32.xlu0 %v4191, 106
  %v4273 = vpop.permute.xlu0 %4272
  %4274 = vrot.lane.b32.xlu0 %v4189, 106
  %v4275 = vpop.permute.xlu0 %4274
  %4276 = vrot.lane.b32.xlu0 %v4201, 106
  %v4277 = vpop.permute.xlu0 %4276
  %4278 = vrot.lane.b32.xlu0 %v4202, 106
  %v4279 = vpop.permute.xlu0 %4278
  %4280 = vrot.lane.b32.xlu0 %v4200, 106
  %v4281 = vpop.permute.xlu0 %4280
  %4282 = vrot.lane.b32.xlu0 %v4212, 106
  %v4283 = vpop.permute.xlu0 %4282
  %4284 = vrot.lane.b32.xlu0 %v4213, 106
  %v4285 = vpop.permute.xlu0 %4284
  %4286 = vrot.lane.b32.xlu0 %v4211, 106
  %v4287 = vpop.permute.xlu0 %4286
  %4288 = vrot.lane.b32.xlu0 %v4223, 106
  %v4289 = vpop.permute.xlu0 %4288
  %4290 = vrot.lane.b32.xlu0 %v4224, 106
  %v4291 = vpop.permute.xlu0 %4290
  %4292 = vrot.lane.b32.xlu0 %v4222, 106
  %v4293 = vpop.permute.xlu0 %4292
  %4294 = vrot.lane.b32.xlu0 %v4234, 106
  %v4295 = vpop.permute.xlu0 %4294
  %4296 = vrot.lane.b32.xlu0 %v4235, 106
  %v4297 = vpop.permute.xlu0 %4296
  %4298 = vrot.lane.b32.xlu0 %v4233, 106
  %v4299 = vpop.permute.xlu0 %4298
  %v4300 = vsel %vm721, %v4259, %v4261
  %v4301 = vsel %vm721, %v4261, %v4263
  %v4302 = vsel %vm721, %v4265, %v4267
  %v4303 = vsel %vm721, %v4267, %v4269
  %v4304 = vsel %vm721, %v4271, %v4273
  %v4305 = vsel %vm721, %v4273, %v4275
  %v4306 = vsel %vm721, %v4277, %v4279
  %v4307 = vsel %vm721, %v4279, %v4281
  %v4308 = vsel %vm721, %v4283, %v4285
  %v4309 = vsel %vm721, %v4285, %v4287
  %v4310 = vsel %vm721, %v4289, %v4291
  %v4311 = vsel %vm721, %v4291, %v4293
  %v4312 = vsel %vm721, %v4295, %v4297
  %v4313 = vsel %vm721, %v4297, %v4299
  %4335 = vrot.lane.b32.xlu0 %v4095, 84
  %v4336 = vpop.permute.xlu0 %4335
  %4337 = vrot.lane.b32.xlu0 %v4097, 84
  %v4338 = vpop.permute.xlu0 %4337
  %4339 = vrot.lane.b32.xlu0 %v4166, 84
  %v4340 = vpop.permute.xlu0 %4339
  %4341 = vrot.lane.b32.xlu0 %v4168, 84
  %v4342 = vpop.permute.xlu0 %4341
  %4343 = vrot.lane.b32.xlu0 %v4179, 84
  %v4344 = vpop.permute.xlu0 %4343
  %4345 = vrot.lane.b32.xlu0 %v4180, 84
  %v4346 = vpop.permute.xlu0 %4345
  %4347 = vrot.lane.b32.xlu0 %v4242, 84
  %v4348 = vpop.permute.xlu0 %4347
  %4349 = vrot.lane.b32.xlu0 %v4241, 84
  %v4350 = vpop.permute.xlu0 %4349
  %4351 = vrot.lane.b32.xlu0 %v4190, 84
  %v4352 = vpop.permute.xlu0 %4351
  %4353 = vrot.lane.b32.xlu0 %v4191, 84
  %v4354 = vpop.permute.xlu0 %4353
  %4355 = vrot.lane.b32.xlu0 %v4245, 84
  %v4356 = vpop.permute.xlu0 %4355
  %4357 = vrot.lane.b32.xlu0 %v4244, 84
  %v4358 = vpop.permute.xlu0 %4357
  %4359 = vrot.lane.b32.xlu0 %v4201, 84
  %v4360 = vpop.permute.xlu0 %4359
  %4361 = vrot.lane.b32.xlu0 %v4202, 84
  %v4362 = vpop.permute.xlu0 %4361
  %4363 = vrot.lane.b32.xlu0 %v4248, 84
  %v4364 = vpop.permute.xlu0 %4363
  %4365 = vrot.lane.b32.xlu0 %v4247, 84
  %v4366 = vpop.permute.xlu0 %4365
  %4367 = vrot.lane.b32.xlu0 %v4212, 84
  %v4368 = vpop.permute.xlu0 %4367
  %4369 = vrot.lane.b32.xlu0 %v4213, 84
  %v4370 = vpop.permute.xlu0 %4369
  %4371 = vrot.lane.b32.xlu0 %v4251, 84
  %v4372 = vpop.permute.xlu0 %4371
  %4373 = vrot.lane.b32.xlu0 %v4250, 84
  %v4374 = vpop.permute.xlu0 %4373
  %4375 = vrot.lane.b32.xlu0 %v4223, 84
  %v4376 = vpop.permute.xlu0 %4375
  %4377 = vrot.lane.b32.xlu0 %v4224, 84
  %v4378 = vpop.permute.xlu0 %4377
  %4379 = vrot.lane.b32.xlu0 %v4254, 84
  %v4380 = vpop.permute.xlu0 %4379
  %4381 = vrot.lane.b32.xlu0 %v4253, 84
  %v4382 = vpop.permute.xlu0 %4381
  %4383 = vrot.lane.b32.xlu0 %v4234, 84
  %v4384 = vpop.permute.xlu0 %4383
  %4385 = vrot.lane.b32.xlu0 %v4235, 84
  %v4386 = vpop.permute.xlu0 %4385
  %4387 = vrot.lane.b32.xlu0 %v4257, 84
  %v4388 = vpop.permute.xlu0 %4387
  %4389 = vrot.lane.b32.xlu0 %v4256, 84
  %v4390 = vpop.permute.xlu0 %4389
  %v4391 = vsel %vm1766, %v4336, %v4338
  %v4392 = vsel %vm1766, %v4338, %v4340
  %v4393 = vsel %vm1766, %v4340, %v4342
  %v4394 = vsel %vm1766, %v4344, %v4346
  %v4395 = vsel %vm1766, %v4346, %v4348
  %v4396 = vsel %vm1766, %v4348, %v4350
  %v4397 = vsel %vm1766, %v4352, %v4354
  %v4398 = vsel %vm1766, %v4354, %v4356
  %v4399 = vsel %vm1766, %v4356, %v4358
  %v4400 = vsel %vm1766, %v4360, %v4362
  %v4401 = vsel %vm1766, %v4362, %v4364
  %v4402 = vsel %vm1766, %v4364, %v4366
  %v4403 = vsel %vm1766, %v4368, %v4370
  %v4404 = vsel %vm1766, %v4370, %v4372
  %v4405 = vsel %vm1766, %v4372, %v4374
  %v4406 = vsel %vm1766, %v4376, %v4378
  %v4407 = vsel %vm1766, %v4378, %v4380
  %v4408 = vsel %vm1766, %v4380, %v4382
  %v4409 = vsel %vm1766, %v4384, %v4386
  %v4410 = vsel %vm1766, %v4386, %v4388
  %v4411 = vsel %vm1766, %v4388, %v4390
  %4433 = vrot.lane.b32.xlu0 %v4095, 62
  %v4434 = vpop.permute.xlu0 %4433
  %4435 = vrot.lane.b32.xlu0 %v4097, 62
  %v4436 = vpop.permute.xlu0 %4435
  %4437 = vrot.lane.b32.xlu0 %v4166, 62
  %v4438 = vpop.permute.xlu0 %4437
  %4439 = vrot.lane.b32.xlu0 %v4168, 62
  %v4440 = vpop.permute.xlu0 %4439
  %4441 = vrot.lane.b32.xlu0 %v4179, 62
  %v4442 = vpop.permute.xlu0 %4441
  %4443 = vrot.lane.b32.xlu0 %v4180, 62
  %v4444 = vpop.permute.xlu0 %4443
  %4445 = vrot.lane.b32.xlu0 %v4242, 62
  %v4446 = vpop.permute.xlu0 %4445
  %4447 = vrot.lane.b32.xlu0 %v4241, 62
  %v4448 = vpop.permute.xlu0 %4447
  %4449 = vrot.lane.b32.xlu0 %v4190, 62
  %v4450 = vpop.permute.xlu0 %4449
  %4451 = vrot.lane.b32.xlu0 %v4191, 62
  %v4452 = vpop.permute.xlu0 %4451
  %4453 = vrot.lane.b32.xlu0 %v4245, 62
  %v4454 = vpop.permute.xlu0 %4453
  %4455 = vrot.lane.b32.xlu0 %v4244, 62
  %v4456 = vpop.permute.xlu0 %4455
  %4457 = vrot.lane.b32.xlu0 %v4201, 62
  %v4458 = vpop.permute.xlu0 %4457
  %4459 = vrot.lane.b32.xlu0 %v4202, 62
  %v4460 = vpop.permute.xlu0 %4459
  %4461 = vrot.lane.b32.xlu0 %v4248, 62
  %v4462 = vpop.permute.xlu0 %4461
  %4463 = vrot.lane.b32.xlu0 %v4247, 62
  %v4464 = vpop.permute.xlu0 %4463
  %4465 = vrot.lane.b32.xlu0 %v4212, 62
  %v4466 = vpop.permute.xlu0 %4465
  %4467 = vrot.lane.b32.xlu0 %v4213, 62
  %v4468 = vpop.permute.xlu0 %4467
  %4469 = vrot.lane.b32.xlu0 %v4251, 62
  %v4470 = vpop.permute.xlu0 %4469
  %4471 = vrot.lane.b32.xlu0 %v4250, 62
  %v4472 = vpop.permute.xlu0 %4471
  %4473 = vrot.lane.b32.xlu0 %v4223, 62
  %v4474 = vpop.permute.xlu0 %4473
  %4475 = vrot.lane.b32.xlu0 %v4224, 62
  %v4476 = vpop.permute.xlu0 %4475
  %4477 = vrot.lane.b32.xlu0 %v4254, 62
  %v4478 = vpop.permute.xlu0 %4477
  %4479 = vrot.lane.b32.xlu0 %v4253, 62
  %v4480 = vpop.permute.xlu0 %4479
  %4481 = vrot.lane.b32.xlu0 %v4234, 62
  %v4482 = vpop.permute.xlu0 %4481
  %4483 = vrot.lane.b32.xlu0 %v4235, 62
  %v4484 = vpop.permute.xlu0 %4483
  %4485 = vrot.lane.b32.xlu0 %v4257, 62
  %v4486 = vpop.permute.xlu0 %4485
  %4487 = vrot.lane.b32.xlu0 %v4256, 62
  %v4488 = vpop.permute.xlu0 %4487
  %v4489 = vsel %vm1865, %v4434, %v4436
  %v4490 = vsel %vm1865, %v4436, %v4438
  %v4491 = vsel %vm1865, %v4438, %v4440
  %v4492 = vsel %vm1865, %v4442, %v4444
  %v4493 = vsel %vm1865, %v4444, %v4446
  %v4494 = vsel %vm1865, %v4446, %v4448
  %v4495 = vsel %vm1865, %v4450, %v4452
  %v4496 = vsel %vm1865, %v4452, %v4454
  %v4497 = vsel %vm1865, %v4454, %v4456
  %v4498 = vsel %vm1865, %v4458, %v4460
  %v4499 = vsel %vm1865, %v4460, %v4462
  %v4500 = vsel %vm1865, %v4462, %v4464
  %v4501 = vsel %vm1865, %v4466, %v4468
  %v4502 = vsel %vm1865, %v4468, %v4470
  %v4503 = vsel %vm1865, %v4470, %v4472
  %v4504 = vsel %vm1865, %v4474, %v4476
  %v4505 = vsel %vm1865, %v4476, %v4478
  %v4506 = vsel %vm1865, %v4478, %v4480
  %v4507 = vsel %vm1865, %v4482, %v4484
  %v4508 = vsel %vm1865, %v4484, %v4486
  %v4509 = vsel %vm1865, %v4486, %v4488
  %4531 = vrot.lane.b32.xlu0 %v4095, 40
  %v4532 = vpop.permute.xlu0 %4531
  %4533 = vrot.lane.b32.xlu0 %v4097, 40
  %v4534 = vpop.permute.xlu0 %4533
  %4535 = vrot.lane.b32.xlu0 %v4166, 40
  %v4536 = vpop.permute.xlu0 %4535
  %4537 = vrot.lane.b32.xlu0 %v4168, 40
  %v4538 = vpop.permute.xlu0 %4537
  %4539 = vrot.lane.b32.xlu0 %v4179, 40
  %v4540 = vpop.permute.xlu0 %4539
  %4541 = vrot.lane.b32.xlu0 %v4180, 40
  %v4542 = vpop.permute.xlu0 %4541
  %4543 = vrot.lane.b32.xlu0 %v4242, 40
  %v4544 = vpop.permute.xlu0 %4543
  %4545 = vrot.lane.b32.xlu0 %v4241, 40
  %v4546 = vpop.permute.xlu0 %4545
  %4547 = vrot.lane.b32.xlu0 %v4190, 40
  %v4548 = vpop.permute.xlu0 %4547
  %4549 = vrot.lane.b32.xlu0 %v4191, 40
  %v4550 = vpop.permute.xlu0 %4549
  %4551 = vrot.lane.b32.xlu0 %v4245, 40
  %v4552 = vpop.permute.xlu0 %4551
  %4553 = vrot.lane.b32.xlu0 %v4244, 40
  %v4554 = vpop.permute.xlu0 %4553
  %4555 = vrot.lane.b32.xlu0 %v4201, 40
  %v4556 = vpop.permute.xlu0 %4555
  %4557 = vrot.lane.b32.xlu0 %v4202, 40
  %v4558 = vpop.permute.xlu0 %4557
  %4559 = vrot.lane.b32.xlu0 %v4248, 40
  %v4560 = vpop.permute.xlu0 %4559
  %4561 = vrot.lane.b32.xlu0 %v4247, 40
  %v4562 = vpop.permute.xlu0 %4561
  %4563 = vrot.lane.b32.xlu0 %v4212, 40
  %v4564 = vpop.permute.xlu0 %4563
  %4565 = vrot.lane.b32.xlu0 %v4213, 40
  %v4566 = vpop.permute.xlu0 %4565
  %4567 = vrot.lane.b32.xlu0 %v4251, 40
  %v4568 = vpop.permute.xlu0 %4567
  %4569 = vrot.lane.b32.xlu0 %v4250, 40
  %v4570 = vpop.permute.xlu0 %4569
  %4571 = vrot.lane.b32.xlu0 %v4223, 40
  %v4572 = vpop.permute.xlu0 %4571
  %4573 = vrot.lane.b32.xlu0 %v4224, 40
  %v4574 = vpop.permute.xlu0 %4573
  %4575 = vrot.lane.b32.xlu0 %v4254, 40
  %v4576 = vpop.permute.xlu0 %4575
  %4577 = vrot.lane.b32.xlu0 %v4253, 40
  %v4578 = vpop.permute.xlu0 %4577
  %4579 = vrot.lane.b32.xlu0 %v4234, 40
  %v4580 = vpop.permute.xlu0 %4579
  %4581 = vrot.lane.b32.xlu0 %v4235, 40
  %v4582 = vpop.permute.xlu0 %4581
  %4583 = vrot.lane.b32.xlu0 %v4257, 40
  %v4584 = vpop.permute.xlu0 %4583
  %4585 = vrot.lane.b32.xlu0 %v4256, 40
  %v4586 = vpop.permute.xlu0 %4585
  %v4587 = vsel %vm1964, %v4532, %v4534
  %v4588 = vsel %vm1964, %v4534, %v4536
  %v4589 = vsel %vm1964, %v4536, %v4538
  %v4590 = vsel %vm1964, %v4540, %v4542
  %v4591 = vsel %vm1964, %v4542, %v4544
  %v4592 = vsel %vm1964, %v4544, %v4546
  %v4593 = vsel %vm1964, %v4548, %v4550
  %v4594 = vsel %vm1964, %v4550, %v4552
  %v4595 = vsel %vm1964, %v4552, %v4554
  %v4596 = vsel %vm1964, %v4556, %v4558
  %v4597 = vsel %vm1964, %v4558, %v4560
  %v4598 = vsel %vm1964, %v4560, %v4562
  %v4599 = vsel %vm1964, %v4564, %v4566
  %v4600 = vsel %vm1964, %v4566, %v4568
  %v4601 = vsel %vm1964, %v4568, %v4570
  %v4602 = vsel %vm1964, %v4572, %v4574
  %v4603 = vsel %vm1964, %v4574, %v4576
  %v4604 = vsel %vm1964, %v4576, %v4578
  %v4605 = vsel %vm1964, %v4580, %v4582
  %v4606 = vsel %vm1964, %v4582, %v4584
  %v4607 = vsel %vm1964, %v4584, %v4586
  %4629 = vrot.lane.b32.xlu0 %v4095, 18
  %v4630 = vpop.permute.xlu0 %4629
  %4631 = vrot.lane.b32.xlu0 %v4097, 18
  %v4632 = vpop.permute.xlu0 %4631
  %4633 = vrot.lane.b32.xlu0 %v4166, 18
  %v4634 = vpop.permute.xlu0 %4633
  %4635 = vrot.lane.b32.xlu0 %v4168, 18
  %v4636 = vpop.permute.xlu0 %4635
  %4637 = vrot.lane.b32.xlu0 %v4179, 18
  %v4638 = vpop.permute.xlu0 %4637
  %4639 = vrot.lane.b32.xlu0 %v4180, 18
  %v4640 = vpop.permute.xlu0 %4639
  %4641 = vrot.lane.b32.xlu0 %v4242, 18
  %v4642 = vpop.permute.xlu0 %4641
  %4643 = vrot.lane.b32.xlu0 %v4241, 18
  %v4644 = vpop.permute.xlu0 %4643
  %4645 = vrot.lane.b32.xlu0 %v4190, 18
  %v4646 = vpop.permute.xlu0 %4645
  %4647 = vrot.lane.b32.xlu0 %v4191, 18
  %v4648 = vpop.permute.xlu0 %4647
  %4649 = vrot.lane.b32.xlu0 %v4245, 18
  %v4650 = vpop.permute.xlu0 %4649
  %4651 = vrot.lane.b32.xlu0 %v4244, 18
  %v4652 = vpop.permute.xlu0 %4651
  %4653 = vrot.lane.b32.xlu0 %v4201, 18
  %v4654 = vpop.permute.xlu0 %4653
  %4655 = vrot.lane.b32.xlu0 %v4202, 18
  %v4656 = vpop.permute.xlu0 %4655
  %4657 = vrot.lane.b32.xlu0 %v4248, 18
  %v4658 = vpop.permute.xlu0 %4657
  %4659 = vrot.lane.b32.xlu0 %v4247, 18
  %v4660 = vpop.permute.xlu0 %4659
  %4661 = vrot.lane.b32.xlu0 %v4212, 18
  %v4662 = vpop.permute.xlu0 %4661
  %4663 = vrot.lane.b32.xlu0 %v4213, 18
  %v4664 = vpop.permute.xlu0 %4663
  %4665 = vrot.lane.b32.xlu0 %v4251, 18
  %v4666 = vpop.permute.xlu0 %4665
  %4667 = vrot.lane.b32.xlu0 %v4250, 18
  %v4668 = vpop.permute.xlu0 %4667
  %4669 = vrot.lane.b32.xlu0 %v4223, 18
  %v4670 = vpop.permute.xlu0 %4669
  %4671 = vrot.lane.b32.xlu0 %v4224, 18
  %v4672 = vpop.permute.xlu0 %4671
  %4673 = vrot.lane.b32.xlu0 %v4254, 18
  %v4674 = vpop.permute.xlu0 %4673
  %4675 = vrot.lane.b32.xlu0 %v4253, 18
  %v4676 = vpop.permute.xlu0 %4675
  %4677 = vrot.lane.b32.xlu0 %v4234, 18
  %v4678 = vpop.permute.xlu0 %4677
  %4679 = vrot.lane.b32.xlu0 %v4235, 18
  %v4680 = vpop.permute.xlu0 %4679
  %4681 = vrot.lane.b32.xlu0 %v4257, 18
  %v4682 = vpop.permute.xlu0 %4681
  %4683 = vrot.lane.b32.xlu0 %v4256, 18
  %v4684 = vpop.permute.xlu0 %4683
  %v4685 = vsel %vm2063, %v4630, %v4632
  %v4686 = vsel %vm2063, %v4632, %v4634
  %v4687 = vsel %vm2063, %v4634, %v4636
  %v4688 = vsel %vm2063, %v4638, %v4640
  %v4689 = vsel %vm2063, %v4640, %v4642
  %v4690 = vsel %vm2063, %v4642, %v4644
  %v4691 = vsel %vm2063, %v4646, %v4648
  %v4692 = vsel %vm2063, %v4648, %v4650
  %v4693 = vsel %vm2063, %v4650, %v4652
  %v4694 = vsel %vm2063, %v4654, %v4656
  %v4695 = vsel %vm2063, %v4656, %v4658
  %v4696 = vsel %vm2063, %v4658, %v4660
  %v4697 = vsel %vm2063, %v4662, %v4664
  %v4698 = vsel %vm2063, %v4664, %v4666
  %v4699 = vsel %vm2063, %v4666, %v4668
  %v4700 = vsel %vm2063, %v4670, %v4672
  %v4701 = vsel %vm2063, %v4672, %v4674
  %v4702 = vsel %vm2063, %v4674, %v4676
  %v4703 = vsel %vm2063, %v4678, %v4680
  %v4704 = vsel %vm2063, %v4680, %v4682
  %v4705 = vsel %vm2063, %v4682, %v4684
  %4727 = vrot.lane.b32.xlu0 %v4180, 124
  %v4728 = vpop.permute.xlu0 %4727
  %4729 = vrot.lane.b32.xlu0 %v4242, 124
  %v4730 = vpop.permute.xlu0 %4729
  %4731 = vrot.lane.b32.xlu0 %v4241, 124
  %v4732 = vpop.permute.xlu0 %4731
  %4733 = vrot.lane.b32.xlu0 %v4191, 124
  %v4734 = vpop.permute.xlu0 %4733
  %4735 = vrot.lane.b32.xlu0 %v4245, 124
  %v4736 = vpop.permute.xlu0 %4735
  %4737 = vrot.lane.b32.xlu0 %v4244, 124
  %v4738 = vpop.permute.xlu0 %4737
  %4739 = vrot.lane.b32.xlu0 %v4202, 124
  %v4740 = vpop.permute.xlu0 %4739
  %4741 = vrot.lane.b32.xlu0 %v4248, 124
  %v4742 = vpop.permute.xlu0 %4741
  %4743 = vrot.lane.b32.xlu0 %v4247, 124
  %v4744 = vpop.permute.xlu0 %4743
  %4745 = vrot.lane.b32.xlu0 %v4213, 124
  %v4746 = vpop.permute.xlu0 %4745
  %4747 = vrot.lane.b32.xlu0 %v4251, 124
  %v4748 = vpop.permute.xlu0 %4747
  %4749 = vrot.lane.b32.xlu0 %v4250, 124
  %v4750 = vpop.permute.xlu0 %4749
  %4751 = vrot.lane.b32.xlu0 %v4224, 124
  %v4752 = vpop.permute.xlu0 %4751
  %4753 = vrot.lane.b32.xlu0 %v4254, 124
  %v4754 = vpop.permute.xlu0 %4753
  %4755 = vrot.lane.b32.xlu0 %v4253, 124
  %v4756 = vpop.permute.xlu0 %4755
  %4757 = vrot.lane.b32.xlu0 %v4235, 124
  %v4758 = vpop.permute.xlu0 %4757
  %4759 = vrot.lane.b32.xlu0 %v4257, 124
  %v4760 = vpop.permute.xlu0 %4759
  %4761 = vrot.lane.b32.xlu0 %v4256, 124
  %v4762 = vpop.permute.xlu0 %4761
  %v4763 = vsel %vm333, %v4728, %v4730
  %v4764 = vsel %vm333, %v4730, %v4732
  %v4765 = vsel %vm333, %v4734, %v4736
  %v4766 = vsel %vm333, %v4736, %v4738
  %v4767 = vsel %vm333, %v4740, %v4742
  %v4768 = vsel %vm333, %v4742, %v4744
  %v4769 = vsel %vm333, %v4746, %v4748
  %v4770 = vsel %vm333, %v4748, %v4750
  %v4771 = vsel %vm333, %v4752, %v4754
  %v4772 = vsel %vm333, %v4754, %v4756
  %v4773 = vsel %vm333, %v4758, %v4760
  %v4774 = vsel %vm333, %v4760, %v4762
  %v4795 = vpack.c.bf16 %v4179, %v4095
  %v4796 = vpack.c.bf16 %v4180, %v4097
  %v4797 = vpack.c.bf16 %v4178, %v4166
  %v4798 = vpack.c.bf16 %v4201, %v4190
  %v4799 = vpack.c.bf16 %v4202, %v4191
  %v4800 = vpack.c.bf16 %v4200, %v4189
  %v4801 = vpack.c.bf16 %v4223, %v4212
  %v4802 = vpack.c.bf16 %v4224, %v4213
  %v4803 = vpack.c.bf16 %v4222, %v4211
  %v4804 = vpack.c.bf16 %v4300, %v4234
  %v4805 = vpack.c.bf16 %v4301, %v4235
  %v4806 = vpack.c.bf16 %v4263, %v4233
  %v4807 = vpack.c.bf16 %v4304, %v4302
  %v4808 = vpack.c.bf16 %v4305, %v4303
  %v4809 = vpack.c.bf16 %v4275, %v4269
  %v4810 = vpack.c.bf16 %v4308, %v4306
  %v4811 = vpack.c.bf16 %v4309, %v4307
  %v4812 = vpack.c.bf16 %v4287, %v4281
  %v4813 = vpack.c.bf16 %v4312, %v4310
  %v4814 = vpack.c.bf16 %v4313, %v4311
  %v4815 = vpack.c.bf16 %v4299, %v4293
  %v4816 = vpack.c.bf16 %v4394, %v4391
  %v4817 = vpack.c.bf16 %v4395, %v4392
  %v4818 = vpack.c.bf16 %v4396, %v4393
  %v4819 = vpack.c.bf16 %v4400, %v4397
  %v4820 = vpack.c.bf16 %v4401, %v4398
  %v4821 = vpack.c.bf16 %v4402, %v4399
  %v4822 = vpack.c.bf16 %v4406, %v4403
  %v4823 = vpack.c.bf16 %v4407, %v4404
  %v4824 = vpack.c.bf16 %v4408, %v4405
  %v4825 = vpack.c.bf16 %v4489, %v4409
  %v4826 = vpack.c.bf16 %v4490, %v4410
  %v4827 = vpack.c.bf16 %v4491, %v4411
  %v4828 = vpack.c.bf16 %v4495, %v4492
  %v4829 = vpack.c.bf16 %v4496, %v4493
  %v4830 = vpack.c.bf16 %v4497, %v4494
  %v4831 = vpack.c.bf16 %v4501, %v4498
  %v4832 = vpack.c.bf16 %v4502, %v4499
  %v4833 = vpack.c.bf16 %v4503, %v4500
  %v4834 = vpack.c.bf16 %v4507, %v4504
  %v4835 = vpack.c.bf16 %v4508, %v4505
  %v4836 = vpack.c.bf16 %v4509, %v4506
  %v4837 = vpack.c.bf16 %v4590, %v4587
  %v4838 = vpack.c.bf16 %v4591, %v4588
  %v4839 = vpack.c.bf16 %v4592, %v4589
  %v4840 = vpack.c.bf16 %v4596, %v4593
  %v4841 = vpack.c.bf16 %v4597, %v4594
  %v4842 = vpack.c.bf16 %v4598, %v4595
  %v4843 = vpack.c.bf16 %v4602, %v4599
  %v4844 = vpack.c.bf16 %v4603, %v4600
  %v4845 = vpack.c.bf16 %v4604, %v4601
  %v4846 = vpack.c.bf16 %v4685, %v4605
  %v4847 = vpack.c.bf16 %v4686, %v4606
  %v4848 = vpack.c.bf16 %v4687, %v4607
  %v4849 = vpack.c.bf16 %v4691, %v4688
  %v4850 = vpack.c.bf16 %v4692, %v4689
  %v4851 = vpack.c.bf16 %v4693, %v4690
  %v4852 = vpack.c.bf16 %v4697, %v4694
  %v4853 = vpack.c.bf16 %v4698, %v4695
  %v4854 = vpack.c.bf16 %v4699, %v4696
  %v4855 = vpack.c.bf16 %v4703, %v4700
  %v4856 = vpack.c.bf16 %v4704, %v4701
  %v4857 = vpack.c.bf16 %v4705, %v4702
  %v4858 = vpack.c.bf16 %v4763, %v4213
  %v4859 = vpack.c.bf16 %v4764, %v4251
  %v4860 = vpack.c.bf16 %v4732, %v4250
  %v4861 = vpack.c.bf16 %v4767, %v4765
  %v4862 = vpack.c.bf16 %v4768, %v4766
  %v4863 = vpack.c.bf16 %v4744, %v4738
  %v4864 = vpack.c.bf16 %v4771, %v4769
  %v4865 = vpack.c.bf16 %v4772, %v4770
  %v4866 = vpack.c.bf16 %v4756, %v4750
  %v4867 = vpack.c.bf16 %v4773, %v4773
  %v4868 = vpack.c.bf16 %v4774, %v4774
  %v4869 = vpack.c.bf16 %v4762, %v4762
  %v4870 = vld [vmem:[%s17] sm:$0xff]
  %v4872 = vcombine.high %v4870, %v4870
  %v4874 = vunpack.c.l.s4 1983009808
  %v4875 = vunpack.c.0.s8 %v4874
  %v4876 = vlaneseq
  %v4877 = vshrl.u32 %v4876, 7
  %v4878 = vsub.s32 %v4875, %v4877
  %v4879 = vrot.slane %v4870, %v4878
  %v4881 = vunpack.c.l.s4 1983009808
  %v4882 = vunpack.c.0.s8 %v4881
  %v4883 = vlaneseq
  %v4884 = vshrl.u32 %v4883, 7
  %v4885 = vsub.s32 %v4882, %v4884
  %v4886 = vrot.slane %v4872, %v4885
  %v4887 = vcombine.high %v4879, %v4879
  %v4888 = vcombine.high %v4886, %v4886
  %v4893 = vsel %vm619, %v4888, 0
  %v4896 = vsel %vm623, %v4867, 0
  %v4899 = vsel %vm623, %v4868, 0
  %v4902 = vsel %vm623, %v4869, 0
  %4904 = vmatprep.subr.bf16.mxu0 %v4817
  %4905 = vmatpush1.bf16.msra.mxu0 %v4816
  %4906 = vmatprep.subr.bf16.mxu0 %v4814
  %4907 = vmatpush1.bf16.msra.mxu0 %v4813
  %4908 = vmatprep.subr.bf16.mxu0 %v4811
  %4909 = vmatpush1.bf16.msra.mxu0 %v4810
  %4910 = vmatprep.subr.bf16.mxu0 %v4808
  %4911 = vmatpush1.bf16.msra.mxu0 %v4807
  %4912 = vmatprep.subr.bf16.mxu0 %v4805
  %4913 = vmatpush1.bf16.msra.mxu0 %v4804
  %4914 = vmatprep.subr.bf16.mxu0 %v4802
  %4915 = vmatpush1.bf16.msra.mxu0 %v4801
  %4916 = vmatprep.subr.bf16.mxu0 %v4799
  %4917 = vmatpush1.bf16.msra.mxu0 %v4798
  %4918 = vmatprep.subr.bf16.mxu0 %v4796
  %4919 = vmatpush1.bf16.msra.mxu0 %v4795
  %4920 = vmatprep.subr.bf16.mxu0 %v4841
  %4921 = vmatpush2.bf16.msra.mxu0 %v4840
  %4922 = vmatprep.subr.bf16.mxu0 %v4838
  %4923 = vmatpush2.bf16.msra.mxu0 %v4837
  %4924 = vmatprep.subr.bf16.mxu0 %v4835
  %4925 = vmatpush2.bf16.msra.mxu0 %v4834
  %4926 = vmatprep.subr.bf16.mxu0 %v4832
  %4927 = vmatpush2.bf16.msra.mxu0 %v4831
  %4928 = vmatprep.subr.bf16.mxu0 %v4829
  %4929 = vmatpush2.bf16.msra.mxu0 %v4828
  %4930 = vmatprep.subr.bf16.mxu0 %v4826
  %4931 = vmatpush2.bf16.msra.mxu0 %v4825
  %4932 = vmatprep.subr.bf16.mxu0 %v4823
  %4933 = vmatpush2.bf16.msra.mxu0 %v4822
  %4934 = vmatprep.subr.bf16.mxu0 %v4820
  %4935 = vmatpush2.bf16.msra.mxu0 %v4819
  %4936 = vmatprep.mubr.bf16.mxu0 %v4887
  %4937 = vmatmul.mubr.bf16.gmra.mxu0 %v4879
  %v4938 = vpop.f32.mrf.mxu0
  %v4939 = vadd.f32 0.0, %v4938
  %v4940 = vpop.f32.mrf.mxu0
  %v4941 = vadd.f32 0.0, %v4940
  %v4942 = vpop.f32.mrf.mxu0
  %v4943 = vpop.f32.mrf.mxu0
  %4944 = vdwg.mxu0
  %4945 = vmatprep.subr.bf16.mxu0 %v4865
  %4946 = vmatpush1.bf16.msra.mxu0 %v4864
  %4947 = vmatprep.subr.bf16.mxu0 %v4862
  %4948 = vmatpush1.bf16.msra.mxu0 %v4861
  %4949 = vmatprep.subr.bf16.mxu0 %v4859
  %4950 = vmatpush1.bf16.msra.mxu0 %v4858
  %4951 = vmatprep.subr.bf16.mxu0 %v4856
  %4952 = vmatpush1.bf16.msra.mxu0 %v4855
  %4953 = vmatprep.subr.bf16.mxu0 %v4853
  %4954 = vmatpush1.bf16.msra.mxu0 %v4852
  %4955 = vmatprep.subr.bf16.mxu0 %v4850
  %4956 = vmatpush1.bf16.msra.mxu0 %v4849
  %4957 = vmatprep.subr.bf16.mxu0 %v4847
  %4958 = vmatpush1.bf16.msra.mxu0 %v4846
  %4959 = vmatprep.subr.bf16.mxu0 %v4844
  %4960 = vmatpush1.bf16.msra.mxu0 %v4843
  %4961 = vmatprep.subr.bf16.mxu0 0
  %4962 = vmatpush2.bf16.msra.mxu0 0
  %4963 = vmatprep.subr.bf16.mxu0 0
  %4964 = vmatpush2.bf16.msra.mxu0 0
  %4965 = vmatprep.subr.bf16.mxu0 0
  %4966 = vmatpush2.bf16.msra.mxu0 0
  %4967 = vmatprep.subr.bf16.mxu0 0
  %4968 = vmatpush2.bf16.msra.mxu0 0
  %4969 = vmatprep.subr.bf16.mxu0 0
  %4970 = vmatpush2.bf16.msra.mxu0 0
  %4971 = vmatprep.subr.bf16.mxu0 0
  %4972 = vmatpush2.bf16.msra.mxu0 0
  %4973 = vmatprep.subr.bf16.mxu0 0
  %4974 = vmatpush2.bf16.msra.mxu0 0
  %4975 = vmatprep.subr.bf16.mxu0 %v4899
  %4976 = vmatpush2.bf16.msra.mxu0 %v4896
  %4977 = vmatprep.mubr.bf16.mxu0 %v4893
  %4978 = vmatmul.mubr.bf16.gmra.mxu0 %v4886
  %v4979 = vpop.f32.mrf.mxu0
  %v4980 = vadd.f32 %v4939, %v4979
  %v4981 = vpop.f32.mrf.mxu0
  %v4982 = vadd.f32 %v4941, %v4981
  %v4983 = vpop.f32.mrf.mxu0
  %v4984 = vpop.f32.mrf.mxu0
  %4985 = vdwg.mxu0
  %4986 = vmatprep.subr.bf16.mxu0 0
  %4987 = vmatpush1.bf16.msra.mxu0 %v4818
  %4988 = vmatprep.subr.bf16.mxu0 0
  %4989 = vmatpush1.bf16.msra.mxu0 %v4815
  %4990 = vmatprep.subr.bf16.mxu0 0
  %4991 = vmatpush1.bf16.msra.mxu0 %v4812
  %4992 = vmatprep.subr.bf16.mxu0 0
  %4993 = vmatpush1.bf16.msra.mxu0 %v4809
  %4994 = vmatprep.subr.bf16.mxu0 0
  %4995 = vmatpush1.bf16.msra.mxu0 %v4806
  %4996 = vmatprep.subr.bf16.mxu0 0
  %4997 = vmatpush1.bf16.msra.mxu0 %v4803
  %4998 = vmatprep.subr.bf16.mxu0 0
  %4999 = vmatpush1.bf16.msra.mxu0 %v4800
  %5000 = vmatprep.subr.bf16.mxu0 0
  %5001 = vmatpush1.bf16.msra.mxu0 %v4797
  %5002 = vmatprep.subr.bf16.mxu0 0
  %5003 = vmatpush2.bf16.msra.mxu0 %v4842
  %5004 = vmatprep.subr.bf16.mxu0 0
  %5005 = vmatpush2.bf16.msra.mxu0 %v4839
  %5006 = vmatprep.subr.bf16.mxu0 0
  %5007 = vmatpush2.bf16.msra.mxu0 %v4836
  %5008 = vmatprep.subr.bf16.mxu0 0
  %5009 = vmatpush2.bf16.msra.mxu0 %v4833
  %5010 = vmatprep.subr.bf16.mxu0 0
  %5011 = vmatpush2.bf16.msra.mxu0 %v4830
  %5012 = vmatprep.subr.bf16.mxu0 0
  %5013 = vmatpush2.bf16.msra.mxu0 %v4827
  %5014 = vmatprep.subr.bf16.mxu0 0
  %5015 = vmatpush2.bf16.msra.mxu0 %v4824
  %5016 = vmatprep.subr.bf16.mxu0 0
  %5017 = vmatpush2.bf16.msra.mxu0 %v4821
  %5018 = vmatprep.mubr.bf16.mxu0 %v4887
  %5019 = vmatmul.mubr.bf16.gmra.mxu0 %v4879
  %v5020 = vpop.f32.mrf.mxu0
  %v5021 = vadd.f32 0.0, %v5020
  %v5022 = vpop.f32.mrf.mxu0
  %v5023 = vpop.f32.mrf.mxu0
  %v5024 = vpop.f32.mrf.mxu0
  %5025 = vdwg.mxu0
  %5026 = vmatprep.subr.bf16.mxu0 0
  %5027 = vmatpush1.bf16.msra.mxu0 %v4866
  %5028 = vmatprep.subr.bf16.mxu0 0
  %5029 = vmatpush1.bf16.msra.mxu0 %v4863
  %5030 = vmatprep.subr.bf16.mxu0 0
  %5031 = vmatpush1.bf16.msra.mxu0 %v4860
  %5032 = vmatprep.subr.bf16.mxu0 0
  %5033 = vmatpush1.bf16.msra.mxu0 %v4857
  %5034 = vmatprep.subr.bf16.mxu0 0
  %5035 = vmatpush1.bf16.msra.mxu0 %v4854
  %5036 = vmatprep.subr.bf16.mxu0 0
  %5037 = vmatpush1.bf16.msra.mxu0 %v4851
  %5038 = vmatprep.subr.bf16.mxu0 0
  %5039 = vmatpush1.bf16.msra.mxu0 %v4848
  %5040 = vmatprep.subr.bf16.mxu0 0
  %5041 = vmatpush1.bf16.msra.mxu0 %v4845
  %5042 = vmatprep.subr.bf16.mxu0 0
  %5043 = vmatpush2.bf16.msra.mxu0 0
  %5044 = vmatprep.subr.bf16.mxu0 0
  %5045 = vmatpush2.bf16.msra.mxu0 0
  %5046 = vmatprep.subr.bf16.mxu0 0
  %5047 = vmatpush2.bf16.msra.mxu0 0
  %5048 = vmatprep.subr.bf16.mxu0 0
  %5049 = vmatpush2.bf16.msra.mxu0 0
  %5050 = vmatprep.subr.bf16.mxu0 0
  %5051 = vmatpush2.bf16.msra.mxu0 0
  %5052 = vmatprep.subr.bf16.mxu0 0
  %5053 = vmatpush2.bf16.msra.mxu0 0
  %5054 = vmatprep.subr.bf16.mxu0 0
  %5055 = vmatpush2.bf16.msra.mxu0 0
  %5056 = vmatprep.subr.bf16.mxu0 0
  %5057 = vmatpush2.bf16.msra.mxu0 %v4902
  %5058 = vmatprep.mubr.bf16.mxu0 %v4893
  %5059 = vmatmul.mubr.bf16.gmra.mxu0 %v4886
  %v5060 = vpop.f32.mrf.mxu0
  %v5061 = vadd.f32 %v5021, %v5060
  %v5062 = vpop.f32.mrf.mxu0
  %v5063 = vpop.f32.mrf.mxu0
  %v5064 = vpop.f32.mrf.mxu0
  %5065 = vdwg.mxu0
  %v5067 = vsel %vm2526, %v5061, 0
  %5069 = vmatprep.subr.mxu0 %v2469
  %5070 = vmatpush1.msra.mxu0 %v2468
  %5071 = vmatprep.subr.mxu0 %v2467
  %5072 = vmatpush1.msra.mxu0 %v2466
  %5073 = vmatprep.subr.mxu0 %v2465
  %5074 = vmatpush1.msra.mxu0 %v2464
  %5075 = vmatprep.subr.mxu0 %v2463
  %5076 = vmatpush1.msra.mxu0 %v2462
  %5077 = vmatprep.subr.mxu0 %v2461
  %5078 = vmatpush1.msra.mxu0 %v2460
  %5079 = vmatprep.subr.mxu0 %v2459
  %5080 = vmatpush1.msra.mxu0 %v2458
  %5081 = vmatprep.subr.mxu0 %v2457
  %5082 = vmatpush1.msra.mxu0 %v2456
  %5083 = vmatprep.subr.mxu0 %v2455
  %5084 = vmatpush1.msra.mxu0 %v2454
  %5085 = vmatprep.subr.mxu0 %v2453
  %5086 = vmatpush1.msra.mxu0 %v2452
  %5087 = vmatprep.subr.mxu0 %v2451
  %5088 = vmatpush1.msra.mxu0 %v2450
  %5089 = vmatprep.subr.mxu0 %v2449
  %5090 = vmatpush1.msra.mxu0 %v2448
  %5091 = vmatprep.subr.mxu0 %v2447
  %5092 = vmatpush1.msra.mxu0 %v2446
  %5093 = vmatprep.subr.mxu0 %v2445
  %5094 = vmatpush1.msra.mxu0 %v2444
  %5095 = vmatprep.subr.mxu0 %v2443
  %5096 = vmatpush1.msra.mxu0 %v2442
  %5097 = vmatprep.subr.mxu0 %v2441
  %5098 = vmatpush1.msra.mxu0 %v2440
  %5099 = vmatprep.subr.mxu0 %v2439
  %5100 = vmatpush1.msra.mxu0 %v2438
  %5101 = vmatprep.subr.mxu0 %v2501
  %5102 = vmatpush2.msra.mxu0 %v2500
  %5103 = vmatprep.subr.mxu0 %v2499
  %5104 = vmatpush2.msra.mxu0 %v2498
  %5105 = vmatprep.subr.mxu0 %v2497
  %5106 = vmatpush2.msra.mxu0 %v2496
  %5107 = vmatprep.subr.mxu0 %v2495
  %5108 = vmatpush2.msra.mxu0 %v2494
  %5109 = vmatprep.subr.mxu0 %v2493
  %5110 = vmatpush2.msra.mxu0 %v2492
  %5111 = vmatprep.subr.mxu0 %v2491
  %5112 = vmatpush2.msra.mxu0 %v2490
  %5113 = vmatprep.subr.mxu0 %v2489
  %5114 = vmatpush2.msra.mxu0 %v2488
  %5115 = vmatprep.subr.mxu0 %v2487
  %5116 = vmatpush2.msra.mxu0 %v2486
  %5117 = vmatprep.subr.mxu0 %v2485
  %5118 = vmatpush2.msra.mxu0 %v2484
  %5119 = vmatprep.subr.mxu0 %v2483
  %5120 = vmatpush2.msra.mxu0 %v2482
  %5121 = vmatprep.subr.mxu0 %v2481
  %5122 = vmatpush2.msra.mxu0 %v2480
  %5123 = vmatprep.subr.mxu0 %v2479
  %5124 = vmatpush2.msra.mxu0 %v2478
  %5125 = vmatprep.subr.mxu0 %v2477
  %5126 = vmatpush2.msra.mxu0 %v2476
  %5127 = vmatprep.subr.mxu0 %v2475
  %5128 = vmatpush2.msra.mxu0 %v2474
  %5129 = vmatprep.subr.mxu0 %v2473
  %5130 = vmatpush2.msra.mxu0 %v2472
  %5131 = vmatprep.subr.mxu0 %v2471
  %5132 = vmatpush2.msra.mxu0 %v2470
  %5133 = vmatprep.mubr.f32.mxu0 %v4982
  %5134 = vmatmul.mubr.f32.gmra.mxu0 %v4980
  %v5135 = vpop.f32.mrf.mxu0
  %v5136 = vadd.f32 0.0, %v5135
  %v5137 = vpop.f32.mrf.mxu0
  %v5138 = vadd.f32 0.0, %v5137
  %5139 = vdwg.mxu0
  %5140 = vmatprep.subr.mxu0 0.0
  %5141 = vmatpush1.msra.mxu0 0.0
  %5142 = vmatprep.subr.mxu0 0.0
  %5143 = vmatpush1.msra.mxu0 0.0
  %5144 = vmatprep.subr.mxu0 0.0
  %5145 = vmatpush1.msra.mxu0 0.0
  %5146 = vmatprep.subr.mxu0 0.0
  %5147 = vmatpush1.msra.mxu0 0.0
  %5148 = vmatprep.subr.mxu0 %v2534
  %5149 = vmatpush1.msra.mxu0 %v2531
  %5150 = vmatprep.subr.mxu0 %v2523
  %5151 = vmatpush1.msra.mxu0 %v2522
  %5152 = vmatprep.subr.mxu0 %v2521
  %5153 = vmatpush1.msra.mxu0 %v2520
  %5154 = vmatprep.subr.mxu0 %v2519
  %5155 = vmatpush1.msra.mxu0 %v2518
  %5156 = vmatprep.subr.mxu0 %v2517
  %5157 = vmatpush1.msra.mxu0 %v2516
  %5158 = vmatprep.subr.mxu0 %v2515
  %5159 = vmatpush1.msra.mxu0 %v2514
  %5160 = vmatprep.subr.mxu0 %v2513
  %5161 = vmatpush1.msra.mxu0 %v2512
  %5162 = vmatprep.subr.mxu0 %v2511
  %5163 = vmatpush1.msra.mxu0 %v2510
  %5164 = vmatprep.subr.mxu0 %v2509
  %5165 = vmatpush1.msra.mxu0 %v2508
  %5166 = vmatprep.subr.mxu0 %v2507
  %5167 = vmatpush1.msra.mxu0 %v2506
  %5168 = vmatprep.subr.mxu0 %v2505
  %5169 = vmatpush1.msra.mxu0 %v2504
  %5170 = vmatprep.subr.mxu0 %v2503
  %5171 = vmatpush1.msra.mxu0 %v2502
  %5172 = vmatprep.subr.mxu0 0.0
  %5173 = vmatpush2.msra.mxu0 0.0
  %5174 = vmatprep.subr.mxu0 0.0
  %5175 = vmatpush2.msra.mxu0 0.0
  %5176 = vmatprep.subr.mxu0 0.0
  %5177 = vmatpush2.msra.mxu0 0.0
  %5178 = vmatprep.subr.mxu0 0.0
  %5179 = vmatpush2.msra.mxu0 0.0
  %5180 = vmatprep.subr.mxu0 0.0
  %5181 = vmatpush2.msra.mxu0 0.0
  %5182 = vmatprep.subr.mxu0 0.0
  %5183 = vmatpush2.msra.mxu0 0.0
  %5184 = vmatprep.subr.mxu0 0.0
  %5185 = vmatpush2.msra.mxu0 0.0
  %5186 = vmatprep.subr.mxu0 0.0
  %5187 = vmatpush2.msra.mxu0 0.0
  %5188 = vmatprep.subr.mxu0 0.0
  %5189 = vmatpush2.msra.mxu0 0.0
  %5190 = vmatprep.subr.mxu0 0.0
  %5191 = vmatpush2.msra.mxu0 0.0
  %5192 = vmatprep.subr.mxu0 0.0
  %5193 = vmatpush2.msra.mxu0 0.0
  %5194 = vmatprep.subr.mxu0 0.0
  %5195 = vmatpush2.msra.mxu0 0.0
  %5196 = vmatprep.subr.mxu0 0.0
  %5197 = vmatpush2.msra.mxu0 0.0
  %5198 = vmatprep.subr.mxu0 0.0
  %5199 = vmatpush2.msra.mxu0 0.0
  %5200 = vmatprep.subr.mxu0 0.0
  %5201 = vmatpush2.msra.mxu0 0.0
  %5202 = vmatprep.subr.mxu0 0.0
  %5203 = vmatpush2.msra.mxu0 0.0
  %5204 = vmatprep.mubr.f32.mxu0 0.0
  %5205 = vmatmul.mubr.f32.gmra.mxu0 %v5067
  %v5206 = vpop.f32.mrf.mxu0
  %v5207 = vadd.f32 %v5136, %v5206
  %v5208 = vpop.f32.mrf.mxu0
  %v5209 = vadd.f32 %v5138, %v5208
  %5210 = vdwg.mxu0
  %v5211 = vsub.f32 0.0, %v5207
  %v5212 = vsub.f32 0.0, %v5209
  %v5213 = vmul.f32 %v5211, 1.442695
  %v5214 = vpow.pop %v5213
  %v5215 = vmul.f32 %v5212, 1.442695
  %v5216 = vpow.pop %v5215
  %v5217 = vadd.f32 %v5214, 1.0
  %v5218 = vadd.f32 %v5216, 1.0
  %v5219 = vrcp.pop %v5217
  %v5220 = vmul.f32 1.0, %v5219
  %v5221 = vrcp.pop %v5218
  %v5222 = vmul.f32 1.0, %v5221
  %v5225 = vcombine.low %v5220, %v5222
  %5227 = vst [vmem:[%s18] sm:$0x77] %v5225
  %v5228 = vld [vmem:[%s14] sm:$0xff]
  %v5229 = vld [vmem:[%s14 + $0x8] sm:$0xff]
  %v5230 = vld [vmem:[%s14 + $0x10] sm:$0xff]
  %v5231 = vld [vmem:[%s14 + $0x18] sm:$0xff]
  %v5232 = vld [vmem:[%s14 + $0x20] sm:$0xff]
  %v5233 = vld [vmem:[%s14 + $0x28] sm:$0xff]
  %v5234 = vld [vmem:[%s14 + $0x30] sm:$0xff]
  %v5235 = vld [vmem:[%s14 + $0x38] sm:$0xff]
  %v5236 = vld [vmem:[%s14 + $0x40] sm:$0xff]
  %v5237 = vld [vmem:[%s14 + $0x48] sm:$0xff]
  %v5238 = vld [vmem:[%s14 + $0x50] sm:$0xff]
  %v5239 = vld [vmem:[%s14 + $0x58] sm:$0xff]
  %v5240 = vld [vmem:[%s14 + $0x60] sm:$0xff]
  %v5241 = vld [vmem:[%s14 + $0x68] sm:$0xff]
  %v5242 = vld [vmem:[%s14 + $0x70] sm:$0xff]
  %v5243 = vld [vmem:[%s14 + $0x78] sm:$0xff]
  %v5244 = vld [vmem:[%s14 + $0x80] sm:$0xff]
  %v5245 = vld [vmem:[%s14 + $0x88] sm:$0xff]
  %v5246 = vld [vmem:[%s14 + $0x90] sm:$0xff]
  %v5247 = vld [vmem:[%s14 + $0x98] sm:$0xff]
  %v5248 = vld [vmem:[%s14 + $0xa0] sm:$0xff]
  %v5249 = vld [vmem:[%s14 + $0xa8] sm:$0xff]
  %v5250 = vld [vmem:[%s14 + $0xb0] sm:$0xff]
  %v5251 = vld [vmem:[%s14 + $0xb8] sm:$0xff]
  %v5252 = vld [vmem:[%s14 + $0xc0] sm:$0xff]
  %v5253 = vld [vmem:[%s14 + $0xc8] sm:$0xff]
  %v5254 = vld [vmem:[%s14 + $0xd0] sm:$0xff]
  %v5255 = vld [vmem:[%s14 + $0xd8] sm:$0xff]
  %v5256 = vld [vmem:[%s14 + $0xe0] sm:$0xff]
  %v5257 = vld [vmem:[%s14 + $0xe8] sm:$0xff]
  %v5258 = vld [vmem:[%s14 + $0xf0] sm:$0xff]
  %v5259 = vld [vmem:[%s14 + $0xf8] sm:$0xff]
  %v5260 = vld [vmem:[%s14 + $0x100] sm:$0xff]
  %v5261 = vld [vmem:[%s14 + $0x108] sm:$0xff]
  %v5262 = vld [vmem:[%s14 + $0x110] sm:$0xff]
  %v5263 = vld [vmem:[%s14 + $0x118] sm:$0xff]
  %v5264 = vld [vmem:[%s14 + $0x120] sm:$0xff]
  %v5265 = vld [vmem:[%s14 + $0x128] sm:$0xff]
  %v5266 = vld [vmem:[%s14 + $0x130] sm:$0xff]
  %v5267 = vld [vmem:[%s14 + $0x138] sm:$0xff]
  %v5268 = vld [vmem:[%s14 + $0x140] sm:$0xff]
  %v5269 = vld [vmem:[%s14 + $0x148] sm:$0xff]
  %v5270 = vld [vmem:[%s14 + $0x150] sm:$0xff]
  %v5271 = vld [vmem:[%s14 + $0x158] sm:$0xff]
  %v5272 = vld [vmem:[%s14 + $0x160] sm:$0xff]
  %v5273 = vld [vmem:[%s14 + $0x168] sm:$0xff]
  %v5274 = vld [vmem:[%s14 + $0x170] sm:$0xff]
  %v5275 = vld [vmem:[%s14 + $0x178] sm:$0xff]
  %v5276 = vld [vmem:[%s14 + $0x180] sm:$0xff]
  %v5277 = vld [vmem:[%s14 + $0x188] sm:$0xff]
  %v5278 = vld [vmem:[%s14 + $0x190] sm:$0xff]
  %v5279 = vld [vmem:[%s14 + $0x198] sm:$0xff]
  %v5280 = vld [vmem:[%s14 + $0x1a0] sm:$0xff]
  %v5281 = vld [vmem:[%s14 + $0x1a8] sm:$0xff]
  %v5282 = vld [vmem:[%s14 + $0x1b0] sm:$0xff]
  %v5283 = vld [vmem:[%s14 + $0x1b8] sm:$0xff]
  %v5284 = vld [vmem:[%s14 + $0x1c0] sm:$0xff]
  %v5285 = vld [vmem:[%s14 + $0x1c8] sm:$0xff]
  %v5286 = vld [vmem:[%s14 + $0x1d0] sm:$0xff]
  %v5287 = vld [vmem:[%s14 + $0x1d8] sm:$0xff]
  %v5288 = vld [vmem:[%s14 + $0x1e0] sm:$0xff]
  %v5289 = vld [vmem:[%s14 + $0x1e8] sm:$0xff]
  %v5290 = vld [vmem:[%s14 + $0x1f0] sm:$0xff]
  %v5291 = vld [vmem:[%s14 + $0x1f8] sm:$0xff]
  %v5292 = vld [vmem:[%s14 + $0x200] sm:$0xff]
  %v5293 = vld [vmem:[%s14 + $0x208] sm:$0xff]
  %v5294 = vld [vmem:[%s14 + $0x210] sm:$0xff]
  %v5295 = vld [vmem:[%s14 + $0x218] sm:$0xff]
  %v5296 = vld [vmem:[%s14 + $0x220] sm:$0xff]
  %v5297 = vld [vmem:[%s14 + $0x228] sm:$0xff]
  %v5298 = vld [vmem:[%s14 + $0x230] sm:$0xff]
  %v5299 = vld [vmem:[%s14 + $0x238] sm:$0xff]
  %v5300 = vld [vmem:[%s14 + $0x240] sm:$0xff]
  %v5301 = vld [vmem:[%s14 + $0x248] sm:$0xff]
  %v5302 = vld [vmem:[%s14 + $0x250] sm:$0xff]
  %v5303 = vld [vmem:[%s14 + $0x258] sm:$0xff]
  %v5304 = vld [vmem:[%s14 + $0x260] sm:$0xff]
  %v5305 = vld [vmem:[%s14 + $0x268] sm:$0xff]
  %v5306 = vld [vmem:[%s14 + $0x270] sm:$0xff]
  %v5307 = vld [vmem:[%s14 + $0x278] sm:$0xff]
  %v5308 = vld [vmem:[%s14 + $0x280] sm:$0xff]
  %v5309 = vld [vmem:[%s14 + $0x288] sm:$0xff]
  %v5310 = vld [vmem:[%s14 + $0x290] sm:$0xff]
  %v5311 = vld [vmem:[%s14 + $0x298] sm:$0xff]
  %v5312 = vld [vmem:[%s14 + $0x2a0] sm:$0xff]
  %v5313 = vld [vmem:[%s14 + $0x2a8] sm:$0xff]
  %v5314 = vld [vmem:[%s14 + $0x2b0] sm:$0xff]
  %v5315 = vld [vmem:[%s14 + $0x2b8] sm:$0xff]
  %v5316 = vld [vmem:[%s14 + $0x2c0] sm:$0xff]
  %v5317 = vld [vmem:[%s14 + $0x2c8] sm:$0xff]
  %v5318 = vld [vmem:[%s14 + $0x2d0] sm:$0xff]
  %v5319 = vld [vmem:[%s14 + $0x2d8] sm:$0xff]
  %v5320 = vld [vmem:[%s14 + $0x2e0] sm:$0xff]
  %v5321 = vld [vmem:[%s14 + $0x2e8] sm:$0xff]
  %v5322 = vld [vmem:[%s14 + $0x2f0] sm:$0xff]
  %v5323 = vld [vmem:[%s14 + $0x2f8] sm:$0xff]
  %v5324 = vld [vmem:[%s14 + $0x300] sm:$0xff]
  %v5325 = vld [vmem:[%s14 + $0x308] sm:$0xff]
  %v5326 = vld [vmem:[%s14 + $0x310] sm:$0xff]
  %v5327 = vld [vmem:[%s14 + $0x318] sm:$0xff]
  %v5328 = vld [vmem:[%s14 + $0x320] sm:$0xff]
  %v5329 = vld [vmem:[%s14 + $0x328] sm:$0xff]
  %v5330 = vld [vmem:[%s14 + $0x330] sm:$0xff]
  %v5331 = vld [vmem:[%s14 + $0x338] sm:$0xff]
  %v5332 = vld [vmem:[%s14 + $0x340] sm:$0xff]
  %v5333 = vld [vmem:[%s14 + $0x348] sm:$0xff]
  %v5334 = vld [vmem:[%s14 + $0x350] sm:$0xff]
  %v5335 = vld [vmem:[%s14 + $0x358] sm:$0xff]
  %v5336 = vld [vmem:[%s14 + $0x360] sm:$0xff]
  %v5337 = vld [vmem:[%s14 + $0x368] sm:$0xff]
  %v5338 = vld [vmem:[%s14 + $0x370] sm:$0xff]
  %v5339 = vld [vmem:[%s14 + $0x378] sm:$0xff]
  %v5340 = vld [vmem:[%s14 + $0x380] sm:$0xff]
  %v5341 = vld [vmem:[%s14 + $0x388] sm:$0xff]
  %v5342 = vld [vmem:[%s14 + $0x390] sm:$0xff]
  %v5343 = vld [vmem:[%s14 + $0x398] sm:$0xff]
  %v5344 = vld [vmem:[%s14 + $0x3a0] sm:$0xff]
  %v5345 = vld [vmem:[%s14 + $0x3a8] sm:$0xff]
  %v5346 = vld [vmem:[%s14 + $0x3b0] sm:$0xff]
  %v5347 = vld [vmem:[%s14 + $0x3b8] sm:$0xff]
  %v5348 = vld [vmem:[%s14 + $0x3c0] sm:$0xff]
  %v5349 = vld [vmem:[%s14 + $0x3c8] sm:$0xff]
  %v5350 = vld [vmem:[%s14 + $0x3d0] sm:$0xff]
  %v5351 = vld [vmem:[%s14 + $0x3d8] sm:$0xff]
  %v5352 = vld [vmem:[%s14 + $0x3e0] sm:$0xff]
  %v5353 = vld [vmem:[%s14 + $0x3e8] sm:$0xff]
  %v5354 = vld [vmem:[%s14 + $0x3f0] sm:$0xff]
  %v5355 = vld [vmem:[%s14 + $0x3f8] sm:$0xff]
  %5356 = vmatprep.subr.mxu0 %v5289
  %5357 = vmatpush1.msra.mxu0 %v5288
  %5358 = vmatprep.subr.mxu0 %v5285
  %5359 = vmatpush1.msra.mxu0 %v5284
  %5360 = vmatprep.subr.mxu0 %v5281
  %5361 = vmatpush1.msra.mxu0 %v5280
  %5362 = vmatprep.subr.mxu0 %v5277
  %5363 = vmatpush1.msra.mxu0 %v5276
  %5364 = vmatprep.subr.mxu0 %v5273
  %5365 = vmatpush1.msra.mxu0 %v5272
  %5366 = vmatprep.subr.mxu0 %v5269
  %5367 = vmatpush1.msra.mxu0 %v5268
  %5368 = vmatprep.subr.mxu0 %v5265
  %5369 = vmatpush1.msra.mxu0 %v5264
  %5370 = vmatprep.subr.mxu0 %v5261
  %5371 = vmatpush1.msra.mxu0 %v5260
  %5372 = vmatprep.subr.mxu0 %v5257
  %5373 = vmatpush1.msra.mxu0 %v5256
  %5374 = vmatprep.subr.mxu0 %v5253
  %5375 = vmatpush1.msra.mxu0 %v5252
  %5376 = vmatprep.subr.mxu0 %v5249
  %5377 = vmatpush1.msra.mxu0 %v5248
  %5378 = vmatprep.subr.mxu0 %v5245
  %5379 = vmatpush1.msra.mxu0 %v5244
  %5380 = vmatprep.subr.mxu0 %v5241
  %5381 = vmatpush1.msra.mxu0 %v5240
  %5382 = vmatprep.subr.mxu0 %v5237
  %5383 = vmatpush1.msra.mxu0 %v5236
  %5384 = vmatprep.subr.mxu0 %v5233
  %5385 = vmatpush1.msra.mxu0 %v5232
  %5386 = vmatprep.subr.mxu0 %v5229
  %5387 = vmatpush1.msra.mxu0 %v5228
  %5388 = vmatprep.subr.mxu0 %v5353
  %5389 = vmatpush2.msra.mxu0 %v5352
  %5390 = vmatprep.subr.mxu0 %v5349
  %5391 = vmatpush2.msra.mxu0 %v5348
  %5392 = vmatprep.subr.mxu0 %v5345
  %5393 = vmatpush2.msra.mxu0 %v5344
  %5394 = vmatprep.subr.mxu0 %v5341
  %5395 = vmatpush2.msra.mxu0 %v5340
  %5396 = vmatprep.subr.mxu0 %v5337
  %5397 = vmatpush2.msra.mxu0 %v5336
  %5398 = vmatprep.subr.mxu0 %v5333
  %5399 = vmatpush2.msra.mxu0 %v5332
  %5400 = vmatprep.subr.mxu0 %v5329
  %5401 = vmatpush2.msra.mxu0 %v5328
  %5402 = vmatprep.subr.mxu0 %v5325
  %5403 = vmatpush2.msra.mxu0 %v5324
  %5404 = vmatprep.subr.mxu0 %v5321
  %5405 = vmatpush2.msra.mxu0 %v5320
  %5406 = vmatprep.subr.mxu0 %v5317
  %5407 = vmatpush2.msra.mxu0 %v5316
  %5408 = vmatprep.subr.mxu0 %v5313
  %5409 = vmatpush2.msra.mxu0 %v5312
  %5410 = vmatprep.subr.mxu0 %v5309
  %5411 = vmatpush2.msra.mxu0 %v5308
  %5412 = vmatprep.subr.mxu0 %v5305
  %5413 = vmatpush2.msra.mxu0 %v5304
  %5414 = vmatprep.subr.mxu0 %v5301
  %5415 = vmatpush2.msra.mxu0 %v5300
  %5416 = vmatprep.subr.mxu0 %v5297
  %5417 = vmatpush2.msra.mxu0 %v5296
  %5418 = vmatprep.subr.mxu0 %v5293
  %5419 = vmatpush2.msra.mxu0 %v5292
  %5420 = vmatprep.mubr.f32.mxu0 %v3899
  %5421 = vmatmul.mubr.f32.gmra.mxu0 %v3898
  %v5422 = vpop.f32.mrf.mxu0
  %v5423 = vadd.f32 0.0, %v5422
  %v5424 = vpop.f32.mrf.mxu0
  %v5425 = vadd.f32 0.0, %v5424
  %5426 = vdwg.mxu0
  %5427 = vmatprep.subr.mxu0 %v5291
  %5428 = vmatpush1.msra.mxu0 %v5290
  %5429 = vmatprep.subr.mxu0 %v5287
  %5430 = vmatpush1.msra.mxu0 %v5286
  %5431 = vmatprep.subr.mxu0 %v5283
  %5432 = vmatpush1.msra.mxu0 %v5282
  %5433 = vmatprep.subr.mxu0 %v5279
  %5434 = vmatpush1.msra.mxu0 %v5278
  %5435 = vmatprep.subr.mxu0 %v5275
  %5436 = vmatpush1.msra.mxu0 %v5274
  %5437 = vmatprep.subr.mxu0 %v5271
  %5438 = vmatpush1.msra.mxu0 %v5270
  %5439 = vmatprep.subr.mxu0 %v5267
  %5440 = vmatpush1.msra.mxu0 %v5266
  %5441 = vmatprep.subr.mxu0 %v5263
  %5442 = vmatpush1.msra.mxu0 %v5262
  %5443 = vmatprep.subr.mxu0 %v5259
  %5444 = vmatpush1.msra.mxu0 %v5258
  %5445 = vmatprep.subr.mxu0 %v5255
  %5446 = vmatpush1.msra.mxu0 %v5254
  %5447 = vmatprep.subr.mxu0 %v5251
  %5448 = vmatpush1.msra.mxu0 %v5250
  %5449 = vmatprep.subr.mxu0 %v5247
  %5450 = vmatpush1.msra.mxu0 %v5246
  %5451 = vmatprep.subr.mxu0 %v5243
  %5452 = vmatpush1.msra.mxu0 %v5242
  %5453 = vmatprep.subr.mxu0 %v5239
  %5454 = vmatpush1.msra.mxu0 %v5238
  %5455 = vmatprep.subr.mxu0 %v5235
  %5456 = vmatpush1.msra.mxu0 %v5234
  %5457 = vmatprep.subr.mxu0 %v5231
  %5458 = vmatpush1.msra.mxu0 %v5230
  %5459 = vmatprep.subr.mxu0 %v5355
  %5460 = vmatpush2.msra.mxu0 %v5354
  %5461 = vmatprep.subr.mxu0 %v5351
  %5462 = vmatpush2.msra.mxu0 %v5350
  %5463 = vmatprep.subr.mxu0 %v5347
  %5464 = vmatpush2.msra.mxu0 %v5346
  %5465 = vmatprep.subr.mxu0 %v5343
  %5466 = vmatpush2.msra.mxu0 %v5342
  %5467 = vmatprep.subr.mxu0 %v5339
  %5468 = vmatpush2.msra.mxu0 %v5338
  %5469 = vmatprep.subr.mxu0 %v5335
  %5470 = vmatpush2.msra.mxu0 %v5334
  %5471 = vmatprep.subr.mxu0 %v5331
  %5472 = vmatpush2.msra.mxu0 %v5330
  %5473 = vmatprep.subr.mxu0 %v5327
  %5474 = vmatpush2.msra.mxu0 %v5326
  %5475 = vmatprep.subr.mxu0 %v5323
  %5476 = vmatpush2.msra.mxu0 %v5322
  %5477 = vmatprep.subr.mxu0 %v5319
  %5478 = vmatpush2.msra.mxu0 %v5318
  %5479 = vmatprep.subr.mxu0 %v5315
  %5480 = vmatpush2.msra.mxu0 %v5314
  %5481 = vmatprep.subr.mxu0 %v5311
  %5482 = vmatpush2.msra.mxu0 %v5310
  %5483 = vmatprep.subr.mxu0 %v5307
  %5484 = vmatpush2.msra.mxu0 %v5306
  %5485 = vmatprep.subr.mxu0 %v5303
  %5486 = vmatpush2.msra.mxu0 %v5302
  %5487 = vmatprep.subr.mxu0 %v5299
  %5488 = vmatpush2.msra.mxu0 %v5298
  %5489 = vmatprep.subr.mxu0 %v5295
  %5490 = vmatpush2.msra.mxu0 %v5294
  %5491 = vmatprep.mubr.f32.mxu0 %v3899
  %5492 = vmatmul.mubr.f32.gmra.mxu0 %v3898
  %v5493 = vpop.f32.mrf.mxu0
  %v5494 = vadd.f32 0.0, %v5493
  %v5495 = vpop.f32.mrf.mxu0
  %v5496 = vadd.f32 0.0, %v5495
  %5497 = vdwg.mxu0
  %5501 = vrot.lane.b32.xlu0 %v5423, 127
  %v5502 = vpop.permute.xlu0 %5501
  %5503 = vrot.lane.b32.xlu0 %v5425, 127
  %v5504 = vpop.permute.xlu0 %5503
  %5505 = vrot.lane.b32.xlu0 %v5494, 127
  %v5506 = vpop.permute.xlu0 %5505
  %v5507 = vsel %vm321, %v5502, %v5504
  %v5508 = vsel %vm321, %v5504, %v5506
  %5512 = vrot.lane.b32.xlu0 %v5423, 126
  %v5513 = vpop.permute.xlu0 %5512
  %5514 = vrot.lane.b32.xlu0 %v5425, 126
  %v5515 = vpop.permute.xlu0 %5514
  %5516 = vrot.lane.b32.xlu0 %v5494, 126
  %v5517 = vpop.permute.xlu0 %5516
  %v5518 = vsel %vm325, %v5513, %v5515
  %v5519 = vsel %vm325, %v5515, %v5517
  %5523 = vrot.lane.b32.xlu0 %v5423, 125
  %v5524 = vpop.permute.xlu0 %5523
  %5525 = vrot.lane.b32.xlu0 %v5425, 125
  %v5526 = vpop.permute.xlu0 %5525
  %5527 = vrot.lane.b32.xlu0 %v5494, 125
  %v5528 = vpop.permute.xlu0 %5527
  %v5529 = vsel %vm329, %v5524, %v5526
  %v5530 = vsel %vm329, %v5526, %v5528
  %5534 = vrot.lane.b32.xlu0 %v5423, 124
  %v5535 = vpop.permute.xlu0 %5534
  %5536 = vrot.lane.b32.xlu0 %v5425, 124
  %v5537 = vpop.permute.xlu0 %5536
  %5538 = vrot.lane.b32.xlu0 %v5494, 124
  %v5539 = vpop.permute.xlu0 %5538
  %v5540 = vsel %vm333, %v5535, %v5537
  %v5541 = vsel %vm333, %v5537, %v5539
  %5545 = vrot.lane.b32.xlu0 %v5423, 123
  %v5546 = vpop.permute.xlu0 %5545
  %5547 = vrot.lane.b32.xlu0 %v5425, 123
  %v5548 = vpop.permute.xlu0 %5547
  %5549 = vrot.lane.b32.xlu0 %v5494, 123
  %v5550 = vpop.permute.xlu0 %5549
  %v5551 = vsel %vm337, %v5546, %v5548
  %v5552 = vsel %vm337, %v5548, %v5550
  %5556 = vrot.lane.b32.xlu0 %v5423, 122
  %v5557 = vpop.permute.xlu0 %5556
  %5558 = vrot.lane.b32.xlu0 %v5425, 122
  %v5559 = vpop.permute.xlu0 %5558
  %5560 = vrot.lane.b32.xlu0 %v5494, 122
  %v5561 = vpop.permute.xlu0 %5560
  %v5562 = vsel %vm341, %v5557, %v5559
  %v5563 = vsel %vm341, %v5559, %v5561
  %5568 = vrot.lane.b32.xlu0 %v5496, 127
  %v5569 = vpop.permute.xlu0 %5568
  %v5570 = vsel %vm321, %v5506, %v5569
  %5571 = vrot.lane.b32.xlu0 %v5496, 126
  %v5572 = vpop.permute.xlu0 %5571
  %v5573 = vsel %vm325, %v5517, %v5572
  %5574 = vrot.lane.b32.xlu0 %v5496, 125
  %v5575 = vpop.permute.xlu0 %5574
  %v5576 = vsel %vm329, %v5528, %v5575
  %5577 = vrot.lane.b32.xlu0 %v5496, 124
  %v5578 = vpop.permute.xlu0 %5577
  %v5579 = vsel %vm333, %v5539, %v5578
  %5580 = vrot.lane.b32.xlu0 %v5496, 123
  %v5581 = vpop.permute.xlu0 %5580
  %v5582 = vsel %vm337, %v5550, %v5581
  %5583 = vrot.lane.b32.xlu0 %v5496, 122
  %v5584 = vpop.permute.xlu0 %5583
  %v5585 = vsel %vm341, %v5561, %v5584
  %5586 = vrot.lane.b32.xlu0 %v5423, 106
  %v5587 = vpop.permute.xlu0 %5586
  %5588 = vrot.lane.b32.xlu0 %v5425, 106
  %v5589 = vpop.permute.xlu0 %5588
  %5590 = vrot.lane.b32.xlu0 %v5494, 106
  %v5591 = vpop.permute.xlu0 %5590
  %5592 = vrot.lane.b32.xlu0 %v5507, 106
  %v5593 = vpop.permute.xlu0 %5592
  %5594 = vrot.lane.b32.xlu0 %v5508, 106
  %v5595 = vpop.permute.xlu0 %5594
  %5596 = vrot.lane.b32.xlu0 %v5506, 106
  %v5597 = vpop.permute.xlu0 %5596
  %5598 = vrot.lane.b32.xlu0 %v5518, 106
  %v5599 = vpop.permute.xlu0 %5598
  %5600 = vrot.lane.b32.xlu0 %v5519, 106
  %v5601 = vpop.permute.xlu0 %5600
  %5602 = vrot.lane.b32.xlu0 %v5517, 106
  %v5603 = vpop.permute.xlu0 %5602
  %5604 = vrot.lane.b32.xlu0 %v5529, 106
  %v5605 = vpop.permute.xlu0 %5604
  %5606 = vrot.lane.b32.xlu0 %v5530, 106
  %v5607 = vpop.permute.xlu0 %5606
  %5608 = vrot.lane.b32.xlu0 %v5528, 106
  %v5609 = vpop.permute.xlu0 %5608
  %5610 = vrot.lane.b32.xlu0 %v5540, 106
  %v5611 = vpop.permute.xlu0 %5610
  %5612 = vrot.lane.b32.xlu0 %v5541, 106
  %v5613 = vpop.permute.xlu0 %5612
  %5614 = vrot.lane.b32.xlu0 %v5539, 106
  %v5615 = vpop.permute.xlu0 %5614
  %5616 = vrot.lane.b32.xlu0 %v5551, 106
  %v5617 = vpop.permute.xlu0 %5616
  %5618 = vrot.lane.b32.xlu0 %v5552, 106
  %v5619 = vpop.permute.xlu0 %5618
  %5620 = vrot.lane.b32.xlu0 %v5550, 106
  %v5621 = vpop.permute.xlu0 %5620
  %5622 = vrot.lane.b32.xlu0 %v5562, 106
  %v5623 = vpop.permute.xlu0 %5622
  %5624 = vrot.lane.b32.xlu0 %v5563, 106
  %v5625 = vpop.permute.xlu0 %5624
  %5626 = vrot.lane.b32.xlu0 %v5561, 106
  %v5627 = vpop.permute.xlu0 %5626
  %v5628 = vsel %vm721, %v5587, %v5589
  %v5629 = vsel %vm721, %v5589, %v5591
  %v5630 = vsel %vm721, %v5593, %v5595
  %v5631 = vsel %vm721, %v5595, %v5597
  %v5632 = vsel %vm721, %v5599, %v5601
  %v5633 = vsel %vm721, %v5601, %v5603
  %v5634 = vsel %vm721, %v5605, %v5607
  %v5635 = vsel %vm721, %v5607, %v5609
  %v5636 = vsel %vm721, %v5611, %v5613
  %v5637 = vsel %vm721, %v5613, %v5615
  %v5638 = vsel %vm721, %v5617, %v5619
  %v5639 = vsel %vm721, %v5619, %v5621
  %v5640 = vsel %vm721, %v5623, %v5625
  %v5641 = vsel %vm721, %v5625, %v5627
  %5663 = vrot.lane.b32.xlu0 %v5423, 84
  %v5664 = vpop.permute.xlu0 %5663
  %5665 = vrot.lane.b32.xlu0 %v5425, 84
  %v5666 = vpop.permute.xlu0 %5665
  %5667 = vrot.lane.b32.xlu0 %v5494, 84
  %v5668 = vpop.permute.xlu0 %5667
  %5669 = vrot.lane.b32.xlu0 %v5496, 84
  %v5670 = vpop.permute.xlu0 %5669
  %5671 = vrot.lane.b32.xlu0 %v5507, 84
  %v5672 = vpop.permute.xlu0 %5671
  %5673 = vrot.lane.b32.xlu0 %v5508, 84
  %v5674 = vpop.permute.xlu0 %5673
  %5675 = vrot.lane.b32.xlu0 %v5570, 84
  %v5676 = vpop.permute.xlu0 %5675
  %5677 = vrot.lane.b32.xlu0 %v5569, 84
  %v5678 = vpop.permute.xlu0 %5677
  %5679 = vrot.lane.b32.xlu0 %v5518, 84
  %v5680 = vpop.permute.xlu0 %5679
  %5681 = vrot.lane.b32.xlu0 %v5519, 84
  %v5682 = vpop.permute.xlu0 %5681
  %5683 = vrot.lane.b32.xlu0 %v5573, 84
  %v5684 = vpop.permute.xlu0 %5683
  %5685 = vrot.lane.b32.xlu0 %v5572, 84
  %v5686 = vpop.permute.xlu0 %5685
  %5687 = vrot.lane.b32.xlu0 %v5529, 84
  %v5688 = vpop.permute.xlu0 %5687
  %5689 = vrot.lane.b32.xlu0 %v5530, 84
  %v5690 = vpop.permute.xlu0 %5689
  %5691 = vrot.lane.b32.xlu0 %v5576, 84
  %v5692 = vpop.permute.xlu0 %5691
  %5693 = vrot.lane.b32.xlu0 %v5575, 84
  %v5694 = vpop.permute.xlu0 %5693
  %5695 = vrot.lane.b32.xlu0 %v5540, 84
  %v5696 = vpop.permute.xlu0 %5695
  %5697 = vrot.lane.b32.xlu0 %v5541, 84
  %v5698 = vpop.permute.xlu0 %5697
  %5699 = vrot.lane.b32.xlu0 %v5579, 84
  %v5700 = vpop.permute.xlu0 %5699
  %5701 = vrot.lane.b32.xlu0 %v5578, 84
  %v5702 = vpop.permute.xlu0 %5701
  %5703 = vrot.lane.b32.xlu0 %v5551, 84
  %v5704 = vpop.permute.xlu0 %5703
  %5705 = vrot.lane.b32.xlu0 %v5552, 84
  %v5706 = vpop.permute.xlu0 %5705
  %5707 = vrot.lane.b32.xlu0 %v5582, 84
  %v5708 = vpop.permute.xlu0 %5707
  %5709 = vrot.lane.b32.xlu0 %v5581, 84
  %v5710 = vpop.permute.xlu0 %5709
  %5711 = vrot.lane.b32.xlu0 %v5562, 84
  %v5712 = vpop.permute.xlu0 %5711
  %5713 = vrot.lane.b32.xlu0 %v5563, 84
  %v5714 = vpop.permute.xlu0 %5713
  %5715 = vrot.lane.b32.xlu0 %v5585, 84
  %v5716 = vpop.permute.xlu0 %5715
  %5717 = vrot.lane.b32.xlu0 %v5584, 84
  %v5718 = vpop.permute.xlu0 %5717
  %v5719 = vsel %vm1766, %v5664, %v5666
  %v5720 = vsel %vm1766, %v5666, %v5668
  %v5721 = vsel %vm1766, %v5668, %v5670
  %v5722 = vsel %vm1766, %v5672, %v5674
  %v5723 = vsel %vm1766, %v5674, %v5676
  %v5724 = vsel %vm1766, %v5676, %v5678
  %v5725 = vsel %vm1766, %v5680, %v5682
  %v5726 = vsel %vm1766, %v5682, %v5684
  %v5727 = vsel %vm1766, %v5684, %v5686
  %v5728 = vsel %vm1766, %v5688, %v5690
  %v5729 = vsel %vm1766, %v5690, %v5692
  %v5730 = vsel %vm1766, %v5692, %v5694
  %v5731 = vsel %vm1766, %v5696, %v5698
  %v5732 = vsel %vm1766, %v5698, %v5700
  %v5733 = vsel %vm1766, %v5700, %v5702
  %v5734 = vsel %vm1766, %v5704, %v5706
  %v5735 = vsel %vm1766, %v5706, %v5708
  %v5736 = vsel %vm1766, %v5708, %v5710
  %v5737 = vsel %vm1766, %v5712, %v5714
  %v5738 = vsel %vm1766, %v5714, %v5716
  %v5739 = vsel %vm1766, %v5716, %v5718
  %5761 = vrot.lane.b32.xlu0 %v5423, 62
  %v5762 = vpop.permute.xlu0 %5761
  %5763 = vrot.lane.b32.xlu0 %v5425, 62
  %v5764 = vpop.permute.xlu0 %5763
  %5765 = vrot.lane.b32.xlu0 %v5494, 62
  %v5766 = vpop.permute.xlu0 %5765
  %5767 = vrot.lane.b32.xlu0 %v5496, 62
  %v5768 = vpop.permute.xlu0 %5767
  %5769 = vrot.lane.b32.xlu0 %v5507, 62
  %v5770 = vpop.permute.xlu0 %5769
  %5771 = vrot.lane.b32.xlu0 %v5508, 62
  %v5772 = vpop.permute.xlu0 %5771
  %5773 = vrot.lane.b32.xlu0 %v5570, 62
  %v5774 = vpop.permute.xlu0 %5773
  %5775 = vrot.lane.b32.xlu0 %v5569, 62
  %v5776 = vpop.permute.xlu0 %5775
  %5777 = vrot.lane.b32.xlu0 %v5518, 62
  %v5778 = vpop.permute.xlu0 %5777
  %5779 = vrot.lane.b32.xlu0 %v5519, 62
  %v5780 = vpop.permute.xlu0 %5779
  %5781 = vrot.lane.b32.xlu0 %v5573, 62
  %v5782 = vpop.permute.xlu0 %5781
  %5783 = vrot.lane.b32.xlu0 %v5572, 62
  %v5784 = vpop.permute.xlu0 %5783
  %5785 = vrot.lane.b32.xlu0 %v5529, 62
  %v5786 = vpop.permute.xlu0 %5785
  %5787 = vrot.lane.b32.xlu0 %v5530, 62
  %v5788 = vpop.permute.xlu0 %5787
  %5789 = vrot.lane.b32.xlu0 %v5576, 62
  %v5790 = vpop.permute.xlu0 %5789
  %5791 = vrot.lane.b32.xlu0 %v5575, 62
  %v5792 = vpop.permute.xlu0 %5791
  %5793 = vrot.lane.b32.xlu0 %v5540, 62
  %v5794 = vpop.permute.xlu0 %5793
  %5795 = vrot.lane.b32.xlu0 %v5541, 62
  %v5796 = vpop.permute.xlu0 %5795
  %5797 = vrot.lane.b32.xlu0 %v5579, 62
  %v5798 = vpop.permute.xlu0 %5797
  %5799 = vrot.lane.b32.xlu0 %v5578, 62
  %v5800 = vpop.permute.xlu0 %5799
  %5801 = vrot.lane.b32.xlu0 %v5551, 62
  %v5802 = vpop.permute.xlu0 %5801
  %5803 = vrot.lane.b32.xlu0 %v5552, 62
  %v5804 = vpop.permute.xlu0 %5803
  %5805 = vrot.lane.b32.xlu0 %v5582, 62
  %v5806 = vpop.permute.xlu0 %5805
  %5807 = vrot.lane.b32.xlu0 %v5581, 62
  %v5808 = vpop.permute.xlu0 %5807
  %5809 = vrot.lane.b32.xlu0 %v5562, 62
  %v5810 = vpop.permute.xlu0 %5809
  %5811 = vrot.lane.b32.xlu0 %v5563, 62
  %v5812 = vpop.permute.xlu0 %5811
  %5813 = vrot.lane.b32.xlu0 %v5585, 62
  %v5814 = vpop.permute.xlu0 %5813
  %5815 = vrot.lane.b32.xlu0 %v5584, 62
  %v5816 = vpop.permute.xlu0 %5815
  %v5817 = vsel %vm1865, %v5762, %v5764
  %v5818 = vsel %vm1865, %v5764, %v5766
  %v5819 = vsel %vm1865, %v5766, %v5768
  %v5820 = vsel %vm1865, %v5770, %v5772
  %v5821 = vsel %vm1865, %v5772, %v5774
  %v5822 = vsel %vm1865, %v5774, %v5776
  %v5823 = vsel %vm1865, %v5778, %v5780
  %v5824 = vsel %vm1865, %v5780, %v5782
  %v5825 = vsel %vm1865, %v5782, %v5784
  %v5826 = vsel %vm1865, %v5786, %v5788
  %v5827 = vsel %vm1865, %v5788, %v5790
  %v5828 = vsel %vm1865, %v5790, %v5792
  %v5829 = vsel %vm1865, %v5794, %v5796
  %v5830 = vsel %vm1865, %v5796, %v5798
  %v5831 = vsel %vm1865, %v5798, %v5800
  %v5832 = vsel %vm1865, %v5802, %v5804
  %v5833 = vsel %vm1865, %v5804, %v5806
  %v5834 = vsel %vm1865, %v5806, %v5808
  %v5835 = vsel %vm1865, %v5810, %v5812
  %v5836 = vsel %vm1865, %v5812, %v5814
  %v5837 = vsel %vm1865, %v5814, %v5816
  %5859 = vrot.lane.b32.xlu0 %v5423, 40
  %v5860 = vpop.permute.xlu0 %5859
  %5861 = vrot.lane.b32.xlu0 %v5425, 40
  %v5862 = vpop.permute.xlu0 %5861
  %5863 = vrot.lane.b32.xlu0 %v5494, 40
  %v5864 = vpop.permute.xlu0 %5863
  %5865 = vrot.lane.b32.xlu0 %v5496, 40
  %v5866 = vpop.permute.xlu0 %5865
  %5867 = vrot.lane.b32.xlu0 %v5507, 40
  %v5868 = vpop.permute.xlu0 %5867
  %5869 = vrot.lane.b32.xlu0 %v5508, 40
  %v5870 = vpop.permute.xlu0 %5869
  %5871 = vrot.lane.b32.xlu0 %v5570, 40
  %v5872 = vpop.permute.xlu0 %5871
  %5873 = vrot.lane.b32.xlu0 %v5569, 40
  %v5874 = vpop.permute.xlu0 %5873
  %5875 = vrot.lane.b32.xlu0 %v5518, 40
  %v5876 = vpop.permute.xlu0 %5875
  %5877 = vrot.lane.b32.xlu0 %v5519, 40
  %v5878 = vpop.permute.xlu0 %5877
  %5879 = vrot.lane.b32.xlu0 %v5573, 40
  %v5880 = vpop.permute.xlu0 %5879
  %5881 = vrot.lane.b32.xlu0 %v5572, 40
  %v5882 = vpop.permute.xlu0 %5881
  %5883 = vrot.lane.b32.xlu0 %v5529, 40
  %v5884 = vpop.permute.xlu0 %5883
  %5885 = vrot.lane.b32.xlu0 %v5530, 40
  %v5886 = vpop.permute.xlu0 %5885
  %5887 = vrot.lane.b32.xlu0 %v5576, 40
  %v5888 = vpop.permute.xlu0 %5887
  %5889 = vrot.lane.b32.xlu0 %v5575, 40
  %v5890 = vpop.permute.xlu0 %5889
  %5891 = vrot.lane.b32.xlu0 %v5540, 40
  %v5892 = vpop.permute.xlu0 %5891
  %5893 = vrot.lane.b32.xlu0 %v5541, 40
  %v5894 = vpop.permute.xlu0 %5893
  %5895 = vrot.lane.b32.xlu0 %v5579, 40
  %v5896 = vpop.permute.xlu0 %5895
  %5897 = vrot.lane.b32.xlu0 %v5578, 40
  %v5898 = vpop.permute.xlu0 %5897
  %5899 = vrot.lane.b32.xlu0 %v5551, 40
  %v5900 = vpop.permute.xlu0 %5899
  %5901 = vrot.lane.b32.xlu0 %v5552, 40
  %v5902 = vpop.permute.xlu0 %5901
  %5903 = vrot.lane.b32.xlu0 %v5582, 40
  %v5904 = vpop.permute.xlu0 %5903
  %5905 = vrot.lane.b32.xlu0 %v5581, 40
  %v5906 = vpop.permute.xlu0 %5905
  %5907 = vrot.lane.b32.xlu0 %v5562, 40
  %v5908 = vpop.permute.xlu0 %5907
  %5909 = vrot.lane.b32.xlu0 %v5563, 40
  %v5910 = vpop.permute.xlu0 %5909
  %5911 = vrot.lane.b32.xlu0 %v5585, 40
  %v5912 = vpop.permute.xlu0 %5911
  %5913 = vrot.lane.b32.xlu0 %v5584, 40
  %v5914 = vpop.permute.xlu0 %5913
  %v5915 = vsel %vm1964, %v5860, %v5862
  %v5916 = vsel %vm1964, %v5862, %v5864
  %v5917 = vsel %vm1964, %v5864, %v5866
  %v5918 = vsel %vm1964, %v5868, %v5870
  %v5919 = vsel %vm1964, %v5870, %v5872
  %v5920 = vsel %vm1964, %v5872, %v5874
  %v5921 = vsel %vm1964, %v5876, %v5878
  %v5922 = vsel %vm1964, %v5878, %v5880
  %v5923 = vsel %vm1964, %v5880, %v5882
  %v5924 = vsel %vm1964, %v5884, %v5886
  %v5925 = vsel %vm1964, %v5886, %v5888
  %v5926 = vsel %vm1964, %v5888, %v5890
  %v5927 = vsel %vm1964, %v5892, %v5894
  %v5928 = vsel %vm1964, %v5894, %v5896
  %v5929 = vsel %vm1964, %v5896, %v5898
  %v5930 = vsel %vm1964, %v5900, %v5902
  %v5931 = vsel %vm1964, %v5902, %v5904
  %v5932 = vsel %vm1964, %v5904, %v5906
  %v5933 = vsel %vm1964, %v5908, %v5910
  %v5934 = vsel %vm1964, %v5910, %v5912
  %v5935 = vsel %vm1964, %v5912, %v5914
  %5957 = vrot.lane.b32.xlu0 %v5423, 18
  %v5958 = vpop.permute.xlu0 %5957
  %5959 = vrot.lane.b32.xlu0 %v5425, 18
  %v5960 = vpop.permute.xlu0 %5959
  %5961 = vrot.lane.b32.xlu0 %v5494, 18
  %v5962 = vpop.permute.xlu0 %5961
  %5963 = vrot.lane.b32.xlu0 %v5496, 18
  %v5964 = vpop.permute.xlu0 %5963
  %5965 = vrot.lane.b32.xlu0 %v5507, 18
  %v5966 = vpop.permute.xlu0 %5965
  %5967 = vrot.lane.b32.xlu0 %v5508, 18
  %v5968 = vpop.permute.xlu0 %5967
  %5969 = vrot.lane.b32.xlu0 %v5570, 18
  %v5970 = vpop.permute.xlu0 %5969
  %5971 = vrot.lane.b32.xlu0 %v5569, 18
  %v5972 = vpop.permute.xlu0 %5971
  %5973 = vrot.lane.b32.xlu0 %v5518, 18
  %v5974 = vpop.permute.xlu0 %5973
  %5975 = vrot.lane.b32.xlu0 %v5519, 18
  %v5976 = vpop.permute.xlu0 %5975
  %5977 = vrot.lane.b32.xlu0 %v5573, 18
  %v5978 = vpop.permute.xlu0 %5977
  %5979 = vrot.lane.b32.xlu0 %v5572, 18
  %v5980 = vpop.permute.xlu0 %5979
  %5981 = vrot.lane.b32.xlu0 %v5529, 18
  %v5982 = vpop.permute.xlu0 %5981
  %5983 = vrot.lane.b32.xlu0 %v5530, 18
  %v5984 = vpop.permute.xlu0 %5983
  %5985 = vrot.lane.b32.xlu0 %v5576, 18
  %v5986 = vpop.permute.xlu0 %5985
  %5987 = vrot.lane.b32.xlu0 %v5575, 18
  %v5988 = vpop.permute.xlu0 %5987
  %5989 = vrot.lane.b32.xlu0 %v5540, 18
  %v5990 = vpop.permute.xlu0 %5989
  %5991 = vrot.lane.b32.xlu0 %v5541, 18
  %v5992 = vpop.permute.xlu0 %5991
  %5993 = vrot.lane.b32.xlu0 %v5579, 18
  %v5994 = vpop.permute.xlu0 %5993
  %5995 = vrot.lane.b32.xlu0 %v5578, 18
  %v5996 = vpop.permute.xlu0 %5995
  %5997 = vrot.lane.b32.xlu0 %v5551, 18
  %v5998 = vpop.permute.xlu0 %5997
  %5999 = vrot.lane.b32.xlu0 %v5552, 18
  %v6000 = vpop.permute.xlu0 %5999
  %6001 = vrot.lane.b32.xlu0 %v5582, 18
  %v6002 = vpop.permute.xlu0 %6001
  %6003 = vrot.lane.b32.xlu0 %v5581, 18
  %v6004 = vpop.permute.xlu0 %6003
  %6005 = vrot.lane.b32.xlu0 %v5562, 18
  %v6006 = vpop.permute.xlu0 %6005
  %6007 = vrot.lane.b32.xlu0 %v5563, 18
  %v6008 = vpop.permute.xlu0 %6007
  %6009 = vrot.lane.b32.xlu0 %v5585, 18
  %v6010 = vpop.permute.xlu0 %6009
  %6011 = vrot.lane.b32.xlu0 %v5584, 18
  %v6012 = vpop.permute.xlu0 %6011
  %v6013 = vsel %vm2063, %v5958, %v5960
  %v6014 = vsel %vm2063, %v5960, %v5962
  %v6015 = vsel %vm2063, %v5962, %v5964
  %v6016 = vsel %vm2063, %v5966, %v5968
  %v6017 = vsel %vm2063, %v5968, %v5970
  %v6018 = vsel %vm2063, %v5970, %v5972
  %v6019 = vsel %vm2063, %v5974, %v5976
  %v6020 = vsel %vm2063, %v5976, %v5978
  %v6021 = vsel %vm2063, %v5978, %v5980
  %v6022 = vsel %vm2063, %v5982, %v5984
  %v6023 = vsel %vm2063, %v5984, %v5986
  %v6024 = vsel %vm2063, %v5986, %v5988
  %v6025 = vsel %vm2063, %v5990, %v5992
  %v6026 = vsel %vm2063, %v5992, %v5994
  %v6027 = vsel %vm2063, %v5994, %v5996
  %v6028 = vsel %vm2063, %v5998, %v6000
  %v6029 = vsel %vm2063, %v6000, %v6002
  %v6030 = vsel %vm2063, %v6002, %v6004
  %v6031 = vsel %vm2063, %v6006, %v6008
  %v6032 = vsel %vm2063, %v6008, %v6010
  %v6033 = vsel %vm2063, %v6010, %v6012
  %6055 = vrot.lane.b32.xlu0 %v5508, 124
  %v6056 = vpop.permute.xlu0 %6055
  %6057 = vrot.lane.b32.xlu0 %v5570, 124
  %v6058 = vpop.permute.xlu0 %6057
  %6059 = vrot.lane.b32.xlu0 %v5569, 124
  %v6060 = vpop.permute.xlu0 %6059
  %6061 = vrot.lane.b32.xlu0 %v5519, 124
  %v6062 = vpop.permute.xlu0 %6061
  %6063 = vrot.lane.b32.xlu0 %v5573, 124
  %v6064 = vpop.permute.xlu0 %6063
  %6065 = vrot.lane.b32.xlu0 %v5572, 124
  %v6066 = vpop.permute.xlu0 %6065
  %6067 = vrot.lane.b32.xlu0 %v5530, 124
  %v6068 = vpop.permute.xlu0 %6067
  %6069 = vrot.lane.b32.xlu0 %v5576, 124
  %v6070 = vpop.permute.xlu0 %6069
  %6071 = vrot.lane.b32.xlu0 %v5575, 124
  %v6072 = vpop.permute.xlu0 %6071
  %6073 = vrot.lane.b32.xlu0 %v5541, 124
  %v6074 = vpop.permute.xlu0 %6073
  %6075 = vrot.lane.b32.xlu0 %v5579, 124
  %v6076 = vpop.permute.xlu0 %6075
  %6077 = vrot.lane.b32.xlu0 %v5578, 124
  %v6078 = vpop.permute.xlu0 %6077
  %6079 = vrot.lane.b32.xlu0 %v5552, 124
  %v6080 = vpop.permute.xlu0 %6079
  %6081 = vrot.lane.b32.xlu0 %v5582, 124
  %v6082 = vpop.permute.xlu0 %6081
  %6083 = vrot.lane.b32.xlu0 %v5581, 124
  %v6084 = vpop.permute.xlu0 %6083
  %6085 = vrot.lane.b32.xlu0 %v5563, 124
  %v6086 = vpop.permute.xlu0 %6085
  %6087 = vrot.lane.b32.xlu0 %v5585, 124
  %v6088 = vpop.permute.xlu0 %6087
  %6089 = vrot.lane.b32.xlu0 %v5584, 124
  %v6090 = vpop.permute.xlu0 %6089
  %v6091 = vsel %vm333, %v6056, %v6058
  %v6092 = vsel %vm333, %v6058, %v6060
  %v6093 = vsel %vm333, %v6062, %v6064
  %v6094 = vsel %vm333, %v6064, %v6066
  %v6095 = vsel %vm333, %v6068, %v6070
  %v6096 = vsel %vm333, %v6070, %v6072
  %v6097 = vsel %vm333, %v6074, %v6076
  %v6098 = vsel %vm333, %v6076, %v6078
  %v6099 = vsel %vm333, %v6080, %v6082
  %v6100 = vsel %vm333, %v6082, %v6084
  %v6101 = vsel %vm333, %v6086, %v6088
  %v6102 = vsel %vm333, %v6088, %v6090
  %v6123 = vpack.c.bf16 %v5507, %v5423
  %v6124 = vpack.c.bf16 %v5508, %v5425
  %v6125 = vpack.c.bf16 %v5506, %v5494
  %v6126 = vpack.c.bf16 %v5529, %v5518
  %v6127 = vpack.c.bf16 %v5530, %v5519
  %v6128 = vpack.c.bf16 %v5528, %v5517
  %v6129 = vpack.c.bf16 %v5551, %v5540
  %v6130 = vpack.c.bf16 %v5552, %v5541
  %v6131 = vpack.c.bf16 %v5550, %v5539
  %v6132 = vpack.c.bf16 %v5628, %v5562
  %v6133 = vpack.c.bf16 %v5629, %v5563
  %v6134 = vpack.c.bf16 %v5591, %v5561
  %v6135 = vpack.c.bf16 %v5632, %v5630
  %v6136 = vpack.c.bf16 %v5633, %v5631
  %v6137 = vpack.c.bf16 %v5603, %v5597
  %v6138 = vpack.c.bf16 %v5636, %v5634
  %v6139 = vpack.c.bf16 %v5637, %v5635
  %v6140 = vpack.c.bf16 %v5615, %v5609
  %v6141 = vpack.c.bf16 %v5640, %v5638
  %v6142 = vpack.c.bf16 %v5641, %v5639
  %v6143 = vpack.c.bf16 %v5627, %v5621
  %v6144 = vpack.c.bf16 %v5722, %v5719
  %v6145 = vpack.c.bf16 %v5723, %v5720
  %v6146 = vpack.c.bf16 %v5724, %v5721
  %v6147 = vpack.c.bf16 %v5728, %v5725
  %v6148 = vpack.c.bf16 %v5729, %v5726
  %v6149 = vpack.c.bf16 %v5730, %v5727
  %v6150 = vpack.c.bf16 %v5734, %v5731
  %v6151 = vpack.c.bf16 %v5735, %v5732
  %v6152 = vpack.c.bf16 %v5736, %v5733
  %v6153 = vpack.c.bf16 %v5817, %v5737
  %v6154 = vpack.c.bf16 %v5818, %v5738
  %v6155 = vpack.c.bf16 %v5819, %v5739
  %v6156 = vpack.c.bf16 %v5823, %v5820
  %v6157 = vpack.c.bf16 %v5824, %v5821
  %v6158 = vpack.c.bf16 %v5825, %v5822
  %v6159 = vpack.c.bf16 %v5829, %v5826
  %v6160 = vpack.c.bf16 %v5830, %v5827
  %v6161 = vpack.c.bf16 %v5831, %v5828
  %v6162 = vpack.c.bf16 %v5835, %v5832
  %v6163 = vpack.c.bf16 %v5836, %v5833
  %v6164 = vpack.c.bf16 %v5837, %v5834
  %v6165 = vpack.c.bf16 %v5918, %v5915
  %v6166 = vpack.c.bf16 %v5919, %v5916
  %v6167 = vpack.c.bf16 %v5920, %v5917
  %v6168 = vpack.c.bf16 %v5924, %v5921
  %v6169 = vpack.c.bf16 %v5925, %v5922
  %v6170 = vpack.c.bf16 %v5926, %v5923
  %v6171 = vpack.c.bf16 %v5930, %v5927
  %v6172 = vpack.c.bf16 %v5931, %v5928
  %v6173 = vpack.c.bf16 %v5932, %v5929
  %v6174 = vpack.c.bf16 %v6013, %v5933
  %v6175 = vpack.c.bf16 %v6014, %v5934
  %v6176 = vpack.c.bf16 %v6015, %v5935
  %v6177 = vpack.c.bf16 %v6019, %v6016
  %v6178 = vpack.c.bf16 %v6020, %v6017
  %v6179 = vpack.c.bf16 %v6021, %v6018
  %v6180 = vpack.c.bf16 %v6025, %v6022
  %v6181 = vpack.c.bf16 %v6026, %v6023
  %v6182 = vpack.c.bf16 %v6027, %v6024
  %v6183 = vpack.c.bf16 %v6031, %v6028
  %v6184 = vpack.c.bf16 %v6032, %v6029
  %v6185 = vpack.c.bf16 %v6033, %v6030
  %v6186 = vpack.c.bf16 %v6091, %v5541
  %v6187 = vpack.c.bf16 %v6092, %v5579
  %v6188 = vpack.c.bf16 %v6060, %v5578
  %v6189 = vpack.c.bf16 %v6095, %v6093
  %v6190 = vpack.c.bf16 %v6096, %v6094
  %v6191 = vpack.c.bf16 %v6072, %v6066
  %v6192 = vpack.c.bf16 %v6099, %v6097
  %v6193 = vpack.c.bf16 %v6100, %v6098
  %v6194 = vpack.c.bf16 %v6084, %v6078
  %v6195 = vpack.c.bf16 %v6101, %v6101
  %v6196 = vpack.c.bf16 %v6102, %v6102
  %v6197 = vpack.c.bf16 %v6090, %v6090
  %v6198 = vld [vmem:[%s17] sm:$0xff]
  %v6200 = vcombine.high %v6198, %v6198
  %v6202 = vunpack.c.l.s4 1983009808
  %v6203 = vunpack.c.0.s8 %v6202
  %v6204 = vlaneseq
  %v6205 = vshrl.u32 %v6204, 7
  %v6206 = vsub.s32 %v6203, %v6205
  %v6207 = vrot.slane %v6198, %v6206
  %v6209 = vunpack.c.l.s4 1983009808
  %v6210 = vunpack.c.0.s8 %v6209
  %v6211 = vlaneseq
  %v6212 = vshrl.u32 %v6211, 7
  %v6213 = vsub.s32 %v6210, %v6212
  %v6214 = vrot.slane %v6200, %v6213
  %v6215 = vcombine.high %v6207, %v6207
  %v6216 = vcombine.high %v6214, %v6214
  %v6221 = vsel %vm619, %v6216, 0
  %v6224 = vsel %vm623, %v6195, 0
  %v6227 = vsel %vm623, %v6196, 0
  %v6230 = vsel %vm623, %v6197, 0
  %6232 = vmatprep.subr.bf16.mxu0 %v6145
  %6233 = vmatpush1.bf16.msra.mxu0 %v6144
  %6234 = vmatprep.subr.bf16.mxu0 %v6142
  %6235 = vmatpush1.bf16.msra.mxu0 %v6141
  %6236 = vmatprep.subr.bf16.mxu0 %v6139
  %6237 = vmatpush1.bf16.msra.mxu0 %v6138
  %6238 = vmatprep.subr.bf16.mxu0 %v6136
  %6239 = vmatpush1.bf16.msra.mxu0 %v6135
  %6240 = vmatprep.subr.bf16.mxu0 %v6133
  %6241 = vmatpush1.bf16.msra.mxu0 %v6132
  %6242 = vmatprep.subr.bf16.mxu0 %v6130
  %6243 = vmatpush1.bf16.msra.mxu0 %v6129
  %6244 = vmatprep.subr.bf16.mxu0 %v6127
  %6245 = vmatpush1.bf16.msra.mxu0 %v6126
  %6246 = vmatprep.subr.bf16.mxu0 %v6124
  %6247 = vmatpush1.bf16.msra.mxu0 %v6123
  %6248 = vmatprep.subr.bf16.mxu0 %v6169
  %6249 = vmatpush2.bf16.msra.mxu0 %v6168
  %6250 = vmatprep.subr.bf16.mxu0 %v6166
  %6251 = vmatpush2.bf16.msra.mxu0 %v6165
  %6252 = vmatprep.subr.bf16.mxu0 %v6163
  %6253 = vmatpush2.bf16.msra.mxu0 %v6162
  %6254 = vmatprep.subr.bf16.mxu0 %v6160
  %6255 = vmatpush2.bf16.msra.mxu0 %v6159
  %6256 = vmatprep.subr.bf16.mxu0 %v6157
  %6257 = vmatpush2.bf16.msra.mxu0 %v6156
  %6258 = vmatprep.subr.bf16.mxu0 %v6154
  %6259 = vmatpush2.bf16.msra.mxu0 %v6153
  %6260 = vmatprep.subr.bf16.mxu0 %v6151
  %6261 = vmatpush2.bf16.msra.mxu0 %v6150
  %6262 = vmatprep.subr.bf16.mxu0 %v6148
  %6263 = vmatpush2.bf16.msra.mxu0 %v6147
  %6264 = vmatprep.mubr.bf16.mxu0 %v6215
  %6265 = vmatmul.mubr.bf16.gmra.mxu0 %v6207
  %v6266 = vpop.f32.mrf.mxu0
  %v6267 = vadd.f32 0.0, %v6266
  %v6268 = vpop.f32.mrf.mxu0
  %v6269 = vadd.f32 0.0, %v6268
  %v6270 = vpop.f32.mrf.mxu0
  %v6271 = vpop.f32.mrf.mxu0
  %6272 = vdwg.mxu0
  %6273 = vmatprep.subr.bf16.mxu0 %v6193
  %6274 = vmatpush1.bf16.msra.mxu0 %v6192
  %6275 = vmatprep.subr.bf16.mxu0 %v6190
  %6276 = vmatpush1.bf16.msra.mxu0 %v6189
  %6277 = vmatprep.subr.bf16.mxu0 %v6187
  %6278 = vmatpush1.bf16.msra.mxu0 %v6186
  %6279 = vmatprep.subr.bf16.mxu0 %v6184
  %6280 = vmatpush1.bf16.msra.mxu0 %v6183
  %6281 = vmatprep.subr.bf16.mxu0 %v6181
  %6282 = vmatpush1.bf16.msra.mxu0 %v6180
  %6283 = vmatprep.subr.bf16.mxu0 %v6178
  %6284 = vmatpush1.bf16.msra.mxu0 %v6177
  %6285 = vmatprep.subr.bf16.mxu0 %v6175
  %6286 = vmatpush1.bf16.msra.mxu0 %v6174
  %6287 = vmatprep.subr.bf16.mxu0 %v6172
  %6288 = vmatpush1.bf16.msra.mxu0 %v6171
  %6289 = vmatprep.subr.bf16.mxu0 0
  %6290 = vmatpush2.bf16.msra.mxu0 0
  %6291 = vmatprep.subr.bf16.mxu0 0
  %6292 = vmatpush2.bf16.msra.mxu0 0
  %6293 = vmatprep.subr.bf16.mxu0 0
  %6294 = vmatpush2.bf16.msra.mxu0 0
  %6295 = vmatprep.subr.bf16.mxu0 0
  %6296 = vmatpush2.bf16.msra.mxu0 0
  %6297 = vmatprep.subr.bf16.mxu0 0
  %6298 = vmatpush2.bf16.msra.mxu0 0
  %6299 = vmatprep.subr.bf16.mxu0 0
  %6300 = vmatpush2.bf16.msra.mxu0 0
  %6301 = vmatprep.subr.bf16.mxu0 0
  %6302 = vmatpush2.bf16.msra.mxu0 0
  %6303 = vmatprep.subr.bf16.mxu0 %v6227
  %6304 = vmatpush2.bf16.msra.mxu0 %v6224
  %6305 = vmatprep.mubr.bf16.mxu0 %v6221
  %6306 = vmatmul.mubr.bf16.gmra.mxu0 %v6214
  %v6307 = vpop.f32.mrf.mxu0
  %v6308 = vadd.f32 %v6267, %v6307
  %v6309 = vpop.f32.mrf.mxu0
  %v6310 = vadd.f32 %v6269, %v6309
  %v6311 = vpop.f32.mrf.mxu0
  %v6312 = vpop.f32.mrf.mxu0
  %6313 = vdwg.mxu0
  %6314 = vmatprep.subr.bf16.mxu0 0
  %6315 = vmatpush1.bf16.msra.mxu0 %v6146
  %6316 = vmatprep.subr.bf16.mxu0 0
  %6317 = vmatpush1.bf16.msra.mxu0 %v6143
  %6318 = vmatprep.subr.bf16.mxu0 0
  %6319 = vmatpush1.bf16.msra.mxu0 %v6140
  %6320 = vmatprep.subr.bf16.mxu0 0
  %6321 = vmatpush1.bf16.msra.mxu0 %v6137
  %6322 = vmatprep.subr.bf16.mxu0 0
  %6323 = vmatpush1.bf16.msra.mxu0 %v6134
  %6324 = vmatprep.subr.bf16.mxu0 0
  %6325 = vmatpush1.bf16.msra.mxu0 %v6131
  %6326 = vmatprep.subr.bf16.mxu0 0
  %6327 = vmatpush1.bf16.msra.mxu0 %v6128
  %6328 = vmatprep.subr.bf16.mxu0 0
  %6329 = vmatpush1.bf16.msra.mxu0 %v6125
  %6330 = vmatprep.subr.bf16.mxu0 0
  %6331 = vmatpush2.bf16.msra.mxu0 %v6170
  %6332 = vmatprep.subr.bf16.mxu0 0
  %6333 = vmatpush2.bf16.msra.mxu0 %v6167
  %6334 = vmatprep.subr.bf16.mxu0 0
  %6335 = vmatpush2.bf16.msra.mxu0 %v6164
  %6336 = vmatprep.subr.bf16.mxu0 0
  %6337 = vmatpush2.bf16.msra.mxu0 %v6161
  %6338 = vmatprep.subr.bf16.mxu0 0
  %6339 = vmatpush2.bf16.msra.mxu0 %v6158
  %6340 = vmatprep.subr.bf16.mxu0 0
  %6341 = vmatpush2.bf16.msra.mxu0 %v6155
  %6342 = vmatprep.subr.bf16.mxu0 0
  %6343 = vmatpush2.bf16.msra.mxu0 %v6152
  %6344 = vmatprep.subr.bf16.mxu0 0
  %6345 = vmatpush2.bf16.msra.mxu0 %v6149
  %6346 = vmatprep.mubr.bf16.mxu0 %v6215
  %6347 = vmatmul.mubr.bf16.gmra.mxu0 %v6207
  %v6348 = vpop.f32.mrf.mxu0
  %v6349 = vadd.f32 0.0, %v6348
  %v6350 = vpop.f32.mrf.mxu0
  %v6351 = vpop.f32.mrf.mxu0
  %v6352 = vpop.f32.mrf.mxu0
  %6353 = vdwg.mxu0
  %6354 = vmatprep.subr.bf16.mxu0 0
  %6355 = vmatpush1.bf16.msra.mxu0 %v6194
  %6356 = vmatprep.subr.bf16.mxu0 0
  %6357 = vmatpush1.bf16.msra.mxu0 %v6191
  %6358 = vmatprep.subr.bf16.mxu0 0
  %6359 = vmatpush1.bf16.msra.mxu0 %v6188
  %6360 = vmatprep.subr.bf16.mxu0 0
  %6361 = vmatpush1.bf16.msra.mxu0 %v6185
  %6362 = vmatprep.subr.bf16.mxu0 0
  %6363 = vmatpush1.bf16.msra.mxu0 %v6182
  %6364 = vmatprep.subr.bf16.mxu0 0
  %6365 = vmatpush1.bf16.msra.mxu0 %v6179
  %6366 = vmatprep.subr.bf16.mxu0 0
  %6367 = vmatpush1.bf16.msra.mxu0 %v6176
  %6368 = vmatprep.subr.bf16.mxu0 0
  %6369 = vmatpush1.bf16.msra.mxu0 %v6173
  %6370 = vmatprep.subr.bf16.mxu0 0
  %6371 = vmatpush2.bf16.msra.mxu0 0
  %6372 = vmatprep.subr.bf16.mxu0 0
  %6373 = vmatpush2.bf16.msra.mxu0 0
  %6374 = vmatprep.subr.bf16.mxu0 0
  %6375 = vmatpush2.bf16.msra.mxu0 0
  %6376 = vmatprep.subr.bf16.mxu0 0
  %6377 = vmatpush2.bf16.msra.mxu0 0
  %6378 = vmatprep.subr.bf16.mxu0 0
  %6379 = vmatpush2.bf16.msra.mxu0 0
  %6380 = vmatprep.subr.bf16.mxu0 0
  %6381 = vmatpush2.bf16.msra.mxu0 0
  %6382 = vmatprep.subr.bf16.mxu0 0
  %6383 = vmatpush2.bf16.msra.mxu0 0
  %6384 = vmatprep.subr.bf16.mxu0 0
  %6385 = vmatpush2.bf16.msra.mxu0 %v6230
  %6386 = vmatprep.mubr.bf16.mxu0 %v6221
  %6387 = vmatmul.mubr.bf16.gmra.mxu0 %v6214
  %v6388 = vpop.f32.mrf.mxu0
  %v6389 = vadd.f32 %v6349, %v6388
  %v6390 = vpop.f32.mrf.mxu0
  %v6391 = vpop.f32.mrf.mxu0
  %v6392 = vpop.f32.mrf.mxu0
  %6393 = vdwg.mxu0
  %v6394 = vld [vmem:[%s13] sm:$0xff]
  %v6395 = vld [vmem:[%s13 + $0x8] sm:$0xff]
  %v6396 = vld [vmem:[%s13 + $0x10] sm:$0xff]
  %v6397 = vld [vmem:[%s13 + $0x18] sm:$0xff]
  %v6398 = vld [vmem:[%s13 + $0x20] sm:$0xff]
  %v6399 = vld [vmem:[%s13 + $0x28] sm:$0xff]
  %v6400 = vld [vmem:[%s13 + $0x30] sm:$0xff]
  %v6401 = vld [vmem:[%s13 + $0x38] sm:$0xff]
  %v6402 = vld [vmem:[%s13 + $0x40] sm:$0xff]
  %v6403 = vld [vmem:[%s13 + $0x48] sm:$0xff]
  %v6404 = vld [vmem:[%s13 + $0x50] sm:$0xff]
  %v6405 = vld [vmem:[%s13 + $0x58] sm:$0xff]
  %v6406 = vld [vmem:[%s13 + $0x60] sm:$0xff]
  %v6407 = vld [vmem:[%s13 + $0x68] sm:$0xff]
  %v6408 = vld [vmem:[%s13 + $0x70] sm:$0xff]
  %v6409 = vld [vmem:[%s13 + $0x78] sm:$0xff]
  %v6410 = vld [vmem:[%s13 + $0x80] sm:$0xff]
  %v6411 = vld [vmem:[%s13 + $0x88] sm:$0xff]
  %v6412 = vld [vmem:[%s13 + $0x90] sm:$0xff]
  %v6413 = vld [vmem:[%s13 + $0x98] sm:$0xff]
  %v6414 = vld [vmem:[%s13 + $0xa0] sm:$0xff]
  %v6415 = vld [vmem:[%s13 + $0xa8] sm:$0xff]
  %v6416 = vld [vmem:[%s13 + $0xb0] sm:$0xff]
  %v6417 = vld [vmem:[%s13 + $0xb8] sm:$0xff]
  %v6418 = vld [vmem:[%s13 + $0xc0] sm:$0xff]
  %v6419 = vld [vmem:[%s13 + $0xc8] sm:$0xff]
  %v6420 = vld [vmem:[%s13 + $0xd0] sm:$0xff]
  %v6421 = vld [vmem:[%s13 + $0xd8] sm:$0xff]
  %v6422 = vld [vmem:[%s13 + $0xe0] sm:$0xff]
  %v6423 = vld [vmem:[%s13 + $0xe8] sm:$0xff]
  %v6424 = vld [vmem:[%s13 + $0xf0] sm:$0xff]
  %v6425 = vld [vmem:[%s13 + $0xf8] sm:$0xff]
  %v6426 = vld [vmem:[%s13 + $0x100] sm:$0xff]
  %v6427 = vld [vmem:[%s13 + $0x108] sm:$0xff]
  %v6428 = vld [vmem:[%s13 + $0x110] sm:$0xff]
  %v6429 = vld [vmem:[%s13 + $0x118] sm:$0xff]
  %v6430 = vld [vmem:[%s13 + $0x120] sm:$0xff]
  %v6431 = vld [vmem:[%s13 + $0x128] sm:$0xff]
  %v6432 = vld [vmem:[%s13 + $0x130] sm:$0xff]
  %v6433 = vld [vmem:[%s13 + $0x138] sm:$0xff]
  %v6434 = vld [vmem:[%s13 + $0x140] sm:$0xff]
  %v6435 = vld [vmem:[%s13 + $0x148] sm:$0xff]
  %v6436 = vld [vmem:[%s13 + $0x150] sm:$0xff]
  %v6437 = vld [vmem:[%s13 + $0x158] sm:$0xff]
  %v6438 = vld [vmem:[%s13 + $0x160] sm:$0xff]
  %v6439 = vld [vmem:[%s13 + $0x168] sm:$0xff]
  %v6440 = vld [vmem:[%s13 + $0x170] sm:$0xff]
  %v6441 = vld [vmem:[%s13 + $0x178] sm:$0xff]
  %v6442 = vld [vmem:[%s13 + $0x180] sm:$0xff]
  %v6443 = vld [vmem:[%s13 + $0x188] sm:$0xff]
  %v6444 = vld [vmem:[%s13 + $0x190] sm:$0xff]
  %v6445 = vld [vmem:[%s13 + $0x198] sm:$0xff]
  %v6446 = vld [vmem:[%s13 + $0x1a0] sm:$0xff]
  %v6447 = vld [vmem:[%s13 + $0x1a8] sm:$0xff]
  %v6448 = vld [vmem:[%s13 + $0x1b0] sm:$0xff]
  %v6449 = vld [vmem:[%s13 + $0x1b8] sm:$0xff]
  %v6450 = vld [vmem:[%s13 + $0x1c0] sm:$0xff]
  %v6451 = vld [vmem:[%s13 + $0x1c8] sm:$0xff]
  %v6452 = vld [vmem:[%s13 + $0x1d0] sm:$0xff]
  %v6453 = vld [vmem:[%s13 + $0x1d8] sm:$0xff]
  %v6454 = vld [vmem:[%s13 + $0x1e0] sm:$0xff]
  %v6455 = vld [vmem:[%s13 + $0x1e8] sm:$0xff]
  %v6456 = vld [vmem:[%s13 + $0x1f0] sm:$0xff]
  %v6457 = vld [vmem:[%s13 + $0x1f8] sm:$0xff]
  %v6458 = vld [vmem:[%s13 + $0x200] sm:$0xff]
  %v6459 = vld [vmem:[%s13 + $0x208] sm:$0xff]
  %v6460 = vld [vmem:[%s13 + $0x210] sm:$0xff]
  %v6461 = vld [vmem:[%s13 + $0x218] sm:$0xff]
  %v6462 = vld [vmem:[%s13 + $0x220] sm:$0xff]
  %v6463 = vld [vmem:[%s13 + $0x228] sm:$0xff]
  %v6464 = vld [vmem:[%s13 + $0x230] sm:$0xff]
  %v6465 = vld [vmem:[%s13 + $0x238] sm:$0xff]
  %v6466 = vld [vmem:[%s13 + $0x240] sm:$0xff]
  %v6467 = vld [vmem:[%s13 + $0x248] sm:$0xff]
  %v6468 = vld [vmem:[%s13 + $0x250] sm:$0xff]
  %v6469 = vld [vmem:[%s13 + $0x258] sm:$0xff]
  %v6470 = vld [vmem:[%s13 + $0x260] sm:$0xff]
  %v6471 = vld [vmem:[%s13 + $0x268] sm:$0xff]
  %v6472 = vld [vmem:[%s13 + $0x270] sm:$0xff]
  %v6473 = vld [vmem:[%s13 + $0x278] sm:$0xff]
  %v6474 = vld [vmem:[%s13 + $0x280] sm:$0xff]
  %v6475 = vld [vmem:[%s13 + $0x288] sm:$0xff]
  %v6476 = vld [vmem:[%s13 + $0x290] sm:$0xff]
  %v6477 = vld [vmem:[%s13 + $0x298] sm:$0xff]
  %v6478 = vld [vmem:[%s13 + $0x2a0] sm:$0xff]
  %v6479 = vld [vmem:[%s13 + $0x2a8] sm:$0xff]
  %v6480 = vld [vmem:[%s13 + $0x2b0] sm:$0x3]
  %v6481 = vld [vmem:[%s13 + $0x2b8] sm:$0x3]
  %v6483 = vsel %vm2526, %v6389, 0
  %v6486 = vsel %vm725, %v6480, 0
  %v6489 = vsel %vm725, %v6481, 0
  %6491 = vmatprep.subr.mxu0 %v6425
  %6492 = vmatpush1.msra.mxu0 %v6424
  %6493 = vmatprep.subr.mxu0 %v6423
  %6494 = vmatpush1.msra.mxu0 %v6422
  %6495 = vmatprep.subr.mxu0 %v6421
  %6496 = vmatpush1.msra.mxu0 %v6420
  %6497 = vmatprep.subr.mxu0 %v6419
  %6498 = vmatpush1.msra.mxu0 %v6418
  %6499 = vmatprep.subr.mxu0 %v6417
  %6500 = vmatpush1.msra.mxu0 %v6416
  %6501 = vmatprep.subr.mxu0 %v6415
  %6502 = vmatpush1.msra.mxu0 %v6414
  %6503 = vmatprep.subr.mxu0 %v6413
  %6504 = vmatpush1.msra.mxu0 %v6412
  %6505 = vmatprep.subr.mxu0 %v6411
  %6506 = vmatpush1.msra.mxu0 %v6410
  %6507 = vmatprep.subr.mxu0 %v6409
  %6508 = vmatpush1.msra.mxu0 %v6408
  %6509 = vmatprep.subr.mxu0 %v6407
  %6510 = vmatpush1.msra.mxu0 %v6406
  %6511 = vmatprep.subr.mxu0 %v6405
  %6512 = vmatpush1.msra.mxu0 %v6404
  %6513 = vmatprep.subr.mxu0 %v6403
  %6514 = vmatpush1.msra.mxu0 %v6402
  %6515 = vmatprep.subr.mxu0 %v6401
  %6516 = vmatpush1.msra.mxu0 %v6400
  %6517 = vmatprep.subr.mxu0 %v6399
  %6518 = vmatpush1.msra.mxu0 %v6398
  %6519 = vmatprep.subr.mxu0 %v6397
  %6520 = vmatpush1.msra.mxu0 %v6396
  %6521 = vmatprep.subr.mxu0 %v6395
  %6522 = vmatpush1.msra.mxu0 %v6394
  %6523 = vmatprep.subr.mxu0 %v6457
  %6524 = vmatpush2.msra.mxu0 %v6456
  %6525 = vmatprep.subr.mxu0 %v6455
  %6526 = vmatpush2.msra.mxu0 %v6454
  %6527 = vmatprep.subr.mxu0 %v6453
  %6528 = vmatpush2.msra.mxu0 %v6452
  %6529 = vmatprep.subr.mxu0 %v6451
  %6530 = vmatpush2.msra.mxu0 %v6450
  %6531 = vmatprep.subr.mxu0 %v6449
  %6532 = vmatpush2.msra.mxu0 %v6448
  %6533 = vmatprep.subr.mxu0 %v6447
  %6534 = vmatpush2.msra.mxu0 %v6446
  %6535 = vmatprep.subr.mxu0 %v6445
  %6536 = vmatpush2.msra.mxu0 %v6444
  %6537 = vmatprep.subr.mxu0 %v6443
  %6538 = vmatpush2.msra.mxu0 %v6442
  %6539 = vmatprep.subr.mxu0 %v6441
  %6540 = vmatpush2.msra.mxu0 %v6440
  %6541 = vmatprep.subr.mxu0 %v6439
  %6542 = vmatpush2.msra.mxu0 %v6438
  %6543 = vmatprep.subr.mxu0 %v6437
  %6544 = vmatpush2.msra.mxu0 %v6436
  %6545 = vmatprep.subr.mxu0 %v6435
  %6546 = vmatpush2.msra.mxu0 %v6434
  %6547 = vmatprep.subr.mxu0 %v6433
  %6548 = vmatpush2.msra.mxu0 %v6432
  %6549 = vmatprep.subr.mxu0 %v6431
  %6550 = vmatpush2.msra.mxu0 %v6430
  %6551 = vmatprep.subr.mxu0 %v6429
  %6552 = vmatpush2.msra.mxu0 %v6428
  %6553 = vmatprep.subr.mxu0 %v6427
  %6554 = vmatpush2.msra.mxu0 %v6426
  %6555 = vmatprep.mubr.f32.mxu0 %v6310
  %6556 = vmatmul.mubr.f32.gmra.mxu0 %v6308
  %v6557 = vpop.f32.mrf.mxu0
  %v6558 = vadd.f32 0.0, %v6557
  %v6559 = vpop.f32.mrf.mxu0
  %v6560 = vadd.f32 0.0, %v6559
  %6561 = vdwg.mxu0
  %6562 = vmatprep.subr.mxu0 0.0
  %6563 = vmatpush1.msra.mxu0 0.0
  %6564 = vmatprep.subr.mxu0 0.0
  %6565 = vmatpush1.msra.mxu0 0.0
  %6566 = vmatprep.subr.mxu0 0.0
  %6567 = vmatpush1.msra.mxu0 0.0
  %6568 = vmatprep.subr.mxu0 0.0
  %6569 = vmatpush1.msra.mxu0 0.0
  %6570 = vmatprep.subr.mxu0 %v6489
  %6571 = vmatpush1.msra.mxu0 %v6486
  %6572 = vmatprep.subr.mxu0 %v6479
  %6573 = vmatpush1.msra.mxu0 %v6478
  %6574 = vmatprep.subr.mxu0 %v6477
  %6575 = vmatpush1.msra.mxu0 %v6476
  %6576 = vmatprep.subr.mxu0 %v6475
  %6577 = vmatpush1.msra.mxu0 %v6474
  %6578 = vmatprep.subr.mxu0 %v6473
  %6579 = vmatpush1.msra.mxu0 %v6472
  %6580 = vmatprep.subr.mxu0 %v6471
  %6581 = vmatpush1.msra.mxu0 %v6470
  %6582 = vmatprep.subr.mxu0 %v6469
  %6583 = vmatpush1.msra.mxu0 %v6468
  %6584 = vmatprep.subr.mxu0 %v6467
  %6585 = vmatpush1.msra.mxu0 %v6466
  %6586 = vmatprep.subr.mxu0 %v6465
  %6587 = vmatpush1.msra.mxu0 %v6464
  %6588 = vmatprep.subr.mxu0 %v6463
  %6589 = vmatpush1.msra.mxu0 %v6462
  %6590 = vmatprep.subr.mxu0 %v6461
  %6591 = vmatpush1.msra.mxu0 %v6460
  %6592 = vmatprep.subr.mxu0 %v6459
  %6593 = vmatpush1.msra.mxu0 %v6458
  %6594 = vmatprep.subr.mxu0 0.0
  %6595 = vmatpush2.msra.mxu0 0.0
  %6596 = vmatprep.subr.mxu0 0.0
  %6597 = vmatpush2.msra.mxu0 0.0
  %6598 = vmatprep.subr.mxu0 0.0
  %6599 = vmatpush2.msra.mxu0 0.0
  %6600 = vmatprep.subr.mxu0 0.0
  %6601 = vmatpush2.msra.mxu0 0.0
  %6602 = vmatprep.subr.mxu0 0.0
  %6603 = vmatpush2.msra.mxu0 0.0
  %6604 = vmatprep.subr.mxu0 0.0
  %6605 = vmatpush2.msra.mxu0 0.0
  %6606 = vmatprep.subr.mxu0 0.0
  %6607 = vmatpush2.msra.mxu0 0.0
  %6608 = vmatprep.subr.mxu0 0.0
  %6609 = vmatpush2.msra.mxu0 0.0
  %6610 = vmatprep.subr.mxu0 0.0
  %6611 = vmatpush2.msra.mxu0 0.0
  %6612 = vmatprep.subr.mxu0 0.0
  %6613 = vmatpush2.msra.mxu0 0.0
  %6614 = vmatprep.subr.mxu0 0.0
  %6615 = vmatpush2.msra.mxu0 0.0
  %6616 = vmatprep.subr.mxu0 0.0
  %6617 = vmatpush2.msra.mxu0 0.0
  %6618 = vmatprep.subr.mxu0 0.0
  %6619 = vmatpush2.msra.mxu0 0.0
  %6620 = vmatprep.subr.mxu0 0.0
  %6621 = vmatpush2.msra.mxu0 0.0
  %6622 = vmatprep.subr.mxu0 0.0
  %6623 = vmatpush2.msra.mxu0 0.0
  %6624 = vmatprep.subr.mxu0 0.0
  %6625 = vmatpush2.msra.mxu0 0.0
  %6626 = vmatprep.mubr.f32.mxu0 0.0
  %6627 = vmatmul.mubr.f32.gmra.mxu0 %v6483
  %v6628 = vpop.f32.mrf.mxu0
  %v6629 = vadd.f32 %v6558, %v6628
  %v6630 = vpop.f32.mrf.mxu0
  %v6631 = vadd.f32 %v6560, %v6630
  %6632 = vdwg.mxu0
  %v6633 = vsub.f32 0.0, %v6629
  %v6634 = vsub.f32 0.0, %v6631
  %v6635 = vmul.f32 %v6633, 1.442695
  %v6636 = vpow.pop %v6635
  %v6637 = vmul.f32 %v6634, 1.442695
  %v6638 = vpow.pop %v6637
  %v6639 = vadd.f32 %v6636, 1.0
  %v6640 = vadd.f32 %v6638, 1.0
  %v6641 = vrcp.pop %v6639
  %v6642 = vmul.f32 1.0, %v6641
  %v6643 = vrcp.pop %v6640
  %v6644 = vmul.f32 1.0, %v6643
  %v6647 = vcombine.low %v6642, %v6644
  %s6649 = scalar_lea.vmem %s18, 8
  %6650 = vst [vmem:[%s6649] sm:$0x77] %v6647
  // Predicated region
  $region74: #{tpu_custom_call.1} parent=0 // pred_check
    _
  $region75: #{tpu_custom_call.1} parent=0 // pred_check_branch
    %6652 = sbr.rel (0) target = $region77
  $region76: #{tpu_custom_call.1} parent=0 // pred_region
    _
  $region77: #{tpu_custom_call.1} parent=0 // pred_fallthru
    _
  // Predicated region
  $region78: #{tpu_custom_call.1} parent=0 // pred_check
    _
  $region79: #{tpu_custom_call.1} parent=0 // pred_check_branch
    %6654 = sbr.rel (0) target = $region81
  $region80: #{tpu_custom_call.1} parent=0 // pred_region
    _
  $region81: #{tpu_custom_call.1} parent=0 // pred_fallthru
    _

</llo_original>
